<compile_context>
chip_gen: v5e
topology: v5e:2x2
jax: 0.10.0
libtpu: 0.0.40
codegen_flags: <defaults>
</compile_context>

<pallas_src>
import jax
import jax.numpy as jnp
from jax.experimental import pallas as pl
from jax.experimental.pallas import tpu as pltpu

DFF = 1024  # self.dff in the PyTorch module


# ---------------------------------------------------------------------------
# Shared elementwise cell math (f32).  Mask gates only C_t, exactly as in the
# PyTorch module.
# ---------------------------------------------------------------------------
def _cell_math(I_tilde, F_tilde, O_tilde, Z_tilde, C_prev, M_prev, N_prev, mask):
    M_t = jnp.maximum(F_tilde + M_prev, I_tilde)
    I_t = jnp.exp(I_tilde - M_t)
    F_t = jnp.exp(F_tilde + M_prev - M_t)
    O_t = jax.nn.sigmoid(O_tilde)
    N_t = F_t * N_prev + I_t
    Z_t = jnp.tanh(Z_tilde)
    C_t = (C_prev * F_t + Z_t * I_t) * mask + (1.0 - mask) * C_prev
    # Exact division (same as the module).  HBM traffic, not EUP/VPU, is the
    # binding resource, so this costs nothing and avoids the N_t>=1 invariant
    # that approx-reciprocal would need.
    H_t = O_t * (C_t / N_t)
    return C_t, M_t, H_t, N_t


# ---------------------------------------------------------------------------
# Single-step kernel: one output-column tile (width tn) of the cell update.
# ---------------------------------------------------------------------------
def _lstm_cell_kernel(h_ref, z_ref, c_ref, mcap_ref, n_ref, m_ref,
                      w_ref, r_ref, b_ref,
                      ct_ref, mt_ref, ht_ref, nt_ref):
    tn = ct_ref.shape[-1]
    # Two MXU dots accumulating into one f32 result (gate columns [I|F|O|Z]).
    gates = jnp.dot(h_ref[...], w_ref[...], preferred_element_type=jnp.float32)
    gates = gates + jnp.dot(z_ref[...], r_ref[...],
                            preferred_element_type=jnp.float32)
    gates = gates + b_ref[...]                       # (1, 4*tn) broadcast

    C_t, M_t, H_t, N_t = _cell_math(
        gates[:, 0 * tn:1 * tn], gates[:, 1 * tn:2 * tn],
        gates[:, 2 * tn:3 * tn], gates[:, 3 * tn:4 * tn],
        c_ref[...], mcap_ref[...], n_ref[...], m_ref[...])

    ct_ref[...] = C_t
    mt_ref[...] = M_t
    ht_ref[...] = H_t
    nt_ref[...] = N_t


# ---------------------------------------------------------------------------
# Sequence kernel: grid=(T,), weights + state resident in VMEM across steps.
# ---------------------------------------------------------------------------
def _lstm_scan_kernel(z_ref, m_ref, w_ref, r_ref, b_ref,
                      c0_ref, m0_ref, h0_ref, n0_ref,
                      ct_ref, mt_ref, ht_ref, nt_ref,
                      h_st, c_st, mcap_st, n_st):
    dff = c_st.shape[-1]
    t = pl.program_id(0)

    @pl.when(t == 0)
    def _():
        h_st[...] = h0_ref[...]
        c_st[...] = c0_ref[...]
        mcap_st[...] = m0_ref[...]
        n_st[...] = n0_ref[...]

    gates = jnp.dot(h_st[...], w_ref[...], preferred_element_type=jnp.float32)
    gates = gates + jnp.dot(z_ref[0], r_ref[...],
                            preferred_element_type=jnp.float32)
    gates = gates + b_ref[...]

    C_t, M_t, H_t, N_t = _cell_math(
        gates[:, 0 * dff:1 * dff], gates[:, 1 * dff:2 * dff],
        gates[:, 2 * dff:3 * dff], gates[:, 3 * dff:4 * dff],
        c_st[...], mcap_st[...], n_st[...], m_ref[0])

    # Per-step outputs (f32, module semantics).
    ct_ref[0] = C_t
    mt_ref[0] = M_t
    ht_ref[0] = H_t
    nt_ref[0] = N_t

    # Recurrent state stays in VMEM; H in bf16 (what the next matmul consumes).
    c_st[...] = C_t
    mcap_st[...] = M_t
    n_st[...] = N_t
    h_st[...] = H_t.astype(h_st.dtype)


# ---------------------------------------------------------------------------
# One-time weight prep.  Fuse the 4 gates into column blocks [I|F|O|Z] per
# output tile of width tn and cast to bf16.  Call ONCE per model.
# ---------------------------------------------------------------------------
def prepare_gate_weights(W, R, b, *, tn=512, weight_dtype=jnp.bfloat16):
    """W: (4, dff, dff), R: (4, d_model, dff), b: (4, dff); (in,out) layout,
    gate order [I, F, O, Z].

    Returns:
      Wt: (dff//tn, dff,     4*tn)  weight tiles for the H path (weight_dtype)
      Rt: (dff//tn, d_model, 4*tn)  weight tiles for the Z path (weight_dtype)
      bT: (dff//tn, 1,       4*tn)  fused biases (f32)
    Use tn=DFF (single tile) for the resident-weight sequence kernel.
    """
    n_gates, dff, dff_out = W.shape
    d_model = R.shape[1]
    assert n_gates == 4 and dff == dff_out == DFF and dff % tn == 0
    n_tiles = dff // tn

    def tile(A):                                  # (4, Kin, dff) -> (nt, Kin, 4*tn)
        k_in = A.shape[1]
        A = A.reshape(4, k_in, n_tiles, tn)
        A = jnp.transpose(A, (2, 1, 0, 3))
        return A.reshape(n_tiles, k_in, 4 * tn).astype(weight_dtype)

    # TODO(synk): int8 (v5e/v6e) / fp8 (v7x) quantized weight paths.
    Wt = tile(W)
    Rt = tile(R)
    bT = b.reshape(4, n_tiles, tn)
    bT = jnp.transpose(bT, (1, 0, 2)).reshape(n_tiles, 1, 4 * tn)
    return Wt, Rt, bT.astype(jnp.float32)


# ---------------------------------------------------------------------------
# Single-step wrapper (exact CustomLSTMCell.forward).
# ---------------------------------------------------------------------------
def custom_lstm_cell(Zi, Ci, Mi, Hi, Ni, m, Wt, Rt, bT, *, patch_size, d_model):
    dff = DFF
    n_tiles, _, four_tn = Wt.shape
    tn = four_tn // 4
    assert n_tiles * tn == dff

    H2 = Hi.reshape(-1, dff).astype(Wt.dtype)
    Z2 = Zi.reshape(-1, d_model).astype(Wt.dtype)
    C2 = Ci.reshape(-1, dff).astype(jnp.float32)
    M2 = Mi.reshape(-1, dff).astype(jnp.float32)
    N2 = Ni.reshape(-1, dff).astype(jnp.float32)
    m2 = m.reshape(-1, 1).astype(jnp.float32)
    rows = H2.shape[0]

    state_spec = pl.BlockSpec((rows, tn), lambda j: (0, j))

    outs = pl.pallas_call(
        _lstm_cell_kernel,
        out_shape=[jax.ShapeDtypeStruct((rows, dff), jnp.float32)] * 4,
        grid_spec=pltpu.PrefetchScalarGridSpec(
            num_scalar_prefetch=0,
            grid=(n_tiles,),
            in_specs=[
                pl.BlockSpec((rows, dff), lambda j: (0, 0)),        # H_prev (bf16)
                pl.BlockSpec((rows, d_model), lambda j: (0, 0)),    # Zi (bf16)
                state_spec,                                         # C_prev tile
                state_spec,                                         # M_prev tile
                state_spec,                                         # N_prev tile
                pl.BlockSpec((rows, 1), lambda j: (0, 0)),          # mask
                pl.BlockSpec((pl.Squeezed(), dff, four_tn),
                             lambda j: (j, 0, 0)),                  # W tile
                pl.BlockSpec((pl.Squeezed(), d_model, four_tn),
                             lambda j: (j, 0, 0)),                  # R tile
                pl.BlockSpec((pl.Squeezed(), 1, four_tn),
                             lambda j: (j, 0, 0)),                  # bias tile
            ],
            out_specs=[state_spec] * 4,
        ),
        compiler_params=pltpu.CompilerParams(
            dimension_semantics=("parallel",),
            vmem_limit_bytes=32 * 1024 * 1024,   # tn=512 weight tile needs > v5e's 16 MiB default
        ),
    )(H2, Z2, C2, M2, N2, m2, Wt, Rt, bT)

    C_t, M_t, H_t, N_t = (o.reshape(-1, patch_size, dff) for o in outs)
    return C_t, M_t, H_t, N_t


# ---------------------------------------------------------------------------
# Sequence wrapper: T steps in ONE pallas_call; weights + state VMEM-resident.
# Requires weights prepared with tn=DFF (single tile).
# ---------------------------------------------------------------------------
def custom_lstm_cell_scan(Z_seq, C0, M0, H0, N0, m_seq, Wt, Rt, bT, *,
                          patch_size, d_model):
    dff = DFF
    n_tiles, _, four_dff = Wt.shape
    assert n_tiles == 1 and four_dff == 4 * dff, \
        "prepare_gate_weights(..., tn=DFF) for the resident-weight scan kernel"

    T = Z_seq.shape[0]
    C2 = C0.reshape(-1, dff).astype(jnp.float32)
    M2 = M0.reshape(-1, dff).astype(jnp.float32)
    N2 = N0.reshape(-1, dff).astype(jnp.float32)
    H2 = H0.reshape(-1, dff).astype(Wt.dtype)
    rows = C2.shape[0]
    Z3 = Z_seq.reshape(T, rows, d_model).astype(Wt.dtype)
    m3 = m_seq.reshape(T, rows, 1).astype(jnp.float32)

    resident = lambda t: (0, 0, 0)       # same block every step -> no re-DMA
    state0_spec = pl.BlockSpec((rows, dff), lambda t: (0, 0))
    seq_out_spec = pl.BlockSpec((1, rows, dff), lambda t: (t, 0, 0))

    outs = pl.pallas_call(
        _lstm_scan_kernel,
        out_shape=[jax.ShapeDtypeStruct((T, rows, dff), jnp.float32)] * 4,
        grid_spec=pltpu.PrefetchScalarGridSpec(
            num_scalar_prefetch=0,
            grid=(T,),
            in_specs=[
                pl.BlockSpec((1, rows, d_model), lambda t: (t, 0, 0)),   # Z_t
                pl.BlockSpec((1, rows, 1), lambda t: (t, 0, 0)),         # mask_t
                pl.BlockSpec((pl.Squeezed(), dff, 4 * dff), resident),   # W (resident)
                pl.BlockSpec((pl.Squeezed(), d_model, 4 * dff), resident),  # R (resident)
                pl.BlockSpec((pl.Squeezed(), 1, 4 * dff), resident),     # bias (resident)
                state0_spec,                                             # C0 (loaded once)
                state0_spec,                                             # M0
                pl.BlockSpec((rows, dff), lambda t: (0, 0)),             # H0 (bf16)
                state0_spec,                                             # N0
            ],
            out_specs=[seq_out_spec] * 4,
            scratch_shapes=[
                pltpu.VMEM((rows, dff), Wt.dtype),      # H state (bf16)
                pltpu.VMEM((rows, dff), jnp.float32),   # C state
                pltpu.VMEM((rows, dff), jnp.float32),   # M state
                pltpu.VMEM((rows, dff), jnp.float32),   # N state
            ],
        ),
        compiler_params=pltpu.CompilerParams(
            dimension_semantics=("arbitrary",),        # time recurrence is sequential
            vmem_limit_bytes=40 * 1024 * 1024,         # ~20 MiB needed (bf16 W+R double-buffered)
        ),
    )(Z3, m3, Wt, Rt, bT, C2, M2, H2, N2)

    C_s, M_s, H_s, N_s = (o.reshape(T, -1, patch_size, dff) for o in outs)
    return C_s, M_s, H_s, N_s


# ---------------------------------------------------------------------------
# Pure-JAX references for validation.
# ---------------------------------------------------------------------------
def _reference(Zi, Ci, Mi, Hi, Ni, m, W, R, b, *, patch_size, d_model,
               matmul_dtype=jnp.float32):
    dff = DFF
    m = m.reshape(-1, patch_size, 1).astype(jnp.float32)
    Zi = Zi.reshape(-1, patch_size, d_model)
    Ci = Ci.reshape(-1, patch_size, dff).astype(jnp.float32)
    Hi = Hi.reshape(-1, patch_size, dff)
    Ni = Ni.reshape(-1, patch_size, dff).astype(jnp.float32)
    Mi = Mi.reshape(-1, patch_size, dff).astype(jnp.float32)
    Hm = Hi.astype(matmul_dtype)
    Zm = Zi.astype(matmul_dtype)
    Wm = W.astype(matmul_dtype)
    Rm = R.astype(matmul_dtype)
    g = [jnp.einsum('bpd,dk->bpk', Hm, Wm[i],
                    preferred_element_type=jnp.float32) +
         jnp.einsum('bpd,dk->bpk', Zm, Rm[i],
                    preferred_element_type=jnp.float32) + b[i]
         for i in range(4)]
    I_tilde, F_tilde, O_tilde, Z_tilde = g
    M_t = jnp.maximum(F_tilde + Mi, I_tilde)
    I_t = jnp.exp(I_tilde - M_t)
    F_t = jnp.exp(F_tilde + Mi - M_t)
    O_t = jax.nn.sigmoid(O_tilde)
    N_t = F_t * Ni + I_t
    Z_t = jnp.tanh(Z_tilde)
    C_t = (Ci * F_t + Z_t * I_t) * m + (1.0 - m) * Ci
    H_t = O_t * (C_t / N_t)
    return C_t, M_t, H_t, N_t


def _reference_scan(Z_seq, C0, M0, H0, N0, m_seq, W, R, b, *, patch_size,
                    d_model, matmul_dtype=jnp.float32):
    C, M, H, N = C0, M0, H0, N0
    Cs, Ms, Hs, Ns = [], [], [], []
    for t in range(Z_seq.shape[0]):
        C, M, H, N = _reference(Z_seq[t], C, M, H, N, m_seq[t], W, R, b,
                                patch_size=patch_size, d_model=d_model,
                                matmul_dtype=matmul_dtype)
        Cs.append(C); Ms.append(M); Hs.append(H); Ns.append(N)
    return jnp.stack(Cs), jnp.stack(Ms), jnp.stack(Hs), jnp.stack(Ns)


if __name__ == "__main__":
    patch_size = 8
    d_model = 128
    batch = 2
    T = 4
    dff = DFF

    key = jax.random.PRNGKey(0)
    keys = jax.random.split(key, 14)

    # Deterministic synthetic parameters; (in, out) layout, gate order [I,F,O,Z].
    W = 0.02 * jax.random.normal(keys[0], (4, dff, dff), jnp.float32)
    R = 0.02 * jax.random.normal(keys[1], (4, d_model, dff), jnp.float32)
    bW = 0.01 * jax.random.normal(keys[2], (4, dff), jnp.float32)
    bR = 0.01 * jax.random.normal(keys[3], (4, dff), jnp.float32)
    b = bW + bR  # WI(H)+RI(Z) adds both biases; combining is exact.

    # Example inputs (shapes implied by the forward's .view calls).
    Zi = jax.random.normal(keys[4], (batch, patch_size, d_model), jnp.float32)
    Ci = jax.random.normal(keys[5], (batch, patch_size, dff), jnp.float32)
    Mi = jax.random.normal(keys[6], (batch, patch_size, dff), jnp.float32)
    Hi = jax.random.normal(keys[7], (batch, patch_size, dff), jnp.float32)
    Ni = 1.0 + jax.nn.softplus(
        jax.random.normal(keys[8], (batch, patch_size, dff), jnp.float32))
    m = (jax.random.uniform(keys[9], (batch, patch_size)) > 0.5).astype(jnp.float32)

    # ---------------- single-step kernel (tn=512, grid=(2,)) -----------------
    Wt, Rt, bT = prepare_gate_weights(W, R, b, tn=512)      # one-time prep
    out = custom_lstm_cell(Zi, Ci, Mi, Hi, Ni, m, Wt, Rt, bT,
                           patch_size=patch_size, d_model=d_model)
    out = jax.block_until_ready(out)

    ref_bf16 = _reference(Zi, Ci, Mi, Hi, Ni, m, W, R, b,
                          patch_size=patch_size, d_model=d_model,
                          matmul_dtype=jnp.bfloat16)
    for got, want in zip(out, ref_bf16):
        assert got.shape == want.shape, (got.shape, want.shape)
        assert jnp.allclose(got, want, rtol=1e-2, atol=1e-2), \
            float(jnp.max(jnp.abs(got - want)))

    ref_f32 = _reference(Zi, Ci, Mi, Hi, Ni, m, W, R, b,
                         patch_size=patch_size, d_model=d_model,
                         matmul_dtype=jnp.float32)
    for got, want in zip(out, ref_f32):
        assert jnp.allclose(got, want, rtol=0.1, atol=0.2), \
            float(jnp.max(jnp.abs(got - want)))

    # ----- sequence kernel: weights + state resident in VMEM across T steps ----
    Z_seq = jax.random.normal(keys[10], (T, batch, patch_size, d_model), jnp.float32)
    m_seq = (jax.random.uniform(keys[11], (T, batch, patch_size)) > 0.5
             ).astype(jnp.float32)

    Wf, Rf, bf = prepare_gate_weights(W, R, b, tn=DFF)       # single resident tile
    seq_out = custom_lstm_cell_scan(Z_seq, Ci, Mi, Hi, Ni, m_seq, Wf, Rf, bf,
                                    patch_size=patch_size, d_model=d_model)
    seq_out = jax.block_until_ready(seq_out)

    # Matched-precision multi-step reference (bf16 matmul operands, f32 accum).
    seq_ref_bf16 = _reference_scan(Z_seq, Ci, Mi, Hi, Ni, m_seq, W, R, b,
                                   patch_size=patch_size, d_model=d_model,
                                   matmul_dtype=jnp.bfloat16)
    for got, want in zip(seq_out, seq_ref_bf16):
        assert got.shape == want.shape, (got.shape, want.shape)
        assert jnp.allclose(got, want, rtol=3e-2, atol=3e-2), \
            float(jnp.max(jnp.abs(got - want)))

    # Full-f32 multi-step reference: loose bound documenting the intentional
    # bf16 weight/H-state approximation compounding over T steps.
    seq_ref_f32 = _reference_scan(Z_seq, Ci, Mi, Hi, Ni, m_seq, W, R, b,
                                  patch_size=patch_size, d_model=d_model,
                                  matmul_dtype=jnp.float32)
    for got, want in zip(seq_out, seq_ref_f32):
        assert jnp.allclose(got, want, rtol=0.15, atol=0.3), \
            float(jnp.max(jnp.abs(got - want)))

    print("KERNEL_OK")
</pallas_src>

<mosaic_0001>
module attributes {stable_mosaic.version = 11 : i64} {
  func.func @_lstm_cell_kernel(%arg0: i32, %arg1: memref<16x1024xbf16, #tpu.memory_space<vmem>>, %arg2: memref<16x128xbf16, #tpu.memory_space<vmem>>, %arg3: memref<16x512xf32, #tpu.memory_space<vmem>>, %arg4: memref<16x512xf32, #tpu.memory_space<vmem>>, %arg5: memref<16x512xf32, #tpu.memory_space<vmem>>, %arg6: memref<16x1xf32, #tpu.memory_space<vmem>>, %arg7: memref<1x1024x2048xbf16, #tpu.memory_space<vmem>>, %arg8: memref<1x128x2048xbf16, #tpu.memory_space<vmem>>, %arg9: memref<1x1x2048xf32, #tpu.memory_space<vmem>>, %arg10: memref<16x512xf32, #tpu.memory_space<vmem>>, %arg11: memref<16x512xf32, #tpu.memory_space<vmem>>, %arg12: memref<16x512xf32, #tpu.memory_space<vmem>>, %arg13: memref<16x512xf32, #tpu.memory_space<vmem>>) attributes {dimension_semantics = [#tpu.dimension_semantics<parallel>], iteration_bounds = array<i64: 2>, scalar_prefetch = 0 : i64, scratch_operands = 0 : i64, tpu.core_type = #tpu.core_type<tc>, window_params = [{pipeline_mode = #tpu.pipeline_mode<synchronous>, transform_indices = @transform_0, window_bounds = array<i64: 16, 1024>}, {pipeline_mode = #tpu.pipeline_mode<synchronous>, transform_indices = @transform_1, window_bounds = array<i64: 16, 128>}, {transform_indices = @transform_2, window_bounds = array<i64: 16, 512>}, {transform_indices = @transform_3, window_bounds = array<i64: 16, 512>}, {transform_indices = @transform_4, window_bounds = array<i64: 16, 512>}, {pipeline_mode = #tpu.pipeline_mode<synchronous>, transform_indices = @transform_5, window_bounds = array<i64: 16, 1>}, {transform_indices = @transform_6, window_bounds = array<i64: 1, 1024, 2048>}, {transform_indices = @transform_7, window_bounds = array<i64: 1, 128, 2048>}, {transform_indices = @transform_8, window_bounds = array<i64: 1, 1, 2048>}, {transform_indices = @transform_9, window_bounds = array<i64: 16, 512>}, {transform_indices = @transform_10, window_bounds = array<i64: 16, 512>}, {transform_indices = @transform_11, window_bounds = array<i64: 16, 512>}, {transform_indices = @transform_12, window_bounds = array<i64: 16, 512>}]} {
    %c0 = arith.constant 0 : index
    %c0_0 = arith.constant 0 : index
    %0 = vector.load %arg1[%c0, %c0_0] : memref<16x1024xbf16, #tpu.memory_space<vmem>>, vector<16x1024xbf16>
    %c0_1 = arith.constant 0 : index
    %c0_2 = arith.constant 0 : index
    %c0_3 = arith.constant 0 : index
    %1 = vector.load %arg7[%c0_1, %c0_2, %c0_3] : memref<1x1024x2048xbf16, #tpu.memory_space<vmem>>, vector<1x1024x2048xbf16>
    %2 = vector.shape_cast %1 : vector<1x1024x2048xbf16> to vector<1024x2048xbf16>
    %cst = arith.constant dense<0.000000e+00> : vector<16x2048xf32>
    %3 = tpu.matmul %0, %2, %cst {dimension_numbers = #tpu.dot_dimension_numbers<[1], [0], [0], [1], [0, 0, 1, 1], [], []>} : vector<16x1024xbf16>, vector<1024x2048xbf16>, vector<16x2048xf32> -> vector<16x2048xf32>
    %c0_4 = arith.constant 0 : index
    %c0_5 = arith.constant 0 : index
    %4 = vector.load %arg2[%c0_4, %c0_5] : memref<16x128xbf16, #tpu.memory_space<vmem>>, vector<16x128xbf16>
    %c0_6 = arith.constant 0 : index
    %c0_7 = arith.constant 0 : index
    %c0_8 = arith.constant 0 : index
    %5 = vector.load %arg8[%c0_6, %c0_7, %c0_8] : memref<1x128x2048xbf16, #tpu.memory_space<vmem>>, vector<1x128x2048xbf16>
    %6 = vector.shape_cast %5 : vector<1x128x2048xbf16> to vector<128x2048xbf16>
    %cst_9 = arith.constant dense<0.000000e+00> : vector<16x2048xf32>
    %7 = tpu.matmul %4, %6, %cst_9 {dimension_numbers = #tpu.dot_dimension_numbers<[1], [0], [0], [1], [0, 0, 1, 1], [], []>} : vector<16x128xbf16>, vector<128x2048xbf16>, vector<16x2048xf32> -> vector<16x2048xf32>
    %8 = arith.addf %3, %7 : vector<16x2048xf32>
    %c0_10 = arith.constant 0 : index
    %c0_11 = arith.constant 0 : index
    %c0_12 = arith.constant 0 : index
    %9 = vector.load %arg9[%c0_10, %c0_11, %c0_12] : memref<1x1x2048xf32, #tpu.memory_space<vmem>>, vector<1x1x2048xf32>
    %10 = vector.shape_cast %9 : vector<1x1x2048xf32> to vector<1x2048xf32>
    %11 = vector.broadcast %10 : vector<1x2048xf32> to vector<16x2048xf32>
    %12 = arith.addf %8, %11 : vector<16x2048xf32>
    %13 = vector.extract_strided_slice %12 {offsets = [0, 0], sizes = [16, 512], strides = [1, 1]} : vector<16x2048xf32> to vector<16x512xf32>
    %14 = vector.extract_strided_slice %12 {offsets = [0, 512], sizes = [16, 512], strides = [1, 1]} : vector<16x2048xf32> to vector<16x512xf32>
    %15 = vector.extract_strided_slice %12 {offsets = [0, 1024], sizes = [16, 512], strides = [1, 1]} : vector<16x2048xf32> to vector<16x512xf32>
    %16 = vector.extract_strided_slice %12 {offsets = [0, 1536], sizes = [16, 512], strides = [1, 1]} : vector<16x2048xf32> to vector<16x512xf32>
    %c0_13 = arith.constant 0 : index
    %c0_14 = arith.constant 0 : index
    %17 = vector.load %arg3[%c0_13, %c0_14] : memref<16x512xf32, #tpu.memory_space<vmem>>, vector<16x512xf32>
    %c0_15 = arith.constant 0 : index
    %c0_16 = arith.constant 0 : index
    %18 = vector.load %arg4[%c0_15, %c0_16] : memref<16x512xf32, #tpu.memory_space<vmem>>, vector<16x512xf32>
    %c0_17 = arith.constant 0 : index
    %c0_18 = arith.constant 0 : index
    %19 = vector.load %arg5[%c0_17, %c0_18] : memref<16x512xf32, #tpu.memory_space<vmem>>, vector<16x512xf32>
    %c0_19 = arith.constant 0 : index
    %c0_20 = arith.constant 0 : index
    %20 = vector.load %arg6[%c0_19, %c0_20] : memref<16x1xf32, #tpu.memory_space<vmem>>, vector<16x1xf32>
    %21 = arith.addf %14, %18 : vector<16x512xf32>
    %22 = arith.maximumf %21, %13 : vector<16x512xf32>
    %23 = arith.subf %13, %22 : vector<16x512xf32>
    %24 = math.exp %23 : vector<16x512xf32>
    %25 = arith.addf %14, %18 : vector<16x512xf32>
    %26 = arith.subf %25, %22 : vector<16x512xf32>
    %27 = math.exp %26 : vector<16x512xf32>
    %28 = arith.negf %15 : vector<16x512xf32>
    %29 = math.exp %28 : vector<16x512xf32>
    %cst_21 = arith.constant 1.000000e+00 : f32
    %30 = vector.broadcast %cst_21 : f32 to vector<16x512xf32>
    %31 = arith.addf %30, %29 : vector<16x512xf32>
    %32 = arith.divf %30, %31 : vector<16x512xf32>
    %33 = arith.mulf %27, %19 : vector<16x512xf32>
    %34 = arith.addf %33, %24 : vector<16x512xf32>
    %35 = math.tanh %16 : vector<16x512xf32>
    %36 = arith.mulf %17, %27 : vector<16x512xf32>
    %37 = arith.mulf %35, %24 : vector<16x512xf32>
    %38 = arith.addf %36, %37 : vector<16x512xf32>
    %39 = vector.broadcast %20 : vector<16x1xf32> to vector<16x512xf32>
    %40 = arith.mulf %38, %39 : vector<16x512xf32>
    %cst_22 = arith.constant 1.000000e+00 : f32
    %41 = vector.broadcast %cst_22 : f32 to vector<16x1xf32>
    %42 = arith.subf %41, %20 : vector<16x1xf32>
    %43 = vector.broadcast %42 : vector<16x1xf32> to vector<16x512xf32>
    %44 = arith.mulf %43, %17 : vector<16x512xf32>
    %45 = arith.addf %40, %44 : vector<16x512xf32>
    %46 = arith.divf %45, %34 : vector<16x512xf32>
    %47 = arith.mulf %32, %46 : vector<16x512xf32>
    %c0_23 = arith.constant 0 : index
    %c0_24 = arith.constant 0 : index
    %48 = vector.load %arg10[%c0_23, %c0_24] : memref<16x512xf32, #tpu.memory_space<vmem>>, vector<16x512xf32>
    tpu.vector_store %arg10[%c0_23, %c0_24], %45 {strides = array<i32>} : memref<16x512xf32, #tpu.memory_space<vmem>>, vector<16x512xf32>,
    %c0_25 = arith.constant 0 : index
    %c0_26 = arith.constant 0 : index
    %49 = vector.load %arg11[%c0_25, %c0_26] : memref<16x512xf32, #tpu.memory_space<vmem>>, vector<16x512xf32>
    tpu.vector_store %arg11[%c0_25, %c0_26], %22 {strides = array<i32>} : memref<16x512xf32, #tpu.memory_space<vmem>>, vector<16x512xf32>,
    %c0_27 = arith.constant 0 : index
    %c0_28 = arith.constant 0 : index
    %50 = vector.load %arg12[%c0_27, %c0_28] : memref<16x512xf32, #tpu.memory_space<vmem>>, vector<16x512xf32>
    tpu.vector_store %arg12[%c0_27, %c0_28], %47 {strides = array<i32>} : memref<16x512xf32, #tpu.memory_space<vmem>>, vector<16x512xf32>,
    %c0_29 = arith.constant 0 : index
    %c0_30 = arith.constant 0 : index
    %51 = vector.load %arg13[%c0_29, %c0_30] : memref<16x512xf32, #tpu.memory_space<vmem>>, vector<16x512xf32>
    tpu.vector_store %arg13[%c0_29, %c0_30], %34 {strides = array<i32>} : memref<16x512xf32, #tpu.memory_space<vmem>>, vector<16x512xf32>,
    return
  }
  func.func @transform_0(%arg0: i32) -> (i32, i32) {
    %c0_i32 = arith.constant 0 : i32
    %c0_i32_0 = arith.constant 0 : i32
    %c0_i32_1 = arith.constant 0 : i32
    return %c0_i32, %c0_i32_0 : i32, i32
  }
  func.func @transform_1(%arg0: i32) -> (i32, i32) {
    %c0_i32 = arith.constant 0 : i32
    %c0_i32_0 = arith.constant 0 : i32
    %c0_i32_1 = arith.constant 0 : i32
    return %c0_i32, %c0_i32_0 : i32, i32
  }
  func.func @transform_2(%arg0: i32) -> (i32, i32) {
    %c0_i32 = arith.constant 0 : i32
    %c0_i32_0 = arith.constant 0 : i32
    return %c0_i32, %arg0 : i32, i32
  }
  func.func @transform_3(%arg0: i32) -> (i32, i32) {
    %c0_i32 = arith.constant 0 : i32
    %c0_i32_0 = arith.constant 0 : i32
    return %c0_i32, %arg0 : i32, i32
  }
  func.func @transform_4(%arg0: i32) -> (i32, i32) {
    %c0_i32 = arith.constant 0 : i32
    %c0_i32_0 = arith.constant 0 : i32
    return %c0_i32, %arg0 : i32, i32
  }
  func.func @transform_5(%arg0: i32) -> (i32, i32) {
    %c0_i32 = arith.constant 0 : i32
    %c0_i32_0 = arith.constant 0 : i32
    %c0_i32_1 = arith.constant 0 : i32
    return %c0_i32, %c0_i32_0 : i32, i32
  }
  func.func @transform_6(%arg0: i32) -> (i32, i32, i32) {
    %c0_i32 = arith.constant 0 : i32
    %c0_i32_0 = arith.constant 0 : i32
    %c0_i32_1 = arith.constant 0 : i32
    return %arg0, %c0_i32, %c0_i32_0 : i32, i32, i32
  }
  func.func @transform_7(%arg0: i32) -> (i32, i32, i32) {
    %c0_i32 = arith.constant 0 : i32
    %c0_i32_0 = arith.constant 0 : i32
    %c0_i32_1 = arith.constant 0 : i32
    return %arg0, %c0_i32, %c0_i32_0 : i32, i32, i32
  }
  func.func @transform_8(%arg0: i32) -> (i32, i32, i32) {
    %c0_i32 = arith.constant 0 : i32
    %c0_i32_0 = arith.constant 0 : i32
    %c0_i32_1 = arith.constant 0 : i32
    return %arg0, %c0_i32, %c0_i32_0 : i32, i32, i32
  }
  func.func @transform_9(%arg0: i32) -> (i32, i32) {
    %c0_i32 = arith.constant 0 : i32
    %c0_i32_0 = arith.constant 0 : i32
    return %c0_i32, %arg0 : i32, i32
  }
  func.func @transform_10(%arg0: i32) -> (i32, i32) {
    %c0_i32 = arith.constant 0 : i32
    %c0_i32_0 = arith.constant 0 : i32
    return %c0_i32, %arg0 : i32, i32
  }
  func.func @transform_11(%arg0: i32) -> (i32, i32) {
    %c0_i32 = arith.constant 0 : i32
    %c0_i32_0 = arith.constant 0 : i32
    return %c0_i32, %arg0 : i32, i32
  }
  func.func @transform_12(%arg0: i32) -> (i32, i32) {
    %c0_i32 = arith.constant 0 : i32
    %c0_i32_0 = arith.constant 0 : i32
    return %c0_i32, %arg0 : i32, i32
  }
}

</mosaic_0001>

<llo_original>
// kernel: tpu_custom_call.1
$region0: #{tpu_custom_call.1}
  #allocation0 [shape = 'u32[]', space=smem, size = 0x4, offset = 0x4, fixed_abs, tag = 'smem constant byte address 0x4 - core index']
  #allocation1 [shape = 'u32[72,128]{1,0:T(1,128)}', space=vmem, size = 0x9000, scoped, tag = 'internal scratch']
  %s0 = inlined_call_operand.hbm [shape: bf16[16,1024], index: 0, kind: input, shape index: {}]
  %s1 = inlined_call_operand.hbm [shape: bf16[16,128], index: 1, kind: input, shape index: {}]
  %s2 = inlined_call_operand.hbm [shape: f32[16,1024], index: 2, kind: input, shape index: {}]
  %s3 = inlined_call_operand.hbm [shape: f32[16,1024], index: 3, kind: input, shape index: {}]
  %s4 = inlined_call_operand.hbm [shape: f32[16,1024], index: 4, kind: input, shape index: {}]
  %s5 = inlined_call_operand.vmem [shape: f32[16,1], index: 5, kind: input, shape index: {}]
  %s6 = inlined_call_operand.hbm [shape: bf16[2,1024,2048], index: 6, kind: input, shape index: {}]
  %s7 = inlined_call_operand.hbm [shape: bf16[2,128,2048], index: 7, kind: input, shape index: {}]
  %s8 = inlined_call_operand.hbm [shape: f32[2,1,2048], index: 8, kind: input, shape index: {}]
  %s9 = inlined_call_operand.hbm [shape: f32[16,1024], index: 9, kind: output, shape index: {0}]
  %s10 = inlined_call_operand.hbm [shape: f32[16,1024], index: 10, kind: output, shape index: {1}]
  %s11 = inlined_call_operand.hbm [shape: f32[16,1024], index: 11, kind: output, shape index: {2}]
  %s12 = inlined_call_operand.hbm [shape: f32[16,1024], index: 12, kind: output, shape index: {3}]
  %13 = xla_tuple %s9, %s10, %s11, %s12
  %s14 = sld [smem:[#allocation0]]
  $region125: #{tpu_custom_call.1} parent=0
    _
  %s16 = ssub.s32 1, %s14
  %s17 = scalar_select 0, %s16, %s14
  $region1: #{tpu_custom_call.1} parent=0
    #allocation2 [shape = 'u8[32768]{0}', space=vmem, size = 0x8000, scoped, tag = 'input window, operand 0, single buffered']
    #allocation3 [shape = 's32[2]{0}', space=sflag, size = 0x8, scoped, tag = 'scoped memory for tpu_custom_call.1']
    #allocation4 [shape = 's32[2]{0}', space=sflag, size = 0x8, scoped, tag = 'scoped memory for tpu_custom_call.1']
    #allocation5 [shape = 'u8[4096]{0}', space=vmem, size = 0x1000, scoped, tag = 'input window, operand 1, single buffered']
    #allocation6 [shape = 's32[1]{0}', space=sflag, size = 0x4, scoped, tag = 'scoped memory for tpu_custom_call.1']
    #allocation7 [shape = 'u8[65536]{0}', space=vmem, size = 0x10000, scoped, tag = 'input window, operand 2']
    #allocation8 [shape = 'u8[65536]{0}', space=vmem, size = 0x10000, scoped, tag = 'input window, operand 3']
    #allocation9 [shape = 'u8[65536]{0}', space=vmem, size = 0x10000, scoped, tag = 'input window, operand 4']
    #allocation10 [shape = 'u8[8388608]{0}', space=vmem, size = 0x800000, scoped, tag = 'input window, operand 6']
    #allocation11 [shape = 'u8[1048576]{0}', space=vmem, size = 0x100000, scoped, tag = 'input window, operand 7']
    #allocation12 [shape = 'u8[16384]{0}', space=vmem, size = 0x4000, scoped, tag = 'input window, operand 8']
    #allocation13 [shape = 'u8[65536]{0}', space=vmem, size = 0x10000, scoped, tag = 'output window, operand 0']
    #allocation14 [shape = 'u8[65536]{0}', space=vmem, size = 0x10000, scoped, tag = 'output window, operand 1']
    #allocation15 [shape = 's32[2]{0}', space=sflag, size = 0x8, scoped, tag = 'scoped memory for tpu_custom_call.1']
    #allocation16 [shape = 'u8[65536]{0}', space=vmem, size = 0x10000, scoped, tag = 'output window, operand 2']
    #allocation17 [shape = 'u8[65536]{0}', space=vmem, size = 0x10000, scoped, tag = 'output window, operand 3']
    #allocation18 [shape = 's32[2]{0}', space=sflag, size = 0x8, scoped, tag = 'scoped memory for tpu_custom_call.1']
    %18 = vsyncpa [#allocation3], 0
    %19 = vsyncpa [#allocation6], 0
    %20 = vsyncpa [#allocation4], 0
    %s21 = scalar_lea.sflag [#allocation4], 1
    %22 = vsyncpa %s21, 0
    %23 = vsyncpa [#allocation15], 0
    %s24 = scalar_lea.sflag [#allocation15], 1
    %25 = vsyncpa %s24, 0
    %26 = vsyncpa [#allocation18], 0
    %s27 = scalar_lea.sflag [#allocation18], 1
    %28 = vsyncpa %s27, 0
    loop: start=0, step=1, limit=4
    $region2: #{tpu_custom_call.1} parent=1 // loop_pre_header
      _
    $region3: #{tpu_custom_call.1} parent=1 // loop_header
      %s30 = sphi 0, %s34
      %p31 = scmp.ge.s32.totalorder %s30, 4
      %s38 = sphi 0, %s38
      %s40 = sphi 0, %s38
      %s41 = sphi 0, %s40
      %s55 = sphi 0, %s41
      %s59 = sphi 0, %s59
      %s61 = sphi 0, %s59
      %s62 = sphi 0, %s61
      %s76 = sphi 0, %s62
      %s82 = sphi 0, %s84
      %s85 = sphi 0, %s82
      %s86 = sphi 0, %s85
      %s102 = sphi 0, %s86
      %s108 = sphi 0, %s110
      %s111 = sphi 0, %s108
      %s112 = sphi 0, %s111
      %s128 = sphi 0, %s112
      %s134 = sphi 0, %s136
      %s137 = sphi 0, %s134
      %s138 = sphi 0, %s137
      %s154 = sphi 0, %s138
      %s158 = sphi 0, %s158
      %s160 = sphi 0, %s158
      %s161 = sphi 0, %s160
      %s175 = sphi 0, %s161
      %s181 = sphi 0, %s183
      %s184 = sphi 0, %s181
      %s185 = sphi 0, %s184
      %s201 = sphi 0, %s185
      %s207 = sphi 0, %s209
      %s210 = sphi 0, %s207
      %s211 = sphi 0, %s210
      %s227 = sphi 0, %s211
      %s233 = sphi 0, %s235
      %s236 = sphi 0, %s233
      %s237 = sphi 0, %s236
      %s253 = sphi 0, %s237
      %s259 = sphi 0, %s261
      %s262 = sphi 0, %s259
      %s263 = sphi 0, %s262
      %s279 = sphi 0, %s263
      %s285 = sphi 0, %s287
      %s288 = sphi 0, %s285
      %s289 = sphi 0, %s288
      %s305 = sphi 0, %s289
      %s311 = sphi 0, %s313
      %s314 = sphi 0, %s311
      %s315 = sphi 0, %s314
      %s331 = sphi 0, %s315
      %s337 = sphi 0, %s339
      %s340 = sphi 0, %s337
      %s341 = sphi 0, %s340
      %s357 = sphi 0, %s341
    $region4: #{tpu_custom_call.1} parent=1 // loop_header_branch
      %33 = sbr.rel (%p31) target = $region8
    $region5: #{tpu_custom_call.1} parent=1 // loop_body
      %s35 = ssub.s32 %s30, 1
      %s36 = ssub.s32 %s30, 2
      %s37 = sadd.s32 %s30, 1
      %s39 = sadd.s32 %s38, 1
      %p42 = scmp.eq.s32.totalorder %s30, 1
      %p43 = scmp.ne.s32.totalorder %s38, %s40
      %p44 = scmp.eq.s32.totalorder %s30, 0
      %p45 = por %p43, %p44
      %p46 = scmp.ne.s32.totalorder %s38, %s40
      %p47 = scmp.eq.s32.totalorder %s35, 1
      %p48 = por %p46, %p47
      %p49 = scmp.ne.s32.totalorder %s40, %s41
      %p50 = scmp.eq.s32.totalorder %s35, 0
      %p51 = por %p49, %p50
      %p52 = scmp.ne.s32.totalorder %s40, %s41
      %p53 = scmp.eq.s32.totalorder %s36, 1
      %p54 = por %p52, %p53
      %p56 = scmp.ne.s32.totalorder %s41, %s55
      %p57 = scmp.eq.s32.totalorder %s36, 0
      %p58 = por %p56, %p57
      %s60 = sadd.s32 %s59, 1
      %p63 = scmp.eq.s32.totalorder %s30, 1
      %p64 = scmp.ne.s32.totalorder %s59, %s61
      %p65 = scmp.eq.s32.totalorder %s30, 0
      %p66 = por %p64, %p65
      %p67 = scmp.ne.s32.totalorder %s59, %s61
      %p68 = scmp.eq.s32.totalorder %s35, 1
      %p69 = por %p67, %p68
      %p70 = scmp.ne.s32.totalorder %s61, %s62
      %p71 = scmp.eq.s32.totalorder %s35, 0
      %p72 = por %p70, %p71
      %p73 = scmp.ne.s32.totalorder %s61, %s62
      %p74 = scmp.eq.s32.totalorder %s36, 1
      %p75 = por %p73, %p74
      %p77 = scmp.ne.s32.totalorder %s62, %s76
      %p78 = scmp.eq.s32.totalorder %s36, 0
      %p79 = por %p77, %p78
      %s80 = ssub.s32 %s30, %s37
      %p81 = scmp.eq.s32.totalorder %s80, 0
      %s83 = sadd.s32 %s82, 1
      %s84 = scalar_select %p81, %s82, %s83
      %p87 = pneg %p81
      %p88 = scmp.eq.s32.totalorder %s30, 1
      %p89 = por %p87, %p88
      %p90 = scmp.ne.s32.totalorder %s82, %s85
      %p91 = scmp.eq.s32.totalorder %s30, 0
      %p92 = por %p90, %p91
      %p93 = scmp.ne.s32.totalorder %s82, %s85
      %p94 = scmp.eq.s32.totalorder %s35, 1
      %p95 = por %p93, %p94
      %p96 = scmp.ne.s32.totalorder %s85, %s86
      %p97 = scmp.eq.s32.totalorder %s35, 0
      %p98 = por %p96, %p97
      %p99 = scmp.ne.s32.totalorder %s85, %s86
      %p100 = scmp.eq.s32.totalorder %s36, 1
      %p101 = por %p99, %p100
      %p103 = scmp.ne.s32.totalorder %s86, %s102
      %p104 = scmp.eq.s32.totalorder %s36, 0
      %p105 = por %p103, %p104
      %s106 = ssub.s32 %s30, %s37
      %p107 = scmp.eq.s32.totalorder %s106, 0
      %s109 = sadd.s32 %s108, 1
      %s110 = scalar_select %p107, %s108, %s109
      %p113 = pneg %p107
      %p114 = scmp.eq.s32.totalorder %s30, 1
      %p115 = por %p113, %p114
      %p116 = scmp.ne.s32.totalorder %s108, %s111
      %p117 = scmp.eq.s32.totalorder %s30, 0
      %p118 = por %p116, %p117
      %p119 = scmp.ne.s32.totalorder %s108, %s111
      %p120 = scmp.eq.s32.totalorder %s35, 1
      %p121 = por %p119, %p120
      %p122 = scmp.ne.s32.totalorder %s111, %s112
      %p123 = scmp.eq.s32.totalorder %s35, 0
      %p124 = por %p122, %p123
      %p125 = scmp.ne.s32.totalorder %s111, %s112
      %p126 = scmp.eq.s32.totalorder %s36, 1
      %p127 = por %p125, %p126
      %p129 = scmp.ne.s32.totalorder %s112, %s128
      %p130 = scmp.eq.s32.totalorder %s36, 0
      %p131 = por %p129, %p130
      %s132 = ssub.s32 %s30, %s37
      %p133 = scmp.eq.s32.totalorder %s132, 0
      %s135 = sadd.s32 %s134, 1
      %s136 = scalar_select %p133, %s134, %s135
      %p139 = pneg %p133
      %p140 = scmp.eq.s32.totalorder %s30, 1
      %p141 = por %p139, %p140
      %p142 = scmp.ne.s32.totalorder %s134, %s137
      %p143 = scmp.eq.s32.totalorder %s30, 0
      %p144 = por %p142, %p143
      %p145 = scmp.ne.s32.totalorder %s134, %s137
      %p146 = scmp.eq.s32.totalorder %s35, 1
      %p147 = por %p145, %p146
      %p148 = scmp.ne.s32.totalorder %s137, %s138
      %p149 = scmp.eq.s32.totalorder %s35, 0
      %p150 = por %p148, %p149
      %p151 = scmp.ne.s32.totalorder %s137, %s138
      %p152 = scmp.eq.s32.totalorder %s36, 1
      %p153 = por %p151, %p152
      %p155 = scmp.ne.s32.totalorder %s138, %s154
      %p156 = scmp.eq.s32.totalorder %s36, 0
      %p157 = por %p155, %p156
      %s159 = sadd.s32 %s158, 1
      %p162 = scmp.eq.s32.totalorder %s30, 1
      %p163 = scmp.ne.s32.totalorder %s158, %s160
      %p164 = scmp.eq.s32.totalorder %s30, 0
      %p165 = por %p163, %p164
      %p166 = scmp.ne.s32.totalorder %s158, %s160
      %p167 = scmp.eq.s32.totalorder %s35, 1
      %p168 = por %p166, %p167
      %p169 = scmp.ne.s32.totalorder %s160, %s161
      %p170 = scmp.eq.s32.totalorder %s35, 0
      %p171 = por %p169, %p170
      %p172 = scmp.ne.s32.totalorder %s160, %s161
      %p173 = scmp.eq.s32.totalorder %s36, 1
      %p174 = por %p172, %p173
      %p176 = scmp.ne.s32.totalorder %s161, %s175
      %p177 = scmp.eq.s32.totalorder %s36, 0
      %p178 = por %p176, %p177
      %s179 = ssub.s32 %s30, %s37
      %p180 = scmp.eq.s32.totalorder %s179, 0
      %s182 = sadd.s32 %s181, 1
      %s183 = scalar_select %p180, %s181, %s182
      %p186 = pneg %p180
      %p187 = scmp.eq.s32.totalorder %s30, 1
      %p188 = por %p186, %p187
      %p189 = scmp.ne.s32.totalorder %s181, %s184
      %p190 = scmp.eq.s32.totalorder %s30, 0
      %p191 = por %p189, %p190
      %p192 = scmp.ne.s32.totalorder %s181, %s184
      %p193 = scmp.eq.s32.totalorder %s35, 1
      %p194 = por %p192, %p193
      %p195 = scmp.ne.s32.totalorder %s184, %s185
      %p196 = scmp.eq.s32.totalorder %s35, 0
      %p197 = por %p195, %p196
      %p198 = scmp.ne.s32.totalorder %s184, %s185
      %p199 = scmp.eq.s32.totalorder %s36, 1
      %p200 = por %p198, %p199
      %p202 = scmp.ne.s32.totalorder %s185, %s201
      %p203 = scmp.eq.s32.totalorder %s36, 0
      %p204 = por %p202, %p203
      %s205 = ssub.s32 %s30, %s37
      %p206 = scmp.eq.s32.totalorder %s205, 0
      %s208 = sadd.s32 %s207, 1
      %s209 = scalar_select %p206, %s207, %s208
      %p212 = pneg %p206
      %p213 = scmp.eq.s32.totalorder %s30, 1
      %p214 = por %p212, %p213
      %p215 = scmp.ne.s32.totalorder %s207, %s210
      %p216 = scmp.eq.s32.totalorder %s30, 0
      %p217 = por %p215, %p216
      %p218 = scmp.ne.s32.totalorder %s207, %s210
      %p219 = scmp.eq.s32.totalorder %s35, 1
      %p220 = por %p218, %p219
      %p221 = scmp.ne.s32.totalorder %s210, %s211
      %p222 = scmp.eq.s32.totalorder %s35, 0
      %p223 = por %p221, %p222
      %p224 = scmp.ne.s32.totalorder %s210, %s211
      %p225 = scmp.eq.s32.totalorder %s36, 1
      %p226 = por %p224, %p225
      %p228 = scmp.ne.s32.totalorder %s211, %s227
      %p229 = scmp.eq.s32.totalorder %s36, 0
      %p230 = por %p228, %p229
      %s231 = ssub.s32 %s30, %s37
      %p232 = scmp.eq.s32.totalorder %s231, 0
      %s234 = sadd.s32 %s233, 1
      %s235 = scalar_select %p232, %s233, %s234
      %p238 = pneg %p232
      %p239 = scmp.eq.s32.totalorder %s30, 1
      %p240 = por %p238, %p239
      %p241 = scmp.ne.s32.totalorder %s233, %s236
      %p242 = scmp.eq.s32.totalorder %s30, 0
      %p243 = por %p241, %p242
      %p244 = scmp.ne.s32.totalorder %s233, %s236
      %p245 = scmp.eq.s32.totalorder %s35, 1
      %p246 = por %p244, %p245
      %p247 = scmp.ne.s32.totalorder %s236, %s237
      %p248 = scmp.eq.s32.totalorder %s35, 0
      %p249 = por %p247, %p248
      %p250 = scmp.ne.s32.totalorder %s236, %s237
      %p251 = scmp.eq.s32.totalorder %s36, 1
      %p252 = por %p250, %p251
      %p254 = scmp.ne.s32.totalorder %s237, %s253
      %p255 = scmp.eq.s32.totalorder %s36, 0
      %p256 = por %p254, %p255
      %s257 = ssub.s32 %s30, %s37
      %p258 = scmp.eq.s32.totalorder %s257, 0
      %s260 = sadd.s32 %s259, 1
      %s261 = scalar_select %p258, %s259, %s260
      %p264 = pneg %p258
      %p265 = scmp.eq.s32.totalorder %s30, 1
      %p266 = por %p264, %p265
      %p267 = scmp.ne.s32.totalorder %s259, %s262
      %p268 = scmp.eq.s32.totalorder %s30, 0
      %p269 = por %p267, %p268
      %p270 = scmp.ne.s32.totalorder %s259, %s262
      %p271 = scmp.eq.s32.totalorder %s35, 1
      %p272 = por %p270, %p271
      %p273 = scmp.ne.s32.totalorder %s262, %s263
      %p274 = scmp.eq.s32.totalorder %s35, 0
      %p275 = por %p273, %p274
      %p276 = scmp.ne.s32.totalorder %s262, %s263
      %p277 = scmp.eq.s32.totalorder %s36, 1
      %p278 = por %p276, %p277
      %p280 = scmp.ne.s32.totalorder %s263, %s279
      %p281 = scmp.eq.s32.totalorder %s36, 0
      %p282 = por %p280, %p281
      %s283 = ssub.s32 %s30, %s37
      %p284 = scmp.eq.s32.totalorder %s283, 0
      %s286 = sadd.s32 %s285, 1
      %s287 = scalar_select %p284, %s285, %s286
      %p290 = pneg %p284
      %p291 = scmp.eq.s32.totalorder %s30, 1
      %p292 = por %p290, %p291
      %p293 = scmp.ne.s32.totalorder %s285, %s288
      %p294 = scmp.eq.s32.totalorder %s30, 0
      %p295 = por %p293, %p294
      %p296 = scmp.ne.s32.totalorder %s285, %s288
      %p297 = scmp.eq.s32.totalorder %s35, 1
      %p298 = por %p296, %p297
      %p299 = scmp.ne.s32.totalorder %s288, %s289
      %p300 = scmp.eq.s32.totalorder %s35, 0
      %p301 = por %p299, %p300
      %p302 = scmp.ne.s32.totalorder %s288, %s289
      %p303 = scmp.eq.s32.totalorder %s36, 1
      %p304 = por %p302, %p303
      %p306 = scmp.ne.s32.totalorder %s289, %s305
      %p307 = scmp.eq.s32.totalorder %s36, 0
      %p308 = por %p306, %p307
      %s309 = ssub.s32 %s30, %s37
      %p310 = scmp.eq.s32.totalorder %s309, 0
      %s312 = sadd.s32 %s311, 1
      %s313 = scalar_select %p310, %s311, %s312
      %p316 = pneg %p310
      %p317 = scmp.eq.s32.totalorder %s30, 1
      %p318 = por %p316, %p317
      %p319 = scmp.ne.s32.totalorder %s311, %s314
      %p320 = scmp.eq.s32.totalorder %s30, 0
      %p321 = por %p319, %p320
      %p322 = scmp.ne.s32.totalorder %s311, %s314
      %p323 = scmp.eq.s32.totalorder %s35, 1
      %p324 = por %p322, %p323
      %p325 = scmp.ne.s32.totalorder %s314, %s315
      %p326 = scmp.eq.s32.totalorder %s35, 0
      %p327 = por %p325, %p326
      %p328 = scmp.ne.s32.totalorder %s314, %s315
      %p329 = scmp.eq.s32.totalorder %s36, 1
      %p330 = por %p328, %p329
      %p332 = scmp.ne.s32.totalorder %s315, %s331
      %p333 = scmp.eq.s32.totalorder %s36, 0
      %p334 = por %p332, %p333
      %s335 = ssub.s32 %s30, %s37
      %p336 = scmp.eq.s32.totalorder %s335, 0
      %s338 = sadd.s32 %s337, 1
      %s339 = scalar_select %p336, %s337, %s338
      %p342 = pneg %p336
      %p343 = scmp.eq.s32.totalorder %s30, 1
      %p344 = por %p342, %p343
      %p345 = scmp.ne.s32.totalorder %s337, %s340
      %p346 = scmp.eq.s32.totalorder %s30, 0
      %p347 = por %p345, %p346
      %p348 = scmp.ne.s32.totalorder %s337, %s340
      %p349 = scmp.eq.s32.totalorder %s35, 1
      %p350 = por %p348, %p349
      %p351 = scmp.ne.s32.totalorder %s340, %s341
      %p352 = scmp.eq.s32.totalorder %s35, 0
      %p353 = por %p351, %p352
      %p354 = scmp.ne.s32.totalorder %s340, %s341
      %p355 = scmp.eq.s32.totalorder %s36, 1
      %p356 = por %p354, %p355
      %p358 = scmp.ne.s32.totalorder %s341, %s357
      %p359 = scmp.eq.s32.totalorder %s36, 0
      %p360 = por %p358, %p359
      %p361 = scmp.le.s32.totalorder 1, %s30
      %p362 = scmp.lt.s32.totalorder %s30, 3
      %p363 = pnand %p361, %p362
      %p364 = pneg %p363
      // Predicated region
      $region9: #{tpu_custom_call.1} parent=5 // pred_check
        _
      $region10: #{tpu_custom_call.1} parent=5 // pred_check_branch
        %366 = sbr.rel (%p363) target = $region12
      $region11: #{tpu_custom_call.1} parent=5 // pred_region
        %s367 = ssub.s32 %s30, 1
        // Predicated region
        $region13: #{tpu_custom_call.1} parent=11 // pred_check
          %p368 = pneg %p51
        $region14: #{tpu_custom_call.1} parent=11 // pred_check_branch
          %370 = sbr.rel (%p368) target = $region16
        $region15: #{tpu_custom_call.1} parent=11 // pred_region
          %372 = vsyncadd [#allocation3], 0
          %s373 = sshll.u32 %s0, 4
          %s374 = int_to_ptr.hbm [resolvable:$true] %s373
          %s375 = sshll.u32 [#allocation2], 4
          %s376 = int_to_ptr.vmem [resolvable:$true] %s375
          %381 = dma.hbm_to_vmem [thread:$0]  %s374, 1024, %s376, [#allocation3], 512, 512, 32
        $region16: #{tpu_custom_call.1} parent=11 // pred_fallthru
          _
        // Predicated region
        $region17: #{tpu_custom_call.1} parent=11 // pred_check
          %p382 = pneg %p72
        $region18: #{tpu_custom_call.1} parent=11 // pred_check_branch
          %384 = sbr.rel (%p382) target = $region20
        $region19: #{tpu_custom_call.1} parent=11 // pred_region
          %386 = vsyncadd [#allocation6], 0
          %s387 = sshll.u32 %s1, 4
          %s388 = int_to_ptr.hbm [resolvable:$true] %s387
          %s389 = sshll.u32 [#allocation5], 4
          %s390 = int_to_ptr.vmem [resolvable:$true] %s389
          %395 = dma.hbm_to_vmem [thread:$0]  %s388, 128, %s390, [#allocation6], 64, 64, 4
        $region20: #{tpu_custom_call.1} parent=11 // pred_fallthru
          _
        // Predicated region
        $region21: #{tpu_custom_call.1} parent=11 // pred_check
          %p396 = pneg %p171
        $region22: #{tpu_custom_call.1} parent=11 // pred_check_branch
          %398 = sbr.rel (%p396) target = $region24
        $region23: #{tpu_custom_call.1} parent=11 // pred_region
          _
        $region24: #{tpu_custom_call.1} parent=11 // pred_fallthru
          _
      $region12: #{tpu_custom_call.1} parent=5 // pred_fallthru
        _
      %p399 = scmp.lt.s32.totalorder %s30, 2
      // Predicated region
      $region25: #{tpu_custom_call.1} parent=5 // pred_check
        %p400 = pneg %p399
      $region26: #{tpu_custom_call.1} parent=5 // pred_check_branch
        %402 = sbr.rel (%p400) target = $region28
      $region27: #{tpu_custom_call.1} parent=5 // pred_region
        // Predicated region
        $region29: #{tpu_custom_call.1} parent=27 // pred_check
          %p403 = pneg %p92
        $region30: #{tpu_custom_call.1} parent=27 // pred_check_branch
          %405 = sbr.rel (%p403) target = $region32
        $region31: #{tpu_custom_call.1} parent=27 // pred_region
          %s406 = sand.u32 %s30, 1
          %s407 = scalar_lea.sflag [#allocation3], %s406
          %s408 = sand.u32 %s82, 1
          %s409 = smul.addr %s408, 64
          %s410 = scalar_lea.vmem [#allocation7], %s409
          %s411 = smul.u32 4, %s30
          %413 = vsyncadd %s407, 0
          %s414 = smul.addr %s411, 8
          %s415 = scalar_lea.hbm %s2, %s414
          %s416 = sshll.u32 %s415, 4
          %s417 = int_to_ptr.hbm [resolvable:$true] %s416
          %s418 = sshll.u32 %s410, 4
          %s419 = int_to_ptr.vmem [resolvable:$true] %s418
          %424 = dma.hbm_to_vmem [thread:$0]  %s417, 1024, %s419, %s407, 1024, 512, 32
        $region32: #{tpu_custom_call.1} parent=27 // pred_fallthru
          _
        // Predicated region
        $region33: #{tpu_custom_call.1} parent=27 // pred_check
          %p425 = pneg %p118
        $region34: #{tpu_custom_call.1} parent=27 // pred_check_branch
          %427 = sbr.rel (%p425) target = $region36
        $region35: #{tpu_custom_call.1} parent=27 // pred_region
          %s428 = sand.u32 %s30, 1
          %s429 = scalar_lea.sflag [#allocation3], %s428
          %s430 = sand.u32 %s108, 1
          %s431 = smul.addr %s430, 64
          %s432 = scalar_lea.vmem [#allocation8], %s431
          %s433 = smul.u32 4, %s30
          %435 = vsyncadd %s429, 0
          %s436 = smul.addr %s433, 8
          %s437 = scalar_lea.hbm %s3, %s436
          %s438 = sshll.u32 %s437, 4
          %s439 = int_to_ptr.hbm [resolvable:$true] %s438
          %s440 = sshll.u32 %s432, 4
          %s441 = int_to_ptr.vmem [resolvable:$true] %s440
          %446 = dma.hbm_to_vmem [thread:$0]  %s439, 1024, %s441, %s429, 1024, 512, 32
        $region36: #{tpu_custom_call.1} parent=27 // pred_fallthru
          _
        // Predicated region
        $region37: #{tpu_custom_call.1} parent=27 // pred_check
          %p447 = pneg %p144
        $region38: #{tpu_custom_call.1} parent=27 // pred_check_branch
          %449 = sbr.rel (%p447) target = $region40
        $region39: #{tpu_custom_call.1} parent=27 // pred_region
          %s450 = sand.u32 %s30, 1
          %s451 = scalar_lea.sflag [#allocation3], %s450
          %s452 = sand.u32 %s134, 1
          %s453 = smul.addr %s452, 64
          %s454 = scalar_lea.vmem [#allocation9], %s453
          %s455 = smul.u32 4, %s30
          %457 = vsyncadd %s451, 0
          %s458 = smul.addr %s455, 8
          %s459 = scalar_lea.hbm %s4, %s458
          %s460 = sshll.u32 %s459, 4
          %s461 = int_to_ptr.hbm [resolvable:$true] %s460
          %s462 = sshll.u32 %s454, 4
          %s463 = int_to_ptr.vmem [resolvable:$true] %s462
          %468 = dma.hbm_to_vmem [thread:$0]  %s461, 1024, %s463, %s451, 1024, 512, 32
        $region40: #{tpu_custom_call.1} parent=27 // pred_fallthru
          _
        // Predicated region
        $region41: #{tpu_custom_call.1} parent=27 // pred_check
          %p469 = pneg %p191
        $region42: #{tpu_custom_call.1} parent=27 // pred_check_branch
          %471 = sbr.rel (%p469) target = $region44
        $region43: #{tpu_custom_call.1} parent=27 // pred_region
          %s472 = sand.u32 %s30, 1
          %s473 = scalar_lea.sflag [#allocation3], %s472
          %s474 = sand.u32 %s181, 1
          %s475 = smul.addr %s474, 8192
          %s476 = scalar_lea.vmem [#allocation10], %s475
          %478 = vsyncadd %s473, 0
          %s479 = smul.addr %s30, 2048
          %s480 = smul.addr %s479, 4
          %s481 = scalar_lea.hbm %s6, %s480
          %s482 = sshll.u32 %s481, 4
          %s483 = int_to_ptr.hbm [resolvable:$true] %s482
          %s484 = sshll.u32 %s476, 4
          %s485 = int_to_ptr.vmem [resolvable:$true] %s484
          %490 = dma.hbm_to_vmem [thread:$0]  %s483, 131072, %s485, %s473, 1024, 1024, 64
        $region44: #{tpu_custom_call.1} parent=27 // pred_fallthru
          _
        // Predicated region
        $region45: #{tpu_custom_call.1} parent=27 // pred_check
          %p491 = pneg %p217
        $region46: #{tpu_custom_call.1} parent=27 // pred_check_branch
          %493 = sbr.rel (%p491) target = $region48
        $region47: #{tpu_custom_call.1} parent=27 // pred_region
          %s494 = sand.u32 %s30, 1
          %s495 = scalar_lea.sflag [#allocation3], %s494
          %s496 = sand.u32 %s207, 1
          %s497 = smul.addr %s496, 1024
          %s498 = scalar_lea.vmem [#allocation11], %s497
          %500 = vsyncadd %s495, 0
          %s501 = smul.addr %s30, 256
          %s502 = smul.addr %s501, 4
          %s503 = scalar_lea.hbm %s7, %s502
          %s504 = sshll.u32 %s503, 4
          %s505 = int_to_ptr.hbm [resolvable:$true] %s504
          %s506 = sshll.u32 %s498, 4
          %s507 = int_to_ptr.vmem [resolvable:$true] %s506
          %512 = dma.hbm_to_vmem [thread:$0]  %s505, 16384, %s507, %s495, 1024, 1024, 64
        $region48: #{tpu_custom_call.1} parent=27 // pred_fallthru
          _
        // Predicated region
        $region49: #{tpu_custom_call.1} parent=27 // pred_check
          %p513 = pneg %p243
        $region50: #{tpu_custom_call.1} parent=27 // pred_check_branch
          %515 = sbr.rel (%p513) target = $region52
        $region51: #{tpu_custom_call.1} parent=27 // pred_region
          %s516 = sand.u32 %s30, 1
          %s517 = scalar_lea.sflag [#allocation3], %s516
          %s518 = sand.u32 %s233, 1
          %s519 = smul.addr %s518, 16
          %s520 = scalar_lea.vmem [#allocation12], %s519
          %522 = vsyncadd %s517, 0
          %s523 = smul.addr %s30, 16
          %s524 = scalar_lea.hbm %s8, %s523
          %s526 = sshll.u32 %s524, 4
          %s527 = int_to_ptr.hbm [resolvable:$true] %s526
          %s528 = sshll.u32 %s520, 4
          %s529 = int_to_ptr.vmem [resolvable:$true] %s528
          %531 = dma.hbm_to_vmem [thread:$0]  %s527, 256, %s529, %s517
        $region52: #{tpu_custom_call.1} parent=27 // pred_fallthru
          _
      $region28: #{tpu_custom_call.1} parent=5 // pred_fallthru
        _
      %p532 = scmp.le.s32.totalorder 1, %s30
      %p533 = scmp.lt.s32.totalorder %s30, 3
      %p534 = pnand %p532, %p533
      %p535 = pneg %p534
      // Predicated region
      $region53: #{tpu_custom_call.1} parent=5 // pred_check
        _
      $region54: #{tpu_custom_call.1} parent=5 // pred_check_branch
        %537 = sbr.rel (%p534) target = $region56
      $region55: #{tpu_custom_call.1} parent=5 // pred_region
        %s538 = ssub.s32 %s30, 1
        // Predicated region
        $region57: #{tpu_custom_call.1} parent=55 // pred_check
          %p539 = pneg %p51
        $region58: #{tpu_custom_call.1} parent=55 // pred_check_branch
          %541 = sbr.rel (%p539) target = $region60
        $region59: #{tpu_custom_call.1} parent=55 // pred_region
          %543 = dma.done [#allocation3], 1024
        $region60: #{tpu_custom_call.1} parent=55 // pred_fallthru
          _
        // Predicated region
        $region61: #{tpu_custom_call.1} parent=55 // pred_check
          %p544 = pneg %p72
        $region62: #{tpu_custom_call.1} parent=55 // pred_check_branch
          %546 = sbr.rel (%p544) target = $region64
        $region63: #{tpu_custom_call.1} parent=55 // pred_region
          %548 = dma.done [#allocation6], 128
        $region64: #{tpu_custom_call.1} parent=55 // pred_fallthru
          _
        %s549 = sand.u32 %s35, 1
        %s550 = scalar_lea.sflag [#allocation3], %s549
        %s551 = sand.u32 %s85, 1
        %s552 = smul.addr %s551, 64
        %s553 = scalar_lea.vmem [#allocation7], %s552
        // Predicated region
        $region65: #{tpu_custom_call.1} parent=55 // pred_check
          %p554 = pneg %p98
        $region66: #{tpu_custom_call.1} parent=55 // pred_check_branch
          %556 = sbr.rel (%p554) target = $region68
        $region67: #{tpu_custom_call.1} parent=55 // pred_region
          %558 = dma.done %s550, 1024
        $region68: #{tpu_custom_call.1} parent=55 // pred_fallthru
          _
        %s559 = sand.u32 %s35, 1
        %s560 = scalar_lea.sflag [#allocation3], %s559
        %s561 = sand.u32 %s111, 1
        %s562 = smul.addr %s561, 64
        %s563 = scalar_lea.vmem [#allocation8], %s562
        // Predicated region
        $region69: #{tpu_custom_call.1} parent=55 // pred_check
          %p564 = pneg %p124
        $region70: #{tpu_custom_call.1} parent=55 // pred_check_branch
          %566 = sbr.rel (%p564) target = $region72
        $region71: #{tpu_custom_call.1} parent=55 // pred_region
          %568 = dma.done %s560, 1024
        $region72: #{tpu_custom_call.1} parent=55 // pred_fallthru
          _
        %s569 = sand.u32 %s35, 1
        %s570 = scalar_lea.sflag [#allocation3], %s569
        %s571 = sand.u32 %s137, 1
        %s572 = smul.addr %s571, 64
        %s573 = scalar_lea.vmem [#allocation9], %s572
        // Predicated region
        $region73: #{tpu_custom_call.1} parent=55 // pred_check
          %p574 = pneg %p150
        $region74: #{tpu_custom_call.1} parent=55 // pred_check_branch
          %576 = sbr.rel (%p574) target = $region76
        $region75: #{tpu_custom_call.1} parent=55 // pred_region
          %578 = dma.done %s570, 1024
        $region76: #{tpu_custom_call.1} parent=55 // pred_fallthru
          _
        %s579 = sand.u32 %s35, 1
        %s580 = scalar_lea.sflag [#allocation3], %s579
        %s581 = sand.u32 %s184, 1
        %s582 = smul.addr %s581, 8192
        %s583 = scalar_lea.vmem [#allocation10], %s582
        // Predicated region
        $region77: #{tpu_custom_call.1} parent=55 // pred_check
          %p584 = pneg %p197
        $region78: #{tpu_custom_call.1} parent=55 // pred_check_branch
          %586 = sbr.rel (%p584) target = $region80
        $region79: #{tpu_custom_call.1} parent=55 // pred_region
          %588 = dma.done %s580, 131072
        $region80: #{tpu_custom_call.1} parent=55 // pred_fallthru
          _
        %s589 = sand.u32 %s35, 1
        %s590 = scalar_lea.sflag [#allocation3], %s589
        %s591 = sand.u32 %s210, 1
        %s592 = smul.addr %s591, 1024
        %s593 = scalar_lea.vmem [#allocation11], %s592
        // Predicated region
        $region81: #{tpu_custom_call.1} parent=55 // pred_check
          %p594 = pneg %p223
        $region82: #{tpu_custom_call.1} parent=55 // pred_check_branch
          %596 = sbr.rel (%p594) target = $region84
        $region83: #{tpu_custom_call.1} parent=55 // pred_region
          %598 = dma.done %s590, 16384
        $region84: #{tpu_custom_call.1} parent=55 // pred_fallthru
          _
        %s599 = sand.u32 %s35, 1
        %s600 = scalar_lea.sflag [#allocation3], %s599
        %s601 = sand.u32 %s236, 1
        %s602 = smul.addr %s601, 16
        %s603 = scalar_lea.vmem [#allocation12], %s602
        // Predicated region
        $region85: #{tpu_custom_call.1} parent=55 // pred_check
          %p604 = pneg %p249
        $region86: #{tpu_custom_call.1} parent=55 // pred_check_branch
          %606 = sbr.rel (%p604) target = $region88
        $region87: #{tpu_custom_call.1} parent=55 // pred_region
          %608 = dma.done %s600, 256
        $region88: #{tpu_custom_call.1} parent=55 // pred_fallthru
          _
        %p609 = pneg %p51
        %p610 = pneg %p48
        %p611 = pneg %p72
        %p612 = pneg %p69
        %s613 = sand.u32 %s35, 1
        %s614 = scalar_lea.sflag [#allocation3], %s613
        %s615 = sand.u32 %s85, 1
        %s616 = smul.addr %s615, 64
        %s617 = scalar_lea.vmem [#allocation7], %s616
        %p618 = pneg %p98
        %p619 = pneg %p95
        %s620 = sand.u32 %s35, 1
        %s621 = scalar_lea.sflag [#allocation3], %s620
        %s622 = sand.u32 %s111, 1
        %s623 = smul.addr %s622, 64
        %s624 = scalar_lea.vmem [#allocation8], %s623
        %p625 = pneg %p124
        %p626 = pneg %p121
        %s627 = sand.u32 %s35, 1
        %s628 = scalar_lea.sflag [#allocation3], %s627
        %s629 = sand.u32 %s137, 1
        %s630 = smul.addr %s629, 64
        %s631 = scalar_lea.vmem [#allocation9], %s630
        %p632 = pneg %p150
        %p633 = pneg %p147
        %p634 = pneg %p171
        %p635 = pneg %p168
        %s636 = sand.u32 %s35, 1
        %s637 = scalar_lea.sflag [#allocation3], %s636
        %s638 = sand.u32 %s184, 1
        %s639 = smul.addr %s638, 8192
        %s640 = scalar_lea.vmem [#allocation10], %s639
        %p641 = pneg %p197
        %p642 = pneg %p194
        %s643 = sand.u32 %s35, 1
        %s644 = scalar_lea.sflag [#allocation3], %s643
        %s645 = sand.u32 %s210, 1
        %s646 = smul.addr %s645, 1024
        %s647 = scalar_lea.vmem [#allocation11], %s646
        %p648 = pneg %p223
        %p649 = pneg %p220
        %s650 = sand.u32 %s35, 1
        %s651 = scalar_lea.sflag [#allocation3], %s650
        %s652 = sand.u32 %s236, 1
        %s653 = smul.addr %s652, 16
        %s654 = scalar_lea.vmem [#allocation12], %s653
        %p655 = pneg %p249
        %p656 = pneg %p246
        %p657 = pneg %p275
        %p658 = pneg %p272
        %s659 = sand.u32 %s262, 1
        %s660 = scalar_lea.sflag [#allocation4], %s659
        %s661 = sand.u32 %s262, 1
        %s662 = smul.addr %s661, 64
        %s663 = scalar_lea.vmem [#allocation13], %s662
        %p664 = pneg %p301
        %p665 = pneg %p298
        %s666 = sand.u32 %s35, 1
        %s667 = scalar_lea.sflag [#allocation15], %s666
        %s668 = sand.u32 %s288, 1
        %s669 = smul.addr %s668, 64
        %s670 = scalar_lea.vmem [#allocation14], %s669
        %p671 = pneg %p327
        %p672 = pneg %p324
        %s673 = sand.u32 %s35, 1
        %s674 = scalar_lea.sflag [#allocation15], %s673
        %s675 = sand.u32 %s314, 1
        %s676 = smul.addr %s675, 64
        %s677 = scalar_lea.vmem [#allocation16], %s676
        %p678 = pneg %p353
        %p679 = pneg %p350
        %s680 = sand.u32 %s340, 1
        %s681 = scalar_lea.sflag [#allocation18], %s680
        %s682 = sand.u32 %s340, 1
        %s683 = smul.addr %s682, 64
        %s684 = scalar_lea.vmem [#allocation17], %s683
        %s685 = smul.u32 4, %s35
        %s686 = smul.u32 4, %s35
        %s687 = smul.u32 4, %s35
        %s688 = smul.u32 4, %s35
        %s689 = smul.u32 4, %s35
        %s690 = smul.u32 4, %s35
        %s691 = smul.u32 4, %s35
        %v692 = vld [vmem:[#allocation2] sm:$0xff]
        %v693 = vld [vmem:[#allocation2 + $0x8] sm:$0xff]
        %v694 = vld [vmem:[#allocation2 + $0x10] sm:$0xff]
        %v695 = vld [vmem:[#allocation2 + $0x18] sm:$0xff]
        %v696 = vld [vmem:[#allocation2 + $0x20] sm:$0xff]
        %v697 = vld [vmem:[#allocation2 + $0x28] sm:$0xff]
        %v698 = vld [vmem:[#allocation2 + $0x30] sm:$0xff]
        %v699 = vld [vmem:[#allocation2 + $0x38] sm:$0xff]
        %v700 = vld [vmem:[%s583] sm:$0xff]
        %v701 = vld [vmem:[%s583 + $0x8] sm:$0xff]
        %v702 = vld [vmem:[%s583 + $0x10] sm:$0xff]
        %v703 = vld [vmem:[%s583 + $0x18] sm:$0xff]
        %v704 = vld [vmem:[%s583 + $0x20] sm:$0xff]
        %v705 = vld [vmem:[%s583 + $0x28] sm:$0xff]
        %v706 = vld [vmem:[%s583 + $0x30] sm:$0xff]
        %v707 = vld [vmem:[%s583 + $0x38] sm:$0xff]
        %v708 = vld [vmem:[%s583 + $0x40] sm:$0xff]
        %v709 = vld [vmem:[%s583 + $0x48] sm:$0xff]
        %v710 = vld [vmem:[%s583 + $0x50] sm:$0xff]
        %v711 = vld [vmem:[%s583 + $0x58] sm:$0xff]
        %v712 = vld [vmem:[%s583 + $0x60] sm:$0xff]
        %v713 = vld [vmem:[%s583 + $0x68] sm:$0xff]
        %v714 = vld [vmem:[%s583 + $0x70] sm:$0xff]
        %v715 = vld [vmem:[%s583 + $0x78] sm:$0xff]
        %v716 = vld [vmem:[%s583 + $0x80] sm:$0xff]
        %v717 = vld [vmem:[%s583 + $0x88] sm:$0xff]
        %v718 = vld [vmem:[%s583 + $0x90] sm:$0xff]
        %v719 = vld [vmem:[%s583 + $0x98] sm:$0xff]
        %v720 = vld [vmem:[%s583 + $0xa0] sm:$0xff]
        %v721 = vld [vmem:[%s583 + $0xa8] sm:$0xff]
        %v722 = vld [vmem:[%s583 + $0xb0] sm:$0xff]
        %v723 = vld [vmem:[%s583 + $0xb8] sm:$0xff]
        %v724 = vld [vmem:[%s583 + $0xc0] sm:$0xff]
        %v725 = vld [vmem:[%s583 + $0xc8] sm:$0xff]
        %v726 = vld [vmem:[%s583 + $0xd0] sm:$0xff]
        %v727 = vld [vmem:[%s583 + $0xd8] sm:$0xff]
        %v728 = vld [vmem:[%s583 + $0xe0] sm:$0xff]
        %v729 = vld [vmem:[%s583 + $0xe8] sm:$0xff]
        %v730 = vld [vmem:[%s583 + $0xf0] sm:$0xff]
        %v731 = vld [vmem:[%s583 + $0xf8] sm:$0xff]
        %v732 = vld [vmem:[%s583 + $0x100] sm:$0xff]
        %v733 = vld [vmem:[%s583 + $0x108] sm:$0xff]
        %v734 = vld [vmem:[%s583 + $0x110] sm:$0xff]
        %v735 = vld [vmem:[%s583 + $0x118] sm:$0xff]
        %v736 = vld [vmem:[%s583 + $0x120] sm:$0xff]
        %v737 = vld [vmem:[%s583 + $0x128] sm:$0xff]
        %v738 = vld [vmem:[%s583 + $0x130] sm:$0xff]
        %v739 = vld [vmem:[%s583 + $0x138] sm:$0xff]
        %v740 = vld [vmem:[%s583 + $0x140] sm:$0xff]
        %v741 = vld [vmem:[%s583 + $0x148] sm:$0xff]
        %v742 = vld [vmem:[%s583 + $0x150] sm:$0xff]
        %v743 = vld [vmem:[%s583 + $0x158] sm:$0xff]
        %v744 = vld [vmem:[%s583 + $0x160] sm:$0xff]
        %v745 = vld [vmem:[%s583 + $0x168] sm:$0xff]
        %v746 = vld [vmem:[%s583 + $0x170] sm:$0xff]
        %v747 = vld [vmem:[%s583 + $0x178] sm:$0xff]
        %v748 = vld [vmem:[%s583 + $0x180] sm:$0xff]
        %v749 = vld [vmem:[%s583 + $0x188] sm:$0xff]
        %v750 = vld [vmem:[%s583 + $0x190] sm:$0xff]
        %v751 = vld [vmem:[%s583 + $0x198] sm:$0xff]
        %v752 = vld [vmem:[%s583 + $0x1a0] sm:$0xff]
        %v753 = vld [vmem:[%s583 + $0x1a8] sm:$0xff]
        %v754 = vld [vmem:[%s583 + $0x1b0] sm:$0xff]
        %v755 = vld [vmem:[%s583 + $0x1b8] sm:$0xff]
        %v756 = vld [vmem:[%s583 + $0x1c0] sm:$0xff]
        %v757 = vld [vmem:[%s583 + $0x1c8] sm:$0xff]
        %v758 = vld [vmem:[%s583 + $0x1d0] sm:$0xff]
        %v759 = vld [vmem:[%s583 + $0x1d8] sm:$0xff]
        %v760 = vld [vmem:[%s583 + $0x1e0] sm:$0xff]
        %v761 = vld [vmem:[%s583 + $0x1e8] sm:$0xff]
        %v762 = vld [vmem:[%s583 + $0x1f0] sm:$0xff]
        %v763 = vld [vmem:[%s583 + $0x1f8] sm:$0xff]
        %v764 = vld [vmem:[%s583 + $0x200] sm:$0xff]
        %v765 = vld [vmem:[%s583 + $0x208] sm:$0xff]
        %v766 = vld [vmem:[%s583 + $0x210] sm:$0xff]
        %v767 = vld [vmem:[%s583 + $0x218] sm:$0xff]
        %v768 = vld [vmem:[%s583 + $0x220] sm:$0xff]
        %v769 = vld [vmem:[%s583 + $0x228] sm:$0xff]
        %v770 = vld [vmem:[%s583 + $0x230] sm:$0xff]
        %v771 = vld [vmem:[%s583 + $0x238] sm:$0xff]
        %v772 = vld [vmem:[%s583 + $0x240] sm:$0xff]
        %v773 = vld [vmem:[%s583 + $0x248] sm:$0xff]
        %v774 = vld [vmem:[%s583 + $0x250] sm:$0xff]
        %v775 = vld [vmem:[%s583 + $0x258] sm:$0xff]
        %v776 = vld [vmem:[%s583 + $0x260] sm:$0xff]
        %v777 = vld [vmem:[%s583 + $0x268] sm:$0xff]
        %v778 = vld [vmem:[%s583 + $0x270] sm:$0xff]
        %v779 = vld [vmem:[%s583 + $0x278] sm:$0xff]
        %v780 = vld [vmem:[%s583 + $0x280] sm:$0xff]
        %v781 = vld [vmem:[%s583 + $0x288] sm:$0xff]
        %v782 = vld [vmem:[%s583 + $0x290] sm:$0xff]
        %v783 = vld [vmem:[%s583 + $0x298] sm:$0xff]
        %v784 = vld [vmem:[%s583 + $0x2a0] sm:$0xff]
        %v785 = vld [vmem:[%s583 + $0x2a8] sm:$0xff]
        %v786 = vld [vmem:[%s583 + $0x2b0] sm:$0xff]
        %v787 = vld [vmem:[%s583 + $0x2b8] sm:$0xff]
        %v788 = vld [vmem:[%s583 + $0x2c0] sm:$0xff]
        %v789 = vld [vmem:[%s583 + $0x2c8] sm:$0xff]
        %v790 = vld [vmem:[%s583 + $0x2d0] sm:$0xff]
        %v791 = vld [vmem:[%s583 + $0x2d8] sm:$0xff]
        %v792 = vld [vmem:[%s583 + $0x2e0] sm:$0xff]
        %v793 = vld [vmem:[%s583 + $0x2e8] sm:$0xff]
        %v794 = vld [vmem:[%s583 + $0x2f0] sm:$0xff]
        %v795 = vld [vmem:[%s583 + $0x2f8] sm:$0xff]
        %v796 = vld [vmem:[%s583 + $0x300] sm:$0xff]
        %v797 = vld [vmem:[%s583 + $0x308] sm:$0xff]
        %v798 = vld [vmem:[%s583 + $0x310] sm:$0xff]
        %v799 = vld [vmem:[%s583 + $0x318] sm:$0xff]
        %v800 = vld [vmem:[%s583 + $0x320] sm:$0xff]
        %v801 = vld [vmem:[%s583 + $0x328] sm:$0xff]
        %v802 = vld [vmem:[%s583 + $0x330] sm:$0xff]
        %v803 = vld [vmem:[%s583 + $0x338] sm:$0xff]
        %v804 = vld [vmem:[%s583 + $0x340] sm:$0xff]
        %v805 = vld [vmem:[%s583 + $0x348] sm:$0xff]
        %v806 = vld [vmem:[%s583 + $0x350] sm:$0xff]
        %v807 = vld [vmem:[%s583 + $0x358] sm:$0xff]
        %v808 = vld [vmem:[%s583 + $0x360] sm:$0xff]
        %v809 = vld [vmem:[%s583 + $0x368] sm:$0xff]
        %v810 = vld [vmem:[%s583 + $0x370] sm:$0xff]
        %v811 = vld [vmem:[%s583 + $0x378] sm:$0xff]
        %v812 = vld [vmem:[%s583 + $0x380] sm:$0xff]
        %v813 = vld [vmem:[%s583 + $0x388] sm:$0xff]
        %v814 = vld [vmem:[%s583 + $0x390] sm:$0xff]
        %v815 = vld [vmem:[%s583 + $0x398] sm:$0xff]
        %v816 = vld [vmem:[%s583 + $0x3a0] sm:$0xff]
        %v817 = vld [vmem:[%s583 + $0x3a8] sm:$0xff]
        %v818 = vld [vmem:[%s583 + $0x3b0] sm:$0xff]
        %v819 = vld [vmem:[%s583 + $0x3b8] sm:$0xff]
        %v820 = vld [vmem:[%s583 + $0x3c0] sm:$0xff]
        %v821 = vld [vmem:[%s583 + $0x3c8] sm:$0xff]
        %v822 = vld [vmem:[%s583 + $0x3d0] sm:$0xff]
        %v823 = vld [vmem:[%s583 + $0x3d8] sm:$0xff]
        %v824 = vld [vmem:[%s583 + $0x3e0] sm:$0xff]
        %v825 = vld [vmem:[%s583 + $0x3e8] sm:$0xff]
        %v826 = vld [vmem:[%s583 + $0x3f0] sm:$0xff]
        %v827 = vld [vmem:[%s583 + $0x3f8] sm:$0xff]
        %v828 = vld [vmem:[%s583 + $0x400] sm:$0xff]
        %v829 = vld [vmem:[%s583 + $0x408] sm:$0xff]
        %v830 = vld [vmem:[%s583 + $0x410] sm:$0xff]
        %v831 = vld [vmem:[%s583 + $0x418] sm:$0xff]
        %v832 = vld [vmem:[%s583 + $0x420] sm:$0xff]
        %v833 = vld [vmem:[%s583 + $0x428] sm:$0xff]
        %v834 = vld [vmem:[%s583 + $0x430] sm:$0xff]
        %v835 = vld [vmem:[%s583 + $0x438] sm:$0xff]
        %v836 = vld [vmem:[%s583 + $0x440] sm:$0xff]
        %v837 = vld [vmem:[%s583 + $0x448] sm:$0xff]
        %v838 = vld [vmem:[%s583 + $0x450] sm:$0xff]
        %v839 = vld [vmem:[%s583 + $0x458] sm:$0xff]
        %v840 = vld [vmem:[%s583 + $0x460] sm:$0xff]
        %v841 = vld [vmem:[%s583 + $0x468] sm:$0xff]
        %v842 = vld [vmem:[%s583 + $0x470] sm:$0xff]
        %v843 = vld [vmem:[%s583 + $0x478] sm:$0xff]
        %v844 = vld [vmem:[%s583 + $0x480] sm:$0xff]
        %v845 = vld [vmem:[%s583 + $0x488] sm:$0xff]
        %v846 = vld [vmem:[%s583 + $0x490] sm:$0xff]
        %v847 = vld [vmem:[%s583 + $0x498] sm:$0xff]
        %v848 = vld [vmem:[%s583 + $0x4a0] sm:$0xff]
        %v849 = vld [vmem:[%s583 + $0x4a8] sm:$0xff]
        %v850 = vld [vmem:[%s583 + $0x4b0] sm:$0xff]
        %v851 = vld [vmem:[%s583 + $0x4b8] sm:$0xff]
        %v852 = vld [vmem:[%s583 + $0x4c0] sm:$0xff]
        %v853 = vld [vmem:[%s583 + $0x4c8] sm:$0xff]
        %v854 = vld [vmem:[%s583 + $0x4d0] sm:$0xff]
        %v855 = vld [vmem:[%s583 + $0x4d8] sm:$0xff]
        %v856 = vld [vmem:[%s583 + $0x4e0] sm:$0xff]
        %v857 = vld [vmem:[%s583 + $0x4e8] sm:$0xff]
        %v858 = vld [vmem:[%s583 + $0x4f0] sm:$0xff]
        %v859 = vld [vmem:[%s583 + $0x4f8] sm:$0xff]
        %v860 = vld [vmem:[%s583 + $0x500] sm:$0xff]
        %v861 = vld [vmem:[%s583 + $0x508] sm:$0xff]
        %v862 = vld [vmem:[%s583 + $0x510] sm:$0xff]
        %v863 = vld [vmem:[%s583 + $0x518] sm:$0xff]
        %v864 = vld [vmem:[%s583 + $0x520] sm:$0xff]
        %v865 = vld [vmem:[%s583 + $0x528] sm:$0xff]
        %v866 = vld [vmem:[%s583 + $0x530] sm:$0xff]
        %v867 = vld [vmem:[%s583 + $0x538] sm:$0xff]
        %v868 = vld [vmem:[%s583 + $0x540] sm:$0xff]
        %v869 = vld [vmem:[%s583 + $0x548] sm:$0xff]
        %v870 = vld [vmem:[%s583 + $0x550] sm:$0xff]
        %v871 = vld [vmem:[%s583 + $0x558] sm:$0xff]
        %v872 = vld [vmem:[%s583 + $0x560] sm:$0xff]
        %v873 = vld [vmem:[%s583 + $0x568] sm:$0xff]
        %v874 = vld [vmem:[%s583 + $0x570] sm:$0xff]
        %v875 = vld [vmem:[%s583 + $0x578] sm:$0xff]
        %v876 = vld [vmem:[%s583 + $0x580] sm:$0xff]
        %v877 = vld [vmem:[%s583 + $0x588] sm:$0xff]
        %v878 = vld [vmem:[%s583 + $0x590] sm:$0xff]
        %v879 = vld [vmem:[%s583 + $0x598] sm:$0xff]
        %v880 = vld [vmem:[%s583 + $0x5a0] sm:$0xff]
        %v881 = vld [vmem:[%s583 + $0x5a8] sm:$0xff]
        %v882 = vld [vmem:[%s583 + $0x5b0] sm:$0xff]
        %v883 = vld [vmem:[%s583 + $0x5b8] sm:$0xff]
        %v884 = vld [vmem:[%s583 + $0x5c0] sm:$0xff]
        %v885 = vld [vmem:[%s583 + $0x5c8] sm:$0xff]
        %v886 = vld [vmem:[%s583 + $0x5d0] sm:$0xff]
        %v887 = vld [vmem:[%s583 + $0x5d8] sm:$0xff]
        %v888 = vld [vmem:[%s583 + $0x5e0] sm:$0xff]
        %v889 = vld [vmem:[%s583 + $0x5e8] sm:$0xff]
        %v890 = vld [vmem:[%s583 + $0x5f0] sm:$0xff]
        %v891 = vld [vmem:[%s583 + $0x5f8] sm:$0xff]
        %v892 = vld [vmem:[%s583 + $0x600] sm:$0xff]
        %v893 = vld [vmem:[%s583 + $0x608] sm:$0xff]
        %v894 = vld [vmem:[%s583 + $0x610] sm:$0xff]
        %v895 = vld [vmem:[%s583 + $0x618] sm:$0xff]
        %v896 = vld [vmem:[%s583 + $0x620] sm:$0xff]
        %v897 = vld [vmem:[%s583 + $0x628] sm:$0xff]
        %v898 = vld [vmem:[%s583 + $0x630] sm:$0xff]
        %v899 = vld [vmem:[%s583 + $0x638] sm:$0xff]
        %v900 = vld [vmem:[%s583 + $0x640] sm:$0xff]
        %v901 = vld [vmem:[%s583 + $0x648] sm:$0xff]
        %v902 = vld [vmem:[%s583 + $0x650] sm:$0xff]
        %v903 = vld [vmem:[%s583 + $0x658] sm:$0xff]
        %v904 = vld [vmem:[%s583 + $0x660] sm:$0xff]
        %v905 = vld [vmem:[%s583 + $0x668] sm:$0xff]
        %v906 = vld [vmem:[%s583 + $0x670] sm:$0xff]
        %v907 = vld [vmem:[%s583 + $0x678] sm:$0xff]
        %v908 = vld [vmem:[%s583 + $0x680] sm:$0xff]
        %v909 = vld [vmem:[%s583 + $0x688] sm:$0xff]
        %v910 = vld [vmem:[%s583 + $0x690] sm:$0xff]
        %v911 = vld [vmem:[%s583 + $0x698] sm:$0xff]
        %v912 = vld [vmem:[%s583 + $0x6a0] sm:$0xff]
        %v913 = vld [vmem:[%s583 + $0x6a8] sm:$0xff]
        %v914 = vld [vmem:[%s583 + $0x6b0] sm:$0xff]
        %v915 = vld [vmem:[%s583 + $0x6b8] sm:$0xff]
        %v916 = vld [vmem:[%s583 + $0x6c0] sm:$0xff]
        %v917 = vld [vmem:[%s583 + $0x6c8] sm:$0xff]
        %v918 = vld [vmem:[%s583 + $0x6d0] sm:$0xff]
        %v919 = vld [vmem:[%s583 + $0x6d8] sm:$0xff]
        %v920 = vld [vmem:[%s583 + $0x6e0] sm:$0xff]
        %v921 = vld [vmem:[%s583 + $0x6e8] sm:$0xff]
        %v922 = vld [vmem:[%s583 + $0x6f0] sm:$0xff]
        %v923 = vld [vmem:[%s583 + $0x6f8] sm:$0xff]
        %v924 = vld [vmem:[%s583 + $0x700] sm:$0xff]
        %v925 = vld [vmem:[%s583 + $0x708] sm:$0xff]
        %v926 = vld [vmem:[%s583 + $0x710] sm:$0xff]
        %v927 = vld [vmem:[%s583 + $0x718] sm:$0xff]
        %v928 = vld [vmem:[%s583 + $0x720] sm:$0xff]
        %v929 = vld [vmem:[%s583 + $0x728] sm:$0xff]
        %v930 = vld [vmem:[%s583 + $0x730] sm:$0xff]
        %v931 = vld [vmem:[%s583 + $0x738] sm:$0xff]
        %v932 = vld [vmem:[%s583 + $0x740] sm:$0xff]
        %v933 = vld [vmem:[%s583 + $0x748] sm:$0xff]
        %v934 = vld [vmem:[%s583 + $0x750] sm:$0xff]
        %v935 = vld [vmem:[%s583 + $0x758] sm:$0xff]
        %v936 = vld [vmem:[%s583 + $0x760] sm:$0xff]
        %v937 = vld [vmem:[%s583 + $0x768] sm:$0xff]
        %v938 = vld [vmem:[%s583 + $0x770] sm:$0xff]
        %v939 = vld [vmem:[%s583 + $0x778] sm:$0xff]
        %v940 = vld [vmem:[%s583 + $0x780] sm:$0xff]
        %v941 = vld [vmem:[%s583 + $0x788] sm:$0xff]
        %v942 = vld [vmem:[%s583 + $0x790] sm:$0xff]
        %v943 = vld [vmem:[%s583 + $0x798] sm:$0xff]
        %v944 = vld [vmem:[%s583 + $0x7a0] sm:$0xff]
        %v945 = vld [vmem:[%s583 + $0x7a8] sm:$0xff]
        %v946 = vld [vmem:[%s583 + $0x7b0] sm:$0xff]
        %v947 = vld [vmem:[%s583 + $0x7b8] sm:$0xff]
        %v948 = vld [vmem:[%s583 + $0x7c0] sm:$0xff]
        %v949 = vld [vmem:[%s583 + $0x7c8] sm:$0xff]
        %v950 = vld [vmem:[%s583 + $0x7d0] sm:$0xff]
        %v951 = vld [vmem:[%s583 + $0x7d8] sm:$0xff]
        %v952 = vld [vmem:[%s583 + $0x7e0] sm:$0xff]
        %v953 = vld [vmem:[%s583 + $0x7e8] sm:$0xff]
        %v954 = vld [vmem:[%s583 + $0x7f0] sm:$0xff]
        %v955 = vld [vmem:[%s583 + $0x7f8] sm:$0xff]
        %v956 = vld [vmem:[%s583 + $0x800] sm:$0xff]
        %v957 = vld [vmem:[%s583 + $0x808] sm:$0xff]
        %v958 = vld [vmem:[%s583 + $0x810] sm:$0xff]
        %v959 = vld [vmem:[%s583 + $0x818] sm:$0xff]
        %v960 = vld [vmem:[%s583 + $0x820] sm:$0xff]
        %v961 = vld [vmem:[%s583 + $0x828] sm:$0xff]
        %v962 = vld [vmem:[%s583 + $0x830] sm:$0xff]
        %v963 = vld [vmem:[%s583 + $0x838] sm:$0xff]
        %v964 = vld [vmem:[%s583 + $0x840] sm:$0xff]
        %v965 = vld [vmem:[%s583 + $0x848] sm:$0xff]
        %v966 = vld [vmem:[%s583 + $0x850] sm:$0xff]
        %v967 = vld [vmem:[%s583 + $0x858] sm:$0xff]
        %v968 = vld [vmem:[%s583 + $0x860] sm:$0xff]
        %v969 = vld [vmem:[%s583 + $0x868] sm:$0xff]
        %v970 = vld [vmem:[%s583 + $0x870] sm:$0xff]
        %v971 = vld [vmem:[%s583 + $0x878] sm:$0xff]
        %v972 = vld [vmem:[%s583 + $0x880] sm:$0xff]
        %v973 = vld [vmem:[%s583 + $0x888] sm:$0xff]
        %v974 = vld [vmem:[%s583 + $0x890] sm:$0xff]
        %v975 = vld [vmem:[%s583 + $0x898] sm:$0xff]
        %v976 = vld [vmem:[%s583 + $0x8a0] sm:$0xff]
        %v977 = vld [vmem:[%s583 + $0x8a8] sm:$0xff]
        %v978 = vld [vmem:[%s583 + $0x8b0] sm:$0xff]
        %v979 = vld [vmem:[%s583 + $0x8b8] sm:$0xff]
        %v980 = vld [vmem:[%s583 + $0x8c0] sm:$0xff]
        %v981 = vld [vmem:[%s583 + $0x8c8] sm:$0xff]
        %v982 = vld [vmem:[%s583 + $0x8d0] sm:$0xff]
        %v983 = vld [vmem:[%s583 + $0x8d8] sm:$0xff]
        %v984 = vld [vmem:[%s583 + $0x8e0] sm:$0xff]
        %v985 = vld [vmem:[%s583 + $0x8e8] sm:$0xff]
        %v986 = vld [vmem:[%s583 + $0x8f0] sm:$0xff]
        %v987 = vld [vmem:[%s583 + $0x8f8] sm:$0xff]
        %v988 = vld [vmem:[%s583 + $0x900] sm:$0xff]
        %v989 = vld [vmem:[%s583 + $0x908] sm:$0xff]
        %v990 = vld [vmem:[%s583 + $0x910] sm:$0xff]
        %v991 = vld [vmem:[%s583 + $0x918] sm:$0xff]
        %v992 = vld [vmem:[%s583 + $0x920] sm:$0xff]
        %v993 = vld [vmem:[%s583 + $0x928] sm:$0xff]
        %v994 = vld [vmem:[%s583 + $0x930] sm:$0xff]
        %v995 = vld [vmem:[%s583 + $0x938] sm:$0xff]
        %v996 = vld [vmem:[%s583 + $0x940] sm:$0xff]
        %v997 = vld [vmem:[%s583 + $0x948] sm:$0xff]
        %v998 = vld [vmem:[%s583 + $0x950] sm:$0xff]
        %v999 = vld [vmem:[%s583 + $0x958] sm:$0xff]
        %v1000 = vld [vmem:[%s583 + $0x960] sm:$0xff]
        %v1001 = vld [vmem:[%s583 + $0x968] sm:$0xff]
        %v1002 = vld [vmem:[%s583 + $0x970] sm:$0xff]
        %v1003 = vld [vmem:[%s583 + $0x978] sm:$0xff]
        %v1004 = vld [vmem:[%s583 + $0x980] sm:$0xff]
        %v1005 = vld [vmem:[%s583 + $0x988] sm:$0xff]
        %v1006 = vld [vmem:[%s583 + $0x990] sm:$0xff]
        %v1007 = vld [vmem:[%s583 + $0x998] sm:$0xff]
        %v1008 = vld [vmem:[%s583 + $0x9a0] sm:$0xff]
        %v1009 = vld [vmem:[%s583 + $0x9a8] sm:$0xff]
        %v1010 = vld [vmem:[%s583 + $0x9b0] sm:$0xff]
        %v1011 = vld [vmem:[%s583 + $0x9b8] sm:$0xff]
        %v1012 = vld [vmem:[%s583 + $0x9c0] sm:$0xff]
        %v1013 = vld [vmem:[%s583 + $0x9c8] sm:$0xff]
        %v1014 = vld [vmem:[%s583 + $0x9d0] sm:$0xff]
        %v1015 = vld [vmem:[%s583 + $0x9d8] sm:$0xff]
        %v1016 = vld [vmem:[%s583 + $0x9e0] sm:$0xff]
        %v1017 = vld [vmem:[%s583 + $0x9e8] sm:$0xff]
        %v1018 = vld [vmem:[%s583 + $0x9f0] sm:$0xff]
        %v1019 = vld [vmem:[%s583 + $0x9f8] sm:$0xff]
        %v1020 = vld [vmem:[%s583 + $0xa00] sm:$0xff]
        %v1021 = vld [vmem:[%s583 + $0xa08] sm:$0xff]
        %v1022 = vld [vmem:[%s583 + $0xa10] sm:$0xff]
        %v1023 = vld [vmem:[%s583 + $0xa18] sm:$0xff]
        %v1024 = vld [vmem:[%s583 + $0xa20] sm:$0xff]
        %v1025 = vld [vmem:[%s583 + $0xa28] sm:$0xff]
        %v1026 = vld [vmem:[%s583 + $0xa30] sm:$0xff]
        %v1027 = vld [vmem:[%s583 + $0xa38] sm:$0xff]
        %v1028 = vld [vmem:[%s583 + $0xa40] sm:$0xff]
        %v1029 = vld [vmem:[%s583 + $0xa48] sm:$0xff]
        %v1030 = vld [vmem:[%s583 + $0xa50] sm:$0xff]
        %v1031 = vld [vmem:[%s583 + $0xa58] sm:$0xff]
        %v1032 = vld [vmem:[%s583 + $0xa60] sm:$0xff]
        %v1033 = vld [vmem:[%s583 + $0xa68] sm:$0xff]
        %v1034 = vld [vmem:[%s583 + $0xa70] sm:$0xff]
        %v1035 = vld [vmem:[%s583 + $0xa78] sm:$0xff]
        %v1036 = vld [vmem:[%s583 + $0xa80] sm:$0xff]
        %v1037 = vld [vmem:[%s583 + $0xa88] sm:$0xff]
        %v1038 = vld [vmem:[%s583 + $0xa90] sm:$0xff]
        %v1039 = vld [vmem:[%s583 + $0xa98] sm:$0xff]
        %v1040 = vld [vmem:[%s583 + $0xaa0] sm:$0xff]
        %v1041 = vld [vmem:[%s583 + $0xaa8] sm:$0xff]
        %v1042 = vld [vmem:[%s583 + $0xab0] sm:$0xff]
        %v1043 = vld [vmem:[%s583 + $0xab8] sm:$0xff]
        %v1044 = vld [vmem:[%s583 + $0xac0] sm:$0xff]
        %v1045 = vld [vmem:[%s583 + $0xac8] sm:$0xff]
        %v1046 = vld [vmem:[%s583 + $0xad0] sm:$0xff]
        %v1047 = vld [vmem:[%s583 + $0xad8] sm:$0xff]
        %v1048 = vld [vmem:[%s583 + $0xae0] sm:$0xff]
        %v1049 = vld [vmem:[%s583 + $0xae8] sm:$0xff]
        %v1050 = vld [vmem:[%s583 + $0xaf0] sm:$0xff]
        %v1051 = vld [vmem:[%s583 + $0xaf8] sm:$0xff]
        %v1052 = vld [vmem:[%s583 + $0xb00] sm:$0xff]
        %v1053 = vld [vmem:[%s583 + $0xb08] sm:$0xff]
        %v1054 = vld [vmem:[%s583 + $0xb10] sm:$0xff]
        %v1055 = vld [vmem:[%s583 + $0xb18] sm:$0xff]
        %v1056 = vld [vmem:[%s583 + $0xb20] sm:$0xff]
        %v1057 = vld [vmem:[%s583 + $0xb28] sm:$0xff]
        %v1058 = vld [vmem:[%s583 + $0xb30] sm:$0xff]
        %v1059 = vld [vmem:[%s583 + $0xb38] sm:$0xff]
        %v1060 = vld [vmem:[%s583 + $0xb40] sm:$0xff]
        %v1061 = vld [vmem:[%s583 + $0xb48] sm:$0xff]
        %v1062 = vld [vmem:[%s583 + $0xb50] sm:$0xff]
        %v1063 = vld [vmem:[%s583 + $0xb58] sm:$0xff]
        %v1064 = vld [vmem:[%s583 + $0xb60] sm:$0xff]
        %v1065 = vld [vmem:[%s583 + $0xb68] sm:$0xff]
        %v1066 = vld [vmem:[%s583 + $0xb70] sm:$0xff]
        %v1067 = vld [vmem:[%s583 + $0xb78] sm:$0xff]
        %v1068 = vld [vmem:[%s583 + $0xb80] sm:$0xff]
        %v1069 = vld [vmem:[%s583 + $0xb88] sm:$0xff]
        %v1070 = vld [vmem:[%s583 + $0xb90] sm:$0xff]
        %v1071 = vld [vmem:[%s583 + $0xb98] sm:$0xff]
        %v1072 = vld [vmem:[%s583 + $0xba0] sm:$0xff]
        %v1073 = vld [vmem:[%s583 + $0xba8] sm:$0xff]
        %v1074 = vld [vmem:[%s583 + $0xbb0] sm:$0xff]
        %v1075 = vld [vmem:[%s583 + $0xbb8] sm:$0xff]
        %v1076 = vld [vmem:[%s583 + $0xbc0] sm:$0xff]
        %v1077 = vld [vmem:[%s583 + $0xbc8] sm:$0xff]
        %v1078 = vld [vmem:[%s583 + $0xbd0] sm:$0xff]
        %v1079 = vld [vmem:[%s583 + $0xbd8] sm:$0xff]
        %v1080 = vld [vmem:[%s583 + $0xbe0] sm:$0xff]
        %v1081 = vld [vmem:[%s583 + $0xbe8] sm:$0xff]
        %v1082 = vld [vmem:[%s583 + $0xbf0] sm:$0xff]
        %v1083 = vld [vmem:[%s583 + $0xbf8] sm:$0xff]
        %v1084 = vld [vmem:[%s583 + $0xc00] sm:$0xff]
        %v1085 = vld [vmem:[%s583 + $0xc08] sm:$0xff]
        %v1086 = vld [vmem:[%s583 + $0xc10] sm:$0xff]
        %v1087 = vld [vmem:[%s583 + $0xc18] sm:$0xff]
        %v1088 = vld [vmem:[%s583 + $0xc20] sm:$0xff]
        %v1089 = vld [vmem:[%s583 + $0xc28] sm:$0xff]
        %v1090 = vld [vmem:[%s583 + $0xc30] sm:$0xff]
        %v1091 = vld [vmem:[%s583 + $0xc38] sm:$0xff]
        %v1092 = vld [vmem:[%s583 + $0xc40] sm:$0xff]
        %v1093 = vld [vmem:[%s583 + $0xc48] sm:$0xff]
        %v1094 = vld [vmem:[%s583 + $0xc50] sm:$0xff]
        %v1095 = vld [vmem:[%s583 + $0xc58] sm:$0xff]
        %v1096 = vld [vmem:[%s583 + $0xc60] sm:$0xff]
        %v1097 = vld [vmem:[%s583 + $0xc68] sm:$0xff]
        %v1098 = vld [vmem:[%s583 + $0xc70] sm:$0xff]
        %v1099 = vld [vmem:[%s583 + $0xc78] sm:$0xff]
        %v1100 = vld [vmem:[%s583 + $0xc80] sm:$0xff]
        %v1101 = vld [vmem:[%s583 + $0xc88] sm:$0xff]
        %v1102 = vld [vmem:[%s583 + $0xc90] sm:$0xff]
        %v1103 = vld [vmem:[%s583 + $0xc98] sm:$0xff]
        %v1104 = vld [vmem:[%s583 + $0xca0] sm:$0xff]
        %v1105 = vld [vmem:[%s583 + $0xca8] sm:$0xff]
        %v1106 = vld [vmem:[%s583 + $0xcb0] sm:$0xff]
        %v1107 = vld [vmem:[%s583 + $0xcb8] sm:$0xff]
        %v1108 = vld [vmem:[%s583 + $0xcc0] sm:$0xff]
        %v1109 = vld [vmem:[%s583 + $0xcc8] sm:$0xff]
        %v1110 = vld [vmem:[%s583 + $0xcd0] sm:$0xff]
        %v1111 = vld [vmem:[%s583 + $0xcd8] sm:$0xff]
        %v1112 = vld [vmem:[%s583 + $0xce0] sm:$0xff]
        %v1113 = vld [vmem:[%s583 + $0xce8] sm:$0xff]
        %v1114 = vld [vmem:[%s583 + $0xcf0] sm:$0xff]
        %v1115 = vld [vmem:[%s583 + $0xcf8] sm:$0xff]
        %v1116 = vld [vmem:[%s583 + $0xd00] sm:$0xff]
        %v1117 = vld [vmem:[%s583 + $0xd08] sm:$0xff]
        %v1118 = vld [vmem:[%s583 + $0xd10] sm:$0xff]
        %v1119 = vld [vmem:[%s583 + $0xd18] sm:$0xff]
        %v1120 = vld [vmem:[%s583 + $0xd20] sm:$0xff]
        %v1121 = vld [vmem:[%s583 + $0xd28] sm:$0xff]
        %v1122 = vld [vmem:[%s583 + $0xd30] sm:$0xff]
        %v1123 = vld [vmem:[%s583 + $0xd38] sm:$0xff]
        %v1124 = vld [vmem:[%s583 + $0xd40] sm:$0xff]
        %v1125 = vld [vmem:[%s583 + $0xd48] sm:$0xff]
        %v1126 = vld [vmem:[%s583 + $0xd50] sm:$0xff]
        %v1127 = vld [vmem:[%s583 + $0xd58] sm:$0xff]
        %v1128 = vld [vmem:[%s583 + $0xd60] sm:$0xff]
        %v1129 = vld [vmem:[%s583 + $0xd68] sm:$0xff]
        %v1130 = vld [vmem:[%s583 + $0xd70] sm:$0xff]
        %v1131 = vld [vmem:[%s583 + $0xd78] sm:$0xff]
        %v1132 = vld [vmem:[%s583 + $0xd80] sm:$0xff]
        %v1133 = vld [vmem:[%s583 + $0xd88] sm:$0xff]
        %v1134 = vld [vmem:[%s583 + $0xd90] sm:$0xff]
        %v1135 = vld [vmem:[%s583 + $0xd98] sm:$0xff]
        %v1136 = vld [vmem:[%s583 + $0xda0] sm:$0xff]
        %v1137 = vld [vmem:[%s583 + $0xda8] sm:$0xff]
        %v1138 = vld [vmem:[%s583 + $0xdb0] sm:$0xff]
        %v1139 = vld [vmem:[%s583 + $0xdb8] sm:$0xff]
        %v1140 = vld [vmem:[%s583 + $0xdc0] sm:$0xff]
        %v1141 = vld [vmem:[%s583 + $0xdc8] sm:$0xff]
        %v1142 = vld [vmem:[%s583 + $0xdd0] sm:$0xff]
        %v1143 = vld [vmem:[%s583 + $0xdd8] sm:$0xff]
        %v1144 = vld [vmem:[%s583 + $0xde0] sm:$0xff]
        %v1145 = vld [vmem:[%s583 + $0xde8] sm:$0xff]
        %v1146 = vld [vmem:[%s583 + $0xdf0] sm:$0xff]
        %v1147 = vld [vmem:[%s583 + $0xdf8] sm:$0xff]
        %v1148 = vld [vmem:[%s583 + $0xe00] sm:$0xff]
        %v1149 = vld [vmem:[%s583 + $0xe08] sm:$0xff]
        %v1150 = vld [vmem:[%s583 + $0xe10] sm:$0xff]
        %v1151 = vld [vmem:[%s583 + $0xe18] sm:$0xff]
        %v1152 = vld [vmem:[%s583 + $0xe20] sm:$0xff]
        %v1153 = vld [vmem:[%s583 + $0xe28] sm:$0xff]
        %v1154 = vld [vmem:[%s583 + $0xe30] sm:$0xff]
        %v1155 = vld [vmem:[%s583 + $0xe38] sm:$0xff]
        %v1156 = vld [vmem:[%s583 + $0xe40] sm:$0xff]
        %v1157 = vld [vmem:[%s583 + $0xe48] sm:$0xff]
        %v1158 = vld [vmem:[%s583 + $0xe50] sm:$0xff]
        %v1159 = vld [vmem:[%s583 + $0xe58] sm:$0xff]
        %v1160 = vld [vmem:[%s583 + $0xe60] sm:$0xff]
        %v1161 = vld [vmem:[%s583 + $0xe68] sm:$0xff]
        %v1162 = vld [vmem:[%s583 + $0xe70] sm:$0xff]
        %v1163 = vld [vmem:[%s583 + $0xe78] sm:$0xff]
        %v1164 = vld [vmem:[%s583 + $0xe80] sm:$0xff]
        %v1165 = vld [vmem:[%s583 + $0xe88] sm:$0xff]
        %v1166 = vld [vmem:[%s583 + $0xe90] sm:$0xff]
        %v1167 = vld [vmem:[%s583 + $0xe98] sm:$0xff]
        %v1168 = vld [vmem:[%s583 + $0xea0] sm:$0xff]
        %v1169 = vld [vmem:[%s583 + $0xea8] sm:$0xff]
        %v1170 = vld [vmem:[%s583 + $0xeb0] sm:$0xff]
        %v1171 = vld [vmem:[%s583 + $0xeb8] sm:$0xff]
        %v1172 = vld [vmem:[%s583 + $0xec0] sm:$0xff]
        %v1173 = vld [vmem:[%s583 + $0xec8] sm:$0xff]
        %v1174 = vld [vmem:[%s583 + $0xed0] sm:$0xff]
        %v1175 = vld [vmem:[%s583 + $0xed8] sm:$0xff]
        %v1176 = vld [vmem:[%s583 + $0xee0] sm:$0xff]
        %v1177 = vld [vmem:[%s583 + $0xee8] sm:$0xff]
        %v1178 = vld [vmem:[%s583 + $0xef0] sm:$0xff]
        %v1179 = vld [vmem:[%s583 + $0xef8] sm:$0xff]
        %v1180 = vld [vmem:[%s583 + $0xf00] sm:$0xff]
        %v1181 = vld [vmem:[%s583 + $0xf08] sm:$0xff]
        %v1182 = vld [vmem:[%s583 + $0xf10] sm:$0xff]
        %v1183 = vld [vmem:[%s583 + $0xf18] sm:$0xff]
        %v1184 = vld [vmem:[%s583 + $0xf20] sm:$0xff]
        %v1185 = vld [vmem:[%s583 + $0xf28] sm:$0xff]
        %v1186 = vld [vmem:[%s583 + $0xf30] sm:$0xff]
        %v1187 = vld [vmem:[%s583 + $0xf38] sm:$0xff]
        %v1188 = vld [vmem:[%s583 + $0xf40] sm:$0xff]
        %v1189 = vld [vmem:[%s583 + $0xf48] sm:$0xff]
        %v1190 = vld [vmem:[%s583 + $0xf50] sm:$0xff]
        %v1191 = vld [vmem:[%s583 + $0xf58] sm:$0xff]
        %v1192 = vld [vmem:[%s583 + $0xf60] sm:$0xff]
        %v1193 = vld [vmem:[%s583 + $0xf68] sm:$0xff]
        %v1194 = vld [vmem:[%s583 + $0xf70] sm:$0xff]
        %v1195 = vld [vmem:[%s583 + $0xf78] sm:$0xff]
        %v1196 = vld [vmem:[%s583 + $0xf80] sm:$0xff]
        %v1197 = vld [vmem:[%s583 + $0xf88] sm:$0xff]
        %v1198 = vld [vmem:[%s583 + $0xf90] sm:$0xff]
        %v1199 = vld [vmem:[%s583 + $0xf98] sm:$0xff]
        %v1200 = vld [vmem:[%s583 + $0xfa0] sm:$0xff]
        %v1201 = vld [vmem:[%s583 + $0xfa8] sm:$0xff]
        %v1202 = vld [vmem:[%s583 + $0xfb0] sm:$0xff]
        %v1203 = vld [vmem:[%s583 + $0xfb8] sm:$0xff]
        %v1204 = vld [vmem:[%s583 + $0xfc0] sm:$0xff]
        %v1205 = vld [vmem:[%s583 + $0xfc8] sm:$0xff]
        %v1206 = vld [vmem:[%s583 + $0xfd0] sm:$0xff]
        %v1207 = vld [vmem:[%s583 + $0xfd8] sm:$0xff]
        %v1208 = vld [vmem:[%s583 + $0xfe0] sm:$0xff]
        %v1209 = vld [vmem:[%s583 + $0xfe8] sm:$0xff]
        %v1210 = vld [vmem:[%s583 + $0xff0] sm:$0xff]
        %v1211 = vld [vmem:[%s583 + $0xff8] sm:$0xff]
        %v1212 = vld [vmem:[%s583 + $0x1000] sm:$0xff]
        %v1213 = vld [vmem:[%s583 + $0x1008] sm:$0xff]
        %v1214 = vld [vmem:[%s583 + $0x1010] sm:$0xff]
        %v1215 = vld [vmem:[%s583 + $0x1018] sm:$0xff]
        %v1216 = vld [vmem:[%s583 + $0x1020] sm:$0xff]
        %v1217 = vld [vmem:[%s583 + $0x1028] sm:$0xff]
        %v1218 = vld [vmem:[%s583 + $0x1030] sm:$0xff]
        %v1219 = vld [vmem:[%s583 + $0x1038] sm:$0xff]
        %v1220 = vld [vmem:[%s583 + $0x1040] sm:$0xff]
        %v1221 = vld [vmem:[%s583 + $0x1048] sm:$0xff]
        %v1222 = vld [vmem:[%s583 + $0x1050] sm:$0xff]
        %v1223 = vld [vmem:[%s583 + $0x1058] sm:$0xff]
        %v1224 = vld [vmem:[%s583 + $0x1060] sm:$0xff]
        %v1225 = vld [vmem:[%s583 + $0x1068] sm:$0xff]
        %v1226 = vld [vmem:[%s583 + $0x1070] sm:$0xff]
        %v1227 = vld [vmem:[%s583 + $0x1078] sm:$0xff]
        %v1228 = vld [vmem:[%s583 + $0x1080] sm:$0xff]
        %v1229 = vld [vmem:[%s583 + $0x1088] sm:$0xff]
        %v1230 = vld [vmem:[%s583 + $0x1090] sm:$0xff]
        %v1231 = vld [vmem:[%s583 + $0x1098] sm:$0xff]
        %v1232 = vld [vmem:[%s583 + $0x10a0] sm:$0xff]
        %v1233 = vld [vmem:[%s583 + $0x10a8] sm:$0xff]
        %v1234 = vld [vmem:[%s583 + $0x10b0] sm:$0xff]
        %v1235 = vld [vmem:[%s583 + $0x10b8] sm:$0xff]
        %v1236 = vld [vmem:[%s583 + $0x10c0] sm:$0xff]
        %v1237 = vld [vmem:[%s583 + $0x10c8] sm:$0xff]
        %v1238 = vld [vmem:[%s583 + $0x10d0] sm:$0xff]
        %v1239 = vld [vmem:[%s583 + $0x10d8] sm:$0xff]
        %v1240 = vld [vmem:[%s583 + $0x10e0] sm:$0xff]
        %v1241 = vld [vmem:[%s583 + $0x10e8] sm:$0xff]
        %v1242 = vld [vmem:[%s583 + $0x10f0] sm:$0xff]
        %v1243 = vld [vmem:[%s583 + $0x10f8] sm:$0xff]
        %v1244 = vld [vmem:[%s583 + $0x1100] sm:$0xff]
        %v1245 = vld [vmem:[%s583 + $0x1108] sm:$0xff]
        %v1246 = vld [vmem:[%s583 + $0x1110] sm:$0xff]
        %v1247 = vld [vmem:[%s583 + $0x1118] sm:$0xff]
        %v1248 = vld [vmem:[%s583 + $0x1120] sm:$0xff]
        %v1249 = vld [vmem:[%s583 + $0x1128] sm:$0xff]
        %v1250 = vld [vmem:[%s583 + $0x1130] sm:$0xff]
        %v1251 = vld [vmem:[%s583 + $0x1138] sm:$0xff]
        %v1252 = vld [vmem:[%s583 + $0x1140] sm:$0xff]
        %v1253 = vld [vmem:[%s583 + $0x1148] sm:$0xff]
        %v1254 = vld [vmem:[%s583 + $0x1150] sm:$0xff]
        %v1255 = vld [vmem:[%s583 + $0x1158] sm:$0xff]
        %v1256 = vld [vmem:[%s583 + $0x1160] sm:$0xff]
        %v1257 = vld [vmem:[%s583 + $0x1168] sm:$0xff]
        %v1258 = vld [vmem:[%s583 + $0x1170] sm:$0xff]
        %v1259 = vld [vmem:[%s583 + $0x1178] sm:$0xff]
        %v1260 = vld [vmem:[%s583 + $0x1180] sm:$0xff]
        %v1261 = vld [vmem:[%s583 + $0x1188] sm:$0xff]
        %v1262 = vld [vmem:[%s583 + $0x1190] sm:$0xff]
        %v1263 = vld [vmem:[%s583 + $0x1198] sm:$0xff]
        %v1264 = vld [vmem:[%s583 + $0x11a0] sm:$0xff]
        %v1265 = vld [vmem:[%s583 + $0x11a8] sm:$0xff]
        %v1266 = vld [vmem:[%s583 + $0x11b0] sm:$0xff]
        %v1267 = vld [vmem:[%s583 + $0x11b8] sm:$0xff]
        %v1268 = vld [vmem:[%s583 + $0x11c0] sm:$0xff]
        %v1269 = vld [vmem:[%s583 + $0x11c8] sm:$0xff]
        %v1270 = vld [vmem:[%s583 + $0x11d0] sm:$0xff]
        %v1271 = vld [vmem:[%s583 + $0x11d8] sm:$0xff]
        %v1272 = vld [vmem:[%s583 + $0x11e0] sm:$0xff]
        %v1273 = vld [vmem:[%s583 + $0x11e8] sm:$0xff]
        %v1274 = vld [vmem:[%s583 + $0x11f0] sm:$0xff]
        %v1275 = vld [vmem:[%s583 + $0x11f8] sm:$0xff]
        %v1276 = vld [vmem:[%s583 + $0x1200] sm:$0xff]
        %v1277 = vld [vmem:[%s583 + $0x1208] sm:$0xff]
        %v1278 = vld [vmem:[%s583 + $0x1210] sm:$0xff]
        %v1279 = vld [vmem:[%s583 + $0x1218] sm:$0xff]
        %v1280 = vld [vmem:[%s583 + $0x1220] sm:$0xff]
        %v1281 = vld [vmem:[%s583 + $0x1228] sm:$0xff]
        %v1282 = vld [vmem:[%s583 + $0x1230] sm:$0xff]
        %v1283 = vld [vmem:[%s583 + $0x1238] sm:$0xff]
        %v1284 = vld [vmem:[%s583 + $0x1240] sm:$0xff]
        %v1285 = vld [vmem:[%s583 + $0x1248] sm:$0xff]
        %v1286 = vld [vmem:[%s583 + $0x1250] sm:$0xff]
        %v1287 = vld [vmem:[%s583 + $0x1258] sm:$0xff]
        %v1288 = vld [vmem:[%s583 + $0x1260] sm:$0xff]
        %v1289 = vld [vmem:[%s583 + $0x1268] sm:$0xff]
        %v1290 = vld [vmem:[%s583 + $0x1270] sm:$0xff]
        %v1291 = vld [vmem:[%s583 + $0x1278] sm:$0xff]
        %v1292 = vld [vmem:[%s583 + $0x1280] sm:$0xff]
        %v1293 = vld [vmem:[%s583 + $0x1288] sm:$0xff]
        %v1294 = vld [vmem:[%s583 + $0x1290] sm:$0xff]
        %v1295 = vld [vmem:[%s583 + $0x1298] sm:$0xff]
        %v1296 = vld [vmem:[%s583 + $0x12a0] sm:$0xff]
        %v1297 = vld [vmem:[%s583 + $0x12a8] sm:$0xff]
        %v1298 = vld [vmem:[%s583 + $0x12b0] sm:$0xff]
        %v1299 = vld [vmem:[%s583 + $0x12b8] sm:$0xff]
        %v1300 = vld [vmem:[%s583 + $0x12c0] sm:$0xff]
        %v1301 = vld [vmem:[%s583 + $0x12c8] sm:$0xff]
        %v1302 = vld [vmem:[%s583 + $0x12d0] sm:$0xff]
        %v1303 = vld [vmem:[%s583 + $0x12d8] sm:$0xff]
        %v1304 = vld [vmem:[%s583 + $0x12e0] sm:$0xff]
        %v1305 = vld [vmem:[%s583 + $0x12e8] sm:$0xff]
        %v1306 = vld [vmem:[%s583 + $0x12f0] sm:$0xff]
        %v1307 = vld [vmem:[%s583 + $0x12f8] sm:$0xff]
        %v1308 = vld [vmem:[%s583 + $0x1300] sm:$0xff]
        %v1309 = vld [vmem:[%s583 + $0x1308] sm:$0xff]
        %v1310 = vld [vmem:[%s583 + $0x1310] sm:$0xff]
        %v1311 = vld [vmem:[%s583 + $0x1318] sm:$0xff]
        %v1312 = vld [vmem:[%s583 + $0x1320] sm:$0xff]
        %v1313 = vld [vmem:[%s583 + $0x1328] sm:$0xff]
        %v1314 = vld [vmem:[%s583 + $0x1330] sm:$0xff]
        %v1315 = vld [vmem:[%s583 + $0x1338] sm:$0xff]
        %v1316 = vld [vmem:[%s583 + $0x1340] sm:$0xff]
        %v1317 = vld [vmem:[%s583 + $0x1348] sm:$0xff]
        %v1318 = vld [vmem:[%s583 + $0x1350] sm:$0xff]
        %v1319 = vld [vmem:[%s583 + $0x1358] sm:$0xff]
        %v1320 = vld [vmem:[%s583 + $0x1360] sm:$0xff]
        %v1321 = vld [vmem:[%s583 + $0x1368] sm:$0xff]
        %v1322 = vld [vmem:[%s583 + $0x1370] sm:$0xff]
        %v1323 = vld [vmem:[%s583 + $0x1378] sm:$0xff]
        %v1324 = vld [vmem:[%s583 + $0x1380] sm:$0xff]
        %v1325 = vld [vmem:[%s583 + $0x1388] sm:$0xff]
        %v1326 = vld [vmem:[%s583 + $0x1390] sm:$0xff]
        %v1327 = vld [vmem:[%s583 + $0x1398] sm:$0xff]
        %v1328 = vld [vmem:[%s583 + $0x13a0] sm:$0xff]
        %v1329 = vld [vmem:[%s583 + $0x13a8] sm:$0xff]
        %v1330 = vld [vmem:[%s583 + $0x13b0] sm:$0xff]
        %v1331 = vld [vmem:[%s583 + $0x13b8] sm:$0xff]
        %v1332 = vld [vmem:[%s583 + $0x13c0] sm:$0xff]
        %v1333 = vld [vmem:[%s583 + $0x13c8] sm:$0xff]
        %v1334 = vld [vmem:[%s583 + $0x13d0] sm:$0xff]
        %v1335 = vld [vmem:[%s583 + $0x13d8] sm:$0xff]
        %v1336 = vld [vmem:[%s583 + $0x13e0] sm:$0xff]
        %v1337 = vld [vmem:[%s583 + $0x13e8] sm:$0xff]
        %v1338 = vld [vmem:[%s583 + $0x13f0] sm:$0xff]
        %v1339 = vld [vmem:[%s583 + $0x13f8] sm:$0xff]
        %v1340 = vld [vmem:[%s583 + $0x1400] sm:$0xff]
        %v1341 = vld [vmem:[%s583 + $0x1408] sm:$0xff]
        %v1342 = vld [vmem:[%s583 + $0x1410] sm:$0xff]
        %v1343 = vld [vmem:[%s583 + $0x1418] sm:$0xff]
        %v1344 = vld [vmem:[%s583 + $0x1420] sm:$0xff]
        %v1345 = vld [vmem:[%s583 + $0x1428] sm:$0xff]
        %v1346 = vld [vmem:[%s583 + $0x1430] sm:$0xff]
        %v1347 = vld [vmem:[%s583 + $0x1438] sm:$0xff]
        %v1348 = vld [vmem:[%s583 + $0x1440] sm:$0xff]
        %v1349 = vld [vmem:[%s583 + $0x1448] sm:$0xff]
        %v1350 = vld [vmem:[%s583 + $0x1450] sm:$0xff]
        %v1351 = vld [vmem:[%s583 + $0x1458] sm:$0xff]
        %v1352 = vld [vmem:[%s583 + $0x1460] sm:$0xff]
        %v1353 = vld [vmem:[%s583 + $0x1468] sm:$0xff]
        %v1354 = vld [vmem:[%s583 + $0x1470] sm:$0xff]
        %v1355 = vld [vmem:[%s583 + $0x1478] sm:$0xff]
        %v1356 = vld [vmem:[%s583 + $0x1480] sm:$0xff]
        %v1357 = vld [vmem:[%s583 + $0x1488] sm:$0xff]
        %v1358 = vld [vmem:[%s583 + $0x1490] sm:$0xff]
        %v1359 = vld [vmem:[%s583 + $0x1498] sm:$0xff]
        %v1360 = vld [vmem:[%s583 + $0x14a0] sm:$0xff]
        %v1361 = vld [vmem:[%s583 + $0x14a8] sm:$0xff]
        %v1362 = vld [vmem:[%s583 + $0x14b0] sm:$0xff]
        %v1363 = vld [vmem:[%s583 + $0x14b8] sm:$0xff]
        %v1364 = vld [vmem:[%s583 + $0x14c0] sm:$0xff]
        %v1365 = vld [vmem:[%s583 + $0x14c8] sm:$0xff]
        %v1366 = vld [vmem:[%s583 + $0x14d0] sm:$0xff]
        %v1367 = vld [vmem:[%s583 + $0x14d8] sm:$0xff]
        %v1368 = vld [vmem:[%s583 + $0x14e0] sm:$0xff]
        %v1369 = vld [vmem:[%s583 + $0x14e8] sm:$0xff]
        %v1370 = vld [vmem:[%s583 + $0x14f0] sm:$0xff]
        %v1371 = vld [vmem:[%s583 + $0x14f8] sm:$0xff]
        %v1372 = vld [vmem:[%s583 + $0x1500] sm:$0xff]
        %v1373 = vld [vmem:[%s583 + $0x1508] sm:$0xff]
        %v1374 = vld [vmem:[%s583 + $0x1510] sm:$0xff]
        %v1375 = vld [vmem:[%s583 + $0x1518] sm:$0xff]
        %v1376 = vld [vmem:[%s583 + $0x1520] sm:$0xff]
        %v1377 = vld [vmem:[%s583 + $0x1528] sm:$0xff]
        %v1378 = vld [vmem:[%s583 + $0x1530] sm:$0xff]
        %v1379 = vld [vmem:[%s583 + $0x1538] sm:$0xff]
        %v1380 = vld [vmem:[%s583 + $0x1540] sm:$0xff]
        %v1381 = vld [vmem:[%s583 + $0x1548] sm:$0xff]
        %v1382 = vld [vmem:[%s583 + $0x1550] sm:$0xff]
        %v1383 = vld [vmem:[%s583 + $0x1558] sm:$0xff]
        %v1384 = vld [vmem:[%s583 + $0x1560] sm:$0xff]
        %v1385 = vld [vmem:[%s583 + $0x1568] sm:$0xff]
        %v1386 = vld [vmem:[%s583 + $0x1570] sm:$0xff]
        %v1387 = vld [vmem:[%s583 + $0x1578] sm:$0xff]
        %v1388 = vld [vmem:[%s583 + $0x1580] sm:$0xff]
        %v1389 = vld [vmem:[%s583 + $0x1588] sm:$0xff]
        %v1390 = vld [vmem:[%s583 + $0x1590] sm:$0xff]
        %v1391 = vld [vmem:[%s583 + $0x1598] sm:$0xff]
        %v1392 = vld [vmem:[%s583 + $0x15a0] sm:$0xff]
        %v1393 = vld [vmem:[%s583 + $0x15a8] sm:$0xff]
        %v1394 = vld [vmem:[%s583 + $0x15b0] sm:$0xff]
        %v1395 = vld [vmem:[%s583 + $0x15b8] sm:$0xff]
        %v1396 = vld [vmem:[%s583 + $0x15c0] sm:$0xff]
        %v1397 = vld [vmem:[%s583 + $0x15c8] sm:$0xff]
        %v1398 = vld [vmem:[%s583 + $0x15d0] sm:$0xff]
        %v1399 = vld [vmem:[%s583 + $0x15d8] sm:$0xff]
        %v1400 = vld [vmem:[%s583 + $0x15e0] sm:$0xff]
        %v1401 = vld [vmem:[%s583 + $0x15e8] sm:$0xff]
        %v1402 = vld [vmem:[%s583 + $0x15f0] sm:$0xff]
        %v1403 = vld [vmem:[%s583 + $0x15f8] sm:$0xff]
        %v1404 = vld [vmem:[%s583 + $0x1600] sm:$0xff]
        %v1405 = vld [vmem:[%s583 + $0x1608] sm:$0xff]
        %v1406 = vld [vmem:[%s583 + $0x1610] sm:$0xff]
        %v1407 = vld [vmem:[%s583 + $0x1618] sm:$0xff]
        %v1408 = vld [vmem:[%s583 + $0x1620] sm:$0xff]
        %v1409 = vld [vmem:[%s583 + $0x1628] sm:$0xff]
        %v1410 = vld [vmem:[%s583 + $0x1630] sm:$0xff]
        %v1411 = vld [vmem:[%s583 + $0x1638] sm:$0xff]
        %v1412 = vld [vmem:[%s583 + $0x1640] sm:$0xff]
        %v1413 = vld [vmem:[%s583 + $0x1648] sm:$0xff]
        %v1414 = vld [vmem:[%s583 + $0x1650] sm:$0xff]
        %v1415 = vld [vmem:[%s583 + $0x1658] sm:$0xff]
        %v1416 = vld [vmem:[%s583 + $0x1660] sm:$0xff]
        %v1417 = vld [vmem:[%s583 + $0x1668] sm:$0xff]
        %v1418 = vld [vmem:[%s583 + $0x1670] sm:$0xff]
        %v1419 = vld [vmem:[%s583 + $0x1678] sm:$0xff]
        %v1420 = vld [vmem:[%s583 + $0x1680] sm:$0xff]
        %v1421 = vld [vmem:[%s583 + $0x1688] sm:$0xff]
        %v1422 = vld [vmem:[%s583 + $0x1690] sm:$0xff]
        %v1423 = vld [vmem:[%s583 + $0x1698] sm:$0xff]
        %v1424 = vld [vmem:[%s583 + $0x16a0] sm:$0xff]
        %v1425 = vld [vmem:[%s583 + $0x16a8] sm:$0xff]
        %v1426 = vld [vmem:[%s583 + $0x16b0] sm:$0xff]
        %v1427 = vld [vmem:[%s583 + $0x16b8] sm:$0xff]
        %v1428 = vld [vmem:[%s583 + $0x16c0] sm:$0xff]
        %v1429 = vld [vmem:[%s583 + $0x16c8] sm:$0xff]
        %v1430 = vld [vmem:[%s583 + $0x16d0] sm:$0xff]
        %v1431 = vld [vmem:[%s583 + $0x16d8] sm:$0xff]
        %v1432 = vld [vmem:[%s583 + $0x16e0] sm:$0xff]
        %v1433 = vld [vmem:[%s583 + $0x16e8] sm:$0xff]
        %v1434 = vld [vmem:[%s583 + $0x16f0] sm:$0xff]
        %v1435 = vld [vmem:[%s583 + $0x16f8] sm:$0xff]
        %v1436 = vld [vmem:[%s583 + $0x1700] sm:$0xff]
        %v1437 = vld [vmem:[%s583 + $0x1708] sm:$0xff]
        %v1438 = vld [vmem:[%s583 + $0x1710] sm:$0xff]
        %v1439 = vld [vmem:[%s583 + $0x1718] sm:$0xff]
        %v1440 = vld [vmem:[%s583 + $0x1720] sm:$0xff]
        %v1441 = vld [vmem:[%s583 + $0x1728] sm:$0xff]
        %v1442 = vld [vmem:[%s583 + $0x1730] sm:$0xff]
        %v1443 = vld [vmem:[%s583 + $0x1738] sm:$0xff]
        %v1444 = vld [vmem:[%s583 + $0x1740] sm:$0xff]
        %v1445 = vld [vmem:[%s583 + $0x1748] sm:$0xff]
        %v1446 = vld [vmem:[%s583 + $0x1750] sm:$0xff]
        %v1447 = vld [vmem:[%s583 + $0x1758] sm:$0xff]
        %v1448 = vld [vmem:[%s583 + $0x1760] sm:$0xff]
        %v1449 = vld [vmem:[%s583 + $0x1768] sm:$0xff]
        %v1450 = vld [vmem:[%s583 + $0x1770] sm:$0xff]
        %v1451 = vld [vmem:[%s583 + $0x1778] sm:$0xff]
        %v1452 = vld [vmem:[%s583 + $0x1780] sm:$0xff]
        %v1453 = vld [vmem:[%s583 + $0x1788] sm:$0xff]
        %v1454 = vld [vmem:[%s583 + $0x1790] sm:$0xff]
        %v1455 = vld [vmem:[%s583 + $0x1798] sm:$0xff]
        %v1456 = vld [vmem:[%s583 + $0x17a0] sm:$0xff]
        %v1457 = vld [vmem:[%s583 + $0x17a8] sm:$0xff]
        %v1458 = vld [vmem:[%s583 + $0x17b0] sm:$0xff]
        %v1459 = vld [vmem:[%s583 + $0x17b8] sm:$0xff]
        %v1460 = vld [vmem:[%s583 + $0x17c0] sm:$0xff]
        %v1461 = vld [vmem:[%s583 + $0x17c8] sm:$0xff]
        %v1462 = vld [vmem:[%s583 + $0x17d0] sm:$0xff]
        %v1463 = vld [vmem:[%s583 + $0x17d8] sm:$0xff]
        %v1464 = vld [vmem:[%s583 + $0x17e0] sm:$0xff]
        %v1465 = vld [vmem:[%s583 + $0x17e8] sm:$0xff]
        %v1466 = vld [vmem:[%s583 + $0x17f0] sm:$0xff]
        %v1467 = vld [vmem:[%s583 + $0x17f8] sm:$0xff]
        %v1468 = vld [vmem:[%s583 + $0x1800] sm:$0xff]
        %v1469 = vld [vmem:[%s583 + $0x1808] sm:$0xff]
        %v1470 = vld [vmem:[%s583 + $0x1810] sm:$0xff]
        %v1471 = vld [vmem:[%s583 + $0x1818] sm:$0xff]
        %v1472 = vld [vmem:[%s583 + $0x1820] sm:$0xff]
        %v1473 = vld [vmem:[%s583 + $0x1828] sm:$0xff]
        %v1474 = vld [vmem:[%s583 + $0x1830] sm:$0xff]
        %v1475 = vld [vmem:[%s583 + $0x1838] sm:$0xff]
        %v1476 = vld [vmem:[%s583 + $0x1840] sm:$0xff]
        %v1477 = vld [vmem:[%s583 + $0x1848] sm:$0xff]
        %v1478 = vld [vmem:[%s583 + $0x1850] sm:$0xff]
        %v1479 = vld [vmem:[%s583 + $0x1858] sm:$0xff]
        %v1480 = vld [vmem:[%s583 + $0x1860] sm:$0xff]
        %v1481 = vld [vmem:[%s583 + $0x1868] sm:$0xff]
        %v1482 = vld [vmem:[%s583 + $0x1870] sm:$0xff]
        %v1483 = vld [vmem:[%s583 + $0x1878] sm:$0xff]
        %v1484 = vld [vmem:[%s583 + $0x1880] sm:$0xff]
        %v1485 = vld [vmem:[%s583 + $0x1888] sm:$0xff]
        %v1486 = vld [vmem:[%s583 + $0x1890] sm:$0xff]
        %v1487 = vld [vmem:[%s583 + $0x1898] sm:$0xff]
        %v1488 = vld [vmem:[%s583 + $0x18a0] sm:$0xff]
        %v1489 = vld [vmem:[%s583 + $0x18a8] sm:$0xff]
        %v1490 = vld [vmem:[%s583 + $0x18b0] sm:$0xff]
        %v1491 = vld [vmem:[%s583 + $0x18b8] sm:$0xff]
        %v1492 = vld [vmem:[%s583 + $0x18c0] sm:$0xff]
        %v1493 = vld [vmem:[%s583 + $0x18c8] sm:$0xff]
        %v1494 = vld [vmem:[%s583 + $0x18d0] sm:$0xff]
        %v1495 = vld [vmem:[%s583 + $0x18d8] sm:$0xff]
        %v1496 = vld [vmem:[%s583 + $0x18e0] sm:$0xff]
        %v1497 = vld [vmem:[%s583 + $0x18e8] sm:$0xff]
        %v1498 = vld [vmem:[%s583 + $0x18f0] sm:$0xff]
        %v1499 = vld [vmem:[%s583 + $0x18f8] sm:$0xff]
        %v1500 = vld [vmem:[%s583 + $0x1900] sm:$0xff]
        %v1501 = vld [vmem:[%s583 + $0x1908] sm:$0xff]
        %v1502 = vld [vmem:[%s583 + $0x1910] sm:$0xff]
        %v1503 = vld [vmem:[%s583 + $0x1918] sm:$0xff]
        %v1504 = vld [vmem:[%s583 + $0x1920] sm:$0xff]
        %v1505 = vld [vmem:[%s583 + $0x1928] sm:$0xff]
        %v1506 = vld [vmem:[%s583 + $0x1930] sm:$0xff]
        %v1507 = vld [vmem:[%s583 + $0x1938] sm:$0xff]
        %v1508 = vld [vmem:[%s583 + $0x1940] sm:$0xff]
        %v1509 = vld [vmem:[%s583 + $0x1948] sm:$0xff]
        %v1510 = vld [vmem:[%s583 + $0x1950] sm:$0xff]
        %v1511 = vld [vmem:[%s583 + $0x1958] sm:$0xff]
        %v1512 = vld [vmem:[%s583 + $0x1960] sm:$0xff]
        %v1513 = vld [vmem:[%s583 + $0x1968] sm:$0xff]
        %v1514 = vld [vmem:[%s583 + $0x1970] sm:$0xff]
        %v1515 = vld [vmem:[%s583 + $0x1978] sm:$0xff]
        %v1516 = vld [vmem:[%s583 + $0x1980] sm:$0xff]
        %v1517 = vld [vmem:[%s583 + $0x1988] sm:$0xff]
        %v1518 = vld [vmem:[%s583 + $0x1990] sm:$0xff]
        %v1519 = vld [vmem:[%s583 + $0x1998] sm:$0xff]
        %v1520 = vld [vmem:[%s583 + $0x19a0] sm:$0xff]
        %v1521 = vld [vmem:[%s583 + $0x19a8] sm:$0xff]
        %v1522 = vld [vmem:[%s583 + $0x19b0] sm:$0xff]
        %v1523 = vld [vmem:[%s583 + $0x19b8] sm:$0xff]
        %v1524 = vld [vmem:[%s583 + $0x19c0] sm:$0xff]
        %v1525 = vld [vmem:[%s583 + $0x19c8] sm:$0xff]
        %v1526 = vld [vmem:[%s583 + $0x19d0] sm:$0xff]
        %v1527 = vld [vmem:[%s583 + $0x19d8] sm:$0xff]
        %v1528 = vld [vmem:[%s583 + $0x19e0] sm:$0xff]
        %v1529 = vld [vmem:[%s583 + $0x19e8] sm:$0xff]
        %v1530 = vld [vmem:[%s583 + $0x19f0] sm:$0xff]
        %v1531 = vld [vmem:[%s583 + $0x19f8] sm:$0xff]
        %v1532 = vld [vmem:[%s583 + $0x1a00] sm:$0xff]
        %v1533 = vld [vmem:[%s583 + $0x1a08] sm:$0xff]
        %v1534 = vld [vmem:[%s583 + $0x1a10] sm:$0xff]
        %v1535 = vld [vmem:[%s583 + $0x1a18] sm:$0xff]
        %v1536 = vld [vmem:[%s583 + $0x1a20] sm:$0xff]
        %v1537 = vld [vmem:[%s583 + $0x1a28] sm:$0xff]
        %v1538 = vld [vmem:[%s583 + $0x1a30] sm:$0xff]
        %v1539 = vld [vmem:[%s583 + $0x1a38] sm:$0xff]
        %v1540 = vld [vmem:[%s583 + $0x1a40] sm:$0xff]
        %v1541 = vld [vmem:[%s583 + $0x1a48] sm:$0xff]
        %v1542 = vld [vmem:[%s583 + $0x1a50] sm:$0xff]
        %v1543 = vld [vmem:[%s583 + $0x1a58] sm:$0xff]
        %v1544 = vld [vmem:[%s583 + $0x1a60] sm:$0xff]
        %v1545 = vld [vmem:[%s583 + $0x1a68] sm:$0xff]
        %v1546 = vld [vmem:[%s583 + $0x1a70] sm:$0xff]
        %v1547 = vld [vmem:[%s583 + $0x1a78] sm:$0xff]
        %v1548 = vld [vmem:[%s583 + $0x1a80] sm:$0xff]
        %v1549 = vld [vmem:[%s583 + $0x1a88] sm:$0xff]
        %v1550 = vld [vmem:[%s583 + $0x1a90] sm:$0xff]
        %v1551 = vld [vmem:[%s583 + $0x1a98] sm:$0xff]
        %v1552 = vld [vmem:[%s583 + $0x1aa0] sm:$0xff]
        %v1553 = vld [vmem:[%s583 + $0x1aa8] sm:$0xff]
        %v1554 = vld [vmem:[%s583 + $0x1ab0] sm:$0xff]
        %v1555 = vld [vmem:[%s583 + $0x1ab8] sm:$0xff]
        %v1556 = vld [vmem:[%s583 + $0x1ac0] sm:$0xff]
        %v1557 = vld [vmem:[%s583 + $0x1ac8] sm:$0xff]
        %v1558 = vld [vmem:[%s583 + $0x1ad0] sm:$0xff]
        %v1559 = vld [vmem:[%s583 + $0x1ad8] sm:$0xff]
        %v1560 = vld [vmem:[%s583 + $0x1ae0] sm:$0xff]
        %v1561 = vld [vmem:[%s583 + $0x1ae8] sm:$0xff]
        %v1562 = vld [vmem:[%s583 + $0x1af0] sm:$0xff]
        %v1563 = vld [vmem:[%s583 + $0x1af8] sm:$0xff]
        %v1564 = vld [vmem:[%s583 + $0x1b00] sm:$0xff]
        %v1565 = vld [vmem:[%s583 + $0x1b08] sm:$0xff]
        %v1566 = vld [vmem:[%s583 + $0x1b10] sm:$0xff]
        %v1567 = vld [vmem:[%s583 + $0x1b18] sm:$0xff]
        %v1568 = vld [vmem:[%s583 + $0x1b20] sm:$0xff]
        %v1569 = vld [vmem:[%s583 + $0x1b28] sm:$0xff]
        %v1570 = vld [vmem:[%s583 + $0x1b30] sm:$0xff]
        %v1571 = vld [vmem:[%s583 + $0x1b38] sm:$0xff]
        %v1572 = vld [vmem:[%s583 + $0x1b40] sm:$0xff]
        %v1573 = vld [vmem:[%s583 + $0x1b48] sm:$0xff]
        %v1574 = vld [vmem:[%s583 + $0x1b50] sm:$0xff]
        %v1575 = vld [vmem:[%s583 + $0x1b58] sm:$0xff]
        %v1576 = vld [vmem:[%s583 + $0x1b60] sm:$0xff]
        %v1577 = vld [vmem:[%s583 + $0x1b68] sm:$0xff]
        %v1578 = vld [vmem:[%s583 + $0x1b70] sm:$0xff]
        %v1579 = vld [vmem:[%s583 + $0x1b78] sm:$0xff]
        %v1580 = vld [vmem:[%s583 + $0x1b80] sm:$0xff]
        %v1581 = vld [vmem:[%s583 + $0x1b88] sm:$0xff]
        %v1582 = vld [vmem:[%s583 + $0x1b90] sm:$0xff]
        %v1583 = vld [vmem:[%s583 + $0x1b98] sm:$0xff]
        %v1584 = vld [vmem:[%s583 + $0x1ba0] sm:$0xff]
        %v1585 = vld [vmem:[%s583 + $0x1ba8] sm:$0xff]
        %v1586 = vld [vmem:[%s583 + $0x1bb0] sm:$0xff]
        %v1587 = vld [vmem:[%s583 + $0x1bb8] sm:$0xff]
        %v1588 = vld [vmem:[%s583 + $0x1bc0] sm:$0xff]
        %v1589 = vld [vmem:[%s583 + $0x1bc8] sm:$0xff]
        %v1590 = vld [vmem:[%s583 + $0x1bd0] sm:$0xff]
        %v1591 = vld [vmem:[%s583 + $0x1bd8] sm:$0xff]
        %v1592 = vld [vmem:[%s583 + $0x1be0] sm:$0xff]
        %v1593 = vld [vmem:[%s583 + $0x1be8] sm:$0xff]
        %v1594 = vld [vmem:[%s583 + $0x1bf0] sm:$0xff]
        %v1595 = vld [vmem:[%s583 + $0x1bf8] sm:$0xff]
        %v1596 = vld [vmem:[%s583 + $0x1c00] sm:$0xff]
        %v1597 = vld [vmem:[%s583 + $0x1c08] sm:$0xff]
        %v1598 = vld [vmem:[%s583 + $0x1c10] sm:$0xff]
        %v1599 = vld [vmem:[%s583 + $0x1c18] sm:$0xff]
        %v1600 = vld [vmem:[%s583 + $0x1c20] sm:$0xff]
        %v1601 = vld [vmem:[%s583 + $0x1c28] sm:$0xff]
        %v1602 = vld [vmem:[%s583 + $0x1c30] sm:$0xff]
        %v1603 = vld [vmem:[%s583 + $0x1c38] sm:$0xff]
        %v1604 = vld [vmem:[%s583 + $0x1c40] sm:$0xff]
        %v1605 = vld [vmem:[%s583 + $0x1c48] sm:$0xff]
        %v1606 = vld [vmem:[%s583 + $0x1c50] sm:$0xff]
        %v1607 = vld [vmem:[%s583 + $0x1c58] sm:$0xff]
        %v1608 = vld [vmem:[%s583 + $0x1c60] sm:$0xff]
        %v1609 = vld [vmem:[%s583 + $0x1c68] sm:$0xff]
        %v1610 = vld [vmem:[%s583 + $0x1c70] sm:$0xff]
        %v1611 = vld [vmem:[%s583 + $0x1c78] sm:$0xff]
        %v1612 = vld [vmem:[%s583 + $0x1c80] sm:$0xff]
        %v1613 = vld [vmem:[%s583 + $0x1c88] sm:$0xff]
        %v1614 = vld [vmem:[%s583 + $0x1c90] sm:$0xff]
        %v1615 = vld [vmem:[%s583 + $0x1c98] sm:$0xff]
        %v1616 = vld [vmem:[%s583 + $0x1ca0] sm:$0xff]
        %v1617 = vld [vmem:[%s583 + $0x1ca8] sm:$0xff]
        %v1618 = vld [vmem:[%s583 + $0x1cb0] sm:$0xff]
        %v1619 = vld [vmem:[%s583 + $0x1cb8] sm:$0xff]
        %v1620 = vld [vmem:[%s583 + $0x1cc0] sm:$0xff]
        %v1621 = vld [vmem:[%s583 + $0x1cc8] sm:$0xff]
        %v1622 = vld [vmem:[%s583 + $0x1cd0] sm:$0xff]
        %v1623 = vld [vmem:[%s583 + $0x1cd8] sm:$0xff]
        %v1624 = vld [vmem:[%s583 + $0x1ce0] sm:$0xff]
        %v1625 = vld [vmem:[%s583 + $0x1ce8] sm:$0xff]
        %v1626 = vld [vmem:[%s583 + $0x1cf0] sm:$0xff]
        %v1627 = vld [vmem:[%s583 + $0x1cf8] sm:$0xff]
        %v1628 = vld [vmem:[%s583 + $0x1d00] sm:$0xff]
        %v1629 = vld [vmem:[%s583 + $0x1d08] sm:$0xff]
        %v1630 = vld [vmem:[%s583 + $0x1d10] sm:$0xff]
        %v1631 = vld [vmem:[%s583 + $0x1d18] sm:$0xff]
        %v1632 = vld [vmem:[%s583 + $0x1d20] sm:$0xff]
        %v1633 = vld [vmem:[%s583 + $0x1d28] sm:$0xff]
        %v1634 = vld [vmem:[%s583 + $0x1d30] sm:$0xff]
        %v1635 = vld [vmem:[%s583 + $0x1d38] sm:$0xff]
        %v1636 = vld [vmem:[%s583 + $0x1d40] sm:$0xff]
        %v1637 = vld [vmem:[%s583 + $0x1d48] sm:$0xff]
        %v1638 = vld [vmem:[%s583 + $0x1d50] sm:$0xff]
        %v1639 = vld [vmem:[%s583 + $0x1d58] sm:$0xff]
        %v1640 = vld [vmem:[%s583 + $0x1d60] sm:$0xff]
        %v1641 = vld [vmem:[%s583 + $0x1d68] sm:$0xff]
        %v1642 = vld [vmem:[%s583 + $0x1d70] sm:$0xff]
        %v1643 = vld [vmem:[%s583 + $0x1d78] sm:$0xff]
        %v1644 = vld [vmem:[%s583 + $0x1d80] sm:$0xff]
        %v1645 = vld [vmem:[%s583 + $0x1d88] sm:$0xff]
        %v1646 = vld [vmem:[%s583 + $0x1d90] sm:$0xff]
        %v1647 = vld [vmem:[%s583 + $0x1d98] sm:$0xff]
        %v1648 = vld [vmem:[%s583 + $0x1da0] sm:$0xff]
        %v1649 = vld [vmem:[%s583 + $0x1da8] sm:$0xff]
        %v1650 = vld [vmem:[%s583 + $0x1db0] sm:$0xff]
        %v1651 = vld [vmem:[%s583 + $0x1db8] sm:$0xff]
        %v1652 = vld [vmem:[%s583 + $0x1dc0] sm:$0xff]
        %v1653 = vld [vmem:[%s583 + $0x1dc8] sm:$0xff]
        %v1654 = vld [vmem:[%s583 + $0x1dd0] sm:$0xff]
        %v1655 = vld [vmem:[%s583 + $0x1dd8] sm:$0xff]
        %v1656 = vld [vmem:[%s583 + $0x1de0] sm:$0xff]
        %v1657 = vld [vmem:[%s583 + $0x1de8] sm:$0xff]
        %v1658 = vld [vmem:[%s583 + $0x1df0] sm:$0xff]
        %v1659 = vld [vmem:[%s583 + $0x1df8] sm:$0xff]
        %v1660 = vld [vmem:[%s583 + $0x1e00] sm:$0xff]
        %v1661 = vld [vmem:[%s583 + $0x1e08] sm:$0xff]
        %v1662 = vld [vmem:[%s583 + $0x1e10] sm:$0xff]
        %v1663 = vld [vmem:[%s583 + $0x1e18] sm:$0xff]
        %v1664 = vld [vmem:[%s583 + $0x1e20] sm:$0xff]
        %v1665 = vld [vmem:[%s583 + $0x1e28] sm:$0xff]
        %v1666 = vld [vmem:[%s583 + $0x1e30] sm:$0xff]
        %v1667 = vld [vmem:[%s583 + $0x1e38] sm:$0xff]
        %v1668 = vld [vmem:[%s583 + $0x1e40] sm:$0xff]
        %v1669 = vld [vmem:[%s583 + $0x1e48] sm:$0xff]
        %v1670 = vld [vmem:[%s583 + $0x1e50] sm:$0xff]
        %v1671 = vld [vmem:[%s583 + $0x1e58] sm:$0xff]
        %v1672 = vld [vmem:[%s583 + $0x1e60] sm:$0xff]
        %v1673 = vld [vmem:[%s583 + $0x1e68] sm:$0xff]
        %v1674 = vld [vmem:[%s583 + $0x1e70] sm:$0xff]
        %v1675 = vld [vmem:[%s583 + $0x1e78] sm:$0xff]
        %v1676 = vld [vmem:[%s583 + $0x1e80] sm:$0xff]
        %v1677 = vld [vmem:[%s583 + $0x1e88] sm:$0xff]
        %v1678 = vld [vmem:[%s583 + $0x1e90] sm:$0xff]
        %v1679 = vld [vmem:[%s583 + $0x1e98] sm:$0xff]
        %v1680 = vld [vmem:[%s583 + $0x1ea0] sm:$0xff]
        %v1681 = vld [vmem:[%s583 + $0x1ea8] sm:$0xff]
        %v1682 = vld [vmem:[%s583 + $0x1eb0] sm:$0xff]
        %v1683 = vld [vmem:[%s583 + $0x1eb8] sm:$0xff]
        %v1684 = vld [vmem:[%s583 + $0x1ec0] sm:$0xff]
        %v1685 = vld [vmem:[%s583 + $0x1ec8] sm:$0xff]
        %v1686 = vld [vmem:[%s583 + $0x1ed0] sm:$0xff]
        %v1687 = vld [vmem:[%s583 + $0x1ed8] sm:$0xff]
        %v1688 = vld [vmem:[%s583 + $0x1ee0] sm:$0xff]
        %v1689 = vld [vmem:[%s583 + $0x1ee8] sm:$0xff]
        %v1690 = vld [vmem:[%s583 + $0x1ef0] sm:$0xff]
        %v1691 = vld [vmem:[%s583 + $0x1ef8] sm:$0xff]
        %v1692 = vld [vmem:[%s583 + $0x1f00] sm:$0xff]
        %v1693 = vld [vmem:[%s583 + $0x1f08] sm:$0xff]
        %v1694 = vld [vmem:[%s583 + $0x1f10] sm:$0xff]
        %v1695 = vld [vmem:[%s583 + $0x1f18] sm:$0xff]
        %v1696 = vld [vmem:[%s583 + $0x1f20] sm:$0xff]
        %v1697 = vld [vmem:[%s583 + $0x1f28] sm:$0xff]
        %v1698 = vld [vmem:[%s583 + $0x1f30] sm:$0xff]
        %v1699 = vld [vmem:[%s583 + $0x1f38] sm:$0xff]
        %v1700 = vld [vmem:[%s583 + $0x1f40] sm:$0xff]
        %v1701 = vld [vmem:[%s583 + $0x1f48] sm:$0xff]
        %v1702 = vld [vmem:[%s583 + $0x1f50] sm:$0xff]
        %v1703 = vld [vmem:[%s583 + $0x1f58] sm:$0xff]
        %v1704 = vld [vmem:[%s583 + $0x1f60] sm:$0xff]
        %v1705 = vld [vmem:[%s583 + $0x1f68] sm:$0xff]
        %v1706 = vld [vmem:[%s583 + $0x1f70] sm:$0xff]
        %v1707 = vld [vmem:[%s583 + $0x1f78] sm:$0xff]
        %v1708 = vld [vmem:[%s583 + $0x1f80] sm:$0xff]
        %v1709 = vld [vmem:[%s583 + $0x1f88] sm:$0xff]
        %v1710 = vld [vmem:[%s583 + $0x1f90] sm:$0xff]
        %v1711 = vld [vmem:[%s583 + $0x1f98] sm:$0xff]
        %v1712 = vld [vmem:[%s583 + $0x1fa0] sm:$0xff]
        %v1713 = vld [vmem:[%s583 + $0x1fa8] sm:$0xff]
        %v1714 = vld [vmem:[%s583 + $0x1fb0] sm:$0xff]
        %v1715 = vld [vmem:[%s583 + $0x1fb8] sm:$0xff]
        %v1716 = vld [vmem:[%s583 + $0x1fc0] sm:$0xff]
        %v1717 = vld [vmem:[%s583 + $0x1fc8] sm:$0xff]
        %v1718 = vld [vmem:[%s583 + $0x1fd0] sm:$0xff]
        %v1719 = vld [vmem:[%s583 + $0x1fd8] sm:$0xff]
        %v1720 = vld [vmem:[%s583 + $0x1fe0] sm:$0xff]
        %v1721 = vld [vmem:[%s583 + $0x1fe8] sm:$0xff]
        %v1722 = vld [vmem:[%s583 + $0x1ff0] sm:$0xff]
        %v1723 = vld [vmem:[%s583 + $0x1ff8] sm:$0xff]
        %v1724 = vld [vmem:[#allocation5] sm:$0xf]
        %v1725 = vld [vmem:[#allocation5 + $0x4] sm:$0xf]
        %v1726 = vld [vmem:[%s593] sm:$0xff]
        %v1727 = vld [vmem:[%s593 + $0x8] sm:$0xff]
        %v1728 = vld [vmem:[%s593 + $0x10] sm:$0xff]
        %v1729 = vld [vmem:[%s593 + $0x18] sm:$0xff]
        %v1730 = vld [vmem:[%s593 + $0x20] sm:$0xff]
        %v1731 = vld [vmem:[%s593 + $0x28] sm:$0xff]
        %v1732 = vld [vmem:[%s593 + $0x30] sm:$0xff]
        %v1733 = vld [vmem:[%s593 + $0x38] sm:$0xff]
        %v1734 = vld [vmem:[%s593 + $0x40] sm:$0xff]
        %v1735 = vld [vmem:[%s593 + $0x48] sm:$0xff]
        %v1736 = vld [vmem:[%s593 + $0x50] sm:$0xff]
        %v1737 = vld [vmem:[%s593 + $0x58] sm:$0xff]
        %v1738 = vld [vmem:[%s593 + $0x60] sm:$0xff]
        %v1739 = vld [vmem:[%s593 + $0x68] sm:$0xff]
        %v1740 = vld [vmem:[%s593 + $0x70] sm:$0xff]
        %v1741 = vld [vmem:[%s593 + $0x78] sm:$0xff]
        %v1742 = vld [vmem:[%s593 + $0x80] sm:$0xff]
        %v1743 = vld [vmem:[%s593 + $0x88] sm:$0xff]
        %v1744 = vld [vmem:[%s593 + $0x90] sm:$0xff]
        %v1745 = vld [vmem:[%s593 + $0x98] sm:$0xff]
        %v1746 = vld [vmem:[%s593 + $0xa0] sm:$0xff]
        %v1747 = vld [vmem:[%s593 + $0xa8] sm:$0xff]
        %v1748 = vld [vmem:[%s593 + $0xb0] sm:$0xff]
        %v1749 = vld [vmem:[%s593 + $0xb8] sm:$0xff]
        %v1750 = vld [vmem:[%s593 + $0xc0] sm:$0xff]
        %v1751 = vld [vmem:[%s593 + $0xc8] sm:$0xff]
        %v1752 = vld [vmem:[%s593 + $0xd0] sm:$0xff]
        %v1753 = vld [vmem:[%s593 + $0xd8] sm:$0xff]
        %v1754 = vld [vmem:[%s593 + $0xe0] sm:$0xff]
        %v1755 = vld [vmem:[%s593 + $0xe8] sm:$0xff]
        %v1756 = vld [vmem:[%s593 + $0xf0] sm:$0xff]
        %v1757 = vld [vmem:[%s593 + $0xf8] sm:$0xff]
        %v1758 = vld [vmem:[%s593 + $0x100] sm:$0xff]
        %v1759 = vld [vmem:[%s593 + $0x108] sm:$0xff]
        %v1760 = vld [vmem:[%s593 + $0x110] sm:$0xff]
        %v1761 = vld [vmem:[%s593 + $0x118] sm:$0xff]
        %v1762 = vld [vmem:[%s593 + $0x120] sm:$0xff]
        %v1763 = vld [vmem:[%s593 + $0x128] sm:$0xff]
        %v1764 = vld [vmem:[%s593 + $0x130] sm:$0xff]
        %v1765 = vld [vmem:[%s593 + $0x138] sm:$0xff]
        %v1766 = vld [vmem:[%s593 + $0x140] sm:$0xff]
        %v1767 = vld [vmem:[%s593 + $0x148] sm:$0xff]
        %v1768 = vld [vmem:[%s593 + $0x150] sm:$0xff]
        %v1769 = vld [vmem:[%s593 + $0x158] sm:$0xff]
        %v1770 = vld [vmem:[%s593 + $0x160] sm:$0xff]
        %v1771 = vld [vmem:[%s593 + $0x168] sm:$0xff]
        %v1772 = vld [vmem:[%s593 + $0x170] sm:$0xff]
        %v1773 = vld [vmem:[%s593 + $0x178] sm:$0xff]
        %v1774 = vld [vmem:[%s593 + $0x180] sm:$0xff]
        %v1775 = vld [vmem:[%s593 + $0x188] sm:$0xff]
        %v1776 = vld [vmem:[%s593 + $0x190] sm:$0xff]
        %v1777 = vld [vmem:[%s593 + $0x198] sm:$0xff]
        %v1778 = vld [vmem:[%s593 + $0x1a0] sm:$0xff]
        %v1779 = vld [vmem:[%s593 + $0x1a8] sm:$0xff]
        %v1780 = vld [vmem:[%s593 + $0x1b0] sm:$0xff]
        %v1781 = vld [vmem:[%s593 + $0x1b8] sm:$0xff]
        %v1782 = vld [vmem:[%s593 + $0x1c0] sm:$0xff]
        %v1783 = vld [vmem:[%s593 + $0x1c8] sm:$0xff]
        %v1784 = vld [vmem:[%s593 + $0x1d0] sm:$0xff]
        %v1785 = vld [vmem:[%s593 + $0x1d8] sm:$0xff]
        %v1786 = vld [vmem:[%s593 + $0x1e0] sm:$0xff]
        %v1787 = vld [vmem:[%s593 + $0x1e8] sm:$0xff]
        %v1788 = vld [vmem:[%s593 + $0x1f0] sm:$0xff]
        %v1789 = vld [vmem:[%s593 + $0x1f8] sm:$0xff]
        %v1790 = vld [vmem:[%s593 + $0x200] sm:$0xff]
        %v1791 = vld [vmem:[%s593 + $0x208] sm:$0xff]
        %v1792 = vld [vmem:[%s593 + $0x210] sm:$0xff]
        %v1793 = vld [vmem:[%s593 + $0x218] sm:$0xff]
        %v1794 = vld [vmem:[%s593 + $0x220] sm:$0xff]
        %v1795 = vld [vmem:[%s593 + $0x228] sm:$0xff]
        %v1796 = vld [vmem:[%s593 + $0x230] sm:$0xff]
        %v1797 = vld [vmem:[%s593 + $0x238] sm:$0xff]
        %v1798 = vld [vmem:[%s593 + $0x240] sm:$0xff]
        %v1799 = vld [vmem:[%s593 + $0x248] sm:$0xff]
        %v1800 = vld [vmem:[%s593 + $0x250] sm:$0xff]
        %v1801 = vld [vmem:[%s593 + $0x258] sm:$0xff]
        %v1802 = vld [vmem:[%s593 + $0x260] sm:$0xff]
        %v1803 = vld [vmem:[%s593 + $0x268] sm:$0xff]
        %v1804 = vld [vmem:[%s593 + $0x270] sm:$0xff]
        %v1805 = vld [vmem:[%s593 + $0x278] sm:$0xff]
        %v1806 = vld [vmem:[%s593 + $0x280] sm:$0xff]
        %v1807 = vld [vmem:[%s593 + $0x288] sm:$0xff]
        %v1808 = vld [vmem:[%s593 + $0x290] sm:$0xff]
        %v1809 = vld [vmem:[%s593 + $0x298] sm:$0xff]
        %v1810 = vld [vmem:[%s593 + $0x2a0] sm:$0xff]
        %v1811 = vld [vmem:[%s593 + $0x2a8] sm:$0xff]
        %v1812 = vld [vmem:[%s593 + $0x2b0] sm:$0xff]
        %v1813 = vld [vmem:[%s593 + $0x2b8] sm:$0xff]
        %v1814 = vld [vmem:[%s593 + $0x2c0] sm:$0xff]
        %v1815 = vld [vmem:[%s593 + $0x2c8] sm:$0xff]
        %v1816 = vld [vmem:[%s593 + $0x2d0] sm:$0xff]
        %v1817 = vld [vmem:[%s593 + $0x2d8] sm:$0xff]
        %v1818 = vld [vmem:[%s593 + $0x2e0] sm:$0xff]
        %v1819 = vld [vmem:[%s593 + $0x2e8] sm:$0xff]
        %v1820 = vld [vmem:[%s593 + $0x2f0] sm:$0xff]
        %v1821 = vld [vmem:[%s593 + $0x2f8] sm:$0xff]
        %v1822 = vld [vmem:[%s593 + $0x300] sm:$0xff]
        %v1823 = vld [vmem:[%s593 + $0x308] sm:$0xff]
        %v1824 = vld [vmem:[%s593 + $0x310] sm:$0xff]
        %v1825 = vld [vmem:[%s593 + $0x318] sm:$0xff]
        %v1826 = vld [vmem:[%s593 + $0x320] sm:$0xff]
        %v1827 = vld [vmem:[%s593 + $0x328] sm:$0xff]
        %v1828 = vld [vmem:[%s593 + $0x330] sm:$0xff]
        %v1829 = vld [vmem:[%s593 + $0x338] sm:$0xff]
        %v1830 = vld [vmem:[%s593 + $0x340] sm:$0xff]
        %v1831 = vld [vmem:[%s593 + $0x348] sm:$0xff]
        %v1832 = vld [vmem:[%s593 + $0x350] sm:$0xff]
        %v1833 = vld [vmem:[%s593 + $0x358] sm:$0xff]
        %v1834 = vld [vmem:[%s593 + $0x360] sm:$0xff]
        %v1835 = vld [vmem:[%s593 + $0x368] sm:$0xff]
        %v1836 = vld [vmem:[%s593 + $0x370] sm:$0xff]
        %v1837 = vld [vmem:[%s593 + $0x378] sm:$0xff]
        %v1838 = vld [vmem:[%s593 + $0x380] sm:$0xff]
        %v1839 = vld [vmem:[%s593 + $0x388] sm:$0xff]
        %v1840 = vld [vmem:[%s593 + $0x390] sm:$0xff]
        %v1841 = vld [vmem:[%s593 + $0x398] sm:$0xff]
        %v1842 = vld [vmem:[%s593 + $0x3a0] sm:$0xff]
        %v1843 = vld [vmem:[%s593 + $0x3a8] sm:$0xff]
        %v1844 = vld [vmem:[%s593 + $0x3b0] sm:$0xff]
        %v1845 = vld [vmem:[%s593 + $0x3b8] sm:$0xff]
        %v1846 = vld [vmem:[%s593 + $0x3c0] sm:$0xff]
        %v1847 = vld [vmem:[%s593 + $0x3c8] sm:$0xff]
        %v1848 = vld [vmem:[%s593 + $0x3d0] sm:$0xff]
        %v1849 = vld [vmem:[%s593 + $0x3d8] sm:$0xff]
        %v1850 = vld [vmem:[%s593 + $0x3e0] sm:$0xff]
        %v1851 = vld [vmem:[%s593 + $0x3e8] sm:$0xff]
        %v1852 = vld [vmem:[%s593 + $0x3f0] sm:$0xff]
        %v1853 = vld [vmem:[%s593 + $0x3f8] sm:$0xff]
        %v1856 = vunpack.c.l.b16 %v1724
        %v1857 = vunpack.c.l.b16 %v1725
        %v1858 = vpack.c.b16 %v1857, %v1856
        %v1988 = vunpack.c.l.b16 %v1726
        %v1989 = vunpack.c.h.b16 %v1726
        %v1990 = vunpack.c.l.b16 %v1727
        %v1991 = vunpack.c.h.b16 %v1727
        %v1992 = vunpack.c.l.b16 %v1728
        %v1993 = vunpack.c.h.b16 %v1728
        %v1994 = vunpack.c.l.b16 %v1729
        %v1995 = vunpack.c.h.b16 %v1729
        %v1996 = vunpack.c.l.b16 %v1730
        %v1997 = vunpack.c.h.b16 %v1730
        %v1998 = vunpack.c.l.b16 %v1731
        %v1999 = vunpack.c.h.b16 %v1731
        %v2000 = vunpack.c.l.b16 %v1732
        %v2001 = vunpack.c.h.b16 %v1732
        %v2002 = vunpack.c.l.b16 %v1733
        %v2003 = vunpack.c.h.b16 %v1733
        %v2004 = vunpack.c.l.b16 %v1734
        %v2005 = vunpack.c.h.b16 %v1734
        %v2006 = vunpack.c.l.b16 %v1735
        %v2007 = vunpack.c.h.b16 %v1735
        %v2008 = vunpack.c.l.b16 %v1736
        %v2009 = vunpack.c.h.b16 %v1736
        %v2010 = vunpack.c.l.b16 %v1737
        %v2011 = vunpack.c.h.b16 %v1737
        %v2012 = vunpack.c.l.b16 %v1738
        %v2013 = vunpack.c.h.b16 %v1738
        %v2014 = vunpack.c.l.b16 %v1739
        %v2015 = vunpack.c.h.b16 %v1739
        %v2016 = vunpack.c.l.b16 %v1740
        %v2017 = vunpack.c.h.b16 %v1740
        %v2018 = vunpack.c.l.b16 %v1741
        %v2019 = vunpack.c.h.b16 %v1741
        %v2020 = vunpack.c.l.b16 %v1742
        %v2021 = vunpack.c.h.b16 %v1742
        %v2022 = vunpack.c.l.b16 %v1743
        %v2023 = vunpack.c.h.b16 %v1743
        %v2024 = vunpack.c.l.b16 %v1744
        %v2025 = vunpack.c.h.b16 %v1744
        %v2026 = vunpack.c.l.b16 %v1745
        %v2027 = vunpack.c.h.b16 %v1745
        %v2028 = vunpack.c.l.b16 %v1746
        %v2029 = vunpack.c.h.b16 %v1746
        %v2030 = vunpack.c.l.b16 %v1747
        %v2031 = vunpack.c.h.b16 %v1747
        %v2032 = vunpack.c.l.b16 %v1748
        %v2033 = vunpack.c.h.b16 %v1748
        %v2034 = vunpack.c.l.b16 %v1749
        %v2035 = vunpack.c.h.b16 %v1749
        %v2036 = vunpack.c.l.b16 %v1750
        %v2037 = vunpack.c.h.b16 %v1750
        %v2038 = vunpack.c.l.b16 %v1751
        %v2039 = vunpack.c.h.b16 %v1751
        %v2040 = vunpack.c.l.b16 %v1752
        %v2041 = vunpack.c.h.b16 %v1752
        %v2042 = vunpack.c.l.b16 %v1753
        %v2043 = vunpack.c.h.b16 %v1753
        %v2044 = vunpack.c.l.b16 %v1754
        %v2045 = vunpack.c.h.b16 %v1754
        %v2046 = vunpack.c.l.b16 %v1755
        %v2047 = vunpack.c.h.b16 %v1755
        %v2048 = vunpack.c.l.b16 %v1756
        %v2049 = vunpack.c.h.b16 %v1756
        %v2050 = vunpack.c.l.b16 %v1757
        %v2051 = vunpack.c.h.b16 %v1757
        %v2052 = vunpack.c.l.b16 %v1758
        %v2053 = vunpack.c.h.b16 %v1758
        %v2054 = vunpack.c.l.b16 %v1759
        %v2055 = vunpack.c.h.b16 %v1759
        %v2056 = vunpack.c.l.b16 %v1760
        %v2057 = vunpack.c.h.b16 %v1760
        %v2058 = vunpack.c.l.b16 %v1761
        %v2059 = vunpack.c.h.b16 %v1761
        %v2060 = vunpack.c.l.b16 %v1762
        %v2061 = vunpack.c.h.b16 %v1762
        %v2062 = vunpack.c.l.b16 %v1763
        %v2063 = vunpack.c.h.b16 %v1763
        %v2064 = vunpack.c.l.b16 %v1764
        %v2065 = vunpack.c.h.b16 %v1764
        %v2066 = vunpack.c.l.b16 %v1765
        %v2067 = vunpack.c.h.b16 %v1765
        %v2068 = vunpack.c.l.b16 %v1766
        %v2069 = vunpack.c.h.b16 %v1766
        %v2070 = vunpack.c.l.b16 %v1767
        %v2071 = vunpack.c.h.b16 %v1767
        %v2072 = vunpack.c.l.b16 %v1768
        %v2073 = vunpack.c.h.b16 %v1768
        %v2074 = vunpack.c.l.b16 %v1769
        %v2075 = vunpack.c.h.b16 %v1769
        %v2076 = vunpack.c.l.b16 %v1770
        %v2077 = vunpack.c.h.b16 %v1770
        %v2078 = vunpack.c.l.b16 %v1771
        %v2079 = vunpack.c.h.b16 %v1771
        %v2080 = vunpack.c.l.b16 %v1772
        %v2081 = vunpack.c.h.b16 %v1772
        %v2082 = vunpack.c.l.b16 %v1773
        %v2083 = vunpack.c.h.b16 %v1773
        %v2084 = vunpack.c.l.b16 %v1774
        %v2085 = vunpack.c.h.b16 %v1774
        %v2086 = vunpack.c.l.b16 %v1775
        %v2087 = vunpack.c.h.b16 %v1775
        %v2088 = vunpack.c.l.b16 %v1776
        %v2089 = vunpack.c.h.b16 %v1776
        %v2090 = vunpack.c.l.b16 %v1777
        %v2091 = vunpack.c.h.b16 %v1777
        %v2092 = vunpack.c.l.b16 %v1778
        %v2093 = vunpack.c.h.b16 %v1778
        %v2094 = vunpack.c.l.b16 %v1779
        %v2095 = vunpack.c.h.b16 %v1779
        %v2096 = vunpack.c.l.b16 %v1780
        %v2097 = vunpack.c.h.b16 %v1780
        %v2098 = vunpack.c.l.b16 %v1781
        %v2099 = vunpack.c.h.b16 %v1781
        %v2100 = vunpack.c.l.b16 %v1782
        %v2101 = vunpack.c.h.b16 %v1782
        %v2102 = vunpack.c.l.b16 %v1783
        %v2103 = vunpack.c.h.b16 %v1783
        %v2104 = vunpack.c.l.b16 %v1784
        %v2105 = vunpack.c.h.b16 %v1784
        %v2106 = vunpack.c.l.b16 %v1785
        %v2107 = vunpack.c.h.b16 %v1785
        %v2108 = vunpack.c.l.b16 %v1786
        %v2109 = vunpack.c.h.b16 %v1786
        %v2110 = vunpack.c.l.b16 %v1787
        %v2111 = vunpack.c.h.b16 %v1787
        %v2112 = vunpack.c.l.b16 %v1788
        %v2113 = vunpack.c.h.b16 %v1788
        %v2114 = vunpack.c.l.b16 %v1789
        %v2115 = vunpack.c.h.b16 %v1789
        %v2116 = vunpack.c.l.b16 %v1790
        %v2117 = vunpack.c.h.b16 %v1790
        %v2118 = vunpack.c.l.b16 %v1791
        %v2119 = vunpack.c.h.b16 %v1791
        %v2120 = vunpack.c.l.b16 %v1792
        %v2121 = vunpack.c.h.b16 %v1792
        %v2122 = vunpack.c.l.b16 %v1793
        %v2123 = vunpack.c.h.b16 %v1793
        %v2124 = vunpack.c.l.b16 %v1794
        %v2125 = vunpack.c.h.b16 %v1794
        %v2126 = vunpack.c.l.b16 %v1795
        %v2127 = vunpack.c.h.b16 %v1795
        %v2128 = vunpack.c.l.b16 %v1796
        %v2129 = vunpack.c.h.b16 %v1796
        %v2130 = vunpack.c.l.b16 %v1797
        %v2131 = vunpack.c.h.b16 %v1797
        %v2132 = vunpack.c.l.b16 %v1798
        %v2133 = vunpack.c.h.b16 %v1798
        %v2134 = vunpack.c.l.b16 %v1799
        %v2135 = vunpack.c.h.b16 %v1799
        %v2136 = vunpack.c.l.b16 %v1800
        %v2137 = vunpack.c.h.b16 %v1800
        %v2138 = vunpack.c.l.b16 %v1801
        %v2139 = vunpack.c.h.b16 %v1801
        %v2140 = vunpack.c.l.b16 %v1802
        %v2141 = vunpack.c.h.b16 %v1802
        %v2142 = vunpack.c.l.b16 %v1803
        %v2143 = vunpack.c.h.b16 %v1803
        %v2144 = vunpack.c.l.b16 %v1804
        %v2145 = vunpack.c.h.b16 %v1804
        %v2146 = vunpack.c.l.b16 %v1805
        %v2147 = vunpack.c.h.b16 %v1805
        %v2148 = vunpack.c.l.b16 %v1806
        %v2149 = vunpack.c.h.b16 %v1806
        %v2150 = vunpack.c.l.b16 %v1807
        %v2151 = vunpack.c.h.b16 %v1807
        %v2152 = vunpack.c.l.b16 %v1808
        %v2153 = vunpack.c.h.b16 %v1808
        %v2154 = vunpack.c.l.b16 %v1809
        %v2155 = vunpack.c.h.b16 %v1809
        %v2156 = vunpack.c.l.b16 %v1810
        %v2157 = vunpack.c.h.b16 %v1810
        %v2158 = vunpack.c.l.b16 %v1811
        %v2159 = vunpack.c.h.b16 %v1811
        %v2160 = vunpack.c.l.b16 %v1812
        %v2161 = vunpack.c.h.b16 %v1812
        %v2162 = vunpack.c.l.b16 %v1813
        %v2163 = vunpack.c.h.b16 %v1813
        %v2164 = vunpack.c.l.b16 %v1814
        %v2165 = vunpack.c.h.b16 %v1814
        %v2166 = vunpack.c.l.b16 %v1815
        %v2167 = vunpack.c.h.b16 %v1815
        %v2168 = vunpack.c.l.b16 %v1816
        %v2169 = vunpack.c.h.b16 %v1816
        %v2170 = vunpack.c.l.b16 %v1817
        %v2171 = vunpack.c.h.b16 %v1817
        %v2172 = vunpack.c.l.b16 %v1818
        %v2173 = vunpack.c.h.b16 %v1818
        %v2174 = vunpack.c.l.b16 %v1819
        %v2175 = vunpack.c.h.b16 %v1819
        %v2176 = vunpack.c.l.b16 %v1820
        %v2177 = vunpack.c.h.b16 %v1820
        %v2178 = vunpack.c.l.b16 %v1821
        %v2179 = vunpack.c.h.b16 %v1821
        %v2180 = vunpack.c.l.b16 %v1822
        %v2181 = vunpack.c.h.b16 %v1822
        %v2182 = vunpack.c.l.b16 %v1823
        %v2183 = vunpack.c.h.b16 %v1823
        %v2184 = vunpack.c.l.b16 %v1824
        %v2185 = vunpack.c.h.b16 %v1824
        %v2186 = vunpack.c.l.b16 %v1825
        %v2187 = vunpack.c.h.b16 %v1825
        %v2188 = vunpack.c.l.b16 %v1826
        %v2189 = vunpack.c.h.b16 %v1826
        %v2190 = vunpack.c.l.b16 %v1827
        %v2191 = vunpack.c.h.b16 %v1827
        %v2192 = vunpack.c.l.b16 %v1828
        %v2193 = vunpack.c.h.b16 %v1828
        %v2194 = vunpack.c.l.b16 %v1829
        %v2195 = vunpack.c.h.b16 %v1829
        %v2196 = vunpack.c.l.b16 %v1830
        %v2197 = vunpack.c.h.b16 %v1830
        %v2198 = vunpack.c.l.b16 %v1831
        %v2199 = vunpack.c.h.b16 %v1831
        %v2200 = vunpack.c.l.b16 %v1832
        %v2201 = vunpack.c.h.b16 %v1832
        %v2202 = vunpack.c.l.b16 %v1833
        %v2203 = vunpack.c.h.b16 %v1833
        %v2204 = vunpack.c.l.b16 %v1834
        %v2205 = vunpack.c.h.b16 %v1834
        %v2206 = vunpack.c.l.b16 %v1835
        %v2207 = vunpack.c.h.b16 %v1835
        %v2208 = vunpack.c.l.b16 %v1836
        %v2209 = vunpack.c.h.b16 %v1836
        %v2210 = vunpack.c.l.b16 %v1837
        %v2211 = vunpack.c.h.b16 %v1837
        %v2212 = vunpack.c.l.b16 %v1838
        %v2213 = vunpack.c.h.b16 %v1838
        %v2214 = vunpack.c.l.b16 %v1839
        %v2215 = vunpack.c.h.b16 %v1839
        %v2216 = vunpack.c.l.b16 %v1840
        %v2217 = vunpack.c.h.b16 %v1840
        %v2218 = vunpack.c.l.b16 %v1841
        %v2219 = vunpack.c.h.b16 %v1841
        %v2220 = vunpack.c.l.b16 %v1842
        %v2221 = vunpack.c.h.b16 %v1842
        %v2222 = vunpack.c.l.b16 %v1843
        %v2223 = vunpack.c.h.b16 %v1843
        %v2224 = vunpack.c.l.b16 %v1844
        %v2225 = vunpack.c.h.b16 %v1844
        %v2226 = vunpack.c.l.b16 %v1845
        %v2227 = vunpack.c.h.b16 %v1845
        %v2228 = vunpack.c.l.b16 %v1846
        %v2229 = vunpack.c.h.b16 %v1846
        %v2230 = vunpack.c.l.b16 %v1847
        %v2231 = vunpack.c.h.b16 %v1847
        %v2232 = vunpack.c.l.b16 %v1848
        %v2233 = vunpack.c.h.b16 %v1848
        %v2234 = vunpack.c.l.b16 %v1849
        %v2235 = vunpack.c.h.b16 %v1849
        %v2236 = vunpack.c.l.b16 %v1850
        %v2237 = vunpack.c.h.b16 %v1850
        %v2238 = vunpack.c.l.b16 %v1851
        %v2239 = vunpack.c.h.b16 %v1851
        %v2240 = vunpack.c.l.b16 %v1852
        %v2241 = vunpack.c.h.b16 %v1852
        %v2242 = vunpack.c.l.b16 %v1853
        %v2243 = vunpack.c.h.b16 %v1853
        %v2244 = vpack.c.b16 %v2004, %v1988
        %v2245 = vpack.c.b16 %v2005, %v1989
        %v2246 = vpack.c.b16 %v2006, %v1990
        %v2247 = vpack.c.b16 %v2007, %v1991
        %v2248 = vpack.c.b16 %v2008, %v1992
        %v2249 = vpack.c.b16 %v2009, %v1993
        %v2250 = vpack.c.b16 %v2010, %v1994
        %v2251 = vpack.c.b16 %v2011, %v1995
        %v2252 = vpack.c.b16 %v2012, %v1996
        %v2253 = vpack.c.b16 %v2013, %v1997
        %v2254 = vpack.c.b16 %v2014, %v1998
        %v2255 = vpack.c.b16 %v2015, %v1999
        %v2256 = vpack.c.b16 %v2016, %v2000
        %v2257 = vpack.c.b16 %v2017, %v2001
        %v2258 = vpack.c.b16 %v2018, %v2002
        %v2259 = vpack.c.b16 %v2019, %v2003
        %v2260 = vpack.c.b16 %v2036, %v2020
        %v2261 = vpack.c.b16 %v2037, %v2021
        %v2262 = vpack.c.b16 %v2038, %v2022
        %v2263 = vpack.c.b16 %v2039, %v2023
        %v2264 = vpack.c.b16 %v2040, %v2024
        %v2265 = vpack.c.b16 %v2041, %v2025
        %v2266 = vpack.c.b16 %v2042, %v2026
        %v2267 = vpack.c.b16 %v2043, %v2027
        %v2268 = vpack.c.b16 %v2044, %v2028
        %v2269 = vpack.c.b16 %v2045, %v2029
        %v2270 = vpack.c.b16 %v2046, %v2030
        %v2271 = vpack.c.b16 %v2047, %v2031
        %v2272 = vpack.c.b16 %v2048, %v2032
        %v2273 = vpack.c.b16 %v2049, %v2033
        %v2274 = vpack.c.b16 %v2050, %v2034
        %v2275 = vpack.c.b16 %v2051, %v2035
        %v2276 = vpack.c.b16 %v2068, %v2052
        %v2277 = vpack.c.b16 %v2069, %v2053
        %v2278 = vpack.c.b16 %v2070, %v2054
        %v2279 = vpack.c.b16 %v2071, %v2055
        %v2280 = vpack.c.b16 %v2072, %v2056
        %v2281 = vpack.c.b16 %v2073, %v2057
        %v2282 = vpack.c.b16 %v2074, %v2058
        %v2283 = vpack.c.b16 %v2075, %v2059
        %v2284 = vpack.c.b16 %v2076, %v2060
        %v2285 = vpack.c.b16 %v2077, %v2061
        %v2286 = vpack.c.b16 %v2078, %v2062
        %v2287 = vpack.c.b16 %v2079, %v2063
        %v2288 = vpack.c.b16 %v2080, %v2064
        %v2289 = vpack.c.b16 %v2081, %v2065
        %v2290 = vpack.c.b16 %v2082, %v2066
        %v2291 = vpack.c.b16 %v2083, %v2067
        %v2292 = vpack.c.b16 %v2100, %v2084
        %v2293 = vpack.c.b16 %v2101, %v2085
        %v2294 = vpack.c.b16 %v2102, %v2086
        %v2295 = vpack.c.b16 %v2103, %v2087
        %v2296 = vpack.c.b16 %v2104, %v2088
        %v2297 = vpack.c.b16 %v2105, %v2089
        %v2298 = vpack.c.b16 %v2106, %v2090
        %v2299 = vpack.c.b16 %v2107, %v2091
        %v2300 = vpack.c.b16 %v2108, %v2092
        %v2301 = vpack.c.b16 %v2109, %v2093
        %v2302 = vpack.c.b16 %v2110, %v2094
        %v2303 = vpack.c.b16 %v2111, %v2095
        %v2304 = vpack.c.b16 %v2112, %v2096
        %v2305 = vpack.c.b16 %v2113, %v2097
        %v2306 = vpack.c.b16 %v2114, %v2098
        %v2307 = vpack.c.b16 %v2115, %v2099
        %v2308 = vpack.c.b16 %v2132, %v2116
        %v2309 = vpack.c.b16 %v2133, %v2117
        %v2310 = vpack.c.b16 %v2134, %v2118
        %v2311 = vpack.c.b16 %v2135, %v2119
        %v2312 = vpack.c.b16 %v2136, %v2120
        %v2313 = vpack.c.b16 %v2137, %v2121
        %v2314 = vpack.c.b16 %v2138, %v2122
        %v2315 = vpack.c.b16 %v2139, %v2123
        %v2316 = vpack.c.b16 %v2140, %v2124
        %v2317 = vpack.c.b16 %v2141, %v2125
        %v2318 = vpack.c.b16 %v2142, %v2126
        %v2319 = vpack.c.b16 %v2143, %v2127
        %v2320 = vpack.c.b16 %v2144, %v2128
        %v2321 = vpack.c.b16 %v2145, %v2129
        %v2322 = vpack.c.b16 %v2146, %v2130
        %v2323 = vpack.c.b16 %v2147, %v2131
        %v2324 = vpack.c.b16 %v2164, %v2148
        %v2325 = vpack.c.b16 %v2165, %v2149
        %v2326 = vpack.c.b16 %v2166, %v2150
        %v2327 = vpack.c.b16 %v2167, %v2151
        %v2328 = vpack.c.b16 %v2168, %v2152
        %v2329 = vpack.c.b16 %v2169, %v2153
        %v2330 = vpack.c.b16 %v2170, %v2154
        %v2331 = vpack.c.b16 %v2171, %v2155
        %v2332 = vpack.c.b16 %v2172, %v2156
        %v2333 = vpack.c.b16 %v2173, %v2157
        %v2334 = vpack.c.b16 %v2174, %v2158
        %v2335 = vpack.c.b16 %v2175, %v2159
        %v2336 = vpack.c.b16 %v2176, %v2160
        %v2337 = vpack.c.b16 %v2177, %v2161
        %v2338 = vpack.c.b16 %v2178, %v2162
        %v2339 = vpack.c.b16 %v2179, %v2163
        %v2340 = vpack.c.b16 %v2196, %v2180
        %v2341 = vpack.c.b16 %v2197, %v2181
        %v2342 = vpack.c.b16 %v2198, %v2182
        %v2343 = vpack.c.b16 %v2199, %v2183
        %v2344 = vpack.c.b16 %v2200, %v2184
        %v2345 = vpack.c.b16 %v2201, %v2185
        %v2346 = vpack.c.b16 %v2202, %v2186
        %v2347 = vpack.c.b16 %v2203, %v2187
        %v2348 = vpack.c.b16 %v2204, %v2188
        %v2349 = vpack.c.b16 %v2205, %v2189
        %v2350 = vpack.c.b16 %v2206, %v2190
        %v2351 = vpack.c.b16 %v2207, %v2191
        %v2352 = vpack.c.b16 %v2208, %v2192
        %v2353 = vpack.c.b16 %v2209, %v2193
        %v2354 = vpack.c.b16 %v2210, %v2194
        %v2355 = vpack.c.b16 %v2211, %v2195
        %v2356 = vpack.c.b16 %v2228, %v2212
        %v2357 = vpack.c.b16 %v2229, %v2213
        %v2358 = vpack.c.b16 %v2230, %v2214
        %v2359 = vpack.c.b16 %v2231, %v2215
        %v2360 = vpack.c.b16 %v2232, %v2216
        %v2361 = vpack.c.b16 %v2233, %v2217
        %v2362 = vpack.c.b16 %v2234, %v2218
        %v2363 = vpack.c.b16 %v2235, %v2219
        %v2364 = vpack.c.b16 %v2236, %v2220
        %v2365 = vpack.c.b16 %v2237, %v2221
        %v2366 = vpack.c.b16 %v2238, %v2222
        %v2367 = vpack.c.b16 %v2239, %v2223
        %v2368 = vpack.c.b16 %v2240, %v2224
        %v2369 = vpack.c.b16 %v2241, %v2225
        %v2370 = vpack.c.b16 %v2242, %v2226
        %v2371 = vpack.c.b16 %v2243, %v2227
        %2500 = vmatpush.bf16.msra.mxu0 %v2356
        %2501 = vmatpush.bf16.msra.mxu0 %v2340
        %2502 = vmatpush.bf16.msra.mxu0 %v2324
        %2503 = vmatpush.bf16.msra.mxu0 %v2308
        %2504 = vmatpush.bf16.msra.mxu0 %v2292
        %2505 = vmatpush.bf16.msra.mxu0 %v2276
        %2506 = vmatpush.bf16.msra.mxu0 %v2260
        %2507 = vmatpush.bf16.msra.mxu0 %v2244
        %2508 = vmatmul.bf16.gmra.mxu0 %v1858
        %v2509 = vpop.f32.mrf.mxu0
        %v2510 = vadd.f32 0.0, %v2509
        %v2511 = vpop.f32.mrf.mxu0
        %v2512 = vadd.f32 0.0, %v2511
        %2513 = vdwg.mxu0
        %2514 = vmatpush.bf16.msra.mxu0 %v2357
        %2515 = vmatpush.bf16.msra.mxu0 %v2341
        %2516 = vmatpush.bf16.msra.mxu0 %v2325
        %2517 = vmatpush.bf16.msra.mxu0 %v2309
        %2518 = vmatpush.bf16.msra.mxu0 %v2293
        %2519 = vmatpush.bf16.msra.mxu0 %v2277
        %2520 = vmatpush.bf16.msra.mxu0 %v2261
        %2521 = vmatpush.bf16.msra.mxu0 %v2245
        %2522 = vmatmul.bf16.gmra.mxu0 %v1858
        %v2523 = vpop.f32.mrf.mxu0
        %v2524 = vadd.f32 0.0, %v2523
        %v2525 = vpop.f32.mrf.mxu0
        %v2526 = vadd.f32 0.0, %v2525
        %2527 = vdwg.mxu0
        %2528 = vmatpush.bf16.msra.mxu0 %v2358
        %2529 = vmatpush.bf16.msra.mxu0 %v2342
        %2530 = vmatpush.bf16.msra.mxu0 %v2326
        %2531 = vmatpush.bf16.msra.mxu0 %v2310
        %2532 = vmatpush.bf16.msra.mxu0 %v2294
        %2533 = vmatpush.bf16.msra.mxu0 %v2278
        %2534 = vmatpush.bf16.msra.mxu0 %v2262
        %2535 = vmatpush.bf16.msra.mxu0 %v2246
        %2536 = vmatmul.bf16.gmra.mxu0 %v1858
        %v2537 = vpop.f32.mrf.mxu0
        %v2538 = vadd.f32 0.0, %v2537
        %v2539 = vpop.f32.mrf.mxu0
        %v2540 = vadd.f32 0.0, %v2539
        %2541 = vdwg.mxu0
        %2542 = vmatpush.bf16.msra.mxu0 %v2359
        %2543 = vmatpush.bf16.msra.mxu0 %v2343
        %2544 = vmatpush.bf16.msra.mxu0 %v2327
        %2545 = vmatpush.bf16.msra.mxu0 %v2311
        %2546 = vmatpush.bf16.msra.mxu0 %v2295
        %2547 = vmatpush.bf16.msra.mxu0 %v2279
        %2548 = vmatpush.bf16.msra.mxu0 %v2263
        %2549 = vmatpush.bf16.msra.mxu0 %v2247
        %2550 = vmatmul.bf16.gmra.mxu0 %v1858
        %v2551 = vpop.f32.mrf.mxu0
        %v2552 = vadd.f32 0.0, %v2551
        %v2553 = vpop.f32.mrf.mxu0
        %v2554 = vadd.f32 0.0, %v2553
        %2555 = vdwg.mxu0
        %2556 = vmatpush.bf16.msra.mxu0 %v2360
        %2557 = vmatpush.bf16.msra.mxu0 %v2344
        %2558 = vmatpush.bf16.msra.mxu0 %v2328
        %2559 = vmatpush.bf16.msra.mxu0 %v2312
        %2560 = vmatpush.bf16.msra.mxu0 %v2296
        %2561 = vmatpush.bf16.msra.mxu0 %v2280
        %2562 = vmatpush.bf16.msra.mxu0 %v2264
        %2563 = vmatpush.bf16.msra.mxu0 %v2248
        %2564 = vmatmul.bf16.gmra.mxu0 %v1858
        %v2565 = vpop.f32.mrf.mxu0
        %v2566 = vadd.f32 0.0, %v2565
        %v2567 = vpop.f32.mrf.mxu0
        %v2568 = vadd.f32 0.0, %v2567
        %2569 = vdwg.mxu0
        %2570 = vmatpush.bf16.msra.mxu0 %v2361
        %2571 = vmatpush.bf16.msra.mxu0 %v2345
        %2572 = vmatpush.bf16.msra.mxu0 %v2329
        %2573 = vmatpush.bf16.msra.mxu0 %v2313
        %2574 = vmatpush.bf16.msra.mxu0 %v2297
        %2575 = vmatpush.bf16.msra.mxu0 %v2281
        %2576 = vmatpush.bf16.msra.mxu0 %v2265
        %2577 = vmatpush.bf16.msra.mxu0 %v2249
        %2578 = vmatmul.bf16.gmra.mxu0 %v1858
        %v2579 = vpop.f32.mrf.mxu0
        %v2580 = vadd.f32 0.0, %v2579
        %v2581 = vpop.f32.mrf.mxu0
        %v2582 = vadd.f32 0.0, %v2581
        %2583 = vdwg.mxu0
        %2584 = vmatpush.bf16.msra.mxu0 %v2362
        %2585 = vmatpush.bf16.msra.mxu0 %v2346
        %2586 = vmatpush.bf16.msra.mxu0 %v2330
        %2587 = vmatpush.bf16.msra.mxu0 %v2314
        %2588 = vmatpush.bf16.msra.mxu0 %v2298
        %2589 = vmatpush.bf16.msra.mxu0 %v2282
        %2590 = vmatpush.bf16.msra.mxu0 %v2266
        %2591 = vmatpush.bf16.msra.mxu0 %v2250
        %2592 = vmatmul.bf16.gmra.mxu0 %v1858
        %v2593 = vpop.f32.mrf.mxu0
        %v2594 = vadd.f32 0.0, %v2593
        %v2595 = vpop.f32.mrf.mxu0
        %v2596 = vadd.f32 0.0, %v2595
        %2597 = vdwg.mxu0
        %2598 = vmatpush.bf16.msra.mxu0 %v2363
        %2599 = vmatpush.bf16.msra.mxu0 %v2347
        %2600 = vmatpush.bf16.msra.mxu0 %v2331
        %2601 = vmatpush.bf16.msra.mxu0 %v2315
        %2602 = vmatpush.bf16.msra.mxu0 %v2299
        %2603 = vmatpush.bf16.msra.mxu0 %v2283
        %2604 = vmatpush.bf16.msra.mxu0 %v2267
        %2605 = vmatpush.bf16.msra.mxu0 %v2251
        %2606 = vmatmul.bf16.gmra.mxu0 %v1858
        %v2607 = vpop.f32.mrf.mxu0
        %v2608 = vadd.f32 0.0, %v2607
        %v2609 = vpop.f32.mrf.mxu0
        %v2610 = vadd.f32 0.0, %v2609
        %2611 = vdwg.mxu0
        %2612 = vmatpush.bf16.msra.mxu0 %v2364
        %2613 = vmatpush.bf16.msra.mxu0 %v2348
        %2614 = vmatpush.bf16.msra.mxu0 %v2332
        %2615 = vmatpush.bf16.msra.mxu0 %v2316
        %2616 = vmatpush.bf16.msra.mxu0 %v2300
        %2617 = vmatpush.bf16.msra.mxu0 %v2284
        %2618 = vmatpush.bf16.msra.mxu0 %v2268
        %2619 = vmatpush.bf16.msra.mxu0 %v2252
        %2620 = vmatmul.bf16.gmra.mxu0 %v1858
        %v2621 = vpop.f32.mrf.mxu0
        %v2622 = vadd.f32 0.0, %v2621
        %v2623 = vpop.f32.mrf.mxu0
        %v2624 = vadd.f32 0.0, %v2623
        %2625 = vdwg.mxu0
        %2626 = vmatpush.bf16.msra.mxu0 %v2365
        %2627 = vmatpush.bf16.msra.mxu0 %v2349
        %2628 = vmatpush.bf16.msra.mxu0 %v2333
        %2629 = vmatpush.bf16.msra.mxu0 %v2317
        %2630 = vmatpush.bf16.msra.mxu0 %v2301
        %2631 = vmatpush.bf16.msra.mxu0 %v2285
        %2632 = vmatpush.bf16.msra.mxu0 %v2269
        %2633 = vmatpush.bf16.msra.mxu0 %v2253
        %2634 = vmatmul.bf16.gmra.mxu0 %v1858
        %v2635 = vpop.f32.mrf.mxu0
        %v2636 = vadd.f32 0.0, %v2635
        %v2637 = vpop.f32.mrf.mxu0
        %v2638 = vadd.f32 0.0, %v2637
        %2639 = vdwg.mxu0
        %2640 = vmatpush.bf16.msra.mxu0 %v2366
        %2641 = vmatpush.bf16.msra.mxu0 %v2350
        %2642 = vmatpush.bf16.msra.mxu0 %v2334
        %2643 = vmatpush.bf16.msra.mxu0 %v2318
        %2644 = vmatpush.bf16.msra.mxu0 %v2302
        %2645 = vmatpush.bf16.msra.mxu0 %v2286
        %2646 = vmatpush.bf16.msra.mxu0 %v2270
        %2647 = vmatpush.bf16.msra.mxu0 %v2254
        %2648 = vmatmul.bf16.gmra.mxu0 %v1858
        %v2649 = vpop.f32.mrf.mxu0
        %v2650 = vadd.f32 0.0, %v2649
        %v2651 = vpop.f32.mrf.mxu0
        %v2652 = vadd.f32 0.0, %v2651
        %2653 = vdwg.mxu0
        %2654 = vmatpush.bf16.msra.mxu0 %v2367
        %2655 = vmatpush.bf16.msra.mxu0 %v2351
        %2656 = vmatpush.bf16.msra.mxu0 %v2335
        %2657 = vmatpush.bf16.msra.mxu0 %v2319
        %2658 = vmatpush.bf16.msra.mxu0 %v2303
        %2659 = vmatpush.bf16.msra.mxu0 %v2287
        %2660 = vmatpush.bf16.msra.mxu0 %v2271
        %2661 = vmatpush.bf16.msra.mxu0 %v2255
        %2662 = vmatmul.bf16.gmra.mxu0 %v1858
        %v2663 = vpop.f32.mrf.mxu0
        %v2664 = vadd.f32 0.0, %v2663
        %v2665 = vpop.f32.mrf.mxu0
        %v2666 = vadd.f32 0.0, %v2665
        %2667 = vdwg.mxu0
        %2668 = vmatpush.bf16.msra.mxu0 %v2368
        %2669 = vmatpush.bf16.msra.mxu0 %v2352
        %2670 = vmatpush.bf16.msra.mxu0 %v2336
        %2671 = vmatpush.bf16.msra.mxu0 %v2320
        %2672 = vmatpush.bf16.msra.mxu0 %v2304
        %2673 = vmatpush.bf16.msra.mxu0 %v2288
        %2674 = vmatpush.bf16.msra.mxu0 %v2272
        %2675 = vmatpush.bf16.msra.mxu0 %v2256
        %2676 = vmatmul.bf16.gmra.mxu0 %v1858
        %v2677 = vpop.f32.mrf.mxu0
        %v2678 = vadd.f32 0.0, %v2677
        %v2679 = vpop.f32.mrf.mxu0
        %v2680 = vadd.f32 0.0, %v2679
        %2681 = vdwg.mxu0
        %2682 = vmatpush.bf16.msra.mxu0 %v2369
        %2683 = vmatpush.bf16.msra.mxu0 %v2353
        %2684 = vmatpush.bf16.msra.mxu0 %v2337
        %2685 = vmatpush.bf16.msra.mxu0 %v2321
        %2686 = vmatpush.bf16.msra.mxu0 %v2305
        %2687 = vmatpush.bf16.msra.mxu0 %v2289
        %2688 = vmatpush.bf16.msra.mxu0 %v2273
        %2689 = vmatpush.bf16.msra.mxu0 %v2257
        %2690 = vmatmul.bf16.gmra.mxu0 %v1858
        %v2691 = vpop.f32.mrf.mxu0
        %v2692 = vadd.f32 0.0, %v2691
        %v2693 = vpop.f32.mrf.mxu0
        %v2694 = vadd.f32 0.0, %v2693
        %2695 = vdwg.mxu0
        %2696 = vmatpush.bf16.msra.mxu0 %v2370
        %2697 = vmatpush.bf16.msra.mxu0 %v2354
        %2698 = vmatpush.bf16.msra.mxu0 %v2338
        %2699 = vmatpush.bf16.msra.mxu0 %v2322
        %2700 = vmatpush.bf16.msra.mxu0 %v2306
        %2701 = vmatpush.bf16.msra.mxu0 %v2290
        %2702 = vmatpush.bf16.msra.mxu0 %v2274
        %2703 = vmatpush.bf16.msra.mxu0 %v2258
        %2704 = vmatmul.bf16.gmra.mxu0 %v1858
        %v2705 = vpop.f32.mrf.mxu0
        %v2706 = vadd.f32 0.0, %v2705
        %v2707 = vpop.f32.mrf.mxu0
        %v2708 = vadd.f32 0.0, %v2707
        %2709 = vdwg.mxu0
        %2710 = vmatpush.bf16.msra.mxu0 %v2371
        %2711 = vmatpush.bf16.msra.mxu0 %v2355
        %2712 = vmatpush.bf16.msra.mxu0 %v2339
        %2713 = vmatpush.bf16.msra.mxu0 %v2323
        %2714 = vmatpush.bf16.msra.mxu0 %v2307
        %2715 = vmatpush.bf16.msra.mxu0 %v2291
        %2716 = vmatpush.bf16.msra.mxu0 %v2275
        %2717 = vmatpush.bf16.msra.mxu0 %v2259
        %2718 = vmatmul.bf16.gmra.mxu0 %v1858
        %v2719 = vpop.f32.mrf.mxu0
        %v2720 = vadd.f32 0.0, %v2719
        %v2721 = vpop.f32.mrf.mxu0
        %v2722 = vadd.f32 0.0, %v2721
        %2723 = vdwg.mxu0
        %v2732 = vunpack.c.l.b16 %v692
        %v2733 = vunpack.c.h.b16 %v692
        %v2734 = vunpack.c.l.b16 %v693
        %v2735 = vunpack.c.h.b16 %v693
        %v2736 = vunpack.c.l.b16 %v694
        %v2737 = vunpack.c.h.b16 %v694
        %v2738 = vunpack.c.l.b16 %v695
        %v2739 = vunpack.c.h.b16 %v695
        %v2740 = vunpack.c.l.b16 %v696
        %v2741 = vunpack.c.h.b16 %v696
        %v2742 = vunpack.c.l.b16 %v697
        %v2743 = vunpack.c.h.b16 %v697
        %v2744 = vunpack.c.l.b16 %v698
        %v2745 = vunpack.c.h.b16 %v698
        %v2746 = vunpack.c.l.b16 %v699
        %v2747 = vunpack.c.h.b16 %v699
        %v2748 = vpack.c.b16 %v2740, %v2732
        %v2749 = vpack.c.b16 %v2741, %v2733
        %v2750 = vpack.c.b16 %v2742, %v2734
        %v2751 = vpack.c.b16 %v2743, %v2735
        %v2752 = vpack.c.b16 %v2744, %v2736
        %v2753 = vpack.c.b16 %v2745, %v2737
        %v2754 = vpack.c.b16 %v2746, %v2738
        %v2755 = vpack.c.b16 %v2747, %v2739
        %v3788 = vunpack.c.l.b16 %v700
        %v3789 = vunpack.c.h.b16 %v700
        %v3790 = vunpack.c.l.b16 %v701
        %v3791 = vunpack.c.h.b16 %v701
        %v3792 = vunpack.c.l.b16 %v702
        %v3793 = vunpack.c.h.b16 %v702
        %v3794 = vunpack.c.l.b16 %v703
        %v3795 = vunpack.c.h.b16 %v703
        %v3796 = vunpack.c.l.b16 %v704
        %v3797 = vunpack.c.h.b16 %v704
        %v3798 = vunpack.c.l.b16 %v705
        %v3799 = vunpack.c.h.b16 %v705
        %v3800 = vunpack.c.l.b16 %v706
        %v3801 = vunpack.c.h.b16 %v706
        %v3802 = vunpack.c.l.b16 %v707
        %v3803 = vunpack.c.h.b16 %v707
        %v3804 = vunpack.c.l.b16 %v708
        %v3805 = vunpack.c.h.b16 %v708
        %v3806 = vunpack.c.l.b16 %v709
        %v3807 = vunpack.c.h.b16 %v709
        %v3808 = vunpack.c.l.b16 %v710
        %v3809 = vunpack.c.h.b16 %v710
        %v3810 = vunpack.c.l.b16 %v711
        %v3811 = vunpack.c.h.b16 %v711
        %v3812 = vunpack.c.l.b16 %v712
        %v3813 = vunpack.c.h.b16 %v712
        %v3814 = vunpack.c.l.b16 %v713
        %v3815 = vunpack.c.h.b16 %v713
        %v3816 = vunpack.c.l.b16 %v714
        %v3817 = vunpack.c.h.b16 %v714
        %v3818 = vunpack.c.l.b16 %v715
        %v3819 = vunpack.c.h.b16 %v715
        %v3820 = vunpack.c.l.b16 %v716
        %v3821 = vunpack.c.h.b16 %v716
        %v3822 = vunpack.c.l.b16 %v717
        %v3823 = vunpack.c.h.b16 %v717
        %v3824 = vunpack.c.l.b16 %v718
        %v3825 = vunpack.c.h.b16 %v718
        %v3826 = vunpack.c.l.b16 %v719
        %v3827 = vunpack.c.h.b16 %v719
        %v3828 = vunpack.c.l.b16 %v720
        %v3829 = vunpack.c.h.b16 %v720
        %v3830 = vunpack.c.l.b16 %v721
        %v3831 = vunpack.c.h.b16 %v721
        %v3832 = vunpack.c.l.b16 %v722
        %v3833 = vunpack.c.h.b16 %v722
        %v3834 = vunpack.c.l.b16 %v723
        %v3835 = vunpack.c.h.b16 %v723
        %v3836 = vunpack.c.l.b16 %v724
        %v3837 = vunpack.c.h.b16 %v724
        %v3838 = vunpack.c.l.b16 %v725
        %v3839 = vunpack.c.h.b16 %v725
        %v3840 = vunpack.c.l.b16 %v726
        %v3841 = vunpack.c.h.b16 %v726
        %v3842 = vunpack.c.l.b16 %v727
        %v3843 = vunpack.c.h.b16 %v727
        %v3844 = vunpack.c.l.b16 %v728
        %v3845 = vunpack.c.h.b16 %v728
        %v3846 = vunpack.c.l.b16 %v729
        %v3847 = vunpack.c.h.b16 %v729
        %v3848 = vunpack.c.l.b16 %v730
        %v3849 = vunpack.c.h.b16 %v730
        %v3850 = vunpack.c.l.b16 %v731
        %v3851 = vunpack.c.h.b16 %v731
        %v3852 = vunpack.c.l.b16 %v732
        %v3853 = vunpack.c.h.b16 %v732
        %v3854 = vunpack.c.l.b16 %v733
        %v3855 = vunpack.c.h.b16 %v733
        %v3856 = vunpack.c.l.b16 %v734
        %v3857 = vunpack.c.h.b16 %v734
        %v3858 = vunpack.c.l.b16 %v735
        %v3859 = vunpack.c.h.b16 %v735
        %v3860 = vunpack.c.l.b16 %v736
        %v3861 = vunpack.c.h.b16 %v736
        %v3862 = vunpack.c.l.b16 %v737
        %v3863 = vunpack.c.h.b16 %v737
        %v3864 = vunpack.c.l.b16 %v738
        %v3865 = vunpack.c.h.b16 %v738
        %v3866 = vunpack.c.l.b16 %v739
        %v3867 = vunpack.c.h.b16 %v739
        %v3868 = vunpack.c.l.b16 %v740
        %v3869 = vunpack.c.h.b16 %v740
        %v3870 = vunpack.c.l.b16 %v741
        %v3871 = vunpack.c.h.b16 %v741
        %v3872 = vunpack.c.l.b16 %v742
        %v3873 = vunpack.c.h.b16 %v742
        %v3874 = vunpack.c.l.b16 %v743
        %v3875 = vunpack.c.h.b16 %v743
        %v3876 = vunpack.c.l.b16 %v744
        %v3877 = vunpack.c.h.b16 %v744
        %v3878 = vunpack.c.l.b16 %v745
        %v3879 = vunpack.c.h.b16 %v745
        %v3880 = vunpack.c.l.b16 %v746
        %v3881 = vunpack.c.h.b16 %v746
        %v3882 = vunpack.c.l.b16 %v747
        %v3883 = vunpack.c.h.b16 %v747
        %v3884 = vunpack.c.l.b16 %v748
        %v3885 = vunpack.c.h.b16 %v748
        %v3886 = vunpack.c.l.b16 %v749
        %v3887 = vunpack.c.h.b16 %v749
        %v3888 = vunpack.c.l.b16 %v750
        %v3889 = vunpack.c.h.b16 %v750
        %v3890 = vunpack.c.l.b16 %v751
        %v3891 = vunpack.c.h.b16 %v751
        %v3892 = vunpack.c.l.b16 %v752
        %v3893 = vunpack.c.h.b16 %v752
        %v3894 = vunpack.c.l.b16 %v753
        %v3895 = vunpack.c.h.b16 %v753
        %v3896 = vunpack.c.l.b16 %v754
        %v3897 = vunpack.c.h.b16 %v754
        %v3898 = vunpack.c.l.b16 %v755
        %v3899 = vunpack.c.h.b16 %v755
        %v3900 = vunpack.c.l.b16 %v756
        %v3901 = vunpack.c.h.b16 %v756
        %v3902 = vunpack.c.l.b16 %v757
        %v3903 = vunpack.c.h.b16 %v757
        %v3904 = vunpack.c.l.b16 %v758
        %v3905 = vunpack.c.h.b16 %v758
        %v3906 = vunpack.c.l.b16 %v759
        %v3907 = vunpack.c.h.b16 %v759
        %v3908 = vunpack.c.l.b16 %v760
        %v3909 = vunpack.c.h.b16 %v760
        %v3910 = vunpack.c.l.b16 %v761
        %v3911 = vunpack.c.h.b16 %v761
        %v3912 = vunpack.c.l.b16 %v762
        %v3913 = vunpack.c.h.b16 %v762
        %v3914 = vunpack.c.l.b16 %v763
        %v3915 = vunpack.c.h.b16 %v763
        %v3916 = vunpack.c.l.b16 %v764
        %v3917 = vunpack.c.h.b16 %v764
        %v3918 = vunpack.c.l.b16 %v765
        %v3919 = vunpack.c.h.b16 %v765
        %v3920 = vunpack.c.l.b16 %v766
        %v3921 = vunpack.c.h.b16 %v766
        %v3922 = vunpack.c.l.b16 %v767
        %v3923 = vunpack.c.h.b16 %v767
        %v3924 = vunpack.c.l.b16 %v768
        %v3925 = vunpack.c.h.b16 %v768
        %v3926 = vunpack.c.l.b16 %v769
        %v3927 = vunpack.c.h.b16 %v769
        %v3928 = vunpack.c.l.b16 %v770
        %v3929 = vunpack.c.h.b16 %v770
        %v3930 = vunpack.c.l.b16 %v771
        %v3931 = vunpack.c.h.b16 %v771
        %v3932 = vunpack.c.l.b16 %v772
        %v3933 = vunpack.c.h.b16 %v772
        %v3934 = vunpack.c.l.b16 %v773
        %v3935 = vunpack.c.h.b16 %v773
        %v3936 = vunpack.c.l.b16 %v774
        %v3937 = vunpack.c.h.b16 %v774
        %v3938 = vunpack.c.l.b16 %v775
        %v3939 = vunpack.c.h.b16 %v775
        %v3940 = vunpack.c.l.b16 %v776
        %v3941 = vunpack.c.h.b16 %v776
        %v3942 = vunpack.c.l.b16 %v777
        %v3943 = vunpack.c.h.b16 %v777
        %v3944 = vunpack.c.l.b16 %v778
        %v3945 = vunpack.c.h.b16 %v778
        %v3946 = vunpack.c.l.b16 %v779
        %v3947 = vunpack.c.h.b16 %v779
        %v3948 = vunpack.c.l.b16 %v780
        %v3949 = vunpack.c.h.b16 %v780
        %v3950 = vunpack.c.l.b16 %v781
        %v3951 = vunpack.c.h.b16 %v781
        %v3952 = vunpack.c.l.b16 %v782
        %v3953 = vunpack.c.h.b16 %v782
        %v3954 = vunpack.c.l.b16 %v783
        %v3955 = vunpack.c.h.b16 %v783
        %v3956 = vunpack.c.l.b16 %v784
        %v3957 = vunpack.c.h.b16 %v784
        %v3958 = vunpack.c.l.b16 %v785
        %v3959 = vunpack.c.h.b16 %v785
        %v3960 = vunpack.c.l.b16 %v786
        %v3961 = vunpack.c.h.b16 %v786
        %v3962 = vunpack.c.l.b16 %v787
        %v3963 = vunpack.c.h.b16 %v787
        %v3964 = vunpack.c.l.b16 %v788
        %v3965 = vunpack.c.h.b16 %v788
        %v3966 = vunpack.c.l.b16 %v789
        %v3967 = vunpack.c.h.b16 %v789
        %v3968 = vunpack.c.l.b16 %v790
        %v3969 = vunpack.c.h.b16 %v790
        %v3970 = vunpack.c.l.b16 %v791
        %v3971 = vunpack.c.h.b16 %v791
        %v3972 = vunpack.c.l.b16 %v792
        %v3973 = vunpack.c.h.b16 %v792
        %v3974 = vunpack.c.l.b16 %v793
        %v3975 = vunpack.c.h.b16 %v793
        %v3976 = vunpack.c.l.b16 %v794
        %v3977 = vunpack.c.h.b16 %v794
        %v3978 = vunpack.c.l.b16 %v795
        %v3979 = vunpack.c.h.b16 %v795
        %v3980 = vunpack.c.l.b16 %v796
        %v3981 = vunpack.c.h.b16 %v796
        %v3982 = vunpack.c.l.b16 %v797
        %v3983 = vunpack.c.h.b16 %v797
        %v3984 = vunpack.c.l.b16 %v798
        %v3985 = vunpack.c.h.b16 %v798
        %v3986 = vunpack.c.l.b16 %v799
        %v3987 = vunpack.c.h.b16 %v799
        %v3988 = vunpack.c.l.b16 %v800
        %v3989 = vunpack.c.h.b16 %v800
        %v3990 = vunpack.c.l.b16 %v801
        %v3991 = vunpack.c.h.b16 %v801
        %v3992 = vunpack.c.l.b16 %v802
        %v3993 = vunpack.c.h.b16 %v802
        %v3994 = vunpack.c.l.b16 %v803
        %v3995 = vunpack.c.h.b16 %v803
        %v3996 = vunpack.c.l.b16 %v804
        %v3997 = vunpack.c.h.b16 %v804
        %v3998 = vunpack.c.l.b16 %v805
        %v3999 = vunpack.c.h.b16 %v805
        %v4000 = vunpack.c.l.b16 %v806
        %v4001 = vunpack.c.h.b16 %v806
        %v4002 = vunpack.c.l.b16 %v807
        %v4003 = vunpack.c.h.b16 %v807
        %v4004 = vunpack.c.l.b16 %v808
        %v4005 = vunpack.c.h.b16 %v808
        %v4006 = vunpack.c.l.b16 %v809
        %v4007 = vunpack.c.h.b16 %v809
        %v4008 = vunpack.c.l.b16 %v810
        %v4009 = vunpack.c.h.b16 %v810
        %v4010 = vunpack.c.l.b16 %v811
        %v4011 = vunpack.c.h.b16 %v811
        %v4012 = vunpack.c.l.b16 %v812
        %v4013 = vunpack.c.h.b16 %v812
        %v4014 = vunpack.c.l.b16 %v813
        %v4015 = vunpack.c.h.b16 %v813
        %v4016 = vunpack.c.l.b16 %v814
        %v4017 = vunpack.c.h.b16 %v814
        %v4018 = vunpack.c.l.b16 %v815
        %v4019 = vunpack.c.h.b16 %v815
        %v4020 = vunpack.c.l.b16 %v816
        %v4021 = vunpack.c.h.b16 %v816
        %v4022 = vunpack.c.l.b16 %v817
        %v4023 = vunpack.c.h.b16 %v817
        %v4024 = vunpack.c.l.b16 %v818
        %v4025 = vunpack.c.h.b16 %v818
        %v4026 = vunpack.c.l.b16 %v819
        %v4027 = vunpack.c.h.b16 %v819
        %v4028 = vunpack.c.l.b16 %v820
        %v4029 = vunpack.c.h.b16 %v820
        %v4030 = vunpack.c.l.b16 %v821
        %v4031 = vunpack.c.h.b16 %v821
        %v4032 = vunpack.c.l.b16 %v822
        %v4033 = vunpack.c.h.b16 %v822
        %v4034 = vunpack.c.l.b16 %v823
        %v4035 = vunpack.c.h.b16 %v823
        %v4036 = vunpack.c.l.b16 %v824
        %v4037 = vunpack.c.h.b16 %v824
        %v4038 = vunpack.c.l.b16 %v825
        %v4039 = vunpack.c.h.b16 %v825
        %v4040 = vunpack.c.l.b16 %v826
        %v4041 = vunpack.c.h.b16 %v826
        %v4042 = vunpack.c.l.b16 %v827
        %v4043 = vunpack.c.h.b16 %v827
        %v4044 = vunpack.c.l.b16 %v828
        %v4045 = vunpack.c.h.b16 %v828
        %v4046 = vunpack.c.l.b16 %v829
        %v4047 = vunpack.c.h.b16 %v829
        %v4048 = vunpack.c.l.b16 %v830
        %v4049 = vunpack.c.h.b16 %v830
        %v4050 = vunpack.c.l.b16 %v831
        %v4051 = vunpack.c.h.b16 %v831
        %v4052 = vunpack.c.l.b16 %v832
        %v4053 = vunpack.c.h.b16 %v832
        %v4054 = vunpack.c.l.b16 %v833
        %v4055 = vunpack.c.h.b16 %v833
        %v4056 = vunpack.c.l.b16 %v834
        %v4057 = vunpack.c.h.b16 %v834
        %v4058 = vunpack.c.l.b16 %v835
        %v4059 = vunpack.c.h.b16 %v835
        %v4060 = vunpack.c.l.b16 %v836
        %v4061 = vunpack.c.h.b16 %v836
        %v4062 = vunpack.c.l.b16 %v837
        %v4063 = vunpack.c.h.b16 %v837
        %v4064 = vunpack.c.l.b16 %v838
        %v4065 = vunpack.c.h.b16 %v838
        %v4066 = vunpack.c.l.b16 %v839
        %v4067 = vunpack.c.h.b16 %v839
        %v4068 = vunpack.c.l.b16 %v840
        %v4069 = vunpack.c.h.b16 %v840
        %v4070 = vunpack.c.l.b16 %v841
        %v4071 = vunpack.c.h.b16 %v841
        %v4072 = vunpack.c.l.b16 %v842
        %v4073 = vunpack.c.h.b16 %v842
        %v4074 = vunpack.c.l.b16 %v843
        %v4075 = vunpack.c.h.b16 %v843
        %v4076 = vunpack.c.l.b16 %v844
        %v4077 = vunpack.c.h.b16 %v844
        %v4078 = vunpack.c.l.b16 %v845
        %v4079 = vunpack.c.h.b16 %v845
        %v4080 = vunpack.c.l.b16 %v846
        %v4081 = vunpack.c.h.b16 %v846
        %v4082 = vunpack.c.l.b16 %v847
        %v4083 = vunpack.c.h.b16 %v847
        %v4084 = vunpack.c.l.b16 %v848
        %v4085 = vunpack.c.h.b16 %v848
        %v4086 = vunpack.c.l.b16 %v849
        %v4087 = vunpack.c.h.b16 %v849
        %v4088 = vunpack.c.l.b16 %v850
        %v4089 = vunpack.c.h.b16 %v850
        %v4090 = vunpack.c.l.b16 %v851
        %v4091 = vunpack.c.h.b16 %v851
        %v4092 = vunpack.c.l.b16 %v852
        %v4093 = vunpack.c.h.b16 %v852
        %v4094 = vunpack.c.l.b16 %v853
        %v4095 = vunpack.c.h.b16 %v853
        %v4096 = vunpack.c.l.b16 %v854
        %v4097 = vunpack.c.h.b16 %v854
        %v4098 = vunpack.c.l.b16 %v855
        %v4099 = vunpack.c.h.b16 %v855
        %v4100 = vunpack.c.l.b16 %v856
        %v4101 = vunpack.c.h.b16 %v856
        %v4102 = vunpack.c.l.b16 %v857
        %v4103 = vunpack.c.h.b16 %v857
        %v4104 = vunpack.c.l.b16 %v858
        %v4105 = vunpack.c.h.b16 %v858
        %v4106 = vunpack.c.l.b16 %v859
        %v4107 = vunpack.c.h.b16 %v859
        %v4108 = vunpack.c.l.b16 %v860
        %v4109 = vunpack.c.h.b16 %v860
        %v4110 = vunpack.c.l.b16 %v861
        %v4111 = vunpack.c.h.b16 %v861
        %v4112 = vunpack.c.l.b16 %v862
        %v4113 = vunpack.c.h.b16 %v862
        %v4114 = vunpack.c.l.b16 %v863
        %v4115 = vunpack.c.h.b16 %v863
        %v4116 = vunpack.c.l.b16 %v864
        %v4117 = vunpack.c.h.b16 %v864
        %v4118 = vunpack.c.l.b16 %v865
        %v4119 = vunpack.c.h.b16 %v865
        %v4120 = vunpack.c.l.b16 %v866
        %v4121 = vunpack.c.h.b16 %v866
        %v4122 = vunpack.c.l.b16 %v867
        %v4123 = vunpack.c.h.b16 %v867
        %v4124 = vunpack.c.l.b16 %v868
        %v4125 = vunpack.c.h.b16 %v868
        %v4126 = vunpack.c.l.b16 %v869
        %v4127 = vunpack.c.h.b16 %v869
        %v4128 = vunpack.c.l.b16 %v870
        %v4129 = vunpack.c.h.b16 %v870
        %v4130 = vunpack.c.l.b16 %v871
        %v4131 = vunpack.c.h.b16 %v871
        %v4132 = vunpack.c.l.b16 %v872
        %v4133 = vunpack.c.h.b16 %v872
        %v4134 = vunpack.c.l.b16 %v873
        %v4135 = vunpack.c.h.b16 %v873
        %v4136 = vunpack.c.l.b16 %v874
        %v4137 = vunpack.c.h.b16 %v874
        %v4138 = vunpack.c.l.b16 %v875
        %v4139 = vunpack.c.h.b16 %v875
        %v4140 = vunpack.c.l.b16 %v876
        %v4141 = vunpack.c.h.b16 %v876
        %v4142 = vunpack.c.l.b16 %v877
        %v4143 = vunpack.c.h.b16 %v877
        %v4144 = vunpack.c.l.b16 %v878
        %v4145 = vunpack.c.h.b16 %v878
        %v4146 = vunpack.c.l.b16 %v879
        %v4147 = vunpack.c.h.b16 %v879
        %v4148 = vunpack.c.l.b16 %v880
        %v4149 = vunpack.c.h.b16 %v880
        %v4150 = vunpack.c.l.b16 %v881
        %v4151 = vunpack.c.h.b16 %v881
        %v4152 = vunpack.c.l.b16 %v882
        %v4153 = vunpack.c.h.b16 %v882
        %v4154 = vunpack.c.l.b16 %v883
        %v4155 = vunpack.c.h.b16 %v883
        %v4156 = vunpack.c.l.b16 %v884
        %v4157 = vunpack.c.h.b16 %v884
        %v4158 = vunpack.c.l.b16 %v885
        %v4159 = vunpack.c.h.b16 %v885
        %v4160 = vunpack.c.l.b16 %v886
        %v4161 = vunpack.c.h.b16 %v886
        %v4162 = vunpack.c.l.b16 %v887
        %v4163 = vunpack.c.h.b16 %v887
        %v4164 = vunpack.c.l.b16 %v888
        %v4165 = vunpack.c.h.b16 %v888
        %v4166 = vunpack.c.l.b16 %v889
        %v4167 = vunpack.c.h.b16 %v889
        %v4168 = vunpack.c.l.b16 %v890
        %v4169 = vunpack.c.h.b16 %v890
        %v4170 = vunpack.c.l.b16 %v891
        %v4171 = vunpack.c.h.b16 %v891
        %v4172 = vunpack.c.l.b16 %v892
        %v4173 = vunpack.c.h.b16 %v892
        %v4174 = vunpack.c.l.b16 %v893
        %v4175 = vunpack.c.h.b16 %v893
        %v4176 = vunpack.c.l.b16 %v894
        %v4177 = vunpack.c.h.b16 %v894
        %v4178 = vunpack.c.l.b16 %v895
        %v4179 = vunpack.c.h.b16 %v895
        %v4180 = vunpack.c.l.b16 %v896
        %v4181 = vunpack.c.h.b16 %v896
        %v4182 = vunpack.c.l.b16 %v897
        %v4183 = vunpack.c.h.b16 %v897
        %v4184 = vunpack.c.l.b16 %v898
        %v4185 = vunpack.c.h.b16 %v898
        %v4186 = vunpack.c.l.b16 %v899
        %v4187 = vunpack.c.h.b16 %v899
        %v4188 = vunpack.c.l.b16 %v900
        %v4189 = vunpack.c.h.b16 %v900
        %v4190 = vunpack.c.l.b16 %v901
        %v4191 = vunpack.c.h.b16 %v901
        %v4192 = vunpack.c.l.b16 %v902
        %v4193 = vunpack.c.h.b16 %v902
        %v4194 = vunpack.c.l.b16 %v903
        %v4195 = vunpack.c.h.b16 %v903
        %v4196 = vunpack.c.l.b16 %v904
        %v4197 = vunpack.c.h.b16 %v904
        %v4198 = vunpack.c.l.b16 %v905
        %v4199 = vunpack.c.h.b16 %v905
        %v4200 = vunpack.c.l.b16 %v906
        %v4201 = vunpack.c.h.b16 %v906
        %v4202 = vunpack.c.l.b16 %v907
        %v4203 = vunpack.c.h.b16 %v907
        %v4204 = vunpack.c.l.b16 %v908
        %v4205 = vunpack.c.h.b16 %v908
        %v4206 = vunpack.c.l.b16 %v909
        %v4207 = vunpack.c.h.b16 %v909
        %v4208 = vunpack.c.l.b16 %v910
        %v4209 = vunpack.c.h.b16 %v910
        %v4210 = vunpack.c.l.b16 %v911
        %v4211 = vunpack.c.h.b16 %v911
        %v4212 = vunpack.c.l.b16 %v912
        %v4213 = vunpack.c.h.b16 %v912
        %v4214 = vunpack.c.l.b16 %v913
        %v4215 = vunpack.c.h.b16 %v913
        %v4216 = vunpack.c.l.b16 %v914
        %v4217 = vunpack.c.h.b16 %v914
        %v4218 = vunpack.c.l.b16 %v915
        %v4219 = vunpack.c.h.b16 %v915
        %v4220 = vunpack.c.l.b16 %v916
        %v4221 = vunpack.c.h.b16 %v916
        %v4222 = vunpack.c.l.b16 %v917
        %v4223 = vunpack.c.h.b16 %v917
        %v4224 = vunpack.c.l.b16 %v918
        %v4225 = vunpack.c.h.b16 %v918
        %v4226 = vunpack.c.l.b16 %v919
        %v4227 = vunpack.c.h.b16 %v919
        %v4228 = vunpack.c.l.b16 %v920
        %v4229 = vunpack.c.h.b16 %v920
        %v4230 = vunpack.c.l.b16 %v921
        %v4231 = vunpack.c.h.b16 %v921
        %v4232 = vunpack.c.l.b16 %v922
        %v4233 = vunpack.c.h.b16 %v922
        %v4234 = vunpack.c.l.b16 %v923
        %v4235 = vunpack.c.h.b16 %v923
        %v4236 = vunpack.c.l.b16 %v924
        %v4237 = vunpack.c.h.b16 %v924
        %v4238 = vunpack.c.l.b16 %v925
        %v4239 = vunpack.c.h.b16 %v925
        %v4240 = vunpack.c.l.b16 %v926
        %v4241 = vunpack.c.h.b16 %v926
        %v4242 = vunpack.c.l.b16 %v927
        %v4243 = vunpack.c.h.b16 %v927
        %v4244 = vunpack.c.l.b16 %v928
        %v4245 = vunpack.c.h.b16 %v928
        %v4246 = vunpack.c.l.b16 %v929
        %v4247 = vunpack.c.h.b16 %v929
        %v4248 = vunpack.c.l.b16 %v930
        %v4249 = vunpack.c.h.b16 %v930
        %v4250 = vunpack.c.l.b16 %v931
        %v4251 = vunpack.c.h.b16 %v931
        %v4252 = vunpack.c.l.b16 %v932
        %v4253 = vunpack.c.h.b16 %v932
        %v4254 = vunpack.c.l.b16 %v933
        %v4255 = vunpack.c.h.b16 %v933
        %v4256 = vunpack.c.l.b16 %v934
        %v4257 = vunpack.c.h.b16 %v934
        %v4258 = vunpack.c.l.b16 %v935
        %v4259 = vunpack.c.h.b16 %v935
        %v4260 = vunpack.c.l.b16 %v936
        %v4261 = vunpack.c.h.b16 %v936
        %v4262 = vunpack.c.l.b16 %v937
        %v4263 = vunpack.c.h.b16 %v937
        %v4264 = vunpack.c.l.b16 %v938
        %v4265 = vunpack.c.h.b16 %v938
        %v4266 = vunpack.c.l.b16 %v939
        %v4267 = vunpack.c.h.b16 %v939
        %v4268 = vunpack.c.l.b16 %v940
        %v4269 = vunpack.c.h.b16 %v940
        %v4270 = vunpack.c.l.b16 %v941
        %v4271 = vunpack.c.h.b16 %v941
        %v4272 = vunpack.c.l.b16 %v942
        %v4273 = vunpack.c.h.b16 %v942
        %v4274 = vunpack.c.l.b16 %v943
        %v4275 = vunpack.c.h.b16 %v943
        %v4276 = vunpack.c.l.b16 %v944
        %v4277 = vunpack.c.h.b16 %v944
        %v4278 = vunpack.c.l.b16 %v945
        %v4279 = vunpack.c.h.b16 %v945
        %v4280 = vunpack.c.l.b16 %v946
        %v4281 = vunpack.c.h.b16 %v946
        %v4282 = vunpack.c.l.b16 %v947
        %v4283 = vunpack.c.h.b16 %v947
        %v4284 = vunpack.c.l.b16 %v948
        %v4285 = vunpack.c.h.b16 %v948
        %v4286 = vunpack.c.l.b16 %v949
        %v4287 = vunpack.c.h.b16 %v949
        %v4288 = vunpack.c.l.b16 %v950
        %v4289 = vunpack.c.h.b16 %v950
        %v4290 = vunpack.c.l.b16 %v951
        %v4291 = vunpack.c.h.b16 %v951
        %v4292 = vunpack.c.l.b16 %v952
        %v4293 = vunpack.c.h.b16 %v952
        %v4294 = vunpack.c.l.b16 %v953
        %v4295 = vunpack.c.h.b16 %v953
        %v4296 = vunpack.c.l.b16 %v954
        %v4297 = vunpack.c.h.b16 %v954
        %v4298 = vunpack.c.l.b16 %v955
        %v4299 = vunpack.c.h.b16 %v955
        %v4300 = vunpack.c.l.b16 %v956
        %v4301 = vunpack.c.h.b16 %v956
        %v4302 = vunpack.c.l.b16 %v957
        %v4303 = vunpack.c.h.b16 %v957
        %v4304 = vunpack.c.l.b16 %v958
        %v4305 = vunpack.c.h.b16 %v958
        %v4306 = vunpack.c.l.b16 %v959
        %v4307 = vunpack.c.h.b16 %v959
        %v4308 = vunpack.c.l.b16 %v960
        %v4309 = vunpack.c.h.b16 %v960
        %v4310 = vunpack.c.l.b16 %v961
        %v4311 = vunpack.c.h.b16 %v961
        %v4312 = vunpack.c.l.b16 %v962
        %v4313 = vunpack.c.h.b16 %v962
        %v4314 = vunpack.c.l.b16 %v963
        %v4315 = vunpack.c.h.b16 %v963
        %v4316 = vunpack.c.l.b16 %v964
        %v4317 = vunpack.c.h.b16 %v964
        %v4318 = vunpack.c.l.b16 %v965
        %v4319 = vunpack.c.h.b16 %v965
        %v4320 = vunpack.c.l.b16 %v966
        %v4321 = vunpack.c.h.b16 %v966
        %v4322 = vunpack.c.l.b16 %v967
        %v4323 = vunpack.c.h.b16 %v967
        %v4324 = vunpack.c.l.b16 %v968
        %v4325 = vunpack.c.h.b16 %v968
        %v4326 = vunpack.c.l.b16 %v969
        %v4327 = vunpack.c.h.b16 %v969
        %v4328 = vunpack.c.l.b16 %v970
        %v4329 = vunpack.c.h.b16 %v970
        %v4330 = vunpack.c.l.b16 %v971
        %v4331 = vunpack.c.h.b16 %v971
        %v4332 = vunpack.c.l.b16 %v972
        %v4333 = vunpack.c.h.b16 %v972
        %v4334 = vunpack.c.l.b16 %v973
        %v4335 = vunpack.c.h.b16 %v973
        %v4336 = vunpack.c.l.b16 %v974
        %v4337 = vunpack.c.h.b16 %v974
        %v4338 = vunpack.c.l.b16 %v975
        %v4339 = vunpack.c.h.b16 %v975
        %v4340 = vunpack.c.l.b16 %v976
        %v4341 = vunpack.c.h.b16 %v976
        %v4342 = vunpack.c.l.b16 %v977
        %v4343 = vunpack.c.h.b16 %v977
        %v4344 = vunpack.c.l.b16 %v978
        %v4345 = vunpack.c.h.b16 %v978
        %v4346 = vunpack.c.l.b16 %v979
        %v4347 = vunpack.c.h.b16 %v979
        %v4348 = vunpack.c.l.b16 %v980
        %v4349 = vunpack.c.h.b16 %v980
        %v4350 = vunpack.c.l.b16 %v981
        %v4351 = vunpack.c.h.b16 %v981
        %v4352 = vunpack.c.l.b16 %v982
        %v4353 = vunpack.c.h.b16 %v982
        %v4354 = vunpack.c.l.b16 %v983
        %v4355 = vunpack.c.h.b16 %v983
        %v4356 = vunpack.c.l.b16 %v984
        %v4357 = vunpack.c.h.b16 %v984
        %v4358 = vunpack.c.l.b16 %v985
        %v4359 = vunpack.c.h.b16 %v985
        %v4360 = vunpack.c.l.b16 %v986
        %v4361 = vunpack.c.h.b16 %v986
        %v4362 = vunpack.c.l.b16 %v987
        %v4363 = vunpack.c.h.b16 %v987
        %v4364 = vunpack.c.l.b16 %v988
        %v4365 = vunpack.c.h.b16 %v988
        %v4366 = vunpack.c.l.b16 %v989
        %v4367 = vunpack.c.h.b16 %v989
        %v4368 = vunpack.c.l.b16 %v990
        %v4369 = vunpack.c.h.b16 %v990
        %v4370 = vunpack.c.l.b16 %v991
        %v4371 = vunpack.c.h.b16 %v991
        %v4372 = vunpack.c.l.b16 %v992
        %v4373 = vunpack.c.h.b16 %v992
        %v4374 = vunpack.c.l.b16 %v993
        %v4375 = vunpack.c.h.b16 %v993
        %v4376 = vunpack.c.l.b16 %v994
        %v4377 = vunpack.c.h.b16 %v994
        %v4378 = vunpack.c.l.b16 %v995
        %v4379 = vunpack.c.h.b16 %v995
        %v4380 = vunpack.c.l.b16 %v996
        %v4381 = vunpack.c.h.b16 %v996
        %v4382 = vunpack.c.l.b16 %v997
        %v4383 = vunpack.c.h.b16 %v997
        %v4384 = vunpack.c.l.b16 %v998
        %v4385 = vunpack.c.h.b16 %v998
        %v4386 = vunpack.c.l.b16 %v999
        %v4387 = vunpack.c.h.b16 %v999
        %v4388 = vunpack.c.l.b16 %v1000
        %v4389 = vunpack.c.h.b16 %v1000
        %v4390 = vunpack.c.l.b16 %v1001
        %v4391 = vunpack.c.h.b16 %v1001
        %v4392 = vunpack.c.l.b16 %v1002
        %v4393 = vunpack.c.h.b16 %v1002
        %v4394 = vunpack.c.l.b16 %v1003
        %v4395 = vunpack.c.h.b16 %v1003
        %v4396 = vunpack.c.l.b16 %v1004
        %v4397 = vunpack.c.h.b16 %v1004
        %v4398 = vunpack.c.l.b16 %v1005
        %v4399 = vunpack.c.h.b16 %v1005
        %v4400 = vunpack.c.l.b16 %v1006
        %v4401 = vunpack.c.h.b16 %v1006
        %v4402 = vunpack.c.l.b16 %v1007
        %v4403 = vunpack.c.h.b16 %v1007
        %v4404 = vunpack.c.l.b16 %v1008
        %v4405 = vunpack.c.h.b16 %v1008
        %v4406 = vunpack.c.l.b16 %v1009
        %v4407 = vunpack.c.h.b16 %v1009
        %v4408 = vunpack.c.l.b16 %v1010
        %v4409 = vunpack.c.h.b16 %v1010
        %v4410 = vunpack.c.l.b16 %v1011
        %v4411 = vunpack.c.h.b16 %v1011
        %v4412 = vunpack.c.l.b16 %v1012
        %v4413 = vunpack.c.h.b16 %v1012
        %v4414 = vunpack.c.l.b16 %v1013
        %v4415 = vunpack.c.h.b16 %v1013
        %v4416 = vunpack.c.l.b16 %v1014
        %v4417 = vunpack.c.h.b16 %v1014
        %v4418 = vunpack.c.l.b16 %v1015
        %v4419 = vunpack.c.h.b16 %v1015
        %v4420 = vunpack.c.l.b16 %v1016
        %v4421 = vunpack.c.h.b16 %v1016
        %v4422 = vunpack.c.l.b16 %v1017
        %v4423 = vunpack.c.h.b16 %v1017
        %v4424 = vunpack.c.l.b16 %v1018
        %v4425 = vunpack.c.h.b16 %v1018
        %v4426 = vunpack.c.l.b16 %v1019
        %v4427 = vunpack.c.h.b16 %v1019
        %v4428 = vunpack.c.l.b16 %v1020
        %v4429 = vunpack.c.h.b16 %v1020
        %v4430 = vunpack.c.l.b16 %v1021
        %v4431 = vunpack.c.h.b16 %v1021
        %v4432 = vunpack.c.l.b16 %v1022
        %v4433 = vunpack.c.h.b16 %v1022
        %v4434 = vunpack.c.l.b16 %v1023
        %v4435 = vunpack.c.h.b16 %v1023
        %v4436 = vunpack.c.l.b16 %v1024
        %v4437 = vunpack.c.h.b16 %v1024
        %v4438 = vunpack.c.l.b16 %v1025
        %v4439 = vunpack.c.h.b16 %v1025
        %v4440 = vunpack.c.l.b16 %v1026
        %v4441 = vunpack.c.h.b16 %v1026
        %v4442 = vunpack.c.l.b16 %v1027
        %v4443 = vunpack.c.h.b16 %v1027
        %v4444 = vunpack.c.l.b16 %v1028
        %v4445 = vunpack.c.h.b16 %v1028
        %v4446 = vunpack.c.l.b16 %v1029
        %v4447 = vunpack.c.h.b16 %v1029
        %v4448 = vunpack.c.l.b16 %v1030
        %v4449 = vunpack.c.h.b16 %v1030
        %v4450 = vunpack.c.l.b16 %v1031
        %v4451 = vunpack.c.h.b16 %v1031
        %v4452 = vunpack.c.l.b16 %v1032
        %v4453 = vunpack.c.h.b16 %v1032
        %v4454 = vunpack.c.l.b16 %v1033
        %v4455 = vunpack.c.h.b16 %v1033
        %v4456 = vunpack.c.l.b16 %v1034
        %v4457 = vunpack.c.h.b16 %v1034
        %v4458 = vunpack.c.l.b16 %v1035
        %v4459 = vunpack.c.h.b16 %v1035
        %v4460 = vunpack.c.l.b16 %v1036
        %v4461 = vunpack.c.h.b16 %v1036
        %v4462 = vunpack.c.l.b16 %v1037
        %v4463 = vunpack.c.h.b16 %v1037
        %v4464 = vunpack.c.l.b16 %v1038
        %v4465 = vunpack.c.h.b16 %v1038
        %v4466 = vunpack.c.l.b16 %v1039
        %v4467 = vunpack.c.h.b16 %v1039
        %v4468 = vunpack.c.l.b16 %v1040
        %v4469 = vunpack.c.h.b16 %v1040
        %v4470 = vunpack.c.l.b16 %v1041
        %v4471 = vunpack.c.h.b16 %v1041
        %v4472 = vunpack.c.l.b16 %v1042
        %v4473 = vunpack.c.h.b16 %v1042
        %v4474 = vunpack.c.l.b16 %v1043
        %v4475 = vunpack.c.h.b16 %v1043
        %v4476 = vunpack.c.l.b16 %v1044
        %v4477 = vunpack.c.h.b16 %v1044
        %v4478 = vunpack.c.l.b16 %v1045
        %v4479 = vunpack.c.h.b16 %v1045
        %v4480 = vunpack.c.l.b16 %v1046
        %v4481 = vunpack.c.h.b16 %v1046
        %v4482 = vunpack.c.l.b16 %v1047
        %v4483 = vunpack.c.h.b16 %v1047
        %v4484 = vunpack.c.l.b16 %v1048
        %v4485 = vunpack.c.h.b16 %v1048
        %v4486 = vunpack.c.l.b16 %v1049
        %v4487 = vunpack.c.h.b16 %v1049
        %v4488 = vunpack.c.l.b16 %v1050
        %v4489 = vunpack.c.h.b16 %v1050
        %v4490 = vunpack.c.l.b16 %v1051
        %v4491 = vunpack.c.h.b16 %v1051
        %v4492 = vunpack.c.l.b16 %v1052
        %v4493 = vunpack.c.h.b16 %v1052
        %v4494 = vunpack.c.l.b16 %v1053
        %v4495 = vunpack.c.h.b16 %v1053
        %v4496 = vunpack.c.l.b16 %v1054
        %v4497 = vunpack.c.h.b16 %v1054
        %v4498 = vunpack.c.l.b16 %v1055
        %v4499 = vunpack.c.h.b16 %v1055
        %v4500 = vunpack.c.l.b16 %v1056
        %v4501 = vunpack.c.h.b16 %v1056
        %v4502 = vunpack.c.l.b16 %v1057
        %v4503 = vunpack.c.h.b16 %v1057
        %v4504 = vunpack.c.l.b16 %v1058
        %v4505 = vunpack.c.h.b16 %v1058
        %v4506 = vunpack.c.l.b16 %v1059
        %v4507 = vunpack.c.h.b16 %v1059
        %v4508 = vunpack.c.l.b16 %v1060
        %v4509 = vunpack.c.h.b16 %v1060
        %v4510 = vunpack.c.l.b16 %v1061
        %v4511 = vunpack.c.h.b16 %v1061
        %v4512 = vunpack.c.l.b16 %v1062
        %v4513 = vunpack.c.h.b16 %v1062
        %v4514 = vunpack.c.l.b16 %v1063
        %v4515 = vunpack.c.h.b16 %v1063
        %v4516 = vunpack.c.l.b16 %v1064
        %v4517 = vunpack.c.h.b16 %v1064
        %v4518 = vunpack.c.l.b16 %v1065
        %v4519 = vunpack.c.h.b16 %v1065
        %v4520 = vunpack.c.l.b16 %v1066
        %v4521 = vunpack.c.h.b16 %v1066
        %v4522 = vunpack.c.l.b16 %v1067
        %v4523 = vunpack.c.h.b16 %v1067
        %v4524 = vunpack.c.l.b16 %v1068
        %v4525 = vunpack.c.h.b16 %v1068
        %v4526 = vunpack.c.l.b16 %v1069
        %v4527 = vunpack.c.h.b16 %v1069
        %v4528 = vunpack.c.l.b16 %v1070
        %v4529 = vunpack.c.h.b16 %v1070
        %v4530 = vunpack.c.l.b16 %v1071
        %v4531 = vunpack.c.h.b16 %v1071
        %v4532 = vunpack.c.l.b16 %v1072
        %v4533 = vunpack.c.h.b16 %v1072
        %v4534 = vunpack.c.l.b16 %v1073
        %v4535 = vunpack.c.h.b16 %v1073
        %v4536 = vunpack.c.l.b16 %v1074
        %v4537 = vunpack.c.h.b16 %v1074
        %v4538 = vunpack.c.l.b16 %v1075
        %v4539 = vunpack.c.h.b16 %v1075
        %v4540 = vunpack.c.l.b16 %v1076
        %v4541 = vunpack.c.h.b16 %v1076
        %v4542 = vunpack.c.l.b16 %v1077
        %v4543 = vunpack.c.h.b16 %v1077
        %v4544 = vunpack.c.l.b16 %v1078
        %v4545 = vunpack.c.h.b16 %v1078
        %v4546 = vunpack.c.l.b16 %v1079
        %v4547 = vunpack.c.h.b16 %v1079
        %v4548 = vunpack.c.l.b16 %v1080
        %v4549 = vunpack.c.h.b16 %v1080
        %v4550 = vunpack.c.l.b16 %v1081
        %v4551 = vunpack.c.h.b16 %v1081
        %v4552 = vunpack.c.l.b16 %v1082
        %v4553 = vunpack.c.h.b16 %v1082
        %v4554 = vunpack.c.l.b16 %v1083
        %v4555 = vunpack.c.h.b16 %v1083
        %v4556 = vunpack.c.l.b16 %v1084
        %v4557 = vunpack.c.h.b16 %v1084
        %v4558 = vunpack.c.l.b16 %v1085
        %v4559 = vunpack.c.h.b16 %v1085
        %v4560 = vunpack.c.l.b16 %v1086
        %v4561 = vunpack.c.h.b16 %v1086
        %v4562 = vunpack.c.l.b16 %v1087
        %v4563 = vunpack.c.h.b16 %v1087
        %v4564 = vunpack.c.l.b16 %v1088
        %v4565 = vunpack.c.h.b16 %v1088
        %v4566 = vunpack.c.l.b16 %v1089
        %v4567 = vunpack.c.h.b16 %v1089
        %v4568 = vunpack.c.l.b16 %v1090
        %v4569 = vunpack.c.h.b16 %v1090
        %v4570 = vunpack.c.l.b16 %v1091
        %v4571 = vunpack.c.h.b16 %v1091
        %v4572 = vunpack.c.l.b16 %v1092
        %v4573 = vunpack.c.h.b16 %v1092
        %v4574 = vunpack.c.l.b16 %v1093
        %v4575 = vunpack.c.h.b16 %v1093
        %v4576 = vunpack.c.l.b16 %v1094
        %v4577 = vunpack.c.h.b16 %v1094
        %v4578 = vunpack.c.l.b16 %v1095
        %v4579 = vunpack.c.h.b16 %v1095
        %v4580 = vunpack.c.l.b16 %v1096
        %v4581 = vunpack.c.h.b16 %v1096
        %v4582 = vunpack.c.l.b16 %v1097
        %v4583 = vunpack.c.h.b16 %v1097
        %v4584 = vunpack.c.l.b16 %v1098
        %v4585 = vunpack.c.h.b16 %v1098
        %v4586 = vunpack.c.l.b16 %v1099
        %v4587 = vunpack.c.h.b16 %v1099
        %v4588 = vunpack.c.l.b16 %v1100
        %v4589 = vunpack.c.h.b16 %v1100
        %v4590 = vunpack.c.l.b16 %v1101
        %v4591 = vunpack.c.h.b16 %v1101
        %v4592 = vunpack.c.l.b16 %v1102
        %v4593 = vunpack.c.h.b16 %v1102
        %v4594 = vunpack.c.l.b16 %v1103
        %v4595 = vunpack.c.h.b16 %v1103
        %v4596 = vunpack.c.l.b16 %v1104
        %v4597 = vunpack.c.h.b16 %v1104
        %v4598 = vunpack.c.l.b16 %v1105
        %v4599 = vunpack.c.h.b16 %v1105
        %v4600 = vunpack.c.l.b16 %v1106
        %v4601 = vunpack.c.h.b16 %v1106
        %v4602 = vunpack.c.l.b16 %v1107
        %v4603 = vunpack.c.h.b16 %v1107
        %v4604 = vunpack.c.l.b16 %v1108
        %v4605 = vunpack.c.h.b16 %v1108
        %v4606 = vunpack.c.l.b16 %v1109
        %v4607 = vunpack.c.h.b16 %v1109
        %v4608 = vunpack.c.l.b16 %v1110
        %v4609 = vunpack.c.h.b16 %v1110
        %v4610 = vunpack.c.l.b16 %v1111
        %v4611 = vunpack.c.h.b16 %v1111
        %v4612 = vunpack.c.l.b16 %v1112
        %v4613 = vunpack.c.h.b16 %v1112
        %v4614 = vunpack.c.l.b16 %v1113
        %v4615 = vunpack.c.h.b16 %v1113
        %v4616 = vunpack.c.l.b16 %v1114
        %v4617 = vunpack.c.h.b16 %v1114
        %v4618 = vunpack.c.l.b16 %v1115
        %v4619 = vunpack.c.h.b16 %v1115
        %v4620 = vunpack.c.l.b16 %v1116
        %v4621 = vunpack.c.h.b16 %v1116
        %v4622 = vunpack.c.l.b16 %v1117
        %v4623 = vunpack.c.h.b16 %v1117
        %v4624 = vunpack.c.l.b16 %v1118
        %v4625 = vunpack.c.h.b16 %v1118
        %v4626 = vunpack.c.l.b16 %v1119
        %v4627 = vunpack.c.h.b16 %v1119
        %v4628 = vunpack.c.l.b16 %v1120
        %v4629 = vunpack.c.h.b16 %v1120
        %v4630 = vunpack.c.l.b16 %v1121
        %v4631 = vunpack.c.h.b16 %v1121
        %v4632 = vunpack.c.l.b16 %v1122
        %v4633 = vunpack.c.h.b16 %v1122
        %v4634 = vunpack.c.l.b16 %v1123
        %v4635 = vunpack.c.h.b16 %v1123
        %v4636 = vunpack.c.l.b16 %v1124
        %v4637 = vunpack.c.h.b16 %v1124
        %v4638 = vunpack.c.l.b16 %v1125
        %v4639 = vunpack.c.h.b16 %v1125
        %v4640 = vunpack.c.l.b16 %v1126
        %v4641 = vunpack.c.h.b16 %v1126
        %v4642 = vunpack.c.l.b16 %v1127
        %v4643 = vunpack.c.h.b16 %v1127
        %v4644 = vunpack.c.l.b16 %v1128
        %v4645 = vunpack.c.h.b16 %v1128
        %v4646 = vunpack.c.l.b16 %v1129
        %v4647 = vunpack.c.h.b16 %v1129
        %v4648 = vunpack.c.l.b16 %v1130
        %v4649 = vunpack.c.h.b16 %v1130
        %v4650 = vunpack.c.l.b16 %v1131
        %v4651 = vunpack.c.h.b16 %v1131
        %v4652 = vunpack.c.l.b16 %v1132
        %v4653 = vunpack.c.h.b16 %v1132
        %v4654 = vunpack.c.l.b16 %v1133
        %v4655 = vunpack.c.h.b16 %v1133
        %v4656 = vunpack.c.l.b16 %v1134
        %v4657 = vunpack.c.h.b16 %v1134
        %v4658 = vunpack.c.l.b16 %v1135
        %v4659 = vunpack.c.h.b16 %v1135
        %v4660 = vunpack.c.l.b16 %v1136
        %v4661 = vunpack.c.h.b16 %v1136
        %v4662 = vunpack.c.l.b16 %v1137
        %v4663 = vunpack.c.h.b16 %v1137
        %v4664 = vunpack.c.l.b16 %v1138
        %v4665 = vunpack.c.h.b16 %v1138
        %v4666 = vunpack.c.l.b16 %v1139
        %v4667 = vunpack.c.h.b16 %v1139
        %v4668 = vunpack.c.l.b16 %v1140
        %v4669 = vunpack.c.h.b16 %v1140
        %v4670 = vunpack.c.l.b16 %v1141
        %v4671 = vunpack.c.h.b16 %v1141
        %v4672 = vunpack.c.l.b16 %v1142
        %v4673 = vunpack.c.h.b16 %v1142
        %v4674 = vunpack.c.l.b16 %v1143
        %v4675 = vunpack.c.h.b16 %v1143
        %v4676 = vunpack.c.l.b16 %v1144
        %v4677 = vunpack.c.h.b16 %v1144
        %v4678 = vunpack.c.l.b16 %v1145
        %v4679 = vunpack.c.h.b16 %v1145
        %v4680 = vunpack.c.l.b16 %v1146
        %v4681 = vunpack.c.h.b16 %v1146
        %v4682 = vunpack.c.l.b16 %v1147
        %v4683 = vunpack.c.h.b16 %v1147
        %v4684 = vunpack.c.l.b16 %v1148
        %v4685 = vunpack.c.h.b16 %v1148
        %v4686 = vunpack.c.l.b16 %v1149
        %v4687 = vunpack.c.h.b16 %v1149
        %v4688 = vunpack.c.l.b16 %v1150
        %v4689 = vunpack.c.h.b16 %v1150
        %v4690 = vunpack.c.l.b16 %v1151
        %v4691 = vunpack.c.h.b16 %v1151
        %v4692 = vunpack.c.l.b16 %v1152
        %v4693 = vunpack.c.h.b16 %v1152
        %v4694 = vunpack.c.l.b16 %v1153
        %v4695 = vunpack.c.h.b16 %v1153
        %v4696 = vunpack.c.l.b16 %v1154
        %v4697 = vunpack.c.h.b16 %v1154
        %v4698 = vunpack.c.l.b16 %v1155
        %v4699 = vunpack.c.h.b16 %v1155
        %v4700 = vunpack.c.l.b16 %v1156
        %v4701 = vunpack.c.h.b16 %v1156
        %v4702 = vunpack.c.l.b16 %v1157
        %v4703 = vunpack.c.h.b16 %v1157
        %v4704 = vunpack.c.l.b16 %v1158
        %v4705 = vunpack.c.h.b16 %v1158
        %v4706 = vunpack.c.l.b16 %v1159
        %v4707 = vunpack.c.h.b16 %v1159
        %v4708 = vunpack.c.l.b16 %v1160
        %v4709 = vunpack.c.h.b16 %v1160
        %v4710 = vunpack.c.l.b16 %v1161
        %v4711 = vunpack.c.h.b16 %v1161
        %v4712 = vunpack.c.l.b16 %v1162
        %v4713 = vunpack.c.h.b16 %v1162
        %v4714 = vunpack.c.l.b16 %v1163
        %v4715 = vunpack.c.h.b16 %v1163
        %v4716 = vunpack.c.l.b16 %v1164
        %v4717 = vunpack.c.h.b16 %v1164
        %v4718 = vunpack.c.l.b16 %v1165
        %v4719 = vunpack.c.h.b16 %v1165
        %v4720 = vunpack.c.l.b16 %v1166
        %v4721 = vunpack.c.h.b16 %v1166
        %v4722 = vunpack.c.l.b16 %v1167
        %v4723 = vunpack.c.h.b16 %v1167
        %v4724 = vunpack.c.l.b16 %v1168
        %v4725 = vunpack.c.h.b16 %v1168
        %v4726 = vunpack.c.l.b16 %v1169
        %v4727 = vunpack.c.h.b16 %v1169
        %v4728 = vunpack.c.l.b16 %v1170
        %v4729 = vunpack.c.h.b16 %v1170
        %v4730 = vunpack.c.l.b16 %v1171
        %v4731 = vunpack.c.h.b16 %v1171
        %v4732 = vunpack.c.l.b16 %v1172
        %v4733 = vunpack.c.h.b16 %v1172
        %v4734 = vunpack.c.l.b16 %v1173
        %v4735 = vunpack.c.h.b16 %v1173
        %v4736 = vunpack.c.l.b16 %v1174
        %v4737 = vunpack.c.h.b16 %v1174
        %v4738 = vunpack.c.l.b16 %v1175
        %v4739 = vunpack.c.h.b16 %v1175
        %v4740 = vunpack.c.l.b16 %v1176
        %v4741 = vunpack.c.h.b16 %v1176
        %v4742 = vunpack.c.l.b16 %v1177
        %v4743 = vunpack.c.h.b16 %v1177
        %v4744 = vunpack.c.l.b16 %v1178
        %v4745 = vunpack.c.h.b16 %v1178
        %v4746 = vunpack.c.l.b16 %v1179
        %v4747 = vunpack.c.h.b16 %v1179
        %v4748 = vunpack.c.l.b16 %v1180
        %v4749 = vunpack.c.h.b16 %v1180
        %v4750 = vunpack.c.l.b16 %v1181
        %v4751 = vunpack.c.h.b16 %v1181
        %v4752 = vunpack.c.l.b16 %v1182
        %v4753 = vunpack.c.h.b16 %v1182
        %v4754 = vunpack.c.l.b16 %v1183
        %v4755 = vunpack.c.h.b16 %v1183
        %v4756 = vunpack.c.l.b16 %v1184
        %v4757 = vunpack.c.h.b16 %v1184
        %v4758 = vunpack.c.l.b16 %v1185
        %v4759 = vunpack.c.h.b16 %v1185
        %v4760 = vunpack.c.l.b16 %v1186
        %v4761 = vunpack.c.h.b16 %v1186
        %v4762 = vunpack.c.l.b16 %v1187
        %v4763 = vunpack.c.h.b16 %v1187
        %v4764 = vunpack.c.l.b16 %v1188
        %v4765 = vunpack.c.h.b16 %v1188
        %v4766 = vunpack.c.l.b16 %v1189
        %v4767 = vunpack.c.h.b16 %v1189
        %v4768 = vunpack.c.l.b16 %v1190
        %v4769 = vunpack.c.h.b16 %v1190
        %v4770 = vunpack.c.l.b16 %v1191
        %v4771 = vunpack.c.h.b16 %v1191
        %v4772 = vunpack.c.l.b16 %v1192
        %v4773 = vunpack.c.h.b16 %v1192
        %v4774 = vunpack.c.l.b16 %v1193
        %v4775 = vunpack.c.h.b16 %v1193
        %v4776 = vunpack.c.l.b16 %v1194
        %v4777 = vunpack.c.h.b16 %v1194
        %v4778 = vunpack.c.l.b16 %v1195
        %v4779 = vunpack.c.h.b16 %v1195
        %v4780 = vunpack.c.l.b16 %v1196
        %v4781 = vunpack.c.h.b16 %v1196
        %v4782 = vunpack.c.l.b16 %v1197
        %v4783 = vunpack.c.h.b16 %v1197
        %v4784 = vunpack.c.l.b16 %v1198
        %v4785 = vunpack.c.h.b16 %v1198
        %v4786 = vunpack.c.l.b16 %v1199
        %v4787 = vunpack.c.h.b16 %v1199
        %v4788 = vunpack.c.l.b16 %v1200
        %v4789 = vunpack.c.h.b16 %v1200
        %v4790 = vunpack.c.l.b16 %v1201
        %v4791 = vunpack.c.h.b16 %v1201
        %v4792 = vunpack.c.l.b16 %v1202
        %v4793 = vunpack.c.h.b16 %v1202
        %v4794 = vunpack.c.l.b16 %v1203
        %v4795 = vunpack.c.h.b16 %v1203
        %v4796 = vunpack.c.l.b16 %v1204
        %v4797 = vunpack.c.h.b16 %v1204
        %v4798 = vunpack.c.l.b16 %v1205
        %v4799 = vunpack.c.h.b16 %v1205
        %v4800 = vunpack.c.l.b16 %v1206
        %v4801 = vunpack.c.h.b16 %v1206
        %v4802 = vunpack.c.l.b16 %v1207
        %v4803 = vunpack.c.h.b16 %v1207
        %v4804 = vunpack.c.l.b16 %v1208
        %v4805 = vunpack.c.h.b16 %v1208
        %v4806 = vunpack.c.l.b16 %v1209
        %v4807 = vunpack.c.h.b16 %v1209
        %v4808 = vunpack.c.l.b16 %v1210
        %v4809 = vunpack.c.h.b16 %v1210
        %v4810 = vunpack.c.l.b16 %v1211
        %v4811 = vunpack.c.h.b16 %v1211
        %v4812 = vunpack.c.l.b16 %v1212
        %v4813 = vunpack.c.h.b16 %v1212
        %v4814 = vunpack.c.l.b16 %v1213
        %v4815 = vunpack.c.h.b16 %v1213
        %v4816 = vunpack.c.l.b16 %v1214
        %v4817 = vunpack.c.h.b16 %v1214
        %v4818 = vunpack.c.l.b16 %v1215
        %v4819 = vunpack.c.h.b16 %v1215
        %v4820 = vunpack.c.l.b16 %v1216
        %v4821 = vunpack.c.h.b16 %v1216
        %v4822 = vunpack.c.l.b16 %v1217
        %v4823 = vunpack.c.h.b16 %v1217
        %v4824 = vunpack.c.l.b16 %v1218
        %v4825 = vunpack.c.h.b16 %v1218
        %v4826 = vunpack.c.l.b16 %v1219
        %v4827 = vunpack.c.h.b16 %v1219
        %v4828 = vunpack.c.l.b16 %v1220
        %v4829 = vunpack.c.h.b16 %v1220
        %v4830 = vunpack.c.l.b16 %v1221
        %v4831 = vunpack.c.h.b16 %v1221
        %v4832 = vunpack.c.l.b16 %v1222
        %v4833 = vunpack.c.h.b16 %v1222
        %v4834 = vunpack.c.l.b16 %v1223
        %v4835 = vunpack.c.h.b16 %v1223
        %v4836 = vunpack.c.l.b16 %v1224
        %v4837 = vunpack.c.h.b16 %v1224
        %v4838 = vunpack.c.l.b16 %v1225
        %v4839 = vunpack.c.h.b16 %v1225
        %v4840 = vunpack.c.l.b16 %v1226
        %v4841 = vunpack.c.h.b16 %v1226
        %v4842 = vunpack.c.l.b16 %v1227
        %v4843 = vunpack.c.h.b16 %v1227
        %v4844 = vunpack.c.l.b16 %v1228
        %v4845 = vunpack.c.h.b16 %v1228
        %v4846 = vunpack.c.l.b16 %v1229
        %v4847 = vunpack.c.h.b16 %v1229
        %v4848 = vunpack.c.l.b16 %v1230
        %v4849 = vunpack.c.h.b16 %v1230
        %v4850 = vunpack.c.l.b16 %v1231
        %v4851 = vunpack.c.h.b16 %v1231
        %v4852 = vunpack.c.l.b16 %v1232
        %v4853 = vunpack.c.h.b16 %v1232
        %v4854 = vunpack.c.l.b16 %v1233
        %v4855 = vunpack.c.h.b16 %v1233
        %v4856 = vunpack.c.l.b16 %v1234
        %v4857 = vunpack.c.h.b16 %v1234
        %v4858 = vunpack.c.l.b16 %v1235
        %v4859 = vunpack.c.h.b16 %v1235
        %v4860 = vunpack.c.l.b16 %v1236
        %v4861 = vunpack.c.h.b16 %v1236
        %v4862 = vunpack.c.l.b16 %v1237
        %v4863 = vunpack.c.h.b16 %v1237
        %v4864 = vunpack.c.l.b16 %v1238
        %v4865 = vunpack.c.h.b16 %v1238
        %v4866 = vunpack.c.l.b16 %v1239
        %v4867 = vunpack.c.h.b16 %v1239
        %v4868 = vunpack.c.l.b16 %v1240
        %v4869 = vunpack.c.h.b16 %v1240
        %v4870 = vunpack.c.l.b16 %v1241
        %v4871 = vunpack.c.h.b16 %v1241
        %v4872 = vunpack.c.l.b16 %v1242
        %v4873 = vunpack.c.h.b16 %v1242
        %v4874 = vunpack.c.l.b16 %v1243
        %v4875 = vunpack.c.h.b16 %v1243
        %v4876 = vunpack.c.l.b16 %v1244
        %v4877 = vunpack.c.h.b16 %v1244
        %v4878 = vunpack.c.l.b16 %v1245
        %v4879 = vunpack.c.h.b16 %v1245
        %v4880 = vunpack.c.l.b16 %v1246
        %v4881 = vunpack.c.h.b16 %v1246
        %v4882 = vunpack.c.l.b16 %v1247
        %v4883 = vunpack.c.h.b16 %v1247
        %v4884 = vunpack.c.l.b16 %v1248
        %v4885 = vunpack.c.h.b16 %v1248
        %v4886 = vunpack.c.l.b16 %v1249
        %v4887 = vunpack.c.h.b16 %v1249
        %v4888 = vunpack.c.l.b16 %v1250
        %v4889 = vunpack.c.h.b16 %v1250
        %v4890 = vunpack.c.l.b16 %v1251
        %v4891 = vunpack.c.h.b16 %v1251
        %v4892 = vunpack.c.l.b16 %v1252
        %v4893 = vunpack.c.h.b16 %v1252
        %v4894 = vunpack.c.l.b16 %v1253
        %v4895 = vunpack.c.h.b16 %v1253
        %v4896 = vunpack.c.l.b16 %v1254
        %v4897 = vunpack.c.h.b16 %v1254
        %v4898 = vunpack.c.l.b16 %v1255
        %v4899 = vunpack.c.h.b16 %v1255
        %v4900 = vunpack.c.l.b16 %v1256
        %v4901 = vunpack.c.h.b16 %v1256
        %v4902 = vunpack.c.l.b16 %v1257
        %v4903 = vunpack.c.h.b16 %v1257
        %v4904 = vunpack.c.l.b16 %v1258
        %v4905 = vunpack.c.h.b16 %v1258
        %v4906 = vunpack.c.l.b16 %v1259
        %v4907 = vunpack.c.h.b16 %v1259
        %v4908 = vunpack.c.l.b16 %v1260
        %v4909 = vunpack.c.h.b16 %v1260
        %v4910 = vunpack.c.l.b16 %v1261
        %v4911 = vunpack.c.h.b16 %v1261
        %v4912 = vunpack.c.l.b16 %v1262
        %v4913 = vunpack.c.h.b16 %v1262
        %v4914 = vunpack.c.l.b16 %v1263
        %v4915 = vunpack.c.h.b16 %v1263
        %v4916 = vunpack.c.l.b16 %v1264
        %v4917 = vunpack.c.h.b16 %v1264
        %v4918 = vunpack.c.l.b16 %v1265
        %v4919 = vunpack.c.h.b16 %v1265
        %v4920 = vunpack.c.l.b16 %v1266
        %v4921 = vunpack.c.h.b16 %v1266
        %v4922 = vunpack.c.l.b16 %v1267
        %v4923 = vunpack.c.h.b16 %v1267
        %v4924 = vunpack.c.l.b16 %v1268
        %v4925 = vunpack.c.h.b16 %v1268
        %v4926 = vunpack.c.l.b16 %v1269
        %v4927 = vunpack.c.h.b16 %v1269
        %v4928 = vunpack.c.l.b16 %v1270
        %v4929 = vunpack.c.h.b16 %v1270
        %v4930 = vunpack.c.l.b16 %v1271
        %v4931 = vunpack.c.h.b16 %v1271
        %v4932 = vunpack.c.l.b16 %v1272
        %v4933 = vunpack.c.h.b16 %v1272
        %v4934 = vunpack.c.l.b16 %v1273
        %v4935 = vunpack.c.h.b16 %v1273
        %v4936 = vunpack.c.l.b16 %v1274
        %v4937 = vunpack.c.h.b16 %v1274
        %v4938 = vunpack.c.l.b16 %v1275
        %v4939 = vunpack.c.h.b16 %v1275
        %v4940 = vunpack.c.l.b16 %v1276
        %v4941 = vunpack.c.h.b16 %v1276
        %v4942 = vunpack.c.l.b16 %v1277
        %v4943 = vunpack.c.h.b16 %v1277
        %v4944 = vunpack.c.l.b16 %v1278
        %v4945 = vunpack.c.h.b16 %v1278
        %v4946 = vunpack.c.l.b16 %v1279
        %v4947 = vunpack.c.h.b16 %v1279
        %v4948 = vunpack.c.l.b16 %v1280
        %v4949 = vunpack.c.h.b16 %v1280
        %v4950 = vunpack.c.l.b16 %v1281
        %v4951 = vunpack.c.h.b16 %v1281
        %v4952 = vunpack.c.l.b16 %v1282
        %v4953 = vunpack.c.h.b16 %v1282
        %v4954 = vunpack.c.l.b16 %v1283
        %v4955 = vunpack.c.h.b16 %v1283
        %v4956 = vunpack.c.l.b16 %v1284
        %v4957 = vunpack.c.h.b16 %v1284
        %v4958 = vunpack.c.l.b16 %v1285
        %v4959 = vunpack.c.h.b16 %v1285
        %v4960 = vunpack.c.l.b16 %v1286
        %v4961 = vunpack.c.h.b16 %v1286
        %v4962 = vunpack.c.l.b16 %v1287
        %v4963 = vunpack.c.h.b16 %v1287
        %v4964 = vunpack.c.l.b16 %v1288
        %v4965 = vunpack.c.h.b16 %v1288
        %v4966 = vunpack.c.l.b16 %v1289
        %v4967 = vunpack.c.h.b16 %v1289
        %v4968 = vunpack.c.l.b16 %v1290
        %v4969 = vunpack.c.h.b16 %v1290
        %v4970 = vunpack.c.l.b16 %v1291
        %v4971 = vunpack.c.h.b16 %v1291
        %v4972 = vunpack.c.l.b16 %v1292
        %v4973 = vunpack.c.h.b16 %v1292
        %v4974 = vunpack.c.l.b16 %v1293
        %v4975 = vunpack.c.h.b16 %v1293
        %v4976 = vunpack.c.l.b16 %v1294
        %v4977 = vunpack.c.h.b16 %v1294
        %v4978 = vunpack.c.l.b16 %v1295
        %v4979 = vunpack.c.h.b16 %v1295
        %v4980 = vunpack.c.l.b16 %v1296
        %v4981 = vunpack.c.h.b16 %v1296
        %v4982 = vunpack.c.l.b16 %v1297
        %v4983 = vunpack.c.h.b16 %v1297
        %v4984 = vunpack.c.l.b16 %v1298
        %v4985 = vunpack.c.h.b16 %v1298
        %v4986 = vunpack.c.l.b16 %v1299
        %v4987 = vunpack.c.h.b16 %v1299
        %v4988 = vunpack.c.l.b16 %v1300
        %v4989 = vunpack.c.h.b16 %v1300
        %v4990 = vunpack.c.l.b16 %v1301
        %v4991 = vunpack.c.h.b16 %v1301
        %v4992 = vunpack.c.l.b16 %v1302
        %v4993 = vunpack.c.h.b16 %v1302
        %v4994 = vunpack.c.l.b16 %v1303
        %v4995 = vunpack.c.h.b16 %v1303
        %v4996 = vunpack.c.l.b16 %v1304
        %v4997 = vunpack.c.h.b16 %v1304
        %v4998 = vunpack.c.l.b16 %v1305
        %v4999 = vunpack.c.h.b16 %v1305
        %v5000 = vunpack.c.l.b16 %v1306
        %v5001 = vunpack.c.h.b16 %v1306
        %v5002 = vunpack.c.l.b16 %v1307
        %v5003 = vunpack.c.h.b16 %v1307
        %v5004 = vunpack.c.l.b16 %v1308
        %v5005 = vunpack.c.h.b16 %v1308
        %v5006 = vunpack.c.l.b16 %v1309
        %v5007 = vunpack.c.h.b16 %v1309
        %v5008 = vunpack.c.l.b16 %v1310
        %v5009 = vunpack.c.h.b16 %v1310
        %v5010 = vunpack.c.l.b16 %v1311
        %v5011 = vunpack.c.h.b16 %v1311
        %v5012 = vunpack.c.l.b16 %v1312
        %v5013 = vunpack.c.h.b16 %v1312
        %v5014 = vunpack.c.l.b16 %v1313
        %v5015 = vunpack.c.h.b16 %v1313
        %v5016 = vunpack.c.l.b16 %v1314
        %v5017 = vunpack.c.h.b16 %v1314
        %v5018 = vunpack.c.l.b16 %v1315
        %v5019 = vunpack.c.h.b16 %v1315
        %v5020 = vunpack.c.l.b16 %v1316
        %v5021 = vunpack.c.h.b16 %v1316
        %v5022 = vunpack.c.l.b16 %v1317
        %v5023 = vunpack.c.h.b16 %v1317
        %v5024 = vunpack.c.l.b16 %v1318
        %v5025 = vunpack.c.h.b16 %v1318
        %v5026 = vunpack.c.l.b16 %v1319
        %v5027 = vunpack.c.h.b16 %v1319
        %v5028 = vunpack.c.l.b16 %v1320
        %v5029 = vunpack.c.h.b16 %v1320
        %v5030 = vunpack.c.l.b16 %v1321
        %v5031 = vunpack.c.h.b16 %v1321
        %v5032 = vunpack.c.l.b16 %v1322
        %v5033 = vunpack.c.h.b16 %v1322
        %v5034 = vunpack.c.l.b16 %v1323
        %v5035 = vunpack.c.h.b16 %v1323
        %v5036 = vunpack.c.l.b16 %v1324
        %v5037 = vunpack.c.h.b16 %v1324
        %v5038 = vunpack.c.l.b16 %v1325
        %v5039 = vunpack.c.h.b16 %v1325
        %v5040 = vunpack.c.l.b16 %v1326
        %v5041 = vunpack.c.h.b16 %v1326
        %v5042 = vunpack.c.l.b16 %v1327
        %v5043 = vunpack.c.h.b16 %v1327
        %v5044 = vunpack.c.l.b16 %v1328
        %v5045 = vunpack.c.h.b16 %v1328
        %v5046 = vunpack.c.l.b16 %v1329
        %v5047 = vunpack.c.h.b16 %v1329
        %v5048 = vunpack.c.l.b16 %v1330
        %v5049 = vunpack.c.h.b16 %v1330
        %v5050 = vunpack.c.l.b16 %v1331
        %v5051 = vunpack.c.h.b16 %v1331
        %v5052 = vunpack.c.l.b16 %v1332
        %v5053 = vunpack.c.h.b16 %v1332
        %v5054 = vunpack.c.l.b16 %v1333
        %v5055 = vunpack.c.h.b16 %v1333
        %v5056 = vunpack.c.l.b16 %v1334
        %v5057 = vunpack.c.h.b16 %v1334
        %v5058 = vunpack.c.l.b16 %v1335
        %v5059 = vunpack.c.h.b16 %v1335
        %v5060 = vunpack.c.l.b16 %v1336
        %v5061 = vunpack.c.h.b16 %v1336
        %v5062 = vunpack.c.l.b16 %v1337
        %v5063 = vunpack.c.h.b16 %v1337
        %v5064 = vunpack.c.l.b16 %v1338
        %v5065 = vunpack.c.h.b16 %v1338
        %v5066 = vunpack.c.l.b16 %v1339
        %v5067 = vunpack.c.h.b16 %v1339
        %v5068 = vunpack.c.l.b16 %v1340
        %v5069 = vunpack.c.h.b16 %v1340
        %v5070 = vunpack.c.l.b16 %v1341
        %v5071 = vunpack.c.h.b16 %v1341
        %v5072 = vunpack.c.l.b16 %v1342
        %v5073 = vunpack.c.h.b16 %v1342
        %v5074 = vunpack.c.l.b16 %v1343
        %v5075 = vunpack.c.h.b16 %v1343
        %v5076 = vunpack.c.l.b16 %v1344
        %v5077 = vunpack.c.h.b16 %v1344
        %v5078 = vunpack.c.l.b16 %v1345
        %v5079 = vunpack.c.h.b16 %v1345
        %v5080 = vunpack.c.l.b16 %v1346
        %v5081 = vunpack.c.h.b16 %v1346
        %v5082 = vunpack.c.l.b16 %v1347
        %v5083 = vunpack.c.h.b16 %v1347
        %v5084 = vunpack.c.l.b16 %v1348
        %v5085 = vunpack.c.h.b16 %v1348
        %v5086 = vunpack.c.l.b16 %v1349
        %v5087 = vunpack.c.h.b16 %v1349
        %v5088 = vunpack.c.l.b16 %v1350
        %v5089 = vunpack.c.h.b16 %v1350
        %v5090 = vunpack.c.l.b16 %v1351
        %v5091 = vunpack.c.h.b16 %v1351
        %v5092 = vunpack.c.l.b16 %v1352
        %v5093 = vunpack.c.h.b16 %v1352
        %v5094 = vunpack.c.l.b16 %v1353
        %v5095 = vunpack.c.h.b16 %v1353
        %v5096 = vunpack.c.l.b16 %v1354
        %v5097 = vunpack.c.h.b16 %v1354
        %v5098 = vunpack.c.l.b16 %v1355
        %v5099 = vunpack.c.h.b16 %v1355
        %v5100 = vunpack.c.l.b16 %v1356
        %v5101 = vunpack.c.h.b16 %v1356
        %v5102 = vunpack.c.l.b16 %v1357
        %v5103 = vunpack.c.h.b16 %v1357
        %v5104 = vunpack.c.l.b16 %v1358
        %v5105 = vunpack.c.h.b16 %v1358
        %v5106 = vunpack.c.l.b16 %v1359
        %v5107 = vunpack.c.h.b16 %v1359
        %v5108 = vunpack.c.l.b16 %v1360
        %v5109 = vunpack.c.h.b16 %v1360
        %v5110 = vunpack.c.l.b16 %v1361
        %v5111 = vunpack.c.h.b16 %v1361
        %v5112 = vunpack.c.l.b16 %v1362
        %v5113 = vunpack.c.h.b16 %v1362
        %v5114 = vunpack.c.l.b16 %v1363
        %v5115 = vunpack.c.h.b16 %v1363
        %v5116 = vunpack.c.l.b16 %v1364
        %v5117 = vunpack.c.h.b16 %v1364
        %v5118 = vunpack.c.l.b16 %v1365
        %v5119 = vunpack.c.h.b16 %v1365
        %v5120 = vunpack.c.l.b16 %v1366
        %v5121 = vunpack.c.h.b16 %v1366
        %v5122 = vunpack.c.l.b16 %v1367
        %v5123 = vunpack.c.h.b16 %v1367
        %v5124 = vunpack.c.l.b16 %v1368
        %v5125 = vunpack.c.h.b16 %v1368
        %v5126 = vunpack.c.l.b16 %v1369
        %v5127 = vunpack.c.h.b16 %v1369
        %v5128 = vunpack.c.l.b16 %v1370
        %v5129 = vunpack.c.h.b16 %v1370
        %v5130 = vunpack.c.l.b16 %v1371
        %v5131 = vunpack.c.h.b16 %v1371
        %v5132 = vunpack.c.l.b16 %v1372
        %v5133 = vunpack.c.h.b16 %v1372
        %v5134 = vunpack.c.l.b16 %v1373
        %v5135 = vunpack.c.h.b16 %v1373
        %v5136 = vunpack.c.l.b16 %v1374
        %v5137 = vunpack.c.h.b16 %v1374
        %v5138 = vunpack.c.l.b16 %v1375
        %v5139 = vunpack.c.h.b16 %v1375
        %v5140 = vunpack.c.l.b16 %v1376
        %v5141 = vunpack.c.h.b16 %v1376
        %v5142 = vunpack.c.l.b16 %v1377
        %v5143 = vunpack.c.h.b16 %v1377
        %v5144 = vunpack.c.l.b16 %v1378
        %v5145 = vunpack.c.h.b16 %v1378
        %v5146 = vunpack.c.l.b16 %v1379
        %v5147 = vunpack.c.h.b16 %v1379
        %v5148 = vunpack.c.l.b16 %v1380
        %v5149 = vunpack.c.h.b16 %v1380
        %v5150 = vunpack.c.l.b16 %v1381
        %v5151 = vunpack.c.h.b16 %v1381
        %v5152 = vunpack.c.l.b16 %v1382
        %v5153 = vunpack.c.h.b16 %v1382
        %v5154 = vunpack.c.l.b16 %v1383
        %v5155 = vunpack.c.h.b16 %v1383
        %v5156 = vunpack.c.l.b16 %v1384
        %v5157 = vunpack.c.h.b16 %v1384
        %v5158 = vunpack.c.l.b16 %v1385
        %v5159 = vunpack.c.h.b16 %v1385
        %v5160 = vunpack.c.l.b16 %v1386
        %v5161 = vunpack.c.h.b16 %v1386
        %v5162 = vunpack.c.l.b16 %v1387
        %v5163 = vunpack.c.h.b16 %v1387
        %v5164 = vunpack.c.l.b16 %v1388
        %v5165 = vunpack.c.h.b16 %v1388
        %v5166 = vunpack.c.l.b16 %v1389
        %v5167 = vunpack.c.h.b16 %v1389
        %v5168 = vunpack.c.l.b16 %v1390
        %v5169 = vunpack.c.h.b16 %v1390
        %v5170 = vunpack.c.l.b16 %v1391
        %v5171 = vunpack.c.h.b16 %v1391
        %v5172 = vunpack.c.l.b16 %v1392
        %v5173 = vunpack.c.h.b16 %v1392
        %v5174 = vunpack.c.l.b16 %v1393
        %v5175 = vunpack.c.h.b16 %v1393
        %v5176 = vunpack.c.l.b16 %v1394
        %v5177 = vunpack.c.h.b16 %v1394
        %v5178 = vunpack.c.l.b16 %v1395
        %v5179 = vunpack.c.h.b16 %v1395
        %v5180 = vunpack.c.l.b16 %v1396
        %v5181 = vunpack.c.h.b16 %v1396
        %v5182 = vunpack.c.l.b16 %v1397
        %v5183 = vunpack.c.h.b16 %v1397
        %v5184 = vunpack.c.l.b16 %v1398
        %v5185 = vunpack.c.h.b16 %v1398
        %v5186 = vunpack.c.l.b16 %v1399
        %v5187 = vunpack.c.h.b16 %v1399
        %v5188 = vunpack.c.l.b16 %v1400
        %v5189 = vunpack.c.h.b16 %v1400
        %v5190 = vunpack.c.l.b16 %v1401
        %v5191 = vunpack.c.h.b16 %v1401
        %v5192 = vunpack.c.l.b16 %v1402
        %v5193 = vunpack.c.h.b16 %v1402
        %v5194 = vunpack.c.l.b16 %v1403
        %v5195 = vunpack.c.h.b16 %v1403
        %v5196 = vunpack.c.l.b16 %v1404
        %v5197 = vunpack.c.h.b16 %v1404
        %v5198 = vunpack.c.l.b16 %v1405
        %v5199 = vunpack.c.h.b16 %v1405
        %v5200 = vunpack.c.l.b16 %v1406
        %v5201 = vunpack.c.h.b16 %v1406
        %v5202 = vunpack.c.l.b16 %v1407
        %v5203 = vunpack.c.h.b16 %v1407
        %v5204 = vunpack.c.l.b16 %v1408
        %v5205 = vunpack.c.h.b16 %v1408
        %v5206 = vunpack.c.l.b16 %v1409
        %v5207 = vunpack.c.h.b16 %v1409
        %v5208 = vunpack.c.l.b16 %v1410
        %v5209 = vunpack.c.h.b16 %v1410
        %v5210 = vunpack.c.l.b16 %v1411
        %v5211 = vunpack.c.h.b16 %v1411
        %v5212 = vunpack.c.l.b16 %v1412
        %v5213 = vunpack.c.h.b16 %v1412
        %v5214 = vunpack.c.l.b16 %v1413
        %v5215 = vunpack.c.h.b16 %v1413
        %v5216 = vunpack.c.l.b16 %v1414
        %v5217 = vunpack.c.h.b16 %v1414
        %v5218 = vunpack.c.l.b16 %v1415
        %v5219 = vunpack.c.h.b16 %v1415
        %v5220 = vunpack.c.l.b16 %v1416
        %v5221 = vunpack.c.h.b16 %v1416
        %v5222 = vunpack.c.l.b16 %v1417
        %v5223 = vunpack.c.h.b16 %v1417
        %v5224 = vunpack.c.l.b16 %v1418
        %v5225 = vunpack.c.h.b16 %v1418
        %v5226 = vunpack.c.l.b16 %v1419
        %v5227 = vunpack.c.h.b16 %v1419
        %v5228 = vunpack.c.l.b16 %v1420
        %v5229 = vunpack.c.h.b16 %v1420
        %v5230 = vunpack.c.l.b16 %v1421
        %v5231 = vunpack.c.h.b16 %v1421
        %v5232 = vunpack.c.l.b16 %v1422
        %v5233 = vunpack.c.h.b16 %v1422
        %v5234 = vunpack.c.l.b16 %v1423
        %v5235 = vunpack.c.h.b16 %v1423
        %v5236 = vunpack.c.l.b16 %v1424
        %v5237 = vunpack.c.h.b16 %v1424
        %v5238 = vunpack.c.l.b16 %v1425
        %v5239 = vunpack.c.h.b16 %v1425
        %v5240 = vunpack.c.l.b16 %v1426
        %v5241 = vunpack.c.h.b16 %v1426
        %v5242 = vunpack.c.l.b16 %v1427
        %v5243 = vunpack.c.h.b16 %v1427
        %v5244 = vunpack.c.l.b16 %v1428
        %v5245 = vunpack.c.h.b16 %v1428
        %v5246 = vunpack.c.l.b16 %v1429
        %v5247 = vunpack.c.h.b16 %v1429
        %v5248 = vunpack.c.l.b16 %v1430
        %v5249 = vunpack.c.h.b16 %v1430
        %v5250 = vunpack.c.l.b16 %v1431
        %v5251 = vunpack.c.h.b16 %v1431
        %v5252 = vunpack.c.l.b16 %v1432
        %v5253 = vunpack.c.h.b16 %v1432
        %v5254 = vunpack.c.l.b16 %v1433
        %v5255 = vunpack.c.h.b16 %v1433
        %v5256 = vunpack.c.l.b16 %v1434
        %v5257 = vunpack.c.h.b16 %v1434
        %v5258 = vunpack.c.l.b16 %v1435
        %v5259 = vunpack.c.h.b16 %v1435
        %v5260 = vunpack.c.l.b16 %v1436
        %v5261 = vunpack.c.h.b16 %v1436
        %v5262 = vunpack.c.l.b16 %v1437
        %v5263 = vunpack.c.h.b16 %v1437
        %v5264 = vunpack.c.l.b16 %v1438
        %v5265 = vunpack.c.h.b16 %v1438
        %v5266 = vunpack.c.l.b16 %v1439
        %v5267 = vunpack.c.h.b16 %v1439
        %v5268 = vunpack.c.l.b16 %v1440
        %v5269 = vunpack.c.h.b16 %v1440
        %v5270 = vunpack.c.l.b16 %v1441
        %v5271 = vunpack.c.h.b16 %v1441
        %v5272 = vunpack.c.l.b16 %v1442
        %v5273 = vunpack.c.h.b16 %v1442
        %v5274 = vunpack.c.l.b16 %v1443
        %v5275 = vunpack.c.h.b16 %v1443
        %v5276 = vunpack.c.l.b16 %v1444
        %v5277 = vunpack.c.h.b16 %v1444
        %v5278 = vunpack.c.l.b16 %v1445
        %v5279 = vunpack.c.h.b16 %v1445
        %v5280 = vunpack.c.l.b16 %v1446
        %v5281 = vunpack.c.h.b16 %v1446
        %v5282 = vunpack.c.l.b16 %v1447
        %v5283 = vunpack.c.h.b16 %v1447
        %v5284 = vunpack.c.l.b16 %v1448
        %v5285 = vunpack.c.h.b16 %v1448
        %v5286 = vunpack.c.l.b16 %v1449
        %v5287 = vunpack.c.h.b16 %v1449
        %v5288 = vunpack.c.l.b16 %v1450
        %v5289 = vunpack.c.h.b16 %v1450
        %v5290 = vunpack.c.l.b16 %v1451
        %v5291 = vunpack.c.h.b16 %v1451
        %v5292 = vunpack.c.l.b16 %v1452
        %v5293 = vunpack.c.h.b16 %v1452
        %v5294 = vunpack.c.l.b16 %v1453
        %v5295 = vunpack.c.h.b16 %v1453
        %v5296 = vunpack.c.l.b16 %v1454
        %v5297 = vunpack.c.h.b16 %v1454
        %v5298 = vunpack.c.l.b16 %v1455
        %v5299 = vunpack.c.h.b16 %v1455
        %v5300 = vunpack.c.l.b16 %v1456
        %v5301 = vunpack.c.h.b16 %v1456
        %v5302 = vunpack.c.l.b16 %v1457
        %v5303 = vunpack.c.h.b16 %v1457
        %v5304 = vunpack.c.l.b16 %v1458
        %v5305 = vunpack.c.h.b16 %v1458
        %v5306 = vunpack.c.l.b16 %v1459
        %v5307 = vunpack.c.h.b16 %v1459
        %v5308 = vunpack.c.l.b16 %v1460
        %v5309 = vunpack.c.h.b16 %v1460
        %v5310 = vunpack.c.l.b16 %v1461
        %v5311 = vunpack.c.h.b16 %v1461
        %v5312 = vunpack.c.l.b16 %v1462
        %v5313 = vunpack.c.h.b16 %v1462
        %v5314 = vunpack.c.l.b16 %v1463
        %v5315 = vunpack.c.h.b16 %v1463
        %v5316 = vunpack.c.l.b16 %v1464
        %v5317 = vunpack.c.h.b16 %v1464
        %v5318 = vunpack.c.l.b16 %v1465
        %v5319 = vunpack.c.h.b16 %v1465
        %v5320 = vunpack.c.l.b16 %v1466
        %v5321 = vunpack.c.h.b16 %v1466
        %v5322 = vunpack.c.l.b16 %v1467
        %v5323 = vunpack.c.h.b16 %v1467
        %v5324 = vunpack.c.l.b16 %v1468
        %v5325 = vunpack.c.h.b16 %v1468
        %v5326 = vunpack.c.l.b16 %v1469
        %v5327 = vunpack.c.h.b16 %v1469
        %v5328 = vunpack.c.l.b16 %v1470
        %v5329 = vunpack.c.h.b16 %v1470
        %v5330 = vunpack.c.l.b16 %v1471
        %v5331 = vunpack.c.h.b16 %v1471
        %v5332 = vunpack.c.l.b16 %v1472
        %v5333 = vunpack.c.h.b16 %v1472
        %v5334 = vunpack.c.l.b16 %v1473
        %v5335 = vunpack.c.h.b16 %v1473
        %v5336 = vunpack.c.l.b16 %v1474
        %v5337 = vunpack.c.h.b16 %v1474
        %v5338 = vunpack.c.l.b16 %v1475
        %v5339 = vunpack.c.h.b16 %v1475
        %v5340 = vunpack.c.l.b16 %v1476
        %v5341 = vunpack.c.h.b16 %v1476
        %v5342 = vunpack.c.l.b16 %v1477
        %v5343 = vunpack.c.h.b16 %v1477
        %v5344 = vunpack.c.l.b16 %v1478
        %v5345 = vunpack.c.h.b16 %v1478
        %v5346 = vunpack.c.l.b16 %v1479
        %v5347 = vunpack.c.h.b16 %v1479
        %v5348 = vunpack.c.l.b16 %v1480
        %v5349 = vunpack.c.h.b16 %v1480
        %v5350 = vunpack.c.l.b16 %v1481
        %v5351 = vunpack.c.h.b16 %v1481
        %v5352 = vunpack.c.l.b16 %v1482
        %v5353 = vunpack.c.h.b16 %v1482
        %v5354 = vunpack.c.l.b16 %v1483
        %v5355 = vunpack.c.h.b16 %v1483
        %v5356 = vunpack.c.l.b16 %v1484
        %v5357 = vunpack.c.h.b16 %v1484
        %v5358 = vunpack.c.l.b16 %v1485
        %v5359 = vunpack.c.h.b16 %v1485
        %v5360 = vunpack.c.l.b16 %v1486
        %v5361 = vunpack.c.h.b16 %v1486
        %v5362 = vunpack.c.l.b16 %v1487
        %v5363 = vunpack.c.h.b16 %v1487
        %v5364 = vunpack.c.l.b16 %v1488
        %v5365 = vunpack.c.h.b16 %v1488
        %v5366 = vunpack.c.l.b16 %v1489
        %v5367 = vunpack.c.h.b16 %v1489
        %v5368 = vunpack.c.l.b16 %v1490
        %v5369 = vunpack.c.h.b16 %v1490
        %v5370 = vunpack.c.l.b16 %v1491
        %v5371 = vunpack.c.h.b16 %v1491
        %v5372 = vunpack.c.l.b16 %v1492
        %v5373 = vunpack.c.h.b16 %v1492
        %v5374 = vunpack.c.l.b16 %v1493
        %v5375 = vunpack.c.h.b16 %v1493
        %v5376 = vunpack.c.l.b16 %v1494
        %v5377 = vunpack.c.h.b16 %v1494
        %v5378 = vunpack.c.l.b16 %v1495
        %v5379 = vunpack.c.h.b16 %v1495
        %v5380 = vunpack.c.l.b16 %v1496
        %v5381 = vunpack.c.h.b16 %v1496
        %v5382 = vunpack.c.l.b16 %v1497
        %v5383 = vunpack.c.h.b16 %v1497
        %v5384 = vunpack.c.l.b16 %v1498
        %v5385 = vunpack.c.h.b16 %v1498
        %v5386 = vunpack.c.l.b16 %v1499
        %v5387 = vunpack.c.h.b16 %v1499
        %v5388 = vunpack.c.l.b16 %v1500
        %v5389 = vunpack.c.h.b16 %v1500
        %v5390 = vunpack.c.l.b16 %v1501
        %v5391 = vunpack.c.h.b16 %v1501
        %v5392 = vunpack.c.l.b16 %v1502
        %v5393 = vunpack.c.h.b16 %v1502
        %v5394 = vunpack.c.l.b16 %v1503
        %v5395 = vunpack.c.h.b16 %v1503
        %v5396 = vunpack.c.l.b16 %v1504
        %v5397 = vunpack.c.h.b16 %v1504
        %v5398 = vunpack.c.l.b16 %v1505
        %v5399 = vunpack.c.h.b16 %v1505
        %v5400 = vunpack.c.l.b16 %v1506
        %v5401 = vunpack.c.h.b16 %v1506
        %v5402 = vunpack.c.l.b16 %v1507
        %v5403 = vunpack.c.h.b16 %v1507
        %v5404 = vunpack.c.l.b16 %v1508
        %v5405 = vunpack.c.h.b16 %v1508
        %v5406 = vunpack.c.l.b16 %v1509
        %v5407 = vunpack.c.h.b16 %v1509
        %v5408 = vunpack.c.l.b16 %v1510
        %v5409 = vunpack.c.h.b16 %v1510
        %v5410 = vunpack.c.l.b16 %v1511
        %v5411 = vunpack.c.h.b16 %v1511
        %v5412 = vunpack.c.l.b16 %v1512
        %v5413 = vunpack.c.h.b16 %v1512
        %v5414 = vunpack.c.l.b16 %v1513
        %v5415 = vunpack.c.h.b16 %v1513
        %v5416 = vunpack.c.l.b16 %v1514
        %v5417 = vunpack.c.h.b16 %v1514
        %v5418 = vunpack.c.l.b16 %v1515
        %v5419 = vunpack.c.h.b16 %v1515
        %v5420 = vunpack.c.l.b16 %v1516
        %v5421 = vunpack.c.h.b16 %v1516
        %v5422 = vunpack.c.l.b16 %v1517
        %v5423 = vunpack.c.h.b16 %v1517
        %v5424 = vunpack.c.l.b16 %v1518
        %v5425 = vunpack.c.h.b16 %v1518
        %v5426 = vunpack.c.l.b16 %v1519
        %v5427 = vunpack.c.h.b16 %v1519
        %v5428 = vunpack.c.l.b16 %v1520
        %v5429 = vunpack.c.h.b16 %v1520
        %v5430 = vunpack.c.l.b16 %v1521
        %v5431 = vunpack.c.h.b16 %v1521
        %v5432 = vunpack.c.l.b16 %v1522
        %v5433 = vunpack.c.h.b16 %v1522
        %v5434 = vunpack.c.l.b16 %v1523
        %v5435 = vunpack.c.h.b16 %v1523
        %v5436 = vunpack.c.l.b16 %v1524
        %v5437 = vunpack.c.h.b16 %v1524
        %v5438 = vunpack.c.l.b16 %v1525
        %v5439 = vunpack.c.h.b16 %v1525
        %v5440 = vunpack.c.l.b16 %v1526
        %v5441 = vunpack.c.h.b16 %v1526
        %v5442 = vunpack.c.l.b16 %v1527
        %v5443 = vunpack.c.h.b16 %v1527
        %v5444 = vunpack.c.l.b16 %v1528
        %v5445 = vunpack.c.h.b16 %v1528
        %v5446 = vunpack.c.l.b16 %v1529
        %v5447 = vunpack.c.h.b16 %v1529
        %v5448 = vunpack.c.l.b16 %v1530
        %v5449 = vunpack.c.h.b16 %v1530
        %v5450 = vunpack.c.l.b16 %v1531
        %v5451 = vunpack.c.h.b16 %v1531
        %v5452 = vunpack.c.l.b16 %v1532
        %v5453 = vunpack.c.h.b16 %v1532
        %v5454 = vunpack.c.l.b16 %v1533
        %v5455 = vunpack.c.h.b16 %v1533
        %v5456 = vunpack.c.l.b16 %v1534
        %v5457 = vunpack.c.h.b16 %v1534
        %v5458 = vunpack.c.l.b16 %v1535
        %v5459 = vunpack.c.h.b16 %v1535
        %v5460 = vunpack.c.l.b16 %v1536
        %v5461 = vunpack.c.h.b16 %v1536
        %v5462 = vunpack.c.l.b16 %v1537
        %v5463 = vunpack.c.h.b16 %v1537
        %v5464 = vunpack.c.l.b16 %v1538
        %v5465 = vunpack.c.h.b16 %v1538
        %v5466 = vunpack.c.l.b16 %v1539
        %v5467 = vunpack.c.h.b16 %v1539
        %v5468 = vunpack.c.l.b16 %v1540
        %v5469 = vunpack.c.h.b16 %v1540
        %v5470 = vunpack.c.l.b16 %v1541
        %v5471 = vunpack.c.h.b16 %v1541
        %v5472 = vunpack.c.l.b16 %v1542
        %v5473 = vunpack.c.h.b16 %v1542
        %v5474 = vunpack.c.l.b16 %v1543
        %v5475 = vunpack.c.h.b16 %v1543
        %v5476 = vunpack.c.l.b16 %v1544
        %v5477 = vunpack.c.h.b16 %v1544
        %v5478 = vunpack.c.l.b16 %v1545
        %v5479 = vunpack.c.h.b16 %v1545
        %v5480 = vunpack.c.l.b16 %v1546
        %v5481 = vunpack.c.h.b16 %v1546
        %v5482 = vunpack.c.l.b16 %v1547
        %v5483 = vunpack.c.h.b16 %v1547
        %v5484 = vunpack.c.l.b16 %v1548
        %v5485 = vunpack.c.h.b16 %v1548
        %v5486 = vunpack.c.l.b16 %v1549
        %v5487 = vunpack.c.h.b16 %v1549
        %v5488 = vunpack.c.l.b16 %v1550
        %v5489 = vunpack.c.h.b16 %v1550
        %v5490 = vunpack.c.l.b16 %v1551
        %v5491 = vunpack.c.h.b16 %v1551
        %v5492 = vunpack.c.l.b16 %v1552
        %v5493 = vunpack.c.h.b16 %v1552
        %v5494 = vunpack.c.l.b16 %v1553
        %v5495 = vunpack.c.h.b16 %v1553
        %v5496 = vunpack.c.l.b16 %v1554
        %v5497 = vunpack.c.h.b16 %v1554
        %v5498 = vunpack.c.l.b16 %v1555
        %v5499 = vunpack.c.h.b16 %v1555
        %v5500 = vunpack.c.l.b16 %v1556
        %v5501 = vunpack.c.h.b16 %v1556
        %v5502 = vunpack.c.l.b16 %v1557
        %v5503 = vunpack.c.h.b16 %v1557
        %v5504 = vunpack.c.l.b16 %v1558
        %v5505 = vunpack.c.h.b16 %v1558
        %v5506 = vunpack.c.l.b16 %v1559
        %v5507 = vunpack.c.h.b16 %v1559
        %v5508 = vunpack.c.l.b16 %v1560
        %v5509 = vunpack.c.h.b16 %v1560
        %v5510 = vunpack.c.l.b16 %v1561
        %v5511 = vunpack.c.h.b16 %v1561
        %v5512 = vunpack.c.l.b16 %v1562
        %v5513 = vunpack.c.h.b16 %v1562
        %v5514 = vunpack.c.l.b16 %v1563
        %v5515 = vunpack.c.h.b16 %v1563
        %v5516 = vunpack.c.l.b16 %v1564
        %v5517 = vunpack.c.h.b16 %v1564
        %v5518 = vunpack.c.l.b16 %v1565
        %v5519 = vunpack.c.h.b16 %v1565
        %v5520 = vunpack.c.l.b16 %v1566
        %v5521 = vunpack.c.h.b16 %v1566
        %v5522 = vunpack.c.l.b16 %v1567
        %v5523 = vunpack.c.h.b16 %v1567
        %v5524 = vunpack.c.l.b16 %v1568
        %v5525 = vunpack.c.h.b16 %v1568
        %v5526 = vunpack.c.l.b16 %v1569
        %v5527 = vunpack.c.h.b16 %v1569
        %v5528 = vunpack.c.l.b16 %v1570
        %v5529 = vunpack.c.h.b16 %v1570
        %v5530 = vunpack.c.l.b16 %v1571
        %v5531 = vunpack.c.h.b16 %v1571
        %v5532 = vunpack.c.l.b16 %v1572
        %v5533 = vunpack.c.h.b16 %v1572
        %v5534 = vunpack.c.l.b16 %v1573
        %v5535 = vunpack.c.h.b16 %v1573
        %v5536 = vunpack.c.l.b16 %v1574
        %v5537 = vunpack.c.h.b16 %v1574
        %v5538 = vunpack.c.l.b16 %v1575
        %v5539 = vunpack.c.h.b16 %v1575
        %v5540 = vunpack.c.l.b16 %v1576
        %v5541 = vunpack.c.h.b16 %v1576
        %v5542 = vunpack.c.l.b16 %v1577
        %v5543 = vunpack.c.h.b16 %v1577
        %v5544 = vunpack.c.l.b16 %v1578
        %v5545 = vunpack.c.h.b16 %v1578
        %v5546 = vunpack.c.l.b16 %v1579
        %v5547 = vunpack.c.h.b16 %v1579
        %v5548 = vunpack.c.l.b16 %v1580
        %v5549 = vunpack.c.h.b16 %v1580
        %v5550 = vunpack.c.l.b16 %v1581
        %v5551 = vunpack.c.h.b16 %v1581
        %v5552 = vunpack.c.l.b16 %v1582
        %v5553 = vunpack.c.h.b16 %v1582
        %v5554 = vunpack.c.l.b16 %v1583
        %v5555 = vunpack.c.h.b16 %v1583
        %v5556 = vunpack.c.l.b16 %v1584
        %v5557 = vunpack.c.h.b16 %v1584
        %v5558 = vunpack.c.l.b16 %v1585
        %v5559 = vunpack.c.h.b16 %v1585
        %v5560 = vunpack.c.l.b16 %v1586
        %v5561 = vunpack.c.h.b16 %v1586
        %v5562 = vunpack.c.l.b16 %v1587
        %v5563 = vunpack.c.h.b16 %v1587
        %v5564 = vunpack.c.l.b16 %v1588
        %v5565 = vunpack.c.h.b16 %v1588
        %v5566 = vunpack.c.l.b16 %v1589
        %v5567 = vunpack.c.h.b16 %v1589
        %v5568 = vunpack.c.l.b16 %v1590
        %v5569 = vunpack.c.h.b16 %v1590
        %v5570 = vunpack.c.l.b16 %v1591
        %v5571 = vunpack.c.h.b16 %v1591
        %v5572 = vunpack.c.l.b16 %v1592
        %v5573 = vunpack.c.h.b16 %v1592
        %v5574 = vunpack.c.l.b16 %v1593
        %v5575 = vunpack.c.h.b16 %v1593
        %v5576 = vunpack.c.l.b16 %v1594
        %v5577 = vunpack.c.h.b16 %v1594
        %v5578 = vunpack.c.l.b16 %v1595
        %v5579 = vunpack.c.h.b16 %v1595
        %v5580 = vunpack.c.l.b16 %v1596
        %v5581 = vunpack.c.h.b16 %v1596
        %v5582 = vunpack.c.l.b16 %v1597
        %v5583 = vunpack.c.h.b16 %v1597
        %v5584 = vunpack.c.l.b16 %v1598
        %v5585 = vunpack.c.h.b16 %v1598
        %v5586 = vunpack.c.l.b16 %v1599
        %v5587 = vunpack.c.h.b16 %v1599
        %v5588 = vunpack.c.l.b16 %v1600
        %v5589 = vunpack.c.h.b16 %v1600
        %v5590 = vunpack.c.l.b16 %v1601
        %v5591 = vunpack.c.h.b16 %v1601
        %v5592 = vunpack.c.l.b16 %v1602
        %v5593 = vunpack.c.h.b16 %v1602
        %v5594 = vunpack.c.l.b16 %v1603
        %v5595 = vunpack.c.h.b16 %v1603
        %v5596 = vunpack.c.l.b16 %v1604
        %v5597 = vunpack.c.h.b16 %v1604
        %v5598 = vunpack.c.l.b16 %v1605
        %v5599 = vunpack.c.h.b16 %v1605
        %v5600 = vunpack.c.l.b16 %v1606
        %v5601 = vunpack.c.h.b16 %v1606
        %v5602 = vunpack.c.l.b16 %v1607
        %v5603 = vunpack.c.h.b16 %v1607
        %v5604 = vunpack.c.l.b16 %v1608
        %v5605 = vunpack.c.h.b16 %v1608
        %v5606 = vunpack.c.l.b16 %v1609
        %v5607 = vunpack.c.h.b16 %v1609
        %v5608 = vunpack.c.l.b16 %v1610
        %v5609 = vunpack.c.h.b16 %v1610
        %v5610 = vunpack.c.l.b16 %v1611
        %v5611 = vunpack.c.h.b16 %v1611
        %v5612 = vunpack.c.l.b16 %v1612
        %v5613 = vunpack.c.h.b16 %v1612
        %v5614 = vunpack.c.l.b16 %v1613
        %v5615 = vunpack.c.h.b16 %v1613
        %v5616 = vunpack.c.l.b16 %v1614
        %v5617 = vunpack.c.h.b16 %v1614
        %v5618 = vunpack.c.l.b16 %v1615
        %v5619 = vunpack.c.h.b16 %v1615
        %v5620 = vunpack.c.l.b16 %v1616
        %v5621 = vunpack.c.h.b16 %v1616
        %v5622 = vunpack.c.l.b16 %v1617
        %v5623 = vunpack.c.h.b16 %v1617
        %v5624 = vunpack.c.l.b16 %v1618
        %v5625 = vunpack.c.h.b16 %v1618
        %v5626 = vunpack.c.l.b16 %v1619
        %v5627 = vunpack.c.h.b16 %v1619
        %v5628 = vunpack.c.l.b16 %v1620
        %v5629 = vunpack.c.h.b16 %v1620
        %v5630 = vunpack.c.l.b16 %v1621
        %v5631 = vunpack.c.h.b16 %v1621
        %v5632 = vunpack.c.l.b16 %v1622
        %v5633 = vunpack.c.h.b16 %v1622
        %v5634 = vunpack.c.l.b16 %v1623
        %v5635 = vunpack.c.h.b16 %v1623
        %v5636 = vunpack.c.l.b16 %v1624
        %v5637 = vunpack.c.h.b16 %v1624
        %v5638 = vunpack.c.l.b16 %v1625
        %v5639 = vunpack.c.h.b16 %v1625
        %v5640 = vunpack.c.l.b16 %v1626
        %v5641 = vunpack.c.h.b16 %v1626
        %v5642 = vunpack.c.l.b16 %v1627
        %v5643 = vunpack.c.h.b16 %v1627
        %v5644 = vunpack.c.l.b16 %v1628
        %v5645 = vunpack.c.h.b16 %v1628
        %v5646 = vunpack.c.l.b16 %v1629
        %v5647 = vunpack.c.h.b16 %v1629
        %v5648 = vunpack.c.l.b16 %v1630
        %v5649 = vunpack.c.h.b16 %v1630
        %v5650 = vunpack.c.l.b16 %v1631
        %v5651 = vunpack.c.h.b16 %v1631
        %v5652 = vunpack.c.l.b16 %v1632
        %v5653 = vunpack.c.h.b16 %v1632
        %v5654 = vunpack.c.l.b16 %v1633
        %v5655 = vunpack.c.h.b16 %v1633
        %v5656 = vunpack.c.l.b16 %v1634
        %v5657 = vunpack.c.h.b16 %v1634
        %v5658 = vunpack.c.l.b16 %v1635
        %v5659 = vunpack.c.h.b16 %v1635
        %v5660 = vunpack.c.l.b16 %v1636
        %v5661 = vunpack.c.h.b16 %v1636
        %v5662 = vunpack.c.l.b16 %v1637
        %v5663 = vunpack.c.h.b16 %v1637
        %v5664 = vunpack.c.l.b16 %v1638
        %v5665 = vunpack.c.h.b16 %v1638
        %v5666 = vunpack.c.l.b16 %v1639
        %v5667 = vunpack.c.h.b16 %v1639
        %v5668 = vunpack.c.l.b16 %v1640
        %v5669 = vunpack.c.h.b16 %v1640
        %v5670 = vunpack.c.l.b16 %v1641
        %v5671 = vunpack.c.h.b16 %v1641
        %v5672 = vunpack.c.l.b16 %v1642
        %v5673 = vunpack.c.h.b16 %v1642
        %v5674 = vunpack.c.l.b16 %v1643
        %v5675 = vunpack.c.h.b16 %v1643
        %v5676 = vunpack.c.l.b16 %v1644
        %v5677 = vunpack.c.h.b16 %v1644
        %v5678 = vunpack.c.l.b16 %v1645
        %v5679 = vunpack.c.h.b16 %v1645
        %v5680 = vunpack.c.l.b16 %v1646
        %v5681 = vunpack.c.h.b16 %v1646
        %v5682 = vunpack.c.l.b16 %v1647
        %v5683 = vunpack.c.h.b16 %v1647
        %v5684 = vunpack.c.l.b16 %v1648
        %v5685 = vunpack.c.h.b16 %v1648
        %v5686 = vunpack.c.l.b16 %v1649
        %v5687 = vunpack.c.h.b16 %v1649
        %v5688 = vunpack.c.l.b16 %v1650
        %v5689 = vunpack.c.h.b16 %v1650
        %v5690 = vunpack.c.l.b16 %v1651
        %v5691 = vunpack.c.h.b16 %v1651
        %v5692 = vunpack.c.l.b16 %v1652
        %v5693 = vunpack.c.h.b16 %v1652
        %v5694 = vunpack.c.l.b16 %v1653
        %v5695 = vunpack.c.h.b16 %v1653
        %v5696 = vunpack.c.l.b16 %v1654
        %v5697 = vunpack.c.h.b16 %v1654
        %v5698 = vunpack.c.l.b16 %v1655
        %v5699 = vunpack.c.h.b16 %v1655
        %v5700 = vunpack.c.l.b16 %v1656
        %v5701 = vunpack.c.h.b16 %v1656
        %v5702 = vunpack.c.l.b16 %v1657
        %v5703 = vunpack.c.h.b16 %v1657
        %v5704 = vunpack.c.l.b16 %v1658
        %v5705 = vunpack.c.h.b16 %v1658
        %v5706 = vunpack.c.l.b16 %v1659
        %v5707 = vunpack.c.h.b16 %v1659
        %v5708 = vunpack.c.l.b16 %v1660
        %v5709 = vunpack.c.h.b16 %v1660
        %v5710 = vunpack.c.l.b16 %v1661
        %v5711 = vunpack.c.h.b16 %v1661
        %v5712 = vunpack.c.l.b16 %v1662
        %v5713 = vunpack.c.h.b16 %v1662
        %v5714 = vunpack.c.l.b16 %v1663
        %v5715 = vunpack.c.h.b16 %v1663
        %v5716 = vunpack.c.l.b16 %v1664
        %v5717 = vunpack.c.h.b16 %v1664
        %v5718 = vunpack.c.l.b16 %v1665
        %v5719 = vunpack.c.h.b16 %v1665
        %v5720 = vunpack.c.l.b16 %v1666
        %v5721 = vunpack.c.h.b16 %v1666
        %v5722 = vunpack.c.l.b16 %v1667
        %v5723 = vunpack.c.h.b16 %v1667
        %v5724 = vunpack.c.l.b16 %v1668
        %v5725 = vunpack.c.h.b16 %v1668
        %v5726 = vunpack.c.l.b16 %v1669
        %v5727 = vunpack.c.h.b16 %v1669
        %v5728 = vunpack.c.l.b16 %v1670
        %v5729 = vunpack.c.h.b16 %v1670
        %v5730 = vunpack.c.l.b16 %v1671
        %v5731 = vunpack.c.h.b16 %v1671
        %v5732 = vunpack.c.l.b16 %v1672
        %v5733 = vunpack.c.h.b16 %v1672
        %v5734 = vunpack.c.l.b16 %v1673
        %v5735 = vunpack.c.h.b16 %v1673
        %v5736 = vunpack.c.l.b16 %v1674
        %v5737 = vunpack.c.h.b16 %v1674
        %v5738 = vunpack.c.l.b16 %v1675
        %v5739 = vunpack.c.h.b16 %v1675
        %v5740 = vunpack.c.l.b16 %v1676
        %v5741 = vunpack.c.h.b16 %v1676
        %v5742 = vunpack.c.l.b16 %v1677
        %v5743 = vunpack.c.h.b16 %v1677
        %v5744 = vunpack.c.l.b16 %v1678
        %v5745 = vunpack.c.h.b16 %v1678
        %v5746 = vunpack.c.l.b16 %v1679
        %v5747 = vunpack.c.h.b16 %v1679
        %v5748 = vunpack.c.l.b16 %v1680
        %v5749 = vunpack.c.h.b16 %v1680
        %v5750 = vunpack.c.l.b16 %v1681
        %v5751 = vunpack.c.h.b16 %v1681
        %v5752 = vunpack.c.l.b16 %v1682
        %v5753 = vunpack.c.h.b16 %v1682
        %v5754 = vunpack.c.l.b16 %v1683
        %v5755 = vunpack.c.h.b16 %v1683
        %v5756 = vunpack.c.l.b16 %v1684
        %v5757 = vunpack.c.h.b16 %v1684
        %v5758 = vunpack.c.l.b16 %v1685
        %v5759 = vunpack.c.h.b16 %v1685
        %v5760 = vunpack.c.l.b16 %v1686
        %v5761 = vunpack.c.h.b16 %v1686
        %v5762 = vunpack.c.l.b16 %v1687
        %v5763 = vunpack.c.h.b16 %v1687
        %v5764 = vunpack.c.l.b16 %v1688
        %v5765 = vunpack.c.h.b16 %v1688
        %v5766 = vunpack.c.l.b16 %v1689
        %v5767 = vunpack.c.h.b16 %v1689
        %v5768 = vunpack.c.l.b16 %v1690
        %v5769 = vunpack.c.h.b16 %v1690
        %v5770 = vunpack.c.l.b16 %v1691
        %v5771 = vunpack.c.h.b16 %v1691
        %v5772 = vunpack.c.l.b16 %v1692
        %v5773 = vunpack.c.h.b16 %v1692
        %v5774 = vunpack.c.l.b16 %v1693
        %v5775 = vunpack.c.h.b16 %v1693
        %v5776 = vunpack.c.l.b16 %v1694
        %v5777 = vunpack.c.h.b16 %v1694
        %v5778 = vunpack.c.l.b16 %v1695
        %v5779 = vunpack.c.h.b16 %v1695
        %v5780 = vunpack.c.l.b16 %v1696
        %v5781 = vunpack.c.h.b16 %v1696
        %v5782 = vunpack.c.l.b16 %v1697
        %v5783 = vunpack.c.h.b16 %v1697
        %v5784 = vunpack.c.l.b16 %v1698
        %v5785 = vunpack.c.h.b16 %v1698
        %v5786 = vunpack.c.l.b16 %v1699
        %v5787 = vunpack.c.h.b16 %v1699
        %v5788 = vunpack.c.l.b16 %v1700
        %v5789 = vunpack.c.h.b16 %v1700
        %v5790 = vunpack.c.l.b16 %v1701
        %v5791 = vunpack.c.h.b16 %v1701
        %v5792 = vunpack.c.l.b16 %v1702
        %v5793 = vunpack.c.h.b16 %v1702
        %v5794 = vunpack.c.l.b16 %v1703
        %v5795 = vunpack.c.h.b16 %v1703
        %v5796 = vunpack.c.l.b16 %v1704
        %v5797 = vunpack.c.h.b16 %v1704
        %v5798 = vunpack.c.l.b16 %v1705
        %v5799 = vunpack.c.h.b16 %v1705
        %v5800 = vunpack.c.l.b16 %v1706
        %v5801 = vunpack.c.h.b16 %v1706
        %v5802 = vunpack.c.l.b16 %v1707
        %v5803 = vunpack.c.h.b16 %v1707
        %v5804 = vunpack.c.l.b16 %v1708
        %v5805 = vunpack.c.h.b16 %v1708
        %v5806 = vunpack.c.l.b16 %v1709
        %v5807 = vunpack.c.h.b16 %v1709
        %v5808 = vunpack.c.l.b16 %v1710
        %v5809 = vunpack.c.h.b16 %v1710
        %v5810 = vunpack.c.l.b16 %v1711
        %v5811 = vunpack.c.h.b16 %v1711
        %v5812 = vunpack.c.l.b16 %v1712
        %v5813 = vunpack.c.h.b16 %v1712
        %v5814 = vunpack.c.l.b16 %v1713
        %v5815 = vunpack.c.h.b16 %v1713
        %v5816 = vunpack.c.l.b16 %v1714
        %v5817 = vunpack.c.h.b16 %v1714
        %v5818 = vunpack.c.l.b16 %v1715
        %v5819 = vunpack.c.h.b16 %v1715
        %v5820 = vunpack.c.l.b16 %v1716
        %v5821 = vunpack.c.h.b16 %v1716
        %v5822 = vunpack.c.l.b16 %v1717
        %v5823 = vunpack.c.h.b16 %v1717
        %v5824 = vunpack.c.l.b16 %v1718
        %v5825 = vunpack.c.h.b16 %v1718
        %v5826 = vunpack.c.l.b16 %v1719
        %v5827 = vunpack.c.h.b16 %v1719
        %v5828 = vunpack.c.l.b16 %v1720
        %v5829 = vunpack.c.h.b16 %v1720
        %v5830 = vunpack.c.l.b16 %v1721
        %v5831 = vunpack.c.h.b16 %v1721
        %v5832 = vunpack.c.l.b16 %v1722
        %v5833 = vunpack.c.h.b16 %v1722
        %v5834 = vunpack.c.l.b16 %v1723
        %v5835 = vunpack.c.h.b16 %v1723
        %v5836 = vpack.c.b16 %v3804, %v3788
        %v5837 = vpack.c.b16 %v3805, %v3789
        %v5838 = vpack.c.b16 %v3806, %v3790
        %v5839 = vpack.c.b16 %v3807, %v3791
        %v5840 = vpack.c.b16 %v3808, %v3792
        %v5841 = vpack.c.b16 %v3809, %v3793
        %v5842 = vpack.c.b16 %v3810, %v3794
        %v5843 = vpack.c.b16 %v3811, %v3795
        %v5844 = vpack.c.b16 %v3812, %v3796
        %v5845 = vpack.c.b16 %v3813, %v3797
        %v5846 = vpack.c.b16 %v3814, %v3798
        %v5847 = vpack.c.b16 %v3815, %v3799
        %v5848 = vpack.c.b16 %v3816, %v3800
        %v5849 = vpack.c.b16 %v3817, %v3801
        %v5850 = vpack.c.b16 %v3818, %v3802
        %v5851 = vpack.c.b16 %v3819, %v3803
        %v5852 = vpack.c.b16 %v3836, %v3820
        %v5853 = vpack.c.b16 %v3837, %v3821
        %v5854 = vpack.c.b16 %v3838, %v3822
        %v5855 = vpack.c.b16 %v3839, %v3823
        %v5856 = vpack.c.b16 %v3840, %v3824
        %v5857 = vpack.c.b16 %v3841, %v3825
        %v5858 = vpack.c.b16 %v3842, %v3826
        %v5859 = vpack.c.b16 %v3843, %v3827
        %v5860 = vpack.c.b16 %v3844, %v3828
        %v5861 = vpack.c.b16 %v3845, %v3829
        %v5862 = vpack.c.b16 %v3846, %v3830
        %v5863 = vpack.c.b16 %v3847, %v3831
        %v5864 = vpack.c.b16 %v3848, %v3832
        %v5865 = vpack.c.b16 %v3849, %v3833
        %v5866 = vpack.c.b16 %v3850, %v3834
        %v5867 = vpack.c.b16 %v3851, %v3835
        %v5868 = vpack.c.b16 %v3868, %v3852
        %v5869 = vpack.c.b16 %v3869, %v3853
        %v5870 = vpack.c.b16 %v3870, %v3854
        %v5871 = vpack.c.b16 %v3871, %v3855
        %v5872 = vpack.c.b16 %v3872, %v3856
        %v5873 = vpack.c.b16 %v3873, %v3857
        %v5874 = vpack.c.b16 %v3874, %v3858
        %v5875 = vpack.c.b16 %v3875, %v3859
        %v5876 = vpack.c.b16 %v3876, %v3860
        %v5877 = vpack.c.b16 %v3877, %v3861
        %v5878 = vpack.c.b16 %v3878, %v3862
        %v5879 = vpack.c.b16 %v3879, %v3863
        %v5880 = vpack.c.b16 %v3880, %v3864
        %v5881 = vpack.c.b16 %v3881, %v3865
        %v5882 = vpack.c.b16 %v3882, %v3866
        %v5883 = vpack.c.b16 %v3883, %v3867
        %v5884 = vpack.c.b16 %v3900, %v3884
        %v5885 = vpack.c.b16 %v3901, %v3885
        %v5886 = vpack.c.b16 %v3902, %v3886
        %v5887 = vpack.c.b16 %v3903, %v3887
        %v5888 = vpack.c.b16 %v3904, %v3888
        %v5889 = vpack.c.b16 %v3905, %v3889
        %v5890 = vpack.c.b16 %v3906, %v3890
        %v5891 = vpack.c.b16 %v3907, %v3891
        %v5892 = vpack.c.b16 %v3908, %v3892
        %v5893 = vpack.c.b16 %v3909, %v3893
        %v5894 = vpack.c.b16 %v3910, %v3894
        %v5895 = vpack.c.b16 %v3911, %v3895
        %v5896 = vpack.c.b16 %v3912, %v3896
        %v5897 = vpack.c.b16 %v3913, %v3897
        %v5898 = vpack.c.b16 %v3914, %v3898
        %v5899 = vpack.c.b16 %v3915, %v3899
        %v5900 = vpack.c.b16 %v3932, %v3916
        %v5901 = vpack.c.b16 %v3933, %v3917
        %v5902 = vpack.c.b16 %v3934, %v3918
        %v5903 = vpack.c.b16 %v3935, %v3919
        %v5904 = vpack.c.b16 %v3936, %v3920
        %v5905 = vpack.c.b16 %v3937, %v3921
        %v5906 = vpack.c.b16 %v3938, %v3922
        %v5907 = vpack.c.b16 %v3939, %v3923
        %v5908 = vpack.c.b16 %v3940, %v3924
        %v5909 = vpack.c.b16 %v3941, %v3925
        %v5910 = vpack.c.b16 %v3942, %v3926
        %v5911 = vpack.c.b16 %v3943, %v3927
        %v5912 = vpack.c.b16 %v3944, %v3928
        %v5913 = vpack.c.b16 %v3945, %v3929
        %v5914 = vpack.c.b16 %v3946, %v3930
        %v5915 = vpack.c.b16 %v3947, %v3931
        %v5916 = vpack.c.b16 %v3964, %v3948
        %v5917 = vpack.c.b16 %v3965, %v3949
        %v5918 = vpack.c.b16 %v3966, %v3950
        %v5919 = vpack.c.b16 %v3967, %v3951
        %v5920 = vpack.c.b16 %v3968, %v3952
        %v5921 = vpack.c.b16 %v3969, %v3953
        %v5922 = vpack.c.b16 %v3970, %v3954
        %v5923 = vpack.c.b16 %v3971, %v3955
        %v5924 = vpack.c.b16 %v3972, %v3956
        %v5925 = vpack.c.b16 %v3973, %v3957
        %v5926 = vpack.c.b16 %v3974, %v3958
        %v5927 = vpack.c.b16 %v3975, %v3959
        %v5928 = vpack.c.b16 %v3976, %v3960
        %v5929 = vpack.c.b16 %v3977, %v3961
        %v5930 = vpack.c.b16 %v3978, %v3962
        %v5931 = vpack.c.b16 %v3979, %v3963
        %v5932 = vpack.c.b16 %v3996, %v3980
        %v5933 = vpack.c.b16 %v3997, %v3981
        %v5934 = vpack.c.b16 %v3998, %v3982
        %v5935 = vpack.c.b16 %v3999, %v3983
        %v5936 = vpack.c.b16 %v4000, %v3984
        %v5937 = vpack.c.b16 %v4001, %v3985
        %v5938 = vpack.c.b16 %v4002, %v3986
        %v5939 = vpack.c.b16 %v4003, %v3987
        %v5940 = vpack.c.b16 %v4004, %v3988
        %v5941 = vpack.c.b16 %v4005, %v3989
        %v5942 = vpack.c.b16 %v4006, %v3990
        %v5943 = vpack.c.b16 %v4007, %v3991
        %v5944 = vpack.c.b16 %v4008, %v3992
        %v5945 = vpack.c.b16 %v4009, %v3993
        %v5946 = vpack.c.b16 %v4010, %v3994
        %v5947 = vpack.c.b16 %v4011, %v3995
        %v5948 = vpack.c.b16 %v4028, %v4012
        %v5949 = vpack.c.b16 %v4029, %v4013
        %v5950 = vpack.c.b16 %v4030, %v4014
        %v5951 = vpack.c.b16 %v4031, %v4015
        %v5952 = vpack.c.b16 %v4032, %v4016
        %v5953 = vpack.c.b16 %v4033, %v4017
        %v5954 = vpack.c.b16 %v4034, %v4018
        %v5955 = vpack.c.b16 %v4035, %v4019
        %v5956 = vpack.c.b16 %v4036, %v4020
        %v5957 = vpack.c.b16 %v4037, %v4021
        %v5958 = vpack.c.b16 %v4038, %v4022
        %v5959 = vpack.c.b16 %v4039, %v4023
        %v5960 = vpack.c.b16 %v4040, %v4024
        %v5961 = vpack.c.b16 %v4041, %v4025
        %v5962 = vpack.c.b16 %v4042, %v4026
        %v5963 = vpack.c.b16 %v4043, %v4027
        %v5964 = vpack.c.b16 %v4060, %v4044
        %v5965 = vpack.c.b16 %v4061, %v4045
        %v5966 = vpack.c.b16 %v4062, %v4046
        %v5967 = vpack.c.b16 %v4063, %v4047
        %v5968 = vpack.c.b16 %v4064, %v4048
        %v5969 = vpack.c.b16 %v4065, %v4049
        %v5970 = vpack.c.b16 %v4066, %v4050
        %v5971 = vpack.c.b16 %v4067, %v4051
        %v5972 = vpack.c.b16 %v4068, %v4052
        %v5973 = vpack.c.b16 %v4069, %v4053
        %v5974 = vpack.c.b16 %v4070, %v4054
        %v5975 = vpack.c.b16 %v4071, %v4055
        %v5976 = vpack.c.b16 %v4072, %v4056
        %v5977 = vpack.c.b16 %v4073, %v4057
        %v5978 = vpack.c.b16 %v4074, %v4058
        %v5979 = vpack.c.b16 %v4075, %v4059
        %v5980 = vpack.c.b16 %v4092, %v4076
        %v5981 = vpack.c.b16 %v4093, %v4077
        %v5982 = vpack.c.b16 %v4094, %v4078
        %v5983 = vpack.c.b16 %v4095, %v4079
        %v5984 = vpack.c.b16 %v4096, %v4080
        %v5985 = vpack.c.b16 %v4097, %v4081
        %v5986 = vpack.c.b16 %v4098, %v4082
        %v5987 = vpack.c.b16 %v4099, %v4083
        %v5988 = vpack.c.b16 %v4100, %v4084
        %v5989 = vpack.c.b16 %v4101, %v4085
        %v5990 = vpack.c.b16 %v4102, %v4086
        %v5991 = vpack.c.b16 %v4103, %v4087
        %v5992 = vpack.c.b16 %v4104, %v4088
        %v5993 = vpack.c.b16 %v4105, %v4089
        %v5994 = vpack.c.b16 %v4106, %v4090
        %v5995 = vpack.c.b16 %v4107, %v4091
        %v5996 = vpack.c.b16 %v4124, %v4108
        %v5997 = vpack.c.b16 %v4125, %v4109
        %v5998 = vpack.c.b16 %v4126, %v4110
        %v5999 = vpack.c.b16 %v4127, %v4111
        %v6000 = vpack.c.b16 %v4128, %v4112
        %v6001 = vpack.c.b16 %v4129, %v4113
        %v6002 = vpack.c.b16 %v4130, %v4114
        %v6003 = vpack.c.b16 %v4131, %v4115
        %v6004 = vpack.c.b16 %v4132, %v4116
        %v6005 = vpack.c.b16 %v4133, %v4117
        %v6006 = vpack.c.b16 %v4134, %v4118
        %v6007 = vpack.c.b16 %v4135, %v4119
        %v6008 = vpack.c.b16 %v4136, %v4120
        %v6009 = vpack.c.b16 %v4137, %v4121
        %v6010 = vpack.c.b16 %v4138, %v4122
        %v6011 = vpack.c.b16 %v4139, %v4123
        %v6012 = vpack.c.b16 %v4156, %v4140
        %v6013 = vpack.c.b16 %v4157, %v4141
        %v6014 = vpack.c.b16 %v4158, %v4142
        %v6015 = vpack.c.b16 %v4159, %v4143
        %v6016 = vpack.c.b16 %v4160, %v4144
        %v6017 = vpack.c.b16 %v4161, %v4145
        %v6018 = vpack.c.b16 %v4162, %v4146
        %v6019 = vpack.c.b16 %v4163, %v4147
        %v6020 = vpack.c.b16 %v4164, %v4148
        %v6021 = vpack.c.b16 %v4165, %v4149
        %v6022 = vpack.c.b16 %v4166, %v4150
        %v6023 = vpack.c.b16 %v4167, %v4151
        %v6024 = vpack.c.b16 %v4168, %v4152
        %v6025 = vpack.c.b16 %v4169, %v4153
        %v6026 = vpack.c.b16 %v4170, %v4154
        %v6027 = vpack.c.b16 %v4171, %v4155
        %v6028 = vpack.c.b16 %v4188, %v4172
        %v6029 = vpack.c.b16 %v4189, %v4173
        %v6030 = vpack.c.b16 %v4190, %v4174
        %v6031 = vpack.c.b16 %v4191, %v4175
        %v6032 = vpack.c.b16 %v4192, %v4176
        %v6033 = vpack.c.b16 %v4193, %v4177
        %v6034 = vpack.c.b16 %v4194, %v4178
        %v6035 = vpack.c.b16 %v4195, %v4179
        %v6036 = vpack.c.b16 %v4196, %v4180
        %v6037 = vpack.c.b16 %v4197, %v4181
        %v6038 = vpack.c.b16 %v4198, %v4182
        %v6039 = vpack.c.b16 %v4199, %v4183
        %v6040 = vpack.c.b16 %v4200, %v4184
        %v6041 = vpack.c.b16 %v4201, %v4185
        %v6042 = vpack.c.b16 %v4202, %v4186
        %v6043 = vpack.c.b16 %v4203, %v4187
        %v6044 = vpack.c.b16 %v4220, %v4204
        %v6045 = vpack.c.b16 %v4221, %v4205
        %v6046 = vpack.c.b16 %v4222, %v4206
        %v6047 = vpack.c.b16 %v4223, %v4207
        %v6048 = vpack.c.b16 %v4224, %v4208
        %v6049 = vpack.c.b16 %v4225, %v4209
        %v6050 = vpack.c.b16 %v4226, %v4210
        %v6051 = vpack.c.b16 %v4227, %v4211
        %v6052 = vpack.c.b16 %v4228, %v4212
        %v6053 = vpack.c.b16 %v4229, %v4213
        %v6054 = vpack.c.b16 %v4230, %v4214
        %v6055 = vpack.c.b16 %v4231, %v4215
        %v6056 = vpack.c.b16 %v4232, %v4216
        %v6057 = vpack.c.b16 %v4233, %v4217
        %v6058 = vpack.c.b16 %v4234, %v4218
        %v6059 = vpack.c.b16 %v4235, %v4219
        %v6060 = vpack.c.b16 %v4252, %v4236
        %v6061 = vpack.c.b16 %v4253, %v4237
        %v6062 = vpack.c.b16 %v4254, %v4238
        %v6063 = vpack.c.b16 %v4255, %v4239
        %v6064 = vpack.c.b16 %v4256, %v4240
        %v6065 = vpack.c.b16 %v4257, %v4241
        %v6066 = vpack.c.b16 %v4258, %v4242
        %v6067 = vpack.c.b16 %v4259, %v4243
        %v6068 = vpack.c.b16 %v4260, %v4244
        %v6069 = vpack.c.b16 %v4261, %v4245
        %v6070 = vpack.c.b16 %v4262, %v4246
        %v6071 = vpack.c.b16 %v4263, %v4247
        %v6072 = vpack.c.b16 %v4264, %v4248
        %v6073 = vpack.c.b16 %v4265, %v4249
        %v6074 = vpack.c.b16 %v4266, %v4250
        %v6075 = vpack.c.b16 %v4267, %v4251
        %v6076 = vpack.c.b16 %v4284, %v4268
        %v6077 = vpack.c.b16 %v4285, %v4269
        %v6078 = vpack.c.b16 %v4286, %v4270
        %v6079 = vpack.c.b16 %v4287, %v4271
        %v6080 = vpack.c.b16 %v4288, %v4272
        %v6081 = vpack.c.b16 %v4289, %v4273
        %v6082 = vpack.c.b16 %v4290, %v4274
        %v6083 = vpack.c.b16 %v4291, %v4275
        %v6084 = vpack.c.b16 %v4292, %v4276
        %v6085 = vpack.c.b16 %v4293, %v4277
        %v6086 = vpack.c.b16 %v4294, %v4278
        %v6087 = vpack.c.b16 %v4295, %v4279
        %v6088 = vpack.c.b16 %v4296, %v4280
        %v6089 = vpack.c.b16 %v4297, %v4281
        %v6090 = vpack.c.b16 %v4298, %v4282
        %v6091 = vpack.c.b16 %v4299, %v4283
        %v6092 = vpack.c.b16 %v4316, %v4300
        %v6093 = vpack.c.b16 %v4317, %v4301
        %v6094 = vpack.c.b16 %v4318, %v4302
        %v6095 = vpack.c.b16 %v4319, %v4303
        %v6096 = vpack.c.b16 %v4320, %v4304
        %v6097 = vpack.c.b16 %v4321, %v4305
        %v6098 = vpack.c.b16 %v4322, %v4306
        %v6099 = vpack.c.b16 %v4323, %v4307
        %v6100 = vpack.c.b16 %v4324, %v4308
        %v6101 = vpack.c.b16 %v4325, %v4309
        %v6102 = vpack.c.b16 %v4326, %v4310
        %v6103 = vpack.c.b16 %v4327, %v4311
        %v6104 = vpack.c.b16 %v4328, %v4312
        %v6105 = vpack.c.b16 %v4329, %v4313
        %v6106 = vpack.c.b16 %v4330, %v4314
        %v6107 = vpack.c.b16 %v4331, %v4315
        %v6108 = vpack.c.b16 %v4348, %v4332
        %v6109 = vpack.c.b16 %v4349, %v4333
        %v6110 = vpack.c.b16 %v4350, %v4334
        %v6111 = vpack.c.b16 %v4351, %v4335
        %v6112 = vpack.c.b16 %v4352, %v4336
        %v6113 = vpack.c.b16 %v4353, %v4337
        %v6114 = vpack.c.b16 %v4354, %v4338
        %v6115 = vpack.c.b16 %v4355, %v4339
        %v6116 = vpack.c.b16 %v4356, %v4340
        %v6117 = vpack.c.b16 %v4357, %v4341
        %v6118 = vpack.c.b16 %v4358, %v4342
        %v6119 = vpack.c.b16 %v4359, %v4343
        %v6120 = vpack.c.b16 %v4360, %v4344
        %v6121 = vpack.c.b16 %v4361, %v4345
        %v6122 = vpack.c.b16 %v4362, %v4346
        %v6123 = vpack.c.b16 %v4363, %v4347
        %v6124 = vpack.c.b16 %v4380, %v4364
        %v6125 = vpack.c.b16 %v4381, %v4365
        %v6126 = vpack.c.b16 %v4382, %v4366
        %v6127 = vpack.c.b16 %v4383, %v4367
        %v6128 = vpack.c.b16 %v4384, %v4368
        %v6129 = vpack.c.b16 %v4385, %v4369
        %v6130 = vpack.c.b16 %v4386, %v4370
        %v6131 = vpack.c.b16 %v4387, %v4371
        %v6132 = vpack.c.b16 %v4388, %v4372
        %v6133 = vpack.c.b16 %v4389, %v4373
        %v6134 = vpack.c.b16 %v4390, %v4374
        %v6135 = vpack.c.b16 %v4391, %v4375
        %v6136 = vpack.c.b16 %v4392, %v4376
        %v6137 = vpack.c.b16 %v4393, %v4377
        %v6138 = vpack.c.b16 %v4394, %v4378
        %v6139 = vpack.c.b16 %v4395, %v4379
        %v6140 = vpack.c.b16 %v4412, %v4396
        %v6141 = vpack.c.b16 %v4413, %v4397
        %v6142 = vpack.c.b16 %v4414, %v4398
        %v6143 = vpack.c.b16 %v4415, %v4399
        %v6144 = vpack.c.b16 %v4416, %v4400
        %v6145 = vpack.c.b16 %v4417, %v4401
        %v6146 = vpack.c.b16 %v4418, %v4402
        %v6147 = vpack.c.b16 %v4419, %v4403
        %v6148 = vpack.c.b16 %v4420, %v4404
        %v6149 = vpack.c.b16 %v4421, %v4405
        %v6150 = vpack.c.b16 %v4422, %v4406
        %v6151 = vpack.c.b16 %v4423, %v4407
        %v6152 = vpack.c.b16 %v4424, %v4408
        %v6153 = vpack.c.b16 %v4425, %v4409
        %v6154 = vpack.c.b16 %v4426, %v4410
        %v6155 = vpack.c.b16 %v4427, %v4411
        %v6156 = vpack.c.b16 %v4444, %v4428
        %v6157 = vpack.c.b16 %v4445, %v4429
        %v6158 = vpack.c.b16 %v4446, %v4430
        %v6159 = vpack.c.b16 %v4447, %v4431
        %v6160 = vpack.c.b16 %v4448, %v4432
        %v6161 = vpack.c.b16 %v4449, %v4433
        %v6162 = vpack.c.b16 %v4450, %v4434
        %v6163 = vpack.c.b16 %v4451, %v4435
        %v6164 = vpack.c.b16 %v4452, %v4436
        %v6165 = vpack.c.b16 %v4453, %v4437
        %v6166 = vpack.c.b16 %v4454, %v4438
        %v6167 = vpack.c.b16 %v4455, %v4439
        %v6168 = vpack.c.b16 %v4456, %v4440
        %v6169 = vpack.c.b16 %v4457, %v4441
        %v6170 = vpack.c.b16 %v4458, %v4442
        %v6171 = vpack.c.b16 %v4459, %v4443
        %v6172 = vpack.c.b16 %v4476, %v4460
        %v6173 = vpack.c.b16 %v4477, %v4461
        %v6174 = vpack.c.b16 %v4478, %v4462
        %v6175 = vpack.c.b16 %v4479, %v4463
        %v6176 = vpack.c.b16 %v4480, %v4464
        %v6177 = vpack.c.b16 %v4481, %v4465
        %v6178 = vpack.c.b16 %v4482, %v4466
        %v6179 = vpack.c.b16 %v4483, %v4467
        %v6180 = vpack.c.b16 %v4484, %v4468
        %v6181 = vpack.c.b16 %v4485, %v4469
        %v6182 = vpack.c.b16 %v4486, %v4470
        %v6183 = vpack.c.b16 %v4487, %v4471
        %v6184 = vpack.c.b16 %v4488, %v4472
        %v6185 = vpack.c.b16 %v4489, %v4473
        %v6186 = vpack.c.b16 %v4490, %v4474
        %v6187 = vpack.c.b16 %v4491, %v4475
        %v6188 = vpack.c.b16 %v4508, %v4492
        %v6189 = vpack.c.b16 %v4509, %v4493
        %v6190 = vpack.c.b16 %v4510, %v4494
        %v6191 = vpack.c.b16 %v4511, %v4495
        %v6192 = vpack.c.b16 %v4512, %v4496
        %v6193 = vpack.c.b16 %v4513, %v4497
        %v6194 = vpack.c.b16 %v4514, %v4498
        %v6195 = vpack.c.b16 %v4515, %v4499
        %v6196 = vpack.c.b16 %v4516, %v4500
        %v6197 = vpack.c.b16 %v4517, %v4501
        %v6198 = vpack.c.b16 %v4518, %v4502
        %v6199 = vpack.c.b16 %v4519, %v4503
        %v6200 = vpack.c.b16 %v4520, %v4504
        %v6201 = vpack.c.b16 %v4521, %v4505
        %v6202 = vpack.c.b16 %v4522, %v4506
        %v6203 = vpack.c.b16 %v4523, %v4507
        %v6204 = vpack.c.b16 %v4540, %v4524
        %v6205 = vpack.c.b16 %v4541, %v4525
        %v6206 = vpack.c.b16 %v4542, %v4526
        %v6207 = vpack.c.b16 %v4543, %v4527
        %v6208 = vpack.c.b16 %v4544, %v4528
        %v6209 = vpack.c.b16 %v4545, %v4529
        %v6210 = vpack.c.b16 %v4546, %v4530
        %v6211 = vpack.c.b16 %v4547, %v4531
        %v6212 = vpack.c.b16 %v4548, %v4532
        %v6213 = vpack.c.b16 %v4549, %v4533
        %v6214 = vpack.c.b16 %v4550, %v4534
        %v6215 = vpack.c.b16 %v4551, %v4535
        %v6216 = vpack.c.b16 %v4552, %v4536
        %v6217 = vpack.c.b16 %v4553, %v4537
        %v6218 = vpack.c.b16 %v4554, %v4538
        %v6219 = vpack.c.b16 %v4555, %v4539
        %v6220 = vpack.c.b16 %v4572, %v4556
        %v6221 = vpack.c.b16 %v4573, %v4557
        %v6222 = vpack.c.b16 %v4574, %v4558
        %v6223 = vpack.c.b16 %v4575, %v4559
        %v6224 = vpack.c.b16 %v4576, %v4560
        %v6225 = vpack.c.b16 %v4577, %v4561
        %v6226 = vpack.c.b16 %v4578, %v4562
        %v6227 = vpack.c.b16 %v4579, %v4563
        %v6228 = vpack.c.b16 %v4580, %v4564
        %v6229 = vpack.c.b16 %v4581, %v4565
        %v6230 = vpack.c.b16 %v4582, %v4566
        %v6231 = vpack.c.b16 %v4583, %v4567
        %v6232 = vpack.c.b16 %v4584, %v4568
        %v6233 = vpack.c.b16 %v4585, %v4569
        %v6234 = vpack.c.b16 %v4586, %v4570
        %v6235 = vpack.c.b16 %v4587, %v4571
        %v6236 = vpack.c.b16 %v4604, %v4588
        %v6237 = vpack.c.b16 %v4605, %v4589
        %v6238 = vpack.c.b16 %v4606, %v4590
        %v6239 = vpack.c.b16 %v4607, %v4591
        %v6240 = vpack.c.b16 %v4608, %v4592
        %v6241 = vpack.c.b16 %v4609, %v4593
        %v6242 = vpack.c.b16 %v4610, %v4594
        %v6243 = vpack.c.b16 %v4611, %v4595
        %v6244 = vpack.c.b16 %v4612, %v4596
        %v6245 = vpack.c.b16 %v4613, %v4597
        %v6246 = vpack.c.b16 %v4614, %v4598
        %v6247 = vpack.c.b16 %v4615, %v4599
        %v6248 = vpack.c.b16 %v4616, %v4600
        %v6249 = vpack.c.b16 %v4617, %v4601
        %v6250 = vpack.c.b16 %v4618, %v4602
        %v6251 = vpack.c.b16 %v4619, %v4603
        %v6252 = vpack.c.b16 %v4636, %v4620
        %v6253 = vpack.c.b16 %v4637, %v4621
        %v6254 = vpack.c.b16 %v4638, %v4622
        %v6255 = vpack.c.b16 %v4639, %v4623
        %v6256 = vpack.c.b16 %v4640, %v4624
        %v6257 = vpack.c.b16 %v4641, %v4625
        %v6258 = vpack.c.b16 %v4642, %v4626
        %v6259 = vpack.c.b16 %v4643, %v4627
        %v6260 = vpack.c.b16 %v4644, %v4628
        %v6261 = vpack.c.b16 %v4645, %v4629
        %v6262 = vpack.c.b16 %v4646, %v4630
        %v6263 = vpack.c.b16 %v4647, %v4631
        %v6264 = vpack.c.b16 %v4648, %v4632
        %v6265 = vpack.c.b16 %v4649, %v4633
        %v6266 = vpack.c.b16 %v4650, %v4634
        %v6267 = vpack.c.b16 %v4651, %v4635
        %v6268 = vpack.c.b16 %v4668, %v4652
        %v6269 = vpack.c.b16 %v4669, %v4653
        %v6270 = vpack.c.b16 %v4670, %v4654
        %v6271 = vpack.c.b16 %v4671, %v4655
        %v6272 = vpack.c.b16 %v4672, %v4656
        %v6273 = vpack.c.b16 %v4673, %v4657
        %v6274 = vpack.c.b16 %v4674, %v4658
        %v6275 = vpack.c.b16 %v4675, %v4659
        %v6276 = vpack.c.b16 %v4676, %v4660
        %v6277 = vpack.c.b16 %v4677, %v4661
        %v6278 = vpack.c.b16 %v4678, %v4662
        %v6279 = vpack.c.b16 %v4679, %v4663
        %v6280 = vpack.c.b16 %v4680, %v4664
        %v6281 = vpack.c.b16 %v4681, %v4665
        %v6282 = vpack.c.b16 %v4682, %v4666
        %v6283 = vpack.c.b16 %v4683, %v4667
        %v6284 = vpack.c.b16 %v4700, %v4684
        %v6285 = vpack.c.b16 %v4701, %v4685
        %v6286 = vpack.c.b16 %v4702, %v4686
        %v6287 = vpack.c.b16 %v4703, %v4687
        %v6288 = vpack.c.b16 %v4704, %v4688
        %v6289 = vpack.c.b16 %v4705, %v4689
        %v6290 = vpack.c.b16 %v4706, %v4690
        %v6291 = vpack.c.b16 %v4707, %v4691
        %v6292 = vpack.c.b16 %v4708, %v4692
        %v6293 = vpack.c.b16 %v4709, %v4693
        %v6294 = vpack.c.b16 %v4710, %v4694
        %v6295 = vpack.c.b16 %v4711, %v4695
        %v6296 = vpack.c.b16 %v4712, %v4696
        %v6297 = vpack.c.b16 %v4713, %v4697
        %v6298 = vpack.c.b16 %v4714, %v4698
        %v6299 = vpack.c.b16 %v4715, %v4699
        %v6300 = vpack.c.b16 %v4732, %v4716
        %v6301 = vpack.c.b16 %v4733, %v4717
        %v6302 = vpack.c.b16 %v4734, %v4718
        %v6303 = vpack.c.b16 %v4735, %v4719
        %v6304 = vpack.c.b16 %v4736, %v4720
        %v6305 = vpack.c.b16 %v4737, %v4721
        %v6306 = vpack.c.b16 %v4738, %v4722
        %v6307 = vpack.c.b16 %v4739, %v4723
        %v6308 = vpack.c.b16 %v4740, %v4724
        %v6309 = vpack.c.b16 %v4741, %v4725
        %v6310 = vpack.c.b16 %v4742, %v4726
        %v6311 = vpack.c.b16 %v4743, %v4727
        %v6312 = vpack.c.b16 %v4744, %v4728
        %v6313 = vpack.c.b16 %v4745, %v4729
        %v6314 = vpack.c.b16 %v4746, %v4730
        %v6315 = vpack.c.b16 %v4747, %v4731
        %v6316 = vpack.c.b16 %v4764, %v4748
        %v6317 = vpack.c.b16 %v4765, %v4749
        %v6318 = vpack.c.b16 %v4766, %v4750
        %v6319 = vpack.c.b16 %v4767, %v4751
        %v6320 = vpack.c.b16 %v4768, %v4752
        %v6321 = vpack.c.b16 %v4769, %v4753
        %v6322 = vpack.c.b16 %v4770, %v4754
        %v6323 = vpack.c.b16 %v4771, %v4755
        %v6324 = vpack.c.b16 %v4772, %v4756
        %v6325 = vpack.c.b16 %v4773, %v4757
        %v6326 = vpack.c.b16 %v4774, %v4758
        %v6327 = vpack.c.b16 %v4775, %v4759
        %v6328 = vpack.c.b16 %v4776, %v4760
        %v6329 = vpack.c.b16 %v4777, %v4761
        %v6330 = vpack.c.b16 %v4778, %v4762
        %v6331 = vpack.c.b16 %v4779, %v4763
        %v6332 = vpack.c.b16 %v4796, %v4780
        %v6333 = vpack.c.b16 %v4797, %v4781
        %v6334 = vpack.c.b16 %v4798, %v4782
        %v6335 = vpack.c.b16 %v4799, %v4783
        %v6336 = vpack.c.b16 %v4800, %v4784
        %v6337 = vpack.c.b16 %v4801, %v4785
        %v6338 = vpack.c.b16 %v4802, %v4786
        %v6339 = vpack.c.b16 %v4803, %v4787
        %v6340 = vpack.c.b16 %v4804, %v4788
        %v6341 = vpack.c.b16 %v4805, %v4789
        %v6342 = vpack.c.b16 %v4806, %v4790
        %v6343 = vpack.c.b16 %v4807, %v4791
        %v6344 = vpack.c.b16 %v4808, %v4792
        %v6345 = vpack.c.b16 %v4809, %v4793
        %v6346 = vpack.c.b16 %v4810, %v4794
        %v6347 = vpack.c.b16 %v4811, %v4795
        %v6348 = vpack.c.b16 %v4828, %v4812
        %v6349 = vpack.c.b16 %v4829, %v4813
        %v6350 = vpack.c.b16 %v4830, %v4814
        %v6351 = vpack.c.b16 %v4831, %v4815
        %v6352 = vpack.c.b16 %v4832, %v4816
        %v6353 = vpack.c.b16 %v4833, %v4817
        %v6354 = vpack.c.b16 %v4834, %v4818
        %v6355 = vpack.c.b16 %v4835, %v4819
        %v6356 = vpack.c.b16 %v4836, %v4820
        %v6357 = vpack.c.b16 %v4837, %v4821
        %v6358 = vpack.c.b16 %v4838, %v4822
        %v6359 = vpack.c.b16 %v4839, %v4823
        %v6360 = vpack.c.b16 %v4840, %v4824
        %v6361 = vpack.c.b16 %v4841, %v4825
        %v6362 = vpack.c.b16 %v4842, %v4826
        %v6363 = vpack.c.b16 %v4843, %v4827
        %v6364 = vpack.c.b16 %v4860, %v4844
        %v6365 = vpack.c.b16 %v4861, %v4845
        %v6366 = vpack.c.b16 %v4862, %v4846
        %v6367 = vpack.c.b16 %v4863, %v4847
        %v6368 = vpack.c.b16 %v4864, %v4848
        %v6369 = vpack.c.b16 %v4865, %v4849
        %v6370 = vpack.c.b16 %v4866, %v4850
        %v6371 = vpack.c.b16 %v4867, %v4851
        %v6372 = vpack.c.b16 %v4868, %v4852
        %v6373 = vpack.c.b16 %v4869, %v4853
        %v6374 = vpack.c.b16 %v4870, %v4854
        %v6375 = vpack.c.b16 %v4871, %v4855
        %v6376 = vpack.c.b16 %v4872, %v4856
        %v6377 = vpack.c.b16 %v4873, %v4857
        %v6378 = vpack.c.b16 %v4874, %v4858
        %v6379 = vpack.c.b16 %v4875, %v4859
        %v6380 = vpack.c.b16 %v4892, %v4876
        %v6381 = vpack.c.b16 %v4893, %v4877
        %v6382 = vpack.c.b16 %v4894, %v4878
        %v6383 = vpack.c.b16 %v4895, %v4879
        %v6384 = vpack.c.b16 %v4896, %v4880
        %v6385 = vpack.c.b16 %v4897, %v4881
        %v6386 = vpack.c.b16 %v4898, %v4882
        %v6387 = vpack.c.b16 %v4899, %v4883
        %v6388 = vpack.c.b16 %v4900, %v4884
        %v6389 = vpack.c.b16 %v4901, %v4885
        %v6390 = vpack.c.b16 %v4902, %v4886
        %v6391 = vpack.c.b16 %v4903, %v4887
        %v6392 = vpack.c.b16 %v4904, %v4888
        %v6393 = vpack.c.b16 %v4905, %v4889
        %v6394 = vpack.c.b16 %v4906, %v4890
        %v6395 = vpack.c.b16 %v4907, %v4891
        %v6396 = vpack.c.b16 %v4924, %v4908
        %v6397 = vpack.c.b16 %v4925, %v4909
        %v6398 = vpack.c.b16 %v4926, %v4910
        %v6399 = vpack.c.b16 %v4927, %v4911
        %v6400 = vpack.c.b16 %v4928, %v4912
        %v6401 = vpack.c.b16 %v4929, %v4913
        %v6402 = vpack.c.b16 %v4930, %v4914
        %v6403 = vpack.c.b16 %v4931, %v4915
        %v6404 = vpack.c.b16 %v4932, %v4916
        %v6405 = vpack.c.b16 %v4933, %v4917
        %v6406 = vpack.c.b16 %v4934, %v4918
        %v6407 = vpack.c.b16 %v4935, %v4919
        %v6408 = vpack.c.b16 %v4936, %v4920
        %v6409 = vpack.c.b16 %v4937, %v4921
        %v6410 = vpack.c.b16 %v4938, %v4922
        %v6411 = vpack.c.b16 %v4939, %v4923
        %v6412 = vpack.c.b16 %v4956, %v4940
        %v6413 = vpack.c.b16 %v4957, %v4941
        %v6414 = vpack.c.b16 %v4958, %v4942
        %v6415 = vpack.c.b16 %v4959, %v4943
        %v6416 = vpack.c.b16 %v4960, %v4944
        %v6417 = vpack.c.b16 %v4961, %v4945
        %v6418 = vpack.c.b16 %v4962, %v4946
        %v6419 = vpack.c.b16 %v4963, %v4947
        %v6420 = vpack.c.b16 %v4964, %v4948
        %v6421 = vpack.c.b16 %v4965, %v4949
        %v6422 = vpack.c.b16 %v4966, %v4950
        %v6423 = vpack.c.b16 %v4967, %v4951
        %v6424 = vpack.c.b16 %v4968, %v4952
        %v6425 = vpack.c.b16 %v4969, %v4953
        %v6426 = vpack.c.b16 %v4970, %v4954
        %v6427 = vpack.c.b16 %v4971, %v4955
        %v6428 = vpack.c.b16 %v4988, %v4972
        %v6429 = vpack.c.b16 %v4989, %v4973
        %v6430 = vpack.c.b16 %v4990, %v4974
        %v6431 = vpack.c.b16 %v4991, %v4975
        %v6432 = vpack.c.b16 %v4992, %v4976
        %v6433 = vpack.c.b16 %v4993, %v4977
        %v6434 = vpack.c.b16 %v4994, %v4978
        %v6435 = vpack.c.b16 %v4995, %v4979
        %v6436 = vpack.c.b16 %v4996, %v4980
        %v6437 = vpack.c.b16 %v4997, %v4981
        %v6438 = vpack.c.b16 %v4998, %v4982
        %v6439 = vpack.c.b16 %v4999, %v4983
        %v6440 = vpack.c.b16 %v5000, %v4984
        %v6441 = vpack.c.b16 %v5001, %v4985
        %v6442 = vpack.c.b16 %v5002, %v4986
        %v6443 = vpack.c.b16 %v5003, %v4987
        %v6444 = vpack.c.b16 %v5020, %v5004
        %v6445 = vpack.c.b16 %v5021, %v5005
        %v6446 = vpack.c.b16 %v5022, %v5006
        %v6447 = vpack.c.b16 %v5023, %v5007
        %v6448 = vpack.c.b16 %v5024, %v5008
        %v6449 = vpack.c.b16 %v5025, %v5009
        %v6450 = vpack.c.b16 %v5026, %v5010
        %v6451 = vpack.c.b16 %v5027, %v5011
        %v6452 = vpack.c.b16 %v5028, %v5012
        %v6453 = vpack.c.b16 %v5029, %v5013
        %v6454 = vpack.c.b16 %v5030, %v5014
        %v6455 = vpack.c.b16 %v5031, %v5015
        %v6456 = vpack.c.b16 %v5032, %v5016
        %v6457 = vpack.c.b16 %v5033, %v5017
        %v6458 = vpack.c.b16 %v5034, %v5018
        %v6459 = vpack.c.b16 %v5035, %v5019
        %v6460 = vpack.c.b16 %v5052, %v5036
        %v6461 = vpack.c.b16 %v5053, %v5037
        %v6462 = vpack.c.b16 %v5054, %v5038
        %v6463 = vpack.c.b16 %v5055, %v5039
        %v6464 = vpack.c.b16 %v5056, %v5040
        %v6465 = vpack.c.b16 %v5057, %v5041
        %v6466 = vpack.c.b16 %v5058, %v5042
        %v6467 = vpack.c.b16 %v5059, %v5043
        %v6468 = vpack.c.b16 %v5060, %v5044
        %v6469 = vpack.c.b16 %v5061, %v5045
        %v6470 = vpack.c.b16 %v5062, %v5046
        %v6471 = vpack.c.b16 %v5063, %v5047
        %v6472 = vpack.c.b16 %v5064, %v5048
        %v6473 = vpack.c.b16 %v5065, %v5049
        %v6474 = vpack.c.b16 %v5066, %v5050
        %v6475 = vpack.c.b16 %v5067, %v5051
        %v6476 = vpack.c.b16 %v5084, %v5068
        %v6477 = vpack.c.b16 %v5085, %v5069
        %v6478 = vpack.c.b16 %v5086, %v5070
        %v6479 = vpack.c.b16 %v5087, %v5071
        %v6480 = vpack.c.b16 %v5088, %v5072
        %v6481 = vpack.c.b16 %v5089, %v5073
        %v6482 = vpack.c.b16 %v5090, %v5074
        %v6483 = vpack.c.b16 %v5091, %v5075
        %v6484 = vpack.c.b16 %v5092, %v5076
        %v6485 = vpack.c.b16 %v5093, %v5077
        %v6486 = vpack.c.b16 %v5094, %v5078
        %v6487 = vpack.c.b16 %v5095, %v5079
        %v6488 = vpack.c.b16 %v5096, %v5080
        %v6489 = vpack.c.b16 %v5097, %v5081
        %v6490 = vpack.c.b16 %v5098, %v5082
        %v6491 = vpack.c.b16 %v5099, %v5083
        %v6492 = vpack.c.b16 %v5116, %v5100
        %v6493 = vpack.c.b16 %v5117, %v5101
        %v6494 = vpack.c.b16 %v5118, %v5102
        %v6495 = vpack.c.b16 %v5119, %v5103
        %v6496 = vpack.c.b16 %v5120, %v5104
        %v6497 = vpack.c.b16 %v5121, %v5105
        %v6498 = vpack.c.b16 %v5122, %v5106
        %v6499 = vpack.c.b16 %v5123, %v5107
        %v6500 = vpack.c.b16 %v5124, %v5108
        %v6501 = vpack.c.b16 %v5125, %v5109
        %v6502 = vpack.c.b16 %v5126, %v5110
        %v6503 = vpack.c.b16 %v5127, %v5111
        %v6504 = vpack.c.b16 %v5128, %v5112
        %v6505 = vpack.c.b16 %v5129, %v5113
        %v6506 = vpack.c.b16 %v5130, %v5114
        %v6507 = vpack.c.b16 %v5131, %v5115
        %v6508 = vpack.c.b16 %v5148, %v5132
        %v6509 = vpack.c.b16 %v5149, %v5133
        %v6510 = vpack.c.b16 %v5150, %v5134
        %v6511 = vpack.c.b16 %v5151, %v5135
        %v6512 = vpack.c.b16 %v5152, %v5136
        %v6513 = vpack.c.b16 %v5153, %v5137
        %v6514 = vpack.c.b16 %v5154, %v5138
        %v6515 = vpack.c.b16 %v5155, %v5139
        %v6516 = vpack.c.b16 %v5156, %v5140
        %v6517 = vpack.c.b16 %v5157, %v5141
        %v6518 = vpack.c.b16 %v5158, %v5142
        %v6519 = vpack.c.b16 %v5159, %v5143
        %v6520 = vpack.c.b16 %v5160, %v5144
        %v6521 = vpack.c.b16 %v5161, %v5145
        %v6522 = vpack.c.b16 %v5162, %v5146
        %v6523 = vpack.c.b16 %v5163, %v5147
        %v6524 = vpack.c.b16 %v5180, %v5164
        %v6525 = vpack.c.b16 %v5181, %v5165
        %v6526 = vpack.c.b16 %v5182, %v5166
        %v6527 = vpack.c.b16 %v5183, %v5167
        %v6528 = vpack.c.b16 %v5184, %v5168
        %v6529 = vpack.c.b16 %v5185, %v5169
        %v6530 = vpack.c.b16 %v5186, %v5170
        %v6531 = vpack.c.b16 %v5187, %v5171
        %v6532 = vpack.c.b16 %v5188, %v5172
        %v6533 = vpack.c.b16 %v5189, %v5173
        %v6534 = vpack.c.b16 %v5190, %v5174
        %v6535 = vpack.c.b16 %v5191, %v5175
        %v6536 = vpack.c.b16 %v5192, %v5176
        %v6537 = vpack.c.b16 %v5193, %v5177
        %v6538 = vpack.c.b16 %v5194, %v5178
        %v6539 = vpack.c.b16 %v5195, %v5179
        %v6540 = vpack.c.b16 %v5212, %v5196
        %v6541 = vpack.c.b16 %v5213, %v5197
        %v6542 = vpack.c.b16 %v5214, %v5198
        %v6543 = vpack.c.b16 %v5215, %v5199
        %v6544 = vpack.c.b16 %v5216, %v5200
        %v6545 = vpack.c.b16 %v5217, %v5201
        %v6546 = vpack.c.b16 %v5218, %v5202
        %v6547 = vpack.c.b16 %v5219, %v5203
        %v6548 = vpack.c.b16 %v5220, %v5204
        %v6549 = vpack.c.b16 %v5221, %v5205
        %v6550 = vpack.c.b16 %v5222, %v5206
        %v6551 = vpack.c.b16 %v5223, %v5207
        %v6552 = vpack.c.b16 %v5224, %v5208
        %v6553 = vpack.c.b16 %v5225, %v5209
        %v6554 = vpack.c.b16 %v5226, %v5210
        %v6555 = vpack.c.b16 %v5227, %v5211
        %v6556 = vpack.c.b16 %v5244, %v5228
        %v6557 = vpack.c.b16 %v5245, %v5229
        %v6558 = vpack.c.b16 %v5246, %v5230
        %v6559 = vpack.c.b16 %v5247, %v5231
        %v6560 = vpack.c.b16 %v5248, %v5232
        %v6561 = vpack.c.b16 %v5249, %v5233
        %v6562 = vpack.c.b16 %v5250, %v5234
        %v6563 = vpack.c.b16 %v5251, %v5235
        %v6564 = vpack.c.b16 %v5252, %v5236
        %v6565 = vpack.c.b16 %v5253, %v5237
        %v6566 = vpack.c.b16 %v5254, %v5238
        %v6567 = vpack.c.b16 %v5255, %v5239
        %v6568 = vpack.c.b16 %v5256, %v5240
        %v6569 = vpack.c.b16 %v5257, %v5241
        %v6570 = vpack.c.b16 %v5258, %v5242
        %v6571 = vpack.c.b16 %v5259, %v5243
        %v6572 = vpack.c.b16 %v5276, %v5260
        %v6573 = vpack.c.b16 %v5277, %v5261
        %v6574 = vpack.c.b16 %v5278, %v5262
        %v6575 = vpack.c.b16 %v5279, %v5263
        %v6576 = vpack.c.b16 %v5280, %v5264
        %v6577 = vpack.c.b16 %v5281, %v5265
        %v6578 = vpack.c.b16 %v5282, %v5266
        %v6579 = vpack.c.b16 %v5283, %v5267
        %v6580 = vpack.c.b16 %v5284, %v5268
        %v6581 = vpack.c.b16 %v5285, %v5269
        %v6582 = vpack.c.b16 %v5286, %v5270
        %v6583 = vpack.c.b16 %v5287, %v5271
        %v6584 = vpack.c.b16 %v5288, %v5272
        %v6585 = vpack.c.b16 %v5289, %v5273
        %v6586 = vpack.c.b16 %v5290, %v5274
        %v6587 = vpack.c.b16 %v5291, %v5275
        %v6588 = vpack.c.b16 %v5308, %v5292
        %v6589 = vpack.c.b16 %v5309, %v5293
        %v6590 = vpack.c.b16 %v5310, %v5294
        %v6591 = vpack.c.b16 %v5311, %v5295
        %v6592 = vpack.c.b16 %v5312, %v5296
        %v6593 = vpack.c.b16 %v5313, %v5297
        %v6594 = vpack.c.b16 %v5314, %v5298
        %v6595 = vpack.c.b16 %v5315, %v5299
        %v6596 = vpack.c.b16 %v5316, %v5300
        %v6597 = vpack.c.b16 %v5317, %v5301
        %v6598 = vpack.c.b16 %v5318, %v5302
        %v6599 = vpack.c.b16 %v5319, %v5303
        %v6600 = vpack.c.b16 %v5320, %v5304
        %v6601 = vpack.c.b16 %v5321, %v5305
        %v6602 = vpack.c.b16 %v5322, %v5306
        %v6603 = vpack.c.b16 %v5323, %v5307
        %v6604 = vpack.c.b16 %v5340, %v5324
        %v6605 = vpack.c.b16 %v5341, %v5325
        %v6606 = vpack.c.b16 %v5342, %v5326
        %v6607 = vpack.c.b16 %v5343, %v5327
        %v6608 = vpack.c.b16 %v5344, %v5328
        %v6609 = vpack.c.b16 %v5345, %v5329
        %v6610 = vpack.c.b16 %v5346, %v5330
        %v6611 = vpack.c.b16 %v5347, %v5331
        %v6612 = vpack.c.b16 %v5348, %v5332
        %v6613 = vpack.c.b16 %v5349, %v5333
        %v6614 = vpack.c.b16 %v5350, %v5334
        %v6615 = vpack.c.b16 %v5351, %v5335
        %v6616 = vpack.c.b16 %v5352, %v5336
        %v6617 = vpack.c.b16 %v5353, %v5337
        %v6618 = vpack.c.b16 %v5354, %v5338
        %v6619 = vpack.c.b16 %v5355, %v5339
        %v6620 = vpack.c.b16 %v5372, %v5356
        %v6621 = vpack.c.b16 %v5373, %v5357
        %v6622 = vpack.c.b16 %v5374, %v5358
        %v6623 = vpack.c.b16 %v5375, %v5359
        %v6624 = vpack.c.b16 %v5376, %v5360
        %v6625 = vpack.c.b16 %v5377, %v5361
        %v6626 = vpack.c.b16 %v5378, %v5362
        %v6627 = vpack.c.b16 %v5379, %v5363
        %v6628 = vpack.c.b16 %v5380, %v5364
        %v6629 = vpack.c.b16 %v5381, %v5365
        %v6630 = vpack.c.b16 %v5382, %v5366
        %v6631 = vpack.c.b16 %v5383, %v5367
        %v6632 = vpack.c.b16 %v5384, %v5368
        %v6633 = vpack.c.b16 %v5385, %v5369
        %v6634 = vpack.c.b16 %v5386, %v5370
        %v6635 = vpack.c.b16 %v5387, %v5371
        %v6636 = vpack.c.b16 %v5404, %v5388
        %v6637 = vpack.c.b16 %v5405, %v5389
        %v6638 = vpack.c.b16 %v5406, %v5390
        %v6639 = vpack.c.b16 %v5407, %v5391
        %v6640 = vpack.c.b16 %v5408, %v5392
        %v6641 = vpack.c.b16 %v5409, %v5393
        %v6642 = vpack.c.b16 %v5410, %v5394
        %v6643 = vpack.c.b16 %v5411, %v5395
        %v6644 = vpack.c.b16 %v5412, %v5396
        %v6645 = vpack.c.b16 %v5413, %v5397
        %v6646 = vpack.c.b16 %v5414, %v5398
        %v6647 = vpack.c.b16 %v5415, %v5399
        %v6648 = vpack.c.b16 %v5416, %v5400
        %v6649 = vpack.c.b16 %v5417, %v5401
        %v6650 = vpack.c.b16 %v5418, %v5402
        %v6651 = vpack.c.b16 %v5419, %v5403
        %v6652 = vpack.c.b16 %v5436, %v5420
        %v6653 = vpack.c.b16 %v5437, %v5421
        %v6654 = vpack.c.b16 %v5438, %v5422
        %v6655 = vpack.c.b16 %v5439, %v5423
        %v6656 = vpack.c.b16 %v5440, %v5424
        %v6657 = vpack.c.b16 %v5441, %v5425
        %v6658 = vpack.c.b16 %v5442, %v5426
        %v6659 = vpack.c.b16 %v5443, %v5427
        %v6660 = vpack.c.b16 %v5444, %v5428
        %v6661 = vpack.c.b16 %v5445, %v5429
        %v6662 = vpack.c.b16 %v5446, %v5430
        %v6663 = vpack.c.b16 %v5447, %v5431
        %v6664 = vpack.c.b16 %v5448, %v5432
        %v6665 = vpack.c.b16 %v5449, %v5433
        %v6666 = vpack.c.b16 %v5450, %v5434
        %v6667 = vpack.c.b16 %v5451, %v5435
        %v6668 = vpack.c.b16 %v5468, %v5452
        %v6669 = vpack.c.b16 %v5469, %v5453
        %v6670 = vpack.c.b16 %v5470, %v5454
        %v6671 = vpack.c.b16 %v5471, %v5455
        %v6672 = vpack.c.b16 %v5472, %v5456
        %v6673 = vpack.c.b16 %v5473, %v5457
        %v6674 = vpack.c.b16 %v5474, %v5458
        %v6675 = vpack.c.b16 %v5475, %v5459
        %v6676 = vpack.c.b16 %v5476, %v5460
        %v6677 = vpack.c.b16 %v5477, %v5461
        %v6678 = vpack.c.b16 %v5478, %v5462
        %v6679 = vpack.c.b16 %v5479, %v5463
        %v6680 = vpack.c.b16 %v5480, %v5464
        %v6681 = vpack.c.b16 %v5481, %v5465
        %v6682 = vpack.c.b16 %v5482, %v5466
        %v6683 = vpack.c.b16 %v5483, %v5467
        %v6684 = vpack.c.b16 %v5500, %v5484
        %v6685 = vpack.c.b16 %v5501, %v5485
        %v6686 = vpack.c.b16 %v5502, %v5486
        %v6687 = vpack.c.b16 %v5503, %v5487
        %v6688 = vpack.c.b16 %v5504, %v5488
        %v6689 = vpack.c.b16 %v5505, %v5489
        %v6690 = vpack.c.b16 %v5506, %v5490
        %v6691 = vpack.c.b16 %v5507, %v5491
        %v6692 = vpack.c.b16 %v5508, %v5492
        %v6693 = vpack.c.b16 %v5509, %v5493
        %v6694 = vpack.c.b16 %v5510, %v5494
        %v6695 = vpack.c.b16 %v5511, %v5495
        %v6696 = vpack.c.b16 %v5512, %v5496
        %v6697 = vpack.c.b16 %v5513, %v5497
        %v6698 = vpack.c.b16 %v5514, %v5498
        %v6699 = vpack.c.b16 %v5515, %v5499
        %v6700 = vpack.c.b16 %v5532, %v5516
        %v6701 = vpack.c.b16 %v5533, %v5517
        %v6702 = vpack.c.b16 %v5534, %v5518
        %v6703 = vpack.c.b16 %v5535, %v5519
        %v6704 = vpack.c.b16 %v5536, %v5520
        %v6705 = vpack.c.b16 %v5537, %v5521
        %v6706 = vpack.c.b16 %v5538, %v5522
        %v6707 = vpack.c.b16 %v5539, %v5523
        %v6708 = vpack.c.b16 %v5540, %v5524
        %v6709 = vpack.c.b16 %v5541, %v5525
        %v6710 = vpack.c.b16 %v5542, %v5526
        %v6711 = vpack.c.b16 %v5543, %v5527
        %v6712 = vpack.c.b16 %v5544, %v5528
        %v6713 = vpack.c.b16 %v5545, %v5529
        %v6714 = vpack.c.b16 %v5546, %v5530
        %v6715 = vpack.c.b16 %v5547, %v5531
        %v6716 = vpack.c.b16 %v5564, %v5548
        %v6717 = vpack.c.b16 %v5565, %v5549
        %v6718 = vpack.c.b16 %v5566, %v5550
        %v6719 = vpack.c.b16 %v5567, %v5551
        %v6720 = vpack.c.b16 %v5568, %v5552
        %v6721 = vpack.c.b16 %v5569, %v5553
        %v6722 = vpack.c.b16 %v5570, %v5554
        %v6723 = vpack.c.b16 %v5571, %v5555
        %v6724 = vpack.c.b16 %v5572, %v5556
        %v6725 = vpack.c.b16 %v5573, %v5557
        %v6726 = vpack.c.b16 %v5574, %v5558
        %v6727 = vpack.c.b16 %v5575, %v5559
        %v6728 = vpack.c.b16 %v5576, %v5560
        %v6729 = vpack.c.b16 %v5577, %v5561
        %v6730 = vpack.c.b16 %v5578, %v5562
        %v6731 = vpack.c.b16 %v5579, %v5563
        %v6732 = vpack.c.b16 %v5596, %v5580
        %v6733 = vpack.c.b16 %v5597, %v5581
        %v6734 = vpack.c.b16 %v5598, %v5582
        %v6735 = vpack.c.b16 %v5599, %v5583
        %v6736 = vpack.c.b16 %v5600, %v5584
        %v6737 = vpack.c.b16 %v5601, %v5585
        %v6738 = vpack.c.b16 %v5602, %v5586
        %v6739 = vpack.c.b16 %v5603, %v5587
        %v6740 = vpack.c.b16 %v5604, %v5588
        %v6741 = vpack.c.b16 %v5605, %v5589
        %v6742 = vpack.c.b16 %v5606, %v5590
        %v6743 = vpack.c.b16 %v5607, %v5591
        %v6744 = vpack.c.b16 %v5608, %v5592
        %v6745 = vpack.c.b16 %v5609, %v5593
        %v6746 = vpack.c.b16 %v5610, %v5594
        %v6747 = vpack.c.b16 %v5611, %v5595
        %v6748 = vpack.c.b16 %v5628, %v5612
        %v6749 = vpack.c.b16 %v5629, %v5613
        %v6750 = vpack.c.b16 %v5630, %v5614
        %v6751 = vpack.c.b16 %v5631, %v5615
        %v6752 = vpack.c.b16 %v5632, %v5616
        %v6753 = vpack.c.b16 %v5633, %v5617
        %v6754 = vpack.c.b16 %v5634, %v5618
        %v6755 = vpack.c.b16 %v5635, %v5619
        %v6756 = vpack.c.b16 %v5636, %v5620
        %v6757 = vpack.c.b16 %v5637, %v5621
        %v6758 = vpack.c.b16 %v5638, %v5622
        %v6759 = vpack.c.b16 %v5639, %v5623
        %v6760 = vpack.c.b16 %v5640, %v5624
        %v6761 = vpack.c.b16 %v5641, %v5625
        %v6762 = vpack.c.b16 %v5642, %v5626
        %v6763 = vpack.c.b16 %v5643, %v5627
        %v6764 = vpack.c.b16 %v5660, %v5644
        %v6765 = vpack.c.b16 %v5661, %v5645
        %v6766 = vpack.c.b16 %v5662, %v5646
        %v6767 = vpack.c.b16 %v5663, %v5647
        %v6768 = vpack.c.b16 %v5664, %v5648
        %v6769 = vpack.c.b16 %v5665, %v5649
        %v6770 = vpack.c.b16 %v5666, %v5650
        %v6771 = vpack.c.b16 %v5667, %v5651
        %v6772 = vpack.c.b16 %v5668, %v5652
        %v6773 = vpack.c.b16 %v5669, %v5653
        %v6774 = vpack.c.b16 %v5670, %v5654
        %v6775 = vpack.c.b16 %v5671, %v5655
        %v6776 = vpack.c.b16 %v5672, %v5656
        %v6777 = vpack.c.b16 %v5673, %v5657
        %v6778 = vpack.c.b16 %v5674, %v5658
        %v6779 = vpack.c.b16 %v5675, %v5659
        %v6780 = vpack.c.b16 %v5692, %v5676
        %v6781 = vpack.c.b16 %v5693, %v5677
        %v6782 = vpack.c.b16 %v5694, %v5678
        %v6783 = vpack.c.b16 %v5695, %v5679
        %v6784 = vpack.c.b16 %v5696, %v5680
        %v6785 = vpack.c.b16 %v5697, %v5681
        %v6786 = vpack.c.b16 %v5698, %v5682
        %v6787 = vpack.c.b16 %v5699, %v5683
        %v6788 = vpack.c.b16 %v5700, %v5684
        %v6789 = vpack.c.b16 %v5701, %v5685
        %v6790 = vpack.c.b16 %v5702, %v5686
        %v6791 = vpack.c.b16 %v5703, %v5687
        %v6792 = vpack.c.b16 %v5704, %v5688
        %v6793 = vpack.c.b16 %v5705, %v5689
        %v6794 = vpack.c.b16 %v5706, %v5690
        %v6795 = vpack.c.b16 %v5707, %v5691
        %v6796 = vpack.c.b16 %v5724, %v5708
        %v6797 = vpack.c.b16 %v5725, %v5709
        %v6798 = vpack.c.b16 %v5726, %v5710
        %v6799 = vpack.c.b16 %v5727, %v5711
        %v6800 = vpack.c.b16 %v5728, %v5712
        %v6801 = vpack.c.b16 %v5729, %v5713
        %v6802 = vpack.c.b16 %v5730, %v5714
        %v6803 = vpack.c.b16 %v5731, %v5715
        %v6804 = vpack.c.b16 %v5732, %v5716
        %v6805 = vpack.c.b16 %v5733, %v5717
        %v6806 = vpack.c.b16 %v5734, %v5718
        %v6807 = vpack.c.b16 %v5735, %v5719
        %v6808 = vpack.c.b16 %v5736, %v5720
        %v6809 = vpack.c.b16 %v5737, %v5721
        %v6810 = vpack.c.b16 %v5738, %v5722
        %v6811 = vpack.c.b16 %v5739, %v5723
        %v6812 = vpack.c.b16 %v5756, %v5740
        %v6813 = vpack.c.b16 %v5757, %v5741
        %v6814 = vpack.c.b16 %v5758, %v5742
        %v6815 = vpack.c.b16 %v5759, %v5743
        %v6816 = vpack.c.b16 %v5760, %v5744
        %v6817 = vpack.c.b16 %v5761, %v5745
        %v6818 = vpack.c.b16 %v5762, %v5746
        %v6819 = vpack.c.b16 %v5763, %v5747
        %v6820 = vpack.c.b16 %v5764, %v5748
        %v6821 = vpack.c.b16 %v5765, %v5749
        %v6822 = vpack.c.b16 %v5766, %v5750
        %v6823 = vpack.c.b16 %v5767, %v5751
        %v6824 = vpack.c.b16 %v5768, %v5752
        %v6825 = vpack.c.b16 %v5769, %v5753
        %v6826 = vpack.c.b16 %v5770, %v5754
        %v6827 = vpack.c.b16 %v5771, %v5755
        %v6828 = vpack.c.b16 %v5788, %v5772
        %v6829 = vpack.c.b16 %v5789, %v5773
        %v6830 = vpack.c.b16 %v5790, %v5774
        %v6831 = vpack.c.b16 %v5791, %v5775
        %v6832 = vpack.c.b16 %v5792, %v5776
        %v6833 = vpack.c.b16 %v5793, %v5777
        %v6834 = vpack.c.b16 %v5794, %v5778
        %v6835 = vpack.c.b16 %v5795, %v5779
        %v6836 = vpack.c.b16 %v5796, %v5780
        %v6837 = vpack.c.b16 %v5797, %v5781
        %v6838 = vpack.c.b16 %v5798, %v5782
        %v6839 = vpack.c.b16 %v5799, %v5783
        %v6840 = vpack.c.b16 %v5800, %v5784
        %v6841 = vpack.c.b16 %v5801, %v5785
        %v6842 = vpack.c.b16 %v5802, %v5786
        %v6843 = vpack.c.b16 %v5803, %v5787
        %v6844 = vpack.c.b16 %v5820, %v5804
        %v6845 = vpack.c.b16 %v5821, %v5805
        %v6846 = vpack.c.b16 %v5822, %v5806
        %v6847 = vpack.c.b16 %v5823, %v5807
        %v6848 = vpack.c.b16 %v5824, %v5808
        %v6849 = vpack.c.b16 %v5825, %v5809
        %v6850 = vpack.c.b16 %v5826, %v5810
        %v6851 = vpack.c.b16 %v5827, %v5811
        %v6852 = vpack.c.b16 %v5828, %v5812
        %v6853 = vpack.c.b16 %v5829, %v5813
        %v6854 = vpack.c.b16 %v5830, %v5814
        %v6855 = vpack.c.b16 %v5831, %v5815
        %v6856 = vpack.c.b16 %v5832, %v5816
        %v6857 = vpack.c.b16 %v5833, %v5817
        %v6858 = vpack.c.b16 %v5834, %v5818
        %v6859 = vpack.c.b16 %v5835, %v5819
        %7884 = vmatpush.bf16.msra.mxu0 %v5948
        %7885 = vmatpush.bf16.msra.mxu0 %v5932
        %7886 = vmatpush.bf16.msra.mxu0 %v5916
        %7887 = vmatpush.bf16.msra.mxu0 %v5900
        %7888 = vmatpush.bf16.msra.mxu0 %v5884
        %7889 = vmatpush.bf16.msra.mxu0 %v5868
        %7890 = vmatpush.bf16.msra.mxu0 %v5852
        %7891 = vmatpush.bf16.msra.mxu0 %v5836
        %7892 = vmatmul.bf16.gmra.mxu0 %v2748
        %v7893 = vpop.f32.mrf.mxu0
        %v7894 = vadd.f32 %v2510, %v7893
        %v7895 = vpop.f32.mrf.mxu0
        %v7896 = vadd.f32 %v2512, %v7895
        %7897 = vdwg.mxu0
        %7898 = vmatpush.bf16.msra.mxu0 %v6076
        %7899 = vmatpush.bf16.msra.mxu0 %v6060
        %7900 = vmatpush.bf16.msra.mxu0 %v6044
        %7901 = vmatpush.bf16.msra.mxu0 %v6028
        %7902 = vmatpush.bf16.msra.mxu0 %v6012
        %7903 = vmatpush.bf16.msra.mxu0 %v5996
        %7904 = vmatpush.bf16.msra.mxu0 %v5980
        %7905 = vmatpush.bf16.msra.mxu0 %v5964
        %7906 = vmatmul.bf16.gmra.mxu0 %v2749
        %v7907 = vpop.f32.mrf.mxu0
        %v7908 = vadd.f32 %v7894, %v7907
        %v7909 = vpop.f32.mrf.mxu0
        %v7910 = vadd.f32 %v7896, %v7909
        %7911 = vdwg.mxu0
        %7912 = vmatpush.bf16.msra.mxu0 %v6204
        %7913 = vmatpush.bf16.msra.mxu0 %v6188
        %7914 = vmatpush.bf16.msra.mxu0 %v6172
        %7915 = vmatpush.bf16.msra.mxu0 %v6156
        %7916 = vmatpush.bf16.msra.mxu0 %v6140
        %7917 = vmatpush.bf16.msra.mxu0 %v6124
        %7918 = vmatpush.bf16.msra.mxu0 %v6108
        %7919 = vmatpush.bf16.msra.mxu0 %v6092
        %7920 = vmatmul.bf16.gmra.mxu0 %v2750
        %v7921 = vpop.f32.mrf.mxu0
        %v7922 = vadd.f32 %v7908, %v7921
        %v7923 = vpop.f32.mrf.mxu0
        %v7924 = vadd.f32 %v7910, %v7923
        %7925 = vdwg.mxu0
        %7926 = vmatpush.bf16.msra.mxu0 %v6332
        %7927 = vmatpush.bf16.msra.mxu0 %v6316
        %7928 = vmatpush.bf16.msra.mxu0 %v6300
        %7929 = vmatpush.bf16.msra.mxu0 %v6284
        %7930 = vmatpush.bf16.msra.mxu0 %v6268
        %7931 = vmatpush.bf16.msra.mxu0 %v6252
        %7932 = vmatpush.bf16.msra.mxu0 %v6236
        %7933 = vmatpush.bf16.msra.mxu0 %v6220
        %7934 = vmatmul.bf16.gmra.mxu0 %v2751
        %v7935 = vpop.f32.mrf.mxu0
        %v7936 = vadd.f32 %v7922, %v7935
        %v7937 = vpop.f32.mrf.mxu0
        %v7938 = vadd.f32 %v7924, %v7937
        %7939 = vdwg.mxu0
        %7940 = vmatpush.bf16.msra.mxu0 %v6460
        %7941 = vmatpush.bf16.msra.mxu0 %v6444
        %7942 = vmatpush.bf16.msra.mxu0 %v6428
        %7943 = vmatpush.bf16.msra.mxu0 %v6412
        %7944 = vmatpush.bf16.msra.mxu0 %v6396
        %7945 = vmatpush.bf16.msra.mxu0 %v6380
        %7946 = vmatpush.bf16.msra.mxu0 %v6364
        %7947 = vmatpush.bf16.msra.mxu0 %v6348
        %7948 = vmatmul.bf16.gmra.mxu0 %v2752
        %v7949 = vpop.f32.mrf.mxu0
        %v7950 = vadd.f32 %v7936, %v7949
        %v7951 = vpop.f32.mrf.mxu0
        %v7952 = vadd.f32 %v7938, %v7951
        %7953 = vdwg.mxu0
        %7954 = vmatpush.bf16.msra.mxu0 %v6588
        %7955 = vmatpush.bf16.msra.mxu0 %v6572
        %7956 = vmatpush.bf16.msra.mxu0 %v6556
        %7957 = vmatpush.bf16.msra.mxu0 %v6540
        %7958 = vmatpush.bf16.msra.mxu0 %v6524
        %7959 = vmatpush.bf16.msra.mxu0 %v6508
        %7960 = vmatpush.bf16.msra.mxu0 %v6492
        %7961 = vmatpush.bf16.msra.mxu0 %v6476
        %7962 = vmatmul.bf16.gmra.mxu0 %v2753
        %v7963 = vpop.f32.mrf.mxu0
        %v7964 = vadd.f32 %v7950, %v7963
        %v7965 = vpop.f32.mrf.mxu0
        %v7966 = vadd.f32 %v7952, %v7965
        %7967 = vdwg.mxu0
        %7968 = vmatpush.bf16.msra.mxu0 %v6716
        %7969 = vmatpush.bf16.msra.mxu0 %v6700
        %7970 = vmatpush.bf16.msra.mxu0 %v6684
        %7971 = vmatpush.bf16.msra.mxu0 %v6668
        %7972 = vmatpush.bf16.msra.mxu0 %v6652
        %7973 = vmatpush.bf16.msra.mxu0 %v6636
        %7974 = vmatpush.bf16.msra.mxu0 %v6620
        %7975 = vmatpush.bf16.msra.mxu0 %v6604
        %7976 = vmatmul.bf16.gmra.mxu0 %v2754
        %v7977 = vpop.f32.mrf.mxu0
        %v7978 = vadd.f32 %v7964, %v7977
        %v7979 = vpop.f32.mrf.mxu0
        %v7980 = vadd.f32 %v7966, %v7979
        %7981 = vdwg.mxu0
        %7982 = vmatpush.bf16.msra.mxu0 %v6844
        %7983 = vmatpush.bf16.msra.mxu0 %v6828
        %7984 = vmatpush.bf16.msra.mxu0 %v6812
        %7985 = vmatpush.bf16.msra.mxu0 %v6796
        %7986 = vmatpush.bf16.msra.mxu0 %v6780
        %7987 = vmatpush.bf16.msra.mxu0 %v6764
        %7988 = vmatpush.bf16.msra.mxu0 %v6748
        %7989 = vmatpush.bf16.msra.mxu0 %v6732
        %7990 = vmatmul.bf16.gmra.mxu0 %v2755
        %v7991 = vpop.f32.mrf.mxu0
        %v7992 = vadd.f32 %v7978, %v7991
        %v7993 = vpop.f32.mrf.mxu0
        %v7994 = vadd.f32 %v7980, %v7993
        %7995 = vdwg.mxu0
        %7996 = vmatpush.bf16.msra.mxu0 %v5949
        %7997 = vmatpush.bf16.msra.mxu0 %v5933
        %7998 = vmatpush.bf16.msra.mxu0 %v5917
        %7999 = vmatpush.bf16.msra.mxu0 %v5901
        %8000 = vmatpush.bf16.msra.mxu0 %v5885
        %8001 = vmatpush.bf16.msra.mxu0 %v5869
        %8002 = vmatpush.bf16.msra.mxu0 %v5853
        %8003 = vmatpush.bf16.msra.mxu0 %v5837
        %8004 = vmatmul.bf16.gmra.mxu0 %v2748
        %v8005 = vpop.f32.mrf.mxu0
        %v8006 = vadd.f32 %v2524, %v8005
        %v8007 = vpop.f32.mrf.mxu0
        %v8008 = vadd.f32 %v2526, %v8007
        %8009 = vdwg.mxu0
        %8010 = vmatpush.bf16.msra.mxu0 %v6077
        %8011 = vmatpush.bf16.msra.mxu0 %v6061
        %8012 = vmatpush.bf16.msra.mxu0 %v6045
        %8013 = vmatpush.bf16.msra.mxu0 %v6029
        %8014 = vmatpush.bf16.msra.mxu0 %v6013
        %8015 = vmatpush.bf16.msra.mxu0 %v5997
        %8016 = vmatpush.bf16.msra.mxu0 %v5981
        %8017 = vmatpush.bf16.msra.mxu0 %v5965
        %8018 = vmatmul.bf16.gmra.mxu0 %v2749
        %v8019 = vpop.f32.mrf.mxu0
        %v8020 = vadd.f32 %v8006, %v8019
        %v8021 = vpop.f32.mrf.mxu0
        %v8022 = vadd.f32 %v8008, %v8021
        %8023 = vdwg.mxu0
        %8024 = vmatpush.bf16.msra.mxu0 %v6205
        %8025 = vmatpush.bf16.msra.mxu0 %v6189
        %8026 = vmatpush.bf16.msra.mxu0 %v6173
        %8027 = vmatpush.bf16.msra.mxu0 %v6157
        %8028 = vmatpush.bf16.msra.mxu0 %v6141
        %8029 = vmatpush.bf16.msra.mxu0 %v6125
        %8030 = vmatpush.bf16.msra.mxu0 %v6109
        %8031 = vmatpush.bf16.msra.mxu0 %v6093
        %8032 = vmatmul.bf16.gmra.mxu0 %v2750
        %v8033 = vpop.f32.mrf.mxu0
        %v8034 = vadd.f32 %v8020, %v8033
        %v8035 = vpop.f32.mrf.mxu0
        %v8036 = vadd.f32 %v8022, %v8035
        %8037 = vdwg.mxu0
        %8038 = vmatpush.bf16.msra.mxu0 %v6333
        %8039 = vmatpush.bf16.msra.mxu0 %v6317
        %8040 = vmatpush.bf16.msra.mxu0 %v6301
        %8041 = vmatpush.bf16.msra.mxu0 %v6285
        %8042 = vmatpush.bf16.msra.mxu0 %v6269
        %8043 = vmatpush.bf16.msra.mxu0 %v6253
        %8044 = vmatpush.bf16.msra.mxu0 %v6237
        %8045 = vmatpush.bf16.msra.mxu0 %v6221
        %8046 = vmatmul.bf16.gmra.mxu0 %v2751
        %v8047 = vpop.f32.mrf.mxu0
        %v8048 = vadd.f32 %v8034, %v8047
        %v8049 = vpop.f32.mrf.mxu0
        %v8050 = vadd.f32 %v8036, %v8049
        %8051 = vdwg.mxu0
        %8052 = vmatpush.bf16.msra.mxu0 %v6461
        %8053 = vmatpush.bf16.msra.mxu0 %v6445
        %8054 = vmatpush.bf16.msra.mxu0 %v6429
        %8055 = vmatpush.bf16.msra.mxu0 %v6413
        %8056 = vmatpush.bf16.msra.mxu0 %v6397
        %8057 = vmatpush.bf16.msra.mxu0 %v6381
        %8058 = vmatpush.bf16.msra.mxu0 %v6365
        %8059 = vmatpush.bf16.msra.mxu0 %v6349
        %8060 = vmatmul.bf16.gmra.mxu0 %v2752
        %v8061 = vpop.f32.mrf.mxu0
        %v8062 = vadd.f32 %v8048, %v8061
        %v8063 = vpop.f32.mrf.mxu0
        %v8064 = vadd.f32 %v8050, %v8063
        %8065 = vdwg.mxu0
        %8066 = vmatpush.bf16.msra.mxu0 %v6589
        %8067 = vmatpush.bf16.msra.mxu0 %v6573
        %8068 = vmatpush.bf16.msra.mxu0 %v6557
        %8069 = vmatpush.bf16.msra.mxu0 %v6541
        %8070 = vmatpush.bf16.msra.mxu0 %v6525
        %8071 = vmatpush.bf16.msra.mxu0 %v6509
        %8072 = vmatpush.bf16.msra.mxu0 %v6493
        %8073 = vmatpush.bf16.msra.mxu0 %v6477
        %8074 = vmatmul.bf16.gmra.mxu0 %v2753
        %v8075 = vpop.f32.mrf.mxu0
        %v8076 = vadd.f32 %v8062, %v8075
        %v8077 = vpop.f32.mrf.mxu0
        %v8078 = vadd.f32 %v8064, %v8077
        %8079 = vdwg.mxu0
        %8080 = vmatpush.bf16.msra.mxu0 %v6717
        %8081 = vmatpush.bf16.msra.mxu0 %v6701
        %8082 = vmatpush.bf16.msra.mxu0 %v6685
        %8083 = vmatpush.bf16.msra.mxu0 %v6669
        %8084 = vmatpush.bf16.msra.mxu0 %v6653
        %8085 = vmatpush.bf16.msra.mxu0 %v6637
        %8086 = vmatpush.bf16.msra.mxu0 %v6621
        %8087 = vmatpush.bf16.msra.mxu0 %v6605
        %8088 = vmatmul.bf16.gmra.mxu0 %v2754
        %v8089 = vpop.f32.mrf.mxu0
        %v8090 = vadd.f32 %v8076, %v8089
        %v8091 = vpop.f32.mrf.mxu0
        %v8092 = vadd.f32 %v8078, %v8091
        %8093 = vdwg.mxu0
        %8094 = vmatpush.bf16.msra.mxu0 %v6845
        %8095 = vmatpush.bf16.msra.mxu0 %v6829
        %8096 = vmatpush.bf16.msra.mxu0 %v6813
        %8097 = vmatpush.bf16.msra.mxu0 %v6797
        %8098 = vmatpush.bf16.msra.mxu0 %v6781
        %8099 = vmatpush.bf16.msra.mxu0 %v6765
        %8100 = vmatpush.bf16.msra.mxu0 %v6749
        %8101 = vmatpush.bf16.msra.mxu0 %v6733
        %8102 = vmatmul.bf16.gmra.mxu0 %v2755
        %v8103 = vpop.f32.mrf.mxu0
        %v8104 = vadd.f32 %v8090, %v8103
        %v8105 = vpop.f32.mrf.mxu0
        %v8106 = vadd.f32 %v8092, %v8105
        %8107 = vdwg.mxu0
        %8108 = vmatpush.bf16.msra.mxu0 %v5950
        %8109 = vmatpush.bf16.msra.mxu0 %v5934
        %8110 = vmatpush.bf16.msra.mxu0 %v5918
        %8111 = vmatpush.bf16.msra.mxu0 %v5902
        %8112 = vmatpush.bf16.msra.mxu0 %v5886
        %8113 = vmatpush.bf16.msra.mxu0 %v5870
        %8114 = vmatpush.bf16.msra.mxu0 %v5854
        %8115 = vmatpush.bf16.msra.mxu0 %v5838
        %8116 = vmatmul.bf16.gmra.mxu0 %v2748
        %v8117 = vpop.f32.mrf.mxu0
        %v8118 = vadd.f32 %v2538, %v8117
        %v8119 = vpop.f32.mrf.mxu0
        %v8120 = vadd.f32 %v2540, %v8119
        %8121 = vdwg.mxu0
        %8122 = vmatpush.bf16.msra.mxu0 %v6078
        %8123 = vmatpush.bf16.msra.mxu0 %v6062
        %8124 = vmatpush.bf16.msra.mxu0 %v6046
        %8125 = vmatpush.bf16.msra.mxu0 %v6030
        %8126 = vmatpush.bf16.msra.mxu0 %v6014
        %8127 = vmatpush.bf16.msra.mxu0 %v5998
        %8128 = vmatpush.bf16.msra.mxu0 %v5982
        %8129 = vmatpush.bf16.msra.mxu0 %v5966
        %8130 = vmatmul.bf16.gmra.mxu0 %v2749
        %v8131 = vpop.f32.mrf.mxu0
        %v8132 = vadd.f32 %v8118, %v8131
        %v8133 = vpop.f32.mrf.mxu0
        %v8134 = vadd.f32 %v8120, %v8133
        %8135 = vdwg.mxu0
        %8136 = vmatpush.bf16.msra.mxu0 %v6206
        %8137 = vmatpush.bf16.msra.mxu0 %v6190
        %8138 = vmatpush.bf16.msra.mxu0 %v6174
        %8139 = vmatpush.bf16.msra.mxu0 %v6158
        %8140 = vmatpush.bf16.msra.mxu0 %v6142
        %8141 = vmatpush.bf16.msra.mxu0 %v6126
        %8142 = vmatpush.bf16.msra.mxu0 %v6110
        %8143 = vmatpush.bf16.msra.mxu0 %v6094
        %8144 = vmatmul.bf16.gmra.mxu0 %v2750
        %v8145 = vpop.f32.mrf.mxu0
        %v8146 = vadd.f32 %v8132, %v8145
        %v8147 = vpop.f32.mrf.mxu0
        %v8148 = vadd.f32 %v8134, %v8147
        %8149 = vdwg.mxu0
        %8150 = vmatpush.bf16.msra.mxu0 %v6334
        %8151 = vmatpush.bf16.msra.mxu0 %v6318
        %8152 = vmatpush.bf16.msra.mxu0 %v6302
        %8153 = vmatpush.bf16.msra.mxu0 %v6286
        %8154 = vmatpush.bf16.msra.mxu0 %v6270
        %8155 = vmatpush.bf16.msra.mxu0 %v6254
        %8156 = vmatpush.bf16.msra.mxu0 %v6238
        %8157 = vmatpush.bf16.msra.mxu0 %v6222
        %8158 = vmatmul.bf16.gmra.mxu0 %v2751
        %v8159 = vpop.f32.mrf.mxu0
        %v8160 = vadd.f32 %v8146, %v8159
        %v8161 = vpop.f32.mrf.mxu0
        %v8162 = vadd.f32 %v8148, %v8161
        %8163 = vdwg.mxu0
        %8164 = vmatpush.bf16.msra.mxu0 %v6462
        %8165 = vmatpush.bf16.msra.mxu0 %v6446
        %8166 = vmatpush.bf16.msra.mxu0 %v6430
        %8167 = vmatpush.bf16.msra.mxu0 %v6414
        %8168 = vmatpush.bf16.msra.mxu0 %v6398
        %8169 = vmatpush.bf16.msra.mxu0 %v6382
        %8170 = vmatpush.bf16.msra.mxu0 %v6366
        %8171 = vmatpush.bf16.msra.mxu0 %v6350
        %8172 = vmatmul.bf16.gmra.mxu0 %v2752
        %v8173 = vpop.f32.mrf.mxu0
        %v8174 = vadd.f32 %v8160, %v8173
        %v8175 = vpop.f32.mrf.mxu0
        %v8176 = vadd.f32 %v8162, %v8175
        %8177 = vdwg.mxu0
        %8178 = vmatpush.bf16.msra.mxu0 %v6590
        %8179 = vmatpush.bf16.msra.mxu0 %v6574
        %8180 = vmatpush.bf16.msra.mxu0 %v6558
        %8181 = vmatpush.bf16.msra.mxu0 %v6542
        %8182 = vmatpush.bf16.msra.mxu0 %v6526
        %8183 = vmatpush.bf16.msra.mxu0 %v6510
        %8184 = vmatpush.bf16.msra.mxu0 %v6494
        %8185 = vmatpush.bf16.msra.mxu0 %v6478
        %8186 = vmatmul.bf16.gmra.mxu0 %v2753
        %v8187 = vpop.f32.mrf.mxu0
        %v8188 = vadd.f32 %v8174, %v8187
        %v8189 = vpop.f32.mrf.mxu0
        %v8190 = vadd.f32 %v8176, %v8189
        %8191 = vdwg.mxu0
        %8192 = vmatpush.bf16.msra.mxu0 %v6718
        %8193 = vmatpush.bf16.msra.mxu0 %v6702
        %8194 = vmatpush.bf16.msra.mxu0 %v6686
        %8195 = vmatpush.bf16.msra.mxu0 %v6670
        %8196 = vmatpush.bf16.msra.mxu0 %v6654
        %8197 = vmatpush.bf16.msra.mxu0 %v6638
        %8198 = vmatpush.bf16.msra.mxu0 %v6622
        %8199 = vmatpush.bf16.msra.mxu0 %v6606
        %8200 = vmatmul.bf16.gmra.mxu0 %v2754
        %v8201 = vpop.f32.mrf.mxu0
        %v8202 = vadd.f32 %v8188, %v8201
        %v8203 = vpop.f32.mrf.mxu0
        %v8204 = vadd.f32 %v8190, %v8203
        %8205 = vdwg.mxu0
        %8206 = vmatpush.bf16.msra.mxu0 %v6846
        %8207 = vmatpush.bf16.msra.mxu0 %v6830
        %8208 = vmatpush.bf16.msra.mxu0 %v6814
        %8209 = vmatpush.bf16.msra.mxu0 %v6798
        %8210 = vmatpush.bf16.msra.mxu0 %v6782
        %8211 = vmatpush.bf16.msra.mxu0 %v6766
        %8212 = vmatpush.bf16.msra.mxu0 %v6750
        %8213 = vmatpush.bf16.msra.mxu0 %v6734
        %8214 = vmatmul.bf16.gmra.mxu0 %v2755
        %v8215 = vpop.f32.mrf.mxu0
        %v8216 = vadd.f32 %v8202, %v8215
        %v8217 = vpop.f32.mrf.mxu0
        %v8218 = vadd.f32 %v8204, %v8217
        %8219 = vdwg.mxu0
        %8220 = vmatpush.bf16.msra.mxu0 %v5951
        %8221 = vmatpush.bf16.msra.mxu0 %v5935
        %8222 = vmatpush.bf16.msra.mxu0 %v5919
        %8223 = vmatpush.bf16.msra.mxu0 %v5903
        %8224 = vmatpush.bf16.msra.mxu0 %v5887
        %8225 = vmatpush.bf16.msra.mxu0 %v5871
        %8226 = vmatpush.bf16.msra.mxu0 %v5855
        %8227 = vmatpush.bf16.msra.mxu0 %v5839
        %8228 = vmatmul.bf16.gmra.mxu0 %v2748
        %v8229 = vpop.f32.mrf.mxu0
        %v8230 = vadd.f32 %v2552, %v8229
        %v8231 = vpop.f32.mrf.mxu0
        %v8232 = vadd.f32 %v2554, %v8231
        %8233 = vdwg.mxu0
        %8234 = vmatpush.bf16.msra.mxu0 %v6079
        %8235 = vmatpush.bf16.msra.mxu0 %v6063
        %8236 = vmatpush.bf16.msra.mxu0 %v6047
        %8237 = vmatpush.bf16.msra.mxu0 %v6031
        %8238 = vmatpush.bf16.msra.mxu0 %v6015
        %8239 = vmatpush.bf16.msra.mxu0 %v5999
        %8240 = vmatpush.bf16.msra.mxu0 %v5983
        %8241 = vmatpush.bf16.msra.mxu0 %v5967
        %8242 = vmatmul.bf16.gmra.mxu0 %v2749
        %v8243 = vpop.f32.mrf.mxu0
        %v8244 = vadd.f32 %v8230, %v8243
        %v8245 = vpop.f32.mrf.mxu0
        %v8246 = vadd.f32 %v8232, %v8245
        %8247 = vdwg.mxu0
        %8248 = vmatpush.bf16.msra.mxu0 %v6207
        %8249 = vmatpush.bf16.msra.mxu0 %v6191
        %8250 = vmatpush.bf16.msra.mxu0 %v6175
        %8251 = vmatpush.bf16.msra.mxu0 %v6159
        %8252 = vmatpush.bf16.msra.mxu0 %v6143
        %8253 = vmatpush.bf16.msra.mxu0 %v6127
        %8254 = vmatpush.bf16.msra.mxu0 %v6111
        %8255 = vmatpush.bf16.msra.mxu0 %v6095
        %8256 = vmatmul.bf16.gmra.mxu0 %v2750
        %v8257 = vpop.f32.mrf.mxu0
        %v8258 = vadd.f32 %v8244, %v8257
        %v8259 = vpop.f32.mrf.mxu0
        %v8260 = vadd.f32 %v8246, %v8259
        %8261 = vdwg.mxu0
        %8262 = vmatpush.bf16.msra.mxu0 %v6335
        %8263 = vmatpush.bf16.msra.mxu0 %v6319
        %8264 = vmatpush.bf16.msra.mxu0 %v6303
        %8265 = vmatpush.bf16.msra.mxu0 %v6287
        %8266 = vmatpush.bf16.msra.mxu0 %v6271
        %8267 = vmatpush.bf16.msra.mxu0 %v6255
        %8268 = vmatpush.bf16.msra.mxu0 %v6239
        %8269 = vmatpush.bf16.msra.mxu0 %v6223
        %8270 = vmatmul.bf16.gmra.mxu0 %v2751
        %v8271 = vpop.f32.mrf.mxu0
        %v8272 = vadd.f32 %v8258, %v8271
        %v8273 = vpop.f32.mrf.mxu0
        %v8274 = vadd.f32 %v8260, %v8273
        %8275 = vdwg.mxu0
        %8276 = vmatpush.bf16.msra.mxu0 %v6463
        %8277 = vmatpush.bf16.msra.mxu0 %v6447
        %8278 = vmatpush.bf16.msra.mxu0 %v6431
        %8279 = vmatpush.bf16.msra.mxu0 %v6415
        %8280 = vmatpush.bf16.msra.mxu0 %v6399
        %8281 = vmatpush.bf16.msra.mxu0 %v6383
        %8282 = vmatpush.bf16.msra.mxu0 %v6367
        %8283 = vmatpush.bf16.msra.mxu0 %v6351
        %8284 = vmatmul.bf16.gmra.mxu0 %v2752
        %v8285 = vpop.f32.mrf.mxu0
        %v8286 = vadd.f32 %v8272, %v8285
        %v8287 = vpop.f32.mrf.mxu0
        %v8288 = vadd.f32 %v8274, %v8287
        %8289 = vdwg.mxu0
        %8290 = vmatpush.bf16.msra.mxu0 %v6591
        %8291 = vmatpush.bf16.msra.mxu0 %v6575
        %8292 = vmatpush.bf16.msra.mxu0 %v6559
        %8293 = vmatpush.bf16.msra.mxu0 %v6543
        %8294 = vmatpush.bf16.msra.mxu0 %v6527
        %8295 = vmatpush.bf16.msra.mxu0 %v6511
        %8296 = vmatpush.bf16.msra.mxu0 %v6495
        %8297 = vmatpush.bf16.msra.mxu0 %v6479
        %8298 = vmatmul.bf16.gmra.mxu0 %v2753
        %v8299 = vpop.f32.mrf.mxu0
        %v8300 = vadd.f32 %v8286, %v8299
        %v8301 = vpop.f32.mrf.mxu0
        %v8302 = vadd.f32 %v8288, %v8301
        %8303 = vdwg.mxu0
        %8304 = vmatpush.bf16.msra.mxu0 %v6719
        %8305 = vmatpush.bf16.msra.mxu0 %v6703
        %8306 = vmatpush.bf16.msra.mxu0 %v6687
        %8307 = vmatpush.bf16.msra.mxu0 %v6671
        %8308 = vmatpush.bf16.msra.mxu0 %v6655
        %8309 = vmatpush.bf16.msra.mxu0 %v6639
        %8310 = vmatpush.bf16.msra.mxu0 %v6623
        %8311 = vmatpush.bf16.msra.mxu0 %v6607
        %8312 = vmatmul.bf16.gmra.mxu0 %v2754
        %v8313 = vpop.f32.mrf.mxu0
        %v8314 = vadd.f32 %v8300, %v8313
        %v8315 = vpop.f32.mrf.mxu0
        %v8316 = vadd.f32 %v8302, %v8315
        %8317 = vdwg.mxu0
        %8318 = vmatpush.bf16.msra.mxu0 %v6847
        %8319 = vmatpush.bf16.msra.mxu0 %v6831
        %8320 = vmatpush.bf16.msra.mxu0 %v6815
        %8321 = vmatpush.bf16.msra.mxu0 %v6799
        %8322 = vmatpush.bf16.msra.mxu0 %v6783
        %8323 = vmatpush.bf16.msra.mxu0 %v6767
        %8324 = vmatpush.bf16.msra.mxu0 %v6751
        %8325 = vmatpush.bf16.msra.mxu0 %v6735
        %8326 = vmatmul.bf16.gmra.mxu0 %v2755
        %v8327 = vpop.f32.mrf.mxu0
        %v8328 = vadd.f32 %v8314, %v8327
        %v8329 = vpop.f32.mrf.mxu0
        %v8330 = vadd.f32 %v8316, %v8329
        %8331 = vdwg.mxu0
        %8332 = vmatpush.bf16.msra.mxu0 %v5952
        %8333 = vmatpush.bf16.msra.mxu0 %v5936
        %8334 = vmatpush.bf16.msra.mxu0 %v5920
        %8335 = vmatpush.bf16.msra.mxu0 %v5904
        %8336 = vmatpush.bf16.msra.mxu0 %v5888
        %8337 = vmatpush.bf16.msra.mxu0 %v5872
        %8338 = vmatpush.bf16.msra.mxu0 %v5856
        %8339 = vmatpush.bf16.msra.mxu0 %v5840
        %8340 = vmatmul.bf16.gmra.mxu0 %v2748
        %v8341 = vpop.f32.mrf.mxu0
        %v8342 = vadd.f32 %v2566, %v8341
        %v8343 = vpop.f32.mrf.mxu0
        %v8344 = vadd.f32 %v2568, %v8343
        %8345 = vdwg.mxu0
        %8346 = vmatpush.bf16.msra.mxu0 %v6080
        %8347 = vmatpush.bf16.msra.mxu0 %v6064
        %8348 = vmatpush.bf16.msra.mxu0 %v6048
        %8349 = vmatpush.bf16.msra.mxu0 %v6032
        %8350 = vmatpush.bf16.msra.mxu0 %v6016
        %8351 = vmatpush.bf16.msra.mxu0 %v6000
        %8352 = vmatpush.bf16.msra.mxu0 %v5984
        %8353 = vmatpush.bf16.msra.mxu0 %v5968
        %8354 = vmatmul.bf16.gmra.mxu0 %v2749
        %v8355 = vpop.f32.mrf.mxu0
        %v8356 = vadd.f32 %v8342, %v8355
        %v8357 = vpop.f32.mrf.mxu0
        %v8358 = vadd.f32 %v8344, %v8357
        %8359 = vdwg.mxu0
        %8360 = vmatpush.bf16.msra.mxu0 %v6208
        %8361 = vmatpush.bf16.msra.mxu0 %v6192
        %8362 = vmatpush.bf16.msra.mxu0 %v6176
        %8363 = vmatpush.bf16.msra.mxu0 %v6160
        %8364 = vmatpush.bf16.msra.mxu0 %v6144
        %8365 = vmatpush.bf16.msra.mxu0 %v6128
        %8366 = vmatpush.bf16.msra.mxu0 %v6112
        %8367 = vmatpush.bf16.msra.mxu0 %v6096
        %8368 = vmatmul.bf16.gmra.mxu0 %v2750
        %v8369 = vpop.f32.mrf.mxu0
        %v8370 = vadd.f32 %v8356, %v8369
        %v8371 = vpop.f32.mrf.mxu0
        %v8372 = vadd.f32 %v8358, %v8371
        %8373 = vdwg.mxu0
        %8374 = vmatpush.bf16.msra.mxu0 %v6336
        %8375 = vmatpush.bf16.msra.mxu0 %v6320
        %8376 = vmatpush.bf16.msra.mxu0 %v6304
        %8377 = vmatpush.bf16.msra.mxu0 %v6288
        %8378 = vmatpush.bf16.msra.mxu0 %v6272
        %8379 = vmatpush.bf16.msra.mxu0 %v6256
        %8380 = vmatpush.bf16.msra.mxu0 %v6240
        %8381 = vmatpush.bf16.msra.mxu0 %v6224
        %8382 = vmatmul.bf16.gmra.mxu0 %v2751
        %v8383 = vpop.f32.mrf.mxu0
        %v8384 = vadd.f32 %v8370, %v8383
        %v8385 = vpop.f32.mrf.mxu0
        %v8386 = vadd.f32 %v8372, %v8385
        %8387 = vdwg.mxu0
        %8388 = vmatpush.bf16.msra.mxu0 %v6464
        %8389 = vmatpush.bf16.msra.mxu0 %v6448
        %8390 = vmatpush.bf16.msra.mxu0 %v6432
        %8391 = vmatpush.bf16.msra.mxu0 %v6416
        %8392 = vmatpush.bf16.msra.mxu0 %v6400
        %8393 = vmatpush.bf16.msra.mxu0 %v6384
        %8394 = vmatpush.bf16.msra.mxu0 %v6368
        %8395 = vmatpush.bf16.msra.mxu0 %v6352
        %8396 = vmatmul.bf16.gmra.mxu0 %v2752
        %v8397 = vpop.f32.mrf.mxu0
        %v8398 = vadd.f32 %v8384, %v8397
        %v8399 = vpop.f32.mrf.mxu0
        %v8400 = vadd.f32 %v8386, %v8399
        %8401 = vdwg.mxu0
        %8402 = vmatpush.bf16.msra.mxu0 %v6592
        %8403 = vmatpush.bf16.msra.mxu0 %v6576
        %8404 = vmatpush.bf16.msra.mxu0 %v6560
        %8405 = vmatpush.bf16.msra.mxu0 %v6544
        %8406 = vmatpush.bf16.msra.mxu0 %v6528
        %8407 = vmatpush.bf16.msra.mxu0 %v6512
        %8408 = vmatpush.bf16.msra.mxu0 %v6496
        %8409 = vmatpush.bf16.msra.mxu0 %v6480
        %8410 = vmatmul.bf16.gmra.mxu0 %v2753
        %v8411 = vpop.f32.mrf.mxu0
        %v8412 = vadd.f32 %v8398, %v8411
        %v8413 = vpop.f32.mrf.mxu0
        %v8414 = vadd.f32 %v8400, %v8413
        %8415 = vdwg.mxu0
        %8416 = vmatpush.bf16.msra.mxu0 %v6720
        %8417 = vmatpush.bf16.msra.mxu0 %v6704
        %8418 = vmatpush.bf16.msra.mxu0 %v6688
        %8419 = vmatpush.bf16.msra.mxu0 %v6672
        %8420 = vmatpush.bf16.msra.mxu0 %v6656
        %8421 = vmatpush.bf16.msra.mxu0 %v6640
        %8422 = vmatpush.bf16.msra.mxu0 %v6624
        %8423 = vmatpush.bf16.msra.mxu0 %v6608
        %8424 = vmatmul.bf16.gmra.mxu0 %v2754
        %v8425 = vpop.f32.mrf.mxu0
        %v8426 = vadd.f32 %v8412, %v8425
        %v8427 = vpop.f32.mrf.mxu0
        %v8428 = vadd.f32 %v8414, %v8427
        %8429 = vdwg.mxu0
        %8430 = vmatpush.bf16.msra.mxu0 %v6848
        %8431 = vmatpush.bf16.msra.mxu0 %v6832
        %8432 = vmatpush.bf16.msra.mxu0 %v6816
        %8433 = vmatpush.bf16.msra.mxu0 %v6800
        %8434 = vmatpush.bf16.msra.mxu0 %v6784
        %8435 = vmatpush.bf16.msra.mxu0 %v6768
        %8436 = vmatpush.bf16.msra.mxu0 %v6752
        %8437 = vmatpush.bf16.msra.mxu0 %v6736
        %8438 = vmatmul.bf16.gmra.mxu0 %v2755
        %v8439 = vpop.f32.mrf.mxu0
        %v8440 = vadd.f32 %v8426, %v8439
        %v8441 = vpop.f32.mrf.mxu0
        %v8442 = vadd.f32 %v8428, %v8441
        %8443 = vdwg.mxu0
        %8444 = vmatpush.bf16.msra.mxu0 %v5953
        %8445 = vmatpush.bf16.msra.mxu0 %v5937
        %8446 = vmatpush.bf16.msra.mxu0 %v5921
        %8447 = vmatpush.bf16.msra.mxu0 %v5905
        %8448 = vmatpush.bf16.msra.mxu0 %v5889
        %8449 = vmatpush.bf16.msra.mxu0 %v5873
        %8450 = vmatpush.bf16.msra.mxu0 %v5857
        %8451 = vmatpush.bf16.msra.mxu0 %v5841
        %8452 = vmatmul.bf16.gmra.mxu0 %v2748
        %v8453 = vpop.f32.mrf.mxu0
        %v8454 = vadd.f32 %v2580, %v8453
        %v8455 = vpop.f32.mrf.mxu0
        %v8456 = vadd.f32 %v2582, %v8455
        %8457 = vdwg.mxu0
        %8458 = vmatpush.bf16.msra.mxu0 %v6081
        %8459 = vmatpush.bf16.msra.mxu0 %v6065
        %8460 = vmatpush.bf16.msra.mxu0 %v6049
        %8461 = vmatpush.bf16.msra.mxu0 %v6033
        %8462 = vmatpush.bf16.msra.mxu0 %v6017
        %8463 = vmatpush.bf16.msra.mxu0 %v6001
        %8464 = vmatpush.bf16.msra.mxu0 %v5985
        %8465 = vmatpush.bf16.msra.mxu0 %v5969
        %8466 = vmatmul.bf16.gmra.mxu0 %v2749
        %v8467 = vpop.f32.mrf.mxu0
        %v8468 = vadd.f32 %v8454, %v8467
        %v8469 = vpop.f32.mrf.mxu0
        %v8470 = vadd.f32 %v8456, %v8469
        %8471 = vdwg.mxu0
        %8472 = vmatpush.bf16.msra.mxu0 %v6209
        %8473 = vmatpush.bf16.msra.mxu0 %v6193
        %8474 = vmatpush.bf16.msra.mxu0 %v6177
        %8475 = vmatpush.bf16.msra.mxu0 %v6161
        %8476 = vmatpush.bf16.msra.mxu0 %v6145
        %8477 = vmatpush.bf16.msra.mxu0 %v6129
        %8478 = vmatpush.bf16.msra.mxu0 %v6113
        %8479 = vmatpush.bf16.msra.mxu0 %v6097
        %8480 = vmatmul.bf16.gmra.mxu0 %v2750
        %v8481 = vpop.f32.mrf.mxu0
        %v8482 = vadd.f32 %v8468, %v8481
        %v8483 = vpop.f32.mrf.mxu0
        %v8484 = vadd.f32 %v8470, %v8483
        %8485 = vdwg.mxu0
        %8486 = vmatpush.bf16.msra.mxu0 %v6337
        %8487 = vmatpush.bf16.msra.mxu0 %v6321
        %8488 = vmatpush.bf16.msra.mxu0 %v6305
        %8489 = vmatpush.bf16.msra.mxu0 %v6289
        %8490 = vmatpush.bf16.msra.mxu0 %v6273
        %8491 = vmatpush.bf16.msra.mxu0 %v6257
        %8492 = vmatpush.bf16.msra.mxu0 %v6241
        %8493 = vmatpush.bf16.msra.mxu0 %v6225
        %8494 = vmatmul.bf16.gmra.mxu0 %v2751
        %v8495 = vpop.f32.mrf.mxu0
        %v8496 = vadd.f32 %v8482, %v8495
        %v8497 = vpop.f32.mrf.mxu0
        %v8498 = vadd.f32 %v8484, %v8497
        %8499 = vdwg.mxu0
        %8500 = vmatpush.bf16.msra.mxu0 %v6465
        %8501 = vmatpush.bf16.msra.mxu0 %v6449
        %8502 = vmatpush.bf16.msra.mxu0 %v6433
        %8503 = vmatpush.bf16.msra.mxu0 %v6417
        %8504 = vmatpush.bf16.msra.mxu0 %v6401
        %8505 = vmatpush.bf16.msra.mxu0 %v6385
        %8506 = vmatpush.bf16.msra.mxu0 %v6369
        %8507 = vmatpush.bf16.msra.mxu0 %v6353
        %8508 = vmatmul.bf16.gmra.mxu0 %v2752
        %v8509 = vpop.f32.mrf.mxu0
        %v8510 = vadd.f32 %v8496, %v8509
        %v8511 = vpop.f32.mrf.mxu0
        %v8512 = vadd.f32 %v8498, %v8511
        %8513 = vdwg.mxu0
        %8514 = vmatpush.bf16.msra.mxu0 %v6593
        %8515 = vmatpush.bf16.msra.mxu0 %v6577
        %8516 = vmatpush.bf16.msra.mxu0 %v6561
        %8517 = vmatpush.bf16.msra.mxu0 %v6545
        %8518 = vmatpush.bf16.msra.mxu0 %v6529
        %8519 = vmatpush.bf16.msra.mxu0 %v6513
        %8520 = vmatpush.bf16.msra.mxu0 %v6497
        %8521 = vmatpush.bf16.msra.mxu0 %v6481
        %8522 = vmatmul.bf16.gmra.mxu0 %v2753
        %v8523 = vpop.f32.mrf.mxu0
        %v8524 = vadd.f32 %v8510, %v8523
        %v8525 = vpop.f32.mrf.mxu0
        %v8526 = vadd.f32 %v8512, %v8525
        %8527 = vdwg.mxu0
        %8528 = vmatpush.bf16.msra.mxu0 %v6721
        %8529 = vmatpush.bf16.msra.mxu0 %v6705
        %8530 = vmatpush.bf16.msra.mxu0 %v6689
        %8531 = vmatpush.bf16.msra.mxu0 %v6673
        %8532 = vmatpush.bf16.msra.mxu0 %v6657
        %8533 = vmatpush.bf16.msra.mxu0 %v6641
        %8534 = vmatpush.bf16.msra.mxu0 %v6625
        %8535 = vmatpush.bf16.msra.mxu0 %v6609
        %8536 = vmatmul.bf16.gmra.mxu0 %v2754
        %v8537 = vpop.f32.mrf.mxu0
        %v8538 = vadd.f32 %v8524, %v8537
        %v8539 = vpop.f32.mrf.mxu0
        %v8540 = vadd.f32 %v8526, %v8539
        %8541 = vdwg.mxu0
        %8542 = vmatpush.bf16.msra.mxu0 %v6849
        %8543 = vmatpush.bf16.msra.mxu0 %v6833
        %8544 = vmatpush.bf16.msra.mxu0 %v6817
        %8545 = vmatpush.bf16.msra.mxu0 %v6801
        %8546 = vmatpush.bf16.msra.mxu0 %v6785
        %8547 = vmatpush.bf16.msra.mxu0 %v6769
        %8548 = vmatpush.bf16.msra.mxu0 %v6753
        %8549 = vmatpush.bf16.msra.mxu0 %v6737
        %8550 = vmatmul.bf16.gmra.mxu0 %v2755
        %v8551 = vpop.f32.mrf.mxu0
        %v8552 = vadd.f32 %v8538, %v8551
        %v8553 = vpop.f32.mrf.mxu0
        %v8554 = vadd.f32 %v8540, %v8553
        %8555 = vdwg.mxu0
        %8556 = vmatpush.bf16.msra.mxu0 %v5954
        %8557 = vmatpush.bf16.msra.mxu0 %v5938
        %8558 = vmatpush.bf16.msra.mxu0 %v5922
        %8559 = vmatpush.bf16.msra.mxu0 %v5906
        %8560 = vmatpush.bf16.msra.mxu0 %v5890
        %8561 = vmatpush.bf16.msra.mxu0 %v5874
        %8562 = vmatpush.bf16.msra.mxu0 %v5858
        %8563 = vmatpush.bf16.msra.mxu0 %v5842
        %8564 = vmatmul.bf16.gmra.mxu0 %v2748
        %v8565 = vpop.f32.mrf.mxu0
        %v8566 = vadd.f32 %v2594, %v8565
        %v8567 = vpop.f32.mrf.mxu0
        %v8568 = vadd.f32 %v2596, %v8567
        %8569 = vdwg.mxu0
        %8570 = vmatpush.bf16.msra.mxu0 %v6082
        %8571 = vmatpush.bf16.msra.mxu0 %v6066
        %8572 = vmatpush.bf16.msra.mxu0 %v6050
        %8573 = vmatpush.bf16.msra.mxu0 %v6034
        %8574 = vmatpush.bf16.msra.mxu0 %v6018
        %8575 = vmatpush.bf16.msra.mxu0 %v6002
        %8576 = vmatpush.bf16.msra.mxu0 %v5986
        %8577 = vmatpush.bf16.msra.mxu0 %v5970
        %8578 = vmatmul.bf16.gmra.mxu0 %v2749
        %v8579 = vpop.f32.mrf.mxu0
        %v8580 = vadd.f32 %v8566, %v8579
        %v8581 = vpop.f32.mrf.mxu0
        %v8582 = vadd.f32 %v8568, %v8581
        %8583 = vdwg.mxu0
        %8584 = vmatpush.bf16.msra.mxu0 %v6210
        %8585 = vmatpush.bf16.msra.mxu0 %v6194
        %8586 = vmatpush.bf16.msra.mxu0 %v6178
        %8587 = vmatpush.bf16.msra.mxu0 %v6162
        %8588 = vmatpush.bf16.msra.mxu0 %v6146
        %8589 = vmatpush.bf16.msra.mxu0 %v6130
        %8590 = vmatpush.bf16.msra.mxu0 %v6114
        %8591 = vmatpush.bf16.msra.mxu0 %v6098
        %8592 = vmatmul.bf16.gmra.mxu0 %v2750
        %v8593 = vpop.f32.mrf.mxu0
        %v8594 = vadd.f32 %v8580, %v8593
        %v8595 = vpop.f32.mrf.mxu0
        %v8596 = vadd.f32 %v8582, %v8595
        %8597 = vdwg.mxu0
        %8598 = vmatpush.bf16.msra.mxu0 %v6338
        %8599 = vmatpush.bf16.msra.mxu0 %v6322
        %8600 = vmatpush.bf16.msra.mxu0 %v6306
        %8601 = vmatpush.bf16.msra.mxu0 %v6290
        %8602 = vmatpush.bf16.msra.mxu0 %v6274
        %8603 = vmatpush.bf16.msra.mxu0 %v6258
        %8604 = vmatpush.bf16.msra.mxu0 %v6242
        %8605 = vmatpush.bf16.msra.mxu0 %v6226
        %8606 = vmatmul.bf16.gmra.mxu0 %v2751
        %v8607 = vpop.f32.mrf.mxu0
        %v8608 = vadd.f32 %v8594, %v8607
        %v8609 = vpop.f32.mrf.mxu0
        %v8610 = vadd.f32 %v8596, %v8609
        %8611 = vdwg.mxu0
        %8612 = vmatpush.bf16.msra.mxu0 %v6466
        %8613 = vmatpush.bf16.msra.mxu0 %v6450
        %8614 = vmatpush.bf16.msra.mxu0 %v6434
        %8615 = vmatpush.bf16.msra.mxu0 %v6418
        %8616 = vmatpush.bf16.msra.mxu0 %v6402
        %8617 = vmatpush.bf16.msra.mxu0 %v6386
        %8618 = vmatpush.bf16.msra.mxu0 %v6370
        %8619 = vmatpush.bf16.msra.mxu0 %v6354
        %8620 = vmatmul.bf16.gmra.mxu0 %v2752
        %v8621 = vpop.f32.mrf.mxu0
        %v8622 = vadd.f32 %v8608, %v8621
        %v8623 = vpop.f32.mrf.mxu0
        %v8624 = vadd.f32 %v8610, %v8623
        %8625 = vdwg.mxu0
        %8626 = vmatpush.bf16.msra.mxu0 %v6594
        %8627 = vmatpush.bf16.msra.mxu0 %v6578
        %8628 = vmatpush.bf16.msra.mxu0 %v6562
        %8629 = vmatpush.bf16.msra.mxu0 %v6546
        %8630 = vmatpush.bf16.msra.mxu0 %v6530
        %8631 = vmatpush.bf16.msra.mxu0 %v6514
        %8632 = vmatpush.bf16.msra.mxu0 %v6498
        %8633 = vmatpush.bf16.msra.mxu0 %v6482
        %8634 = vmatmul.bf16.gmra.mxu0 %v2753
        %v8635 = vpop.f32.mrf.mxu0
        %v8636 = vadd.f32 %v8622, %v8635
        %v8637 = vpop.f32.mrf.mxu0
        %v8638 = vadd.f32 %v8624, %v8637
        %8639 = vdwg.mxu0
        %8640 = vmatpush.bf16.msra.mxu0 %v6722
        %8641 = vmatpush.bf16.msra.mxu0 %v6706
        %8642 = vmatpush.bf16.msra.mxu0 %v6690
        %8643 = vmatpush.bf16.msra.mxu0 %v6674
        %8644 = vmatpush.bf16.msra.mxu0 %v6658
        %8645 = vmatpush.bf16.msra.mxu0 %v6642
        %8646 = vmatpush.bf16.msra.mxu0 %v6626
        %8647 = vmatpush.bf16.msra.mxu0 %v6610
        %8648 = vmatmul.bf16.gmra.mxu0 %v2754
        %v8649 = vpop.f32.mrf.mxu0
        %v8650 = vadd.f32 %v8636, %v8649
        %v8651 = vpop.f32.mrf.mxu0
        %v8652 = vadd.f32 %v8638, %v8651
        %8653 = vdwg.mxu0
        %8654 = vmatpush.bf16.msra.mxu0 %v6850
        %8655 = vmatpush.bf16.msra.mxu0 %v6834
        %8656 = vmatpush.bf16.msra.mxu0 %v6818
        %8657 = vmatpush.bf16.msra.mxu0 %v6802
        %8658 = vmatpush.bf16.msra.mxu0 %v6786
        %8659 = vmatpush.bf16.msra.mxu0 %v6770
        %8660 = vmatpush.bf16.msra.mxu0 %v6754
        %8661 = vmatpush.bf16.msra.mxu0 %v6738
        %8662 = vmatmul.bf16.gmra.mxu0 %v2755
        %v8663 = vpop.f32.mrf.mxu0
        %v8664 = vadd.f32 %v8650, %v8663
        %v8665 = vpop.f32.mrf.mxu0
        %v8666 = vadd.f32 %v8652, %v8665
        %8667 = vdwg.mxu0
        %8668 = vmatpush.bf16.msra.mxu0 %v5955
        %8669 = vmatpush.bf16.msra.mxu0 %v5939
        %8670 = vmatpush.bf16.msra.mxu0 %v5923
        %8671 = vmatpush.bf16.msra.mxu0 %v5907
        %8672 = vmatpush.bf16.msra.mxu0 %v5891
        %8673 = vmatpush.bf16.msra.mxu0 %v5875
        %8674 = vmatpush.bf16.msra.mxu0 %v5859
        %8675 = vmatpush.bf16.msra.mxu0 %v5843
        %8676 = vmatmul.bf16.gmra.mxu0 %v2748
        %v8677 = vpop.f32.mrf.mxu0
        %v8678 = vadd.f32 %v2608, %v8677
        %v8679 = vpop.f32.mrf.mxu0
        %v8680 = vadd.f32 %v2610, %v8679
        %8681 = vdwg.mxu0
        %8682 = vmatpush.bf16.msra.mxu0 %v6083
        %8683 = vmatpush.bf16.msra.mxu0 %v6067
        %8684 = vmatpush.bf16.msra.mxu0 %v6051
        %8685 = vmatpush.bf16.msra.mxu0 %v6035
        %8686 = vmatpush.bf16.msra.mxu0 %v6019
        %8687 = vmatpush.bf16.msra.mxu0 %v6003
        %8688 = vmatpush.bf16.msra.mxu0 %v5987
        %8689 = vmatpush.bf16.msra.mxu0 %v5971
        %8690 = vmatmul.bf16.gmra.mxu0 %v2749
        %v8691 = vpop.f32.mrf.mxu0
        %v8692 = vadd.f32 %v8678, %v8691
        %v8693 = vpop.f32.mrf.mxu0
        %v8694 = vadd.f32 %v8680, %v8693
        %8695 = vdwg.mxu0
        %8696 = vmatpush.bf16.msra.mxu0 %v6211
        %8697 = vmatpush.bf16.msra.mxu0 %v6195
        %8698 = vmatpush.bf16.msra.mxu0 %v6179
        %8699 = vmatpush.bf16.msra.mxu0 %v6163
        %8700 = vmatpush.bf16.msra.mxu0 %v6147
        %8701 = vmatpush.bf16.msra.mxu0 %v6131
        %8702 = vmatpush.bf16.msra.mxu0 %v6115
        %8703 = vmatpush.bf16.msra.mxu0 %v6099
        %8704 = vmatmul.bf16.gmra.mxu0 %v2750
        %v8705 = vpop.f32.mrf.mxu0
        %v8706 = vadd.f32 %v8692, %v8705
        %v8707 = vpop.f32.mrf.mxu0
        %v8708 = vadd.f32 %v8694, %v8707
        %8709 = vdwg.mxu0
        %8710 = vmatpush.bf16.msra.mxu0 %v6339
        %8711 = vmatpush.bf16.msra.mxu0 %v6323
        %8712 = vmatpush.bf16.msra.mxu0 %v6307
        %8713 = vmatpush.bf16.msra.mxu0 %v6291
        %8714 = vmatpush.bf16.msra.mxu0 %v6275
        %8715 = vmatpush.bf16.msra.mxu0 %v6259
        %8716 = vmatpush.bf16.msra.mxu0 %v6243
        %8717 = vmatpush.bf16.msra.mxu0 %v6227
        %8718 = vmatmul.bf16.gmra.mxu0 %v2751
        %v8719 = vpop.f32.mrf.mxu0
        %v8720 = vadd.f32 %v8706, %v8719
        %v8721 = vpop.f32.mrf.mxu0
        %v8722 = vadd.f32 %v8708, %v8721
        %8723 = vdwg.mxu0
        %8724 = vmatpush.bf16.msra.mxu0 %v6467
        %8725 = vmatpush.bf16.msra.mxu0 %v6451
        %8726 = vmatpush.bf16.msra.mxu0 %v6435
        %8727 = vmatpush.bf16.msra.mxu0 %v6419
        %8728 = vmatpush.bf16.msra.mxu0 %v6403
        %8729 = vmatpush.bf16.msra.mxu0 %v6387
        %8730 = vmatpush.bf16.msra.mxu0 %v6371
        %8731 = vmatpush.bf16.msra.mxu0 %v6355
        %8732 = vmatmul.bf16.gmra.mxu0 %v2752
        %v8733 = vpop.f32.mrf.mxu0
        %v8734 = vadd.f32 %v8720, %v8733
        %v8735 = vpop.f32.mrf.mxu0
        %v8736 = vadd.f32 %v8722, %v8735
        %8737 = vdwg.mxu0
        %8738 = vmatpush.bf16.msra.mxu0 %v6595
        %8739 = vmatpush.bf16.msra.mxu0 %v6579
        %8740 = vmatpush.bf16.msra.mxu0 %v6563
        %8741 = vmatpush.bf16.msra.mxu0 %v6547
        %8742 = vmatpush.bf16.msra.mxu0 %v6531
        %8743 = vmatpush.bf16.msra.mxu0 %v6515
        %8744 = vmatpush.bf16.msra.mxu0 %v6499
        %8745 = vmatpush.bf16.msra.mxu0 %v6483
        %8746 = vmatmul.bf16.gmra.mxu0 %v2753
        %v8747 = vpop.f32.mrf.mxu0
        %v8748 = vadd.f32 %v8734, %v8747
        %v8749 = vpop.f32.mrf.mxu0
        %v8750 = vadd.f32 %v8736, %v8749
        %8751 = vdwg.mxu0
        %8752 = vmatpush.bf16.msra.mxu0 %v6723
        %8753 = vmatpush.bf16.msra.mxu0 %v6707
        %8754 = vmatpush.bf16.msra.mxu0 %v6691
        %8755 = vmatpush.bf16.msra.mxu0 %v6675
        %8756 = vmatpush.bf16.msra.mxu0 %v6659
        %8757 = vmatpush.bf16.msra.mxu0 %v6643
        %8758 = vmatpush.bf16.msra.mxu0 %v6627
        %8759 = vmatpush.bf16.msra.mxu0 %v6611
        %8760 = vmatmul.bf16.gmra.mxu0 %v2754
        %v8761 = vpop.f32.mrf.mxu0
        %v8762 = vadd.f32 %v8748, %v8761
        %v8763 = vpop.f32.mrf.mxu0
        %v8764 = vadd.f32 %v8750, %v8763
        %8765 = vdwg.mxu0
        %8766 = vmatpush.bf16.msra.mxu0 %v6851
        %8767 = vmatpush.bf16.msra.mxu0 %v6835
        %8768 = vmatpush.bf16.msra.mxu0 %v6819
        %8769 = vmatpush.bf16.msra.mxu0 %v6803
        %8770 = vmatpush.bf16.msra.mxu0 %v6787
        %8771 = vmatpush.bf16.msra.mxu0 %v6771
        %8772 = vmatpush.bf16.msra.mxu0 %v6755
        %8773 = vmatpush.bf16.msra.mxu0 %v6739
        %8774 = vmatmul.bf16.gmra.mxu0 %v2755
        %v8775 = vpop.f32.mrf.mxu0
        %v8776 = vadd.f32 %v8762, %v8775
        %v8777 = vpop.f32.mrf.mxu0
        %v8778 = vadd.f32 %v8764, %v8777
        %8779 = vdwg.mxu0
        %8780 = vmatpush.bf16.msra.mxu0 %v5956
        %8781 = vmatpush.bf16.msra.mxu0 %v5940
        %8782 = vmatpush.bf16.msra.mxu0 %v5924
        %8783 = vmatpush.bf16.msra.mxu0 %v5908
        %8784 = vmatpush.bf16.msra.mxu0 %v5892
        %8785 = vmatpush.bf16.msra.mxu0 %v5876
        %8786 = vmatpush.bf16.msra.mxu0 %v5860
        %8787 = vmatpush.bf16.msra.mxu0 %v5844
        %8788 = vmatmul.bf16.gmra.mxu0 %v2748
        %v8789 = vpop.f32.mrf.mxu0
        %v8790 = vadd.f32 %v2622, %v8789
        %v8791 = vpop.f32.mrf.mxu0
        %v8792 = vadd.f32 %v2624, %v8791
        %8793 = vdwg.mxu0
        %8794 = vmatpush.bf16.msra.mxu0 %v6084
        %8795 = vmatpush.bf16.msra.mxu0 %v6068
        %8796 = vmatpush.bf16.msra.mxu0 %v6052
        %8797 = vmatpush.bf16.msra.mxu0 %v6036
        %8798 = vmatpush.bf16.msra.mxu0 %v6020
        %8799 = vmatpush.bf16.msra.mxu0 %v6004
        %8800 = vmatpush.bf16.msra.mxu0 %v5988
        %8801 = vmatpush.bf16.msra.mxu0 %v5972
        %8802 = vmatmul.bf16.gmra.mxu0 %v2749
        %v8803 = vpop.f32.mrf.mxu0
        %v8804 = vadd.f32 %v8790, %v8803
        %v8805 = vpop.f32.mrf.mxu0
        %v8806 = vadd.f32 %v8792, %v8805
        %8807 = vdwg.mxu0
        %8808 = vmatpush.bf16.msra.mxu0 %v6212
        %8809 = vmatpush.bf16.msra.mxu0 %v6196
        %8810 = vmatpush.bf16.msra.mxu0 %v6180
        %8811 = vmatpush.bf16.msra.mxu0 %v6164
        %8812 = vmatpush.bf16.msra.mxu0 %v6148
        %8813 = vmatpush.bf16.msra.mxu0 %v6132
        %8814 = vmatpush.bf16.msra.mxu0 %v6116
        %8815 = vmatpush.bf16.msra.mxu0 %v6100
        %8816 = vmatmul.bf16.gmra.mxu0 %v2750
        %v8817 = vpop.f32.mrf.mxu0
        %v8818 = vadd.f32 %v8804, %v8817
        %v8819 = vpop.f32.mrf.mxu0
        %v8820 = vadd.f32 %v8806, %v8819
        %8821 = vdwg.mxu0
        %8822 = vmatpush.bf16.msra.mxu0 %v6340
        %8823 = vmatpush.bf16.msra.mxu0 %v6324
        %8824 = vmatpush.bf16.msra.mxu0 %v6308
        %8825 = vmatpush.bf16.msra.mxu0 %v6292
        %8826 = vmatpush.bf16.msra.mxu0 %v6276
        %8827 = vmatpush.bf16.msra.mxu0 %v6260
        %8828 = vmatpush.bf16.msra.mxu0 %v6244
        %8829 = vmatpush.bf16.msra.mxu0 %v6228
        %8830 = vmatmul.bf16.gmra.mxu0 %v2751
        %v8831 = vpop.f32.mrf.mxu0
        %v8832 = vadd.f32 %v8818, %v8831
        %v8833 = vpop.f32.mrf.mxu0
        %v8834 = vadd.f32 %v8820, %v8833
        %8835 = vdwg.mxu0
        %8836 = vmatpush.bf16.msra.mxu0 %v6468
        %8837 = vmatpush.bf16.msra.mxu0 %v6452
        %8838 = vmatpush.bf16.msra.mxu0 %v6436
        %8839 = vmatpush.bf16.msra.mxu0 %v6420
        %8840 = vmatpush.bf16.msra.mxu0 %v6404
        %8841 = vmatpush.bf16.msra.mxu0 %v6388
        %8842 = vmatpush.bf16.msra.mxu0 %v6372
        %8843 = vmatpush.bf16.msra.mxu0 %v6356
        %8844 = vmatmul.bf16.gmra.mxu0 %v2752
        %v8845 = vpop.f32.mrf.mxu0
        %v8846 = vadd.f32 %v8832, %v8845
        %v8847 = vpop.f32.mrf.mxu0
        %v8848 = vadd.f32 %v8834, %v8847
        %8849 = vdwg.mxu0
        %8850 = vmatpush.bf16.msra.mxu0 %v6596
        %8851 = vmatpush.bf16.msra.mxu0 %v6580
        %8852 = vmatpush.bf16.msra.mxu0 %v6564
        %8853 = vmatpush.bf16.msra.mxu0 %v6548
        %8854 = vmatpush.bf16.msra.mxu0 %v6532
        %8855 = vmatpush.bf16.msra.mxu0 %v6516
        %8856 = vmatpush.bf16.msra.mxu0 %v6500
        %8857 = vmatpush.bf16.msra.mxu0 %v6484
        %8858 = vmatmul.bf16.gmra.mxu0 %v2753
        %v8859 = vpop.f32.mrf.mxu0
        %v8860 = vadd.f32 %v8846, %v8859
        %v8861 = vpop.f32.mrf.mxu0
        %v8862 = vadd.f32 %v8848, %v8861
        %8863 = vdwg.mxu0
        %8864 = vmatpush.bf16.msra.mxu0 %v6724
        %8865 = vmatpush.bf16.msra.mxu0 %v6708
        %8866 = vmatpush.bf16.msra.mxu0 %v6692
        %8867 = vmatpush.bf16.msra.mxu0 %v6676
        %8868 = vmatpush.bf16.msra.mxu0 %v6660
        %8869 = vmatpush.bf16.msra.mxu0 %v6644
        %8870 = vmatpush.bf16.msra.mxu0 %v6628
        %8871 = vmatpush.bf16.msra.mxu0 %v6612
        %8872 = vmatmul.bf16.gmra.mxu0 %v2754
        %v8873 = vpop.f32.mrf.mxu0
        %v8874 = vadd.f32 %v8860, %v8873
        %v8875 = vpop.f32.mrf.mxu0
        %v8876 = vadd.f32 %v8862, %v8875
        %8877 = vdwg.mxu0
        %8878 = vmatpush.bf16.msra.mxu0 %v6852
        %8879 = vmatpush.bf16.msra.mxu0 %v6836
        %8880 = vmatpush.bf16.msra.mxu0 %v6820
        %8881 = vmatpush.bf16.msra.mxu0 %v6804
        %8882 = vmatpush.bf16.msra.mxu0 %v6788
        %8883 = vmatpush.bf16.msra.mxu0 %v6772
        %8884 = vmatpush.bf16.msra.mxu0 %v6756
        %8885 = vmatpush.bf16.msra.mxu0 %v6740
        %8886 = vmatmul.bf16.gmra.mxu0 %v2755
        %v8887 = vpop.f32.mrf.mxu0
        %v8888 = vadd.f32 %v8874, %v8887
        %v8889 = vpop.f32.mrf.mxu0
        %v8890 = vadd.f32 %v8876, %v8889
        %8891 = vdwg.mxu0
        %8892 = vmatpush.bf16.msra.mxu0 %v5957
        %8893 = vmatpush.bf16.msra.mxu0 %v5941
        %8894 = vmatpush.bf16.msra.mxu0 %v5925
        %8895 = vmatpush.bf16.msra.mxu0 %v5909
        %8896 = vmatpush.bf16.msra.mxu0 %v5893
        %8897 = vmatpush.bf16.msra.mxu0 %v5877
        %8898 = vmatpush.bf16.msra.mxu0 %v5861
        %8899 = vmatpush.bf16.msra.mxu0 %v5845
        %8900 = vmatmul.bf16.gmra.mxu0 %v2748
        %v8901 = vpop.f32.mrf.mxu0
        %v8902 = vadd.f32 %v2636, %v8901
        %v8903 = vpop.f32.mrf.mxu0
        %v8904 = vadd.f32 %v2638, %v8903
        %8905 = vdwg.mxu0
        %8906 = vmatpush.bf16.msra.mxu0 %v6085
        %8907 = vmatpush.bf16.msra.mxu0 %v6069
        %8908 = vmatpush.bf16.msra.mxu0 %v6053
        %8909 = vmatpush.bf16.msra.mxu0 %v6037
        %8910 = vmatpush.bf16.msra.mxu0 %v6021
        %8911 = vmatpush.bf16.msra.mxu0 %v6005
        %8912 = vmatpush.bf16.msra.mxu0 %v5989
        %8913 = vmatpush.bf16.msra.mxu0 %v5973
        %8914 = vmatmul.bf16.gmra.mxu0 %v2749
        %v8915 = vpop.f32.mrf.mxu0
        %v8916 = vadd.f32 %v8902, %v8915
        %v8917 = vpop.f32.mrf.mxu0
        %v8918 = vadd.f32 %v8904, %v8917
        %8919 = vdwg.mxu0
        %8920 = vmatpush.bf16.msra.mxu0 %v6213
        %8921 = vmatpush.bf16.msra.mxu0 %v6197
        %8922 = vmatpush.bf16.msra.mxu0 %v6181
        %8923 = vmatpush.bf16.msra.mxu0 %v6165
        %8924 = vmatpush.bf16.msra.mxu0 %v6149
        %8925 = vmatpush.bf16.msra.mxu0 %v6133
        %8926 = vmatpush.bf16.msra.mxu0 %v6117
        %8927 = vmatpush.bf16.msra.mxu0 %v6101
        %8928 = vmatmul.bf16.gmra.mxu0 %v2750
        %v8929 = vpop.f32.mrf.mxu0
        %v8930 = vadd.f32 %v8916, %v8929
        %v8931 = vpop.f32.mrf.mxu0
        %v8932 = vadd.f32 %v8918, %v8931
        %8933 = vdwg.mxu0
        %8934 = vmatpush.bf16.msra.mxu0 %v6341
        %8935 = vmatpush.bf16.msra.mxu0 %v6325
        %8936 = vmatpush.bf16.msra.mxu0 %v6309
        %8937 = vmatpush.bf16.msra.mxu0 %v6293
        %8938 = vmatpush.bf16.msra.mxu0 %v6277
        %8939 = vmatpush.bf16.msra.mxu0 %v6261
        %8940 = vmatpush.bf16.msra.mxu0 %v6245
        %8941 = vmatpush.bf16.msra.mxu0 %v6229
        %8942 = vmatmul.bf16.gmra.mxu0 %v2751
        %v8943 = vpop.f32.mrf.mxu0
        %v8944 = vadd.f32 %v8930, %v8943
        %v8945 = vpop.f32.mrf.mxu0
        %v8946 = vadd.f32 %v8932, %v8945
        %8947 = vdwg.mxu0
        %8948 = vmatpush.bf16.msra.mxu0 %v6469
        %8949 = vmatpush.bf16.msra.mxu0 %v6453
        %8950 = vmatpush.bf16.msra.mxu0 %v6437
        %8951 = vmatpush.bf16.msra.mxu0 %v6421
        %8952 = vmatpush.bf16.msra.mxu0 %v6405
        %8953 = vmatpush.bf16.msra.mxu0 %v6389
        %8954 = vmatpush.bf16.msra.mxu0 %v6373
        %8955 = vmatpush.bf16.msra.mxu0 %v6357
        %8956 = vmatmul.bf16.gmra.mxu0 %v2752
        %v8957 = vpop.f32.mrf.mxu0
        %v8958 = vadd.f32 %v8944, %v8957
        %v8959 = vpop.f32.mrf.mxu0
        %v8960 = vadd.f32 %v8946, %v8959
        %8961 = vdwg.mxu0
        %8962 = vmatpush.bf16.msra.mxu0 %v6597
        %8963 = vmatpush.bf16.msra.mxu0 %v6581
        %8964 = vmatpush.bf16.msra.mxu0 %v6565
        %8965 = vmatpush.bf16.msra.mxu0 %v6549
        %8966 = vmatpush.bf16.msra.mxu0 %v6533
        %8967 = vmatpush.bf16.msra.mxu0 %v6517
        %8968 = vmatpush.bf16.msra.mxu0 %v6501
        %8969 = vmatpush.bf16.msra.mxu0 %v6485
        %8970 = vmatmul.bf16.gmra.mxu0 %v2753
        %v8971 = vpop.f32.mrf.mxu0
        %v8972 = vadd.f32 %v8958, %v8971
        %v8973 = vpop.f32.mrf.mxu0
        %v8974 = vadd.f32 %v8960, %v8973
        %8975 = vdwg.mxu0
        %8976 = vmatpush.bf16.msra.mxu0 %v6725
        %8977 = vmatpush.bf16.msra.mxu0 %v6709
        %8978 = vmatpush.bf16.msra.mxu0 %v6693
        %8979 = vmatpush.bf16.msra.mxu0 %v6677
        %8980 = vmatpush.bf16.msra.mxu0 %v6661
        %8981 = vmatpush.bf16.msra.mxu0 %v6645
        %8982 = vmatpush.bf16.msra.mxu0 %v6629
        %8983 = vmatpush.bf16.msra.mxu0 %v6613
        %8984 = vmatmul.bf16.gmra.mxu0 %v2754
        %v8985 = vpop.f32.mrf.mxu0
        %v8986 = vadd.f32 %v8972, %v8985
        %v8987 = vpop.f32.mrf.mxu0
        %v8988 = vadd.f32 %v8974, %v8987
        %8989 = vdwg.mxu0
        %8990 = vmatpush.bf16.msra.mxu0 %v6853
        %8991 = vmatpush.bf16.msra.mxu0 %v6837
        %8992 = vmatpush.bf16.msra.mxu0 %v6821
        %8993 = vmatpush.bf16.msra.mxu0 %v6805
        %8994 = vmatpush.bf16.msra.mxu0 %v6789
        %8995 = vmatpush.bf16.msra.mxu0 %v6773
        %8996 = vmatpush.bf16.msra.mxu0 %v6757
        %8997 = vmatpush.bf16.msra.mxu0 %v6741
        %8998 = vmatmul.bf16.gmra.mxu0 %v2755
        %v8999 = vpop.f32.mrf.mxu0
        %v9000 = vadd.f32 %v8986, %v8999
        %v9001 = vpop.f32.mrf.mxu0
        %v9002 = vadd.f32 %v8988, %v9001
        %9003 = vdwg.mxu0
        %9004 = vmatpush.bf16.msra.mxu0 %v5958
        %9005 = vmatpush.bf16.msra.mxu0 %v5942
        %9006 = vmatpush.bf16.msra.mxu0 %v5926
        %9007 = vmatpush.bf16.msra.mxu0 %v5910
        %9008 = vmatpush.bf16.msra.mxu0 %v5894
        %9009 = vmatpush.bf16.msra.mxu0 %v5878
        %9010 = vmatpush.bf16.msra.mxu0 %v5862
        %9011 = vmatpush.bf16.msra.mxu0 %v5846
        %9012 = vmatmul.bf16.gmra.mxu0 %v2748
        %v9013 = vpop.f32.mrf.mxu0
        %v9014 = vadd.f32 %v2650, %v9013
        %v9015 = vpop.f32.mrf.mxu0
        %v9016 = vadd.f32 %v2652, %v9015
        %9017 = vdwg.mxu0
        %9018 = vmatpush.bf16.msra.mxu0 %v6086
        %9019 = vmatpush.bf16.msra.mxu0 %v6070
        %9020 = vmatpush.bf16.msra.mxu0 %v6054
        %9021 = vmatpush.bf16.msra.mxu0 %v6038
        %9022 = vmatpush.bf16.msra.mxu0 %v6022
        %9023 = vmatpush.bf16.msra.mxu0 %v6006
        %9024 = vmatpush.bf16.msra.mxu0 %v5990
        %9025 = vmatpush.bf16.msra.mxu0 %v5974
        %9026 = vmatmul.bf16.gmra.mxu0 %v2749
        %v9027 = vpop.f32.mrf.mxu0
        %v9028 = vadd.f32 %v9014, %v9027
        %v9029 = vpop.f32.mrf.mxu0
        %v9030 = vadd.f32 %v9016, %v9029
        %9031 = vdwg.mxu0
        %9032 = vmatpush.bf16.msra.mxu0 %v6214
        %9033 = vmatpush.bf16.msra.mxu0 %v6198
        %9034 = vmatpush.bf16.msra.mxu0 %v6182
        %9035 = vmatpush.bf16.msra.mxu0 %v6166
        %9036 = vmatpush.bf16.msra.mxu0 %v6150
        %9037 = vmatpush.bf16.msra.mxu0 %v6134
        %9038 = vmatpush.bf16.msra.mxu0 %v6118
        %9039 = vmatpush.bf16.msra.mxu0 %v6102
        %9040 = vmatmul.bf16.gmra.mxu0 %v2750
        %v9041 = vpop.f32.mrf.mxu0
        %v9042 = vadd.f32 %v9028, %v9041
        %v9043 = vpop.f32.mrf.mxu0
        %v9044 = vadd.f32 %v9030, %v9043
        %9045 = vdwg.mxu0
        %9046 = vmatpush.bf16.msra.mxu0 %v6342
        %9047 = vmatpush.bf16.msra.mxu0 %v6326
        %9048 = vmatpush.bf16.msra.mxu0 %v6310
        %9049 = vmatpush.bf16.msra.mxu0 %v6294
        %9050 = vmatpush.bf16.msra.mxu0 %v6278
        %9051 = vmatpush.bf16.msra.mxu0 %v6262
        %9052 = vmatpush.bf16.msra.mxu0 %v6246
        %9053 = vmatpush.bf16.msra.mxu0 %v6230
        %9054 = vmatmul.bf16.gmra.mxu0 %v2751
        %v9055 = vpop.f32.mrf.mxu0
        %v9056 = vadd.f32 %v9042, %v9055
        %v9057 = vpop.f32.mrf.mxu0
        %v9058 = vadd.f32 %v9044, %v9057
        %9059 = vdwg.mxu0
        %9060 = vmatpush.bf16.msra.mxu0 %v6470
        %9061 = vmatpush.bf16.msra.mxu0 %v6454
        %9062 = vmatpush.bf16.msra.mxu0 %v6438
        %9063 = vmatpush.bf16.msra.mxu0 %v6422
        %9064 = vmatpush.bf16.msra.mxu0 %v6406
        %9065 = vmatpush.bf16.msra.mxu0 %v6390
        %9066 = vmatpush.bf16.msra.mxu0 %v6374
        %9067 = vmatpush.bf16.msra.mxu0 %v6358
        %9068 = vmatmul.bf16.gmra.mxu0 %v2752
        %v9069 = vpop.f32.mrf.mxu0
        %v9070 = vadd.f32 %v9056, %v9069
        %v9071 = vpop.f32.mrf.mxu0
        %v9072 = vadd.f32 %v9058, %v9071
        %9073 = vdwg.mxu0
        %9074 = vmatpush.bf16.msra.mxu0 %v6598
        %9075 = vmatpush.bf16.msra.mxu0 %v6582
        %9076 = vmatpush.bf16.msra.mxu0 %v6566
        %9077 = vmatpush.bf16.msra.mxu0 %v6550
        %9078 = vmatpush.bf16.msra.mxu0 %v6534
        %9079 = vmatpush.bf16.msra.mxu0 %v6518
        %9080 = vmatpush.bf16.msra.mxu0 %v6502
        %9081 = vmatpush.bf16.msra.mxu0 %v6486
        %9082 = vmatmul.bf16.gmra.mxu0 %v2753
        %v9083 = vpop.f32.mrf.mxu0
        %v9084 = vadd.f32 %v9070, %v9083
        %v9085 = vpop.f32.mrf.mxu0
        %v9086 = vadd.f32 %v9072, %v9085
        %9087 = vdwg.mxu0
        %9088 = vmatpush.bf16.msra.mxu0 %v6726
        %9089 = vmatpush.bf16.msra.mxu0 %v6710
        %9090 = vmatpush.bf16.msra.mxu0 %v6694
        %9091 = vmatpush.bf16.msra.mxu0 %v6678
        %9092 = vmatpush.bf16.msra.mxu0 %v6662
        %9093 = vmatpush.bf16.msra.mxu0 %v6646
        %9094 = vmatpush.bf16.msra.mxu0 %v6630
        %9095 = vmatpush.bf16.msra.mxu0 %v6614
        %9096 = vmatmul.bf16.gmra.mxu0 %v2754
        %v9097 = vpop.f32.mrf.mxu0
        %v9098 = vadd.f32 %v9084, %v9097
        %v9099 = vpop.f32.mrf.mxu0
        %v9100 = vadd.f32 %v9086, %v9099
        %9101 = vdwg.mxu0
        %9102 = vmatpush.bf16.msra.mxu0 %v6854
        %9103 = vmatpush.bf16.msra.mxu0 %v6838
        %9104 = vmatpush.bf16.msra.mxu0 %v6822
        %9105 = vmatpush.bf16.msra.mxu0 %v6806
        %9106 = vmatpush.bf16.msra.mxu0 %v6790
        %9107 = vmatpush.bf16.msra.mxu0 %v6774
        %9108 = vmatpush.bf16.msra.mxu0 %v6758
        %9109 = vmatpush.bf16.msra.mxu0 %v6742
        %9110 = vmatmul.bf16.gmra.mxu0 %v2755
        %v9111 = vpop.f32.mrf.mxu0
        %v9112 = vadd.f32 %v9098, %v9111
        %v9113 = vpop.f32.mrf.mxu0
        %v9114 = vadd.f32 %v9100, %v9113
        %9115 = vdwg.mxu0
        %9116 = vmatpush.bf16.msra.mxu0 %v5959
        %9117 = vmatpush.bf16.msra.mxu0 %v5943
        %9118 = vmatpush.bf16.msra.mxu0 %v5927
        %9119 = vmatpush.bf16.msra.mxu0 %v5911
        %9120 = vmatpush.bf16.msra.mxu0 %v5895
        %9121 = vmatpush.bf16.msra.mxu0 %v5879
        %9122 = vmatpush.bf16.msra.mxu0 %v5863
        %9123 = vmatpush.bf16.msra.mxu0 %v5847
        %9124 = vmatmul.bf16.gmra.mxu0 %v2748
        %v9125 = vpop.f32.mrf.mxu0
        %v9126 = vadd.f32 %v2664, %v9125
        %v9127 = vpop.f32.mrf.mxu0
        %v9128 = vadd.f32 %v2666, %v9127
        %9129 = vdwg.mxu0
        %9130 = vmatpush.bf16.msra.mxu0 %v6087
        %9131 = vmatpush.bf16.msra.mxu0 %v6071
        %9132 = vmatpush.bf16.msra.mxu0 %v6055
        %9133 = vmatpush.bf16.msra.mxu0 %v6039
        %9134 = vmatpush.bf16.msra.mxu0 %v6023
        %9135 = vmatpush.bf16.msra.mxu0 %v6007
        %9136 = vmatpush.bf16.msra.mxu0 %v5991
        %9137 = vmatpush.bf16.msra.mxu0 %v5975
        %9138 = vmatmul.bf16.gmra.mxu0 %v2749
        %v9139 = vpop.f32.mrf.mxu0
        %v9140 = vadd.f32 %v9126, %v9139
        %v9141 = vpop.f32.mrf.mxu0
        %v9142 = vadd.f32 %v9128, %v9141
        %9143 = vdwg.mxu0
        %9144 = vmatpush.bf16.msra.mxu0 %v6215
        %9145 = vmatpush.bf16.msra.mxu0 %v6199
        %9146 = vmatpush.bf16.msra.mxu0 %v6183
        %9147 = vmatpush.bf16.msra.mxu0 %v6167
        %9148 = vmatpush.bf16.msra.mxu0 %v6151
        %9149 = vmatpush.bf16.msra.mxu0 %v6135
        %9150 = vmatpush.bf16.msra.mxu0 %v6119
        %9151 = vmatpush.bf16.msra.mxu0 %v6103
        %9152 = vmatmul.bf16.gmra.mxu0 %v2750
        %v9153 = vpop.f32.mrf.mxu0
        %v9154 = vadd.f32 %v9140, %v9153
        %v9155 = vpop.f32.mrf.mxu0
        %v9156 = vadd.f32 %v9142, %v9155
        %9157 = vdwg.mxu0
        %9158 = vmatpush.bf16.msra.mxu0 %v6343
        %9159 = vmatpush.bf16.msra.mxu0 %v6327
        %9160 = vmatpush.bf16.msra.mxu0 %v6311
        %9161 = vmatpush.bf16.msra.mxu0 %v6295
        %9162 = vmatpush.bf16.msra.mxu0 %v6279
        %9163 = vmatpush.bf16.msra.mxu0 %v6263
        %9164 = vmatpush.bf16.msra.mxu0 %v6247
        %9165 = vmatpush.bf16.msra.mxu0 %v6231
        %9166 = vmatmul.bf16.gmra.mxu0 %v2751
        %v9167 = vpop.f32.mrf.mxu0
        %v9168 = vadd.f32 %v9154, %v9167
        %v9169 = vpop.f32.mrf.mxu0
        %v9170 = vadd.f32 %v9156, %v9169
        %9171 = vdwg.mxu0
        %9172 = vmatpush.bf16.msra.mxu0 %v6471
        %9173 = vmatpush.bf16.msra.mxu0 %v6455
        %9174 = vmatpush.bf16.msra.mxu0 %v6439
        %9175 = vmatpush.bf16.msra.mxu0 %v6423
        %9176 = vmatpush.bf16.msra.mxu0 %v6407
        %9177 = vmatpush.bf16.msra.mxu0 %v6391
        %9178 = vmatpush.bf16.msra.mxu0 %v6375
        %9179 = vmatpush.bf16.msra.mxu0 %v6359
        %9180 = vmatmul.bf16.gmra.mxu0 %v2752
        %v9181 = vpop.f32.mrf.mxu0
        %v9182 = vadd.f32 %v9168, %v9181
        %v9183 = vpop.f32.mrf.mxu0
        %v9184 = vadd.f32 %v9170, %v9183
        %9185 = vdwg.mxu0
        %9186 = vmatpush.bf16.msra.mxu0 %v6599
        %9187 = vmatpush.bf16.msra.mxu0 %v6583
        %9188 = vmatpush.bf16.msra.mxu0 %v6567
        %9189 = vmatpush.bf16.msra.mxu0 %v6551
        %9190 = vmatpush.bf16.msra.mxu0 %v6535
        %9191 = vmatpush.bf16.msra.mxu0 %v6519
        %9192 = vmatpush.bf16.msra.mxu0 %v6503
        %9193 = vmatpush.bf16.msra.mxu0 %v6487
        %9194 = vmatmul.bf16.gmra.mxu0 %v2753
        %v9195 = vpop.f32.mrf.mxu0
        %v9196 = vadd.f32 %v9182, %v9195
        %v9197 = vpop.f32.mrf.mxu0
        %v9198 = vadd.f32 %v9184, %v9197
        %9199 = vdwg.mxu0
        %9200 = vmatpush.bf16.msra.mxu0 %v6727
        %9201 = vmatpush.bf16.msra.mxu0 %v6711
        %9202 = vmatpush.bf16.msra.mxu0 %v6695
        %9203 = vmatpush.bf16.msra.mxu0 %v6679
        %9204 = vmatpush.bf16.msra.mxu0 %v6663
        %9205 = vmatpush.bf16.msra.mxu0 %v6647
        %9206 = vmatpush.bf16.msra.mxu0 %v6631
        %9207 = vmatpush.bf16.msra.mxu0 %v6615
        %9208 = vmatmul.bf16.gmra.mxu0 %v2754
        %v9209 = vpop.f32.mrf.mxu0
        %v9210 = vadd.f32 %v9196, %v9209
        %v9211 = vpop.f32.mrf.mxu0
        %v9212 = vadd.f32 %v9198, %v9211
        %9213 = vdwg.mxu0
        %9214 = vmatpush.bf16.msra.mxu0 %v6855
        %9215 = vmatpush.bf16.msra.mxu0 %v6839
        %9216 = vmatpush.bf16.msra.mxu0 %v6823
        %9217 = vmatpush.bf16.msra.mxu0 %v6807
        %9218 = vmatpush.bf16.msra.mxu0 %v6791
        %9219 = vmatpush.bf16.msra.mxu0 %v6775
        %9220 = vmatpush.bf16.msra.mxu0 %v6759
        %9221 = vmatpush.bf16.msra.mxu0 %v6743
        %9222 = vmatmul.bf16.gmra.mxu0 %v2755
        %v9223 = vpop.f32.mrf.mxu0
        %v9224 = vadd.f32 %v9210, %v9223
        %v9225 = vpop.f32.mrf.mxu0
        %v9226 = vadd.f32 %v9212, %v9225
        %9227 = vdwg.mxu0
        %9228 = vmatpush.bf16.msra.mxu0 %v5960
        %9229 = vmatpush.bf16.msra.mxu0 %v5944
        %9230 = vmatpush.bf16.msra.mxu0 %v5928
        %9231 = vmatpush.bf16.msra.mxu0 %v5912
        %9232 = vmatpush.bf16.msra.mxu0 %v5896
        %9233 = vmatpush.bf16.msra.mxu0 %v5880
        %9234 = vmatpush.bf16.msra.mxu0 %v5864
        %9235 = vmatpush.bf16.msra.mxu0 %v5848
        %9236 = vmatmul.bf16.gmra.mxu0 %v2748
        %v9237 = vpop.f32.mrf.mxu0
        %v9238 = vadd.f32 %v2678, %v9237
        %v9239 = vpop.f32.mrf.mxu0
        %v9240 = vadd.f32 %v2680, %v9239
        %9241 = vdwg.mxu0
        %9242 = vmatpush.bf16.msra.mxu0 %v6088
        %9243 = vmatpush.bf16.msra.mxu0 %v6072
        %9244 = vmatpush.bf16.msra.mxu0 %v6056
        %9245 = vmatpush.bf16.msra.mxu0 %v6040
        %9246 = vmatpush.bf16.msra.mxu0 %v6024
        %9247 = vmatpush.bf16.msra.mxu0 %v6008
        %9248 = vmatpush.bf16.msra.mxu0 %v5992
        %9249 = vmatpush.bf16.msra.mxu0 %v5976
        %9250 = vmatmul.bf16.gmra.mxu0 %v2749
        %v9251 = vpop.f32.mrf.mxu0
        %v9252 = vadd.f32 %v9238, %v9251
        %v9253 = vpop.f32.mrf.mxu0
        %v9254 = vadd.f32 %v9240, %v9253
        %9255 = vdwg.mxu0
        %9256 = vmatpush.bf16.msra.mxu0 %v6216
        %9257 = vmatpush.bf16.msra.mxu0 %v6200
        %9258 = vmatpush.bf16.msra.mxu0 %v6184
        %9259 = vmatpush.bf16.msra.mxu0 %v6168
        %9260 = vmatpush.bf16.msra.mxu0 %v6152
        %9261 = vmatpush.bf16.msra.mxu0 %v6136
        %9262 = vmatpush.bf16.msra.mxu0 %v6120
        %9263 = vmatpush.bf16.msra.mxu0 %v6104
        %9264 = vmatmul.bf16.gmra.mxu0 %v2750
        %v9265 = vpop.f32.mrf.mxu0
        %v9266 = vadd.f32 %v9252, %v9265
        %v9267 = vpop.f32.mrf.mxu0
        %v9268 = vadd.f32 %v9254, %v9267
        %9269 = vdwg.mxu0
        %9270 = vmatpush.bf16.msra.mxu0 %v6344
        %9271 = vmatpush.bf16.msra.mxu0 %v6328
        %9272 = vmatpush.bf16.msra.mxu0 %v6312
        %9273 = vmatpush.bf16.msra.mxu0 %v6296
        %9274 = vmatpush.bf16.msra.mxu0 %v6280
        %9275 = vmatpush.bf16.msra.mxu0 %v6264
        %9276 = vmatpush.bf16.msra.mxu0 %v6248
        %9277 = vmatpush.bf16.msra.mxu0 %v6232
        %9278 = vmatmul.bf16.gmra.mxu0 %v2751
        %v9279 = vpop.f32.mrf.mxu0
        %v9280 = vadd.f32 %v9266, %v9279
        %v9281 = vpop.f32.mrf.mxu0
        %v9282 = vadd.f32 %v9268, %v9281
        %9283 = vdwg.mxu0
        %9284 = vmatpush.bf16.msra.mxu0 %v6472
        %9285 = vmatpush.bf16.msra.mxu0 %v6456
        %9286 = vmatpush.bf16.msra.mxu0 %v6440
        %9287 = vmatpush.bf16.msra.mxu0 %v6424
        %9288 = vmatpush.bf16.msra.mxu0 %v6408
        %9289 = vmatpush.bf16.msra.mxu0 %v6392
        %9290 = vmatpush.bf16.msra.mxu0 %v6376
        %9291 = vmatpush.bf16.msra.mxu0 %v6360
        %9292 = vmatmul.bf16.gmra.mxu0 %v2752
        %v9293 = vpop.f32.mrf.mxu0
        %v9294 = vadd.f32 %v9280, %v9293
        %v9295 = vpop.f32.mrf.mxu0
        %v9296 = vadd.f32 %v9282, %v9295
        %9297 = vdwg.mxu0
        %9298 = vmatpush.bf16.msra.mxu0 %v6600
        %9299 = vmatpush.bf16.msra.mxu0 %v6584
        %9300 = vmatpush.bf16.msra.mxu0 %v6568
        %9301 = vmatpush.bf16.msra.mxu0 %v6552
        %9302 = vmatpush.bf16.msra.mxu0 %v6536
        %9303 = vmatpush.bf16.msra.mxu0 %v6520
        %9304 = vmatpush.bf16.msra.mxu0 %v6504
        %9305 = vmatpush.bf16.msra.mxu0 %v6488
        %9306 = vmatmul.bf16.gmra.mxu0 %v2753
        %v9307 = vpop.f32.mrf.mxu0
        %v9308 = vadd.f32 %v9294, %v9307
        %v9309 = vpop.f32.mrf.mxu0
        %v9310 = vadd.f32 %v9296, %v9309
        %9311 = vdwg.mxu0
        %9312 = vmatpush.bf16.msra.mxu0 %v6728
        %9313 = vmatpush.bf16.msra.mxu0 %v6712
        %9314 = vmatpush.bf16.msra.mxu0 %v6696
        %9315 = vmatpush.bf16.msra.mxu0 %v6680
        %9316 = vmatpush.bf16.msra.mxu0 %v6664
        %9317 = vmatpush.bf16.msra.mxu0 %v6648
        %9318 = vmatpush.bf16.msra.mxu0 %v6632
        %9319 = vmatpush.bf16.msra.mxu0 %v6616
        %9320 = vmatmul.bf16.gmra.mxu0 %v2754
        %v9321 = vpop.f32.mrf.mxu0
        %v9322 = vadd.f32 %v9308, %v9321
        %v9323 = vpop.f32.mrf.mxu0
        %v9324 = vadd.f32 %v9310, %v9323
        %9325 = vdwg.mxu0
        %9326 = vmatpush.bf16.msra.mxu0 %v6856
        %9327 = vmatpush.bf16.msra.mxu0 %v6840
        %9328 = vmatpush.bf16.msra.mxu0 %v6824
        %9329 = vmatpush.bf16.msra.mxu0 %v6808
        %9330 = vmatpush.bf16.msra.mxu0 %v6792
        %9331 = vmatpush.bf16.msra.mxu0 %v6776
        %9332 = vmatpush.bf16.msra.mxu0 %v6760
        %9333 = vmatpush.bf16.msra.mxu0 %v6744
        %9334 = vmatmul.bf16.gmra.mxu0 %v2755
        %v9335 = vpop.f32.mrf.mxu0
        %v9336 = vadd.f32 %v9322, %v9335
        %v9337 = vpop.f32.mrf.mxu0
        %v9338 = vadd.f32 %v9324, %v9337
        %9339 = vdwg.mxu0
        %9340 = vmatpush.bf16.msra.mxu0 %v5961
        %9341 = vmatpush.bf16.msra.mxu0 %v5945
        %9342 = vmatpush.bf16.msra.mxu0 %v5929
        %9343 = vmatpush.bf16.msra.mxu0 %v5913
        %9344 = vmatpush.bf16.msra.mxu0 %v5897
        %9345 = vmatpush.bf16.msra.mxu0 %v5881
        %9346 = vmatpush.bf16.msra.mxu0 %v5865
        %9347 = vmatpush.bf16.msra.mxu0 %v5849
        %9348 = vmatmul.bf16.gmra.mxu0 %v2748
        %v9349 = vpop.f32.mrf.mxu0
        %v9350 = vadd.f32 %v2692, %v9349
        %v9351 = vpop.f32.mrf.mxu0
        %v9352 = vadd.f32 %v2694, %v9351
        %9353 = vdwg.mxu0
        %9354 = vmatpush.bf16.msra.mxu0 %v6089
        %9355 = vmatpush.bf16.msra.mxu0 %v6073
        %9356 = vmatpush.bf16.msra.mxu0 %v6057
        %9357 = vmatpush.bf16.msra.mxu0 %v6041
        %9358 = vmatpush.bf16.msra.mxu0 %v6025
        %9359 = vmatpush.bf16.msra.mxu0 %v6009
        %9360 = vmatpush.bf16.msra.mxu0 %v5993
        %9361 = vmatpush.bf16.msra.mxu0 %v5977
        %9362 = vmatmul.bf16.gmra.mxu0 %v2749
        %v9363 = vpop.f32.mrf.mxu0
        %v9364 = vadd.f32 %v9350, %v9363
        %v9365 = vpop.f32.mrf.mxu0
        %v9366 = vadd.f32 %v9352, %v9365
        %9367 = vdwg.mxu0
        %9368 = vmatpush.bf16.msra.mxu0 %v6217
        %9369 = vmatpush.bf16.msra.mxu0 %v6201
        %9370 = vmatpush.bf16.msra.mxu0 %v6185
        %9371 = vmatpush.bf16.msra.mxu0 %v6169
        %9372 = vmatpush.bf16.msra.mxu0 %v6153
        %9373 = vmatpush.bf16.msra.mxu0 %v6137
        %9374 = vmatpush.bf16.msra.mxu0 %v6121
        %9375 = vmatpush.bf16.msra.mxu0 %v6105
        %9376 = vmatmul.bf16.gmra.mxu0 %v2750
        %v9377 = vpop.f32.mrf.mxu0
        %v9378 = vadd.f32 %v9364, %v9377
        %v9379 = vpop.f32.mrf.mxu0
        %v9380 = vadd.f32 %v9366, %v9379
        %9381 = vdwg.mxu0
        %9382 = vmatpush.bf16.msra.mxu0 %v6345
        %9383 = vmatpush.bf16.msra.mxu0 %v6329
        %9384 = vmatpush.bf16.msra.mxu0 %v6313
        %9385 = vmatpush.bf16.msra.mxu0 %v6297
        %9386 = vmatpush.bf16.msra.mxu0 %v6281
        %9387 = vmatpush.bf16.msra.mxu0 %v6265
        %9388 = vmatpush.bf16.msra.mxu0 %v6249
        %9389 = vmatpush.bf16.msra.mxu0 %v6233
        %9390 = vmatmul.bf16.gmra.mxu0 %v2751
        %v9391 = vpop.f32.mrf.mxu0
        %v9392 = vadd.f32 %v9378, %v9391
        %v9393 = vpop.f32.mrf.mxu0
        %v9394 = vadd.f32 %v9380, %v9393
        %9395 = vdwg.mxu0
        %9396 = vmatpush.bf16.msra.mxu0 %v6473
        %9397 = vmatpush.bf16.msra.mxu0 %v6457
        %9398 = vmatpush.bf16.msra.mxu0 %v6441
        %9399 = vmatpush.bf16.msra.mxu0 %v6425
        %9400 = vmatpush.bf16.msra.mxu0 %v6409
        %9401 = vmatpush.bf16.msra.mxu0 %v6393
        %9402 = vmatpush.bf16.msra.mxu0 %v6377
        %9403 = vmatpush.bf16.msra.mxu0 %v6361
        %9404 = vmatmul.bf16.gmra.mxu0 %v2752
        %v9405 = vpop.f32.mrf.mxu0
        %v9406 = vadd.f32 %v9392, %v9405
        %v9407 = vpop.f32.mrf.mxu0
        %v9408 = vadd.f32 %v9394, %v9407
        %9409 = vdwg.mxu0
        %9410 = vmatpush.bf16.msra.mxu0 %v6601
        %9411 = vmatpush.bf16.msra.mxu0 %v6585
        %9412 = vmatpush.bf16.msra.mxu0 %v6569
        %9413 = vmatpush.bf16.msra.mxu0 %v6553
        %9414 = vmatpush.bf16.msra.mxu0 %v6537
        %9415 = vmatpush.bf16.msra.mxu0 %v6521
        %9416 = vmatpush.bf16.msra.mxu0 %v6505
        %9417 = vmatpush.bf16.msra.mxu0 %v6489
        %9418 = vmatmul.bf16.gmra.mxu0 %v2753
        %v9419 = vpop.f32.mrf.mxu0
        %v9420 = vadd.f32 %v9406, %v9419
        %v9421 = vpop.f32.mrf.mxu0
        %v9422 = vadd.f32 %v9408, %v9421
        %9423 = vdwg.mxu0
        %9424 = vmatpush.bf16.msra.mxu0 %v6729
        %9425 = vmatpush.bf16.msra.mxu0 %v6713
        %9426 = vmatpush.bf16.msra.mxu0 %v6697
        %9427 = vmatpush.bf16.msra.mxu0 %v6681
        %9428 = vmatpush.bf16.msra.mxu0 %v6665
        %9429 = vmatpush.bf16.msra.mxu0 %v6649
        %9430 = vmatpush.bf16.msra.mxu0 %v6633
        %9431 = vmatpush.bf16.msra.mxu0 %v6617
        %9432 = vmatmul.bf16.gmra.mxu0 %v2754
        %v9433 = vpop.f32.mrf.mxu0
        %v9434 = vadd.f32 %v9420, %v9433
        %v9435 = vpop.f32.mrf.mxu0
        %v9436 = vadd.f32 %v9422, %v9435
        %9437 = vdwg.mxu0
        %9438 = vmatpush.bf16.msra.mxu0 %v6857
        %9439 = vmatpush.bf16.msra.mxu0 %v6841
        %9440 = vmatpush.bf16.msra.mxu0 %v6825
        %9441 = vmatpush.bf16.msra.mxu0 %v6809
        %9442 = vmatpush.bf16.msra.mxu0 %v6793
        %9443 = vmatpush.bf16.msra.mxu0 %v6777
        %9444 = vmatpush.bf16.msra.mxu0 %v6761
        %9445 = vmatpush.bf16.msra.mxu0 %v6745
        %9446 = vmatmul.bf16.gmra.mxu0 %v2755
        %v9447 = vpop.f32.mrf.mxu0
        %v9448 = vadd.f32 %v9434, %v9447
        %v9449 = vpop.f32.mrf.mxu0
        %v9450 = vadd.f32 %v9436, %v9449
        %9451 = vdwg.mxu0
        %9452 = vmatpush.bf16.msra.mxu0 %v5962
        %9453 = vmatpush.bf16.msra.mxu0 %v5946
        %9454 = vmatpush.bf16.msra.mxu0 %v5930
        %9455 = vmatpush.bf16.msra.mxu0 %v5914
        %9456 = vmatpush.bf16.msra.mxu0 %v5898
        %9457 = vmatpush.bf16.msra.mxu0 %v5882
        %9458 = vmatpush.bf16.msra.mxu0 %v5866
        %9459 = vmatpush.bf16.msra.mxu0 %v5850
        %9460 = vmatmul.bf16.gmra.mxu0 %v2748
        %v9461 = vpop.f32.mrf.mxu0
        %v9462 = vadd.f32 %v2706, %v9461
        %v9463 = vpop.f32.mrf.mxu0
        %v9464 = vadd.f32 %v2708, %v9463
        %9465 = vdwg.mxu0
        %9466 = vmatpush.bf16.msra.mxu0 %v6090
        %9467 = vmatpush.bf16.msra.mxu0 %v6074
        %9468 = vmatpush.bf16.msra.mxu0 %v6058
        %9469 = vmatpush.bf16.msra.mxu0 %v6042
        %9470 = vmatpush.bf16.msra.mxu0 %v6026
        %9471 = vmatpush.bf16.msra.mxu0 %v6010
        %9472 = vmatpush.bf16.msra.mxu0 %v5994
        %9473 = vmatpush.bf16.msra.mxu0 %v5978
        %9474 = vmatmul.bf16.gmra.mxu0 %v2749
        %v9475 = vpop.f32.mrf.mxu0
        %v9476 = vadd.f32 %v9462, %v9475
        %v9477 = vpop.f32.mrf.mxu0
        %v9478 = vadd.f32 %v9464, %v9477
        %9479 = vdwg.mxu0
        %9480 = vmatpush.bf16.msra.mxu0 %v6218
        %9481 = vmatpush.bf16.msra.mxu0 %v6202
        %9482 = vmatpush.bf16.msra.mxu0 %v6186
        %9483 = vmatpush.bf16.msra.mxu0 %v6170
        %9484 = vmatpush.bf16.msra.mxu0 %v6154
        %9485 = vmatpush.bf16.msra.mxu0 %v6138
        %9486 = vmatpush.bf16.msra.mxu0 %v6122
        %9487 = vmatpush.bf16.msra.mxu0 %v6106
        %9488 = vmatmul.bf16.gmra.mxu0 %v2750
        %v9489 = vpop.f32.mrf.mxu0
        %v9490 = vadd.f32 %v9476, %v9489
        %v9491 = vpop.f32.mrf.mxu0
        %v9492 = vadd.f32 %v9478, %v9491
        %9493 = vdwg.mxu0
        %9494 = vmatpush.bf16.msra.mxu0 %v6346
        %9495 = vmatpush.bf16.msra.mxu0 %v6330
        %9496 = vmatpush.bf16.msra.mxu0 %v6314
        %9497 = vmatpush.bf16.msra.mxu0 %v6298
        %9498 = vmatpush.bf16.msra.mxu0 %v6282
        %9499 = vmatpush.bf16.msra.mxu0 %v6266
        %9500 = vmatpush.bf16.msra.mxu0 %v6250
        %9501 = vmatpush.bf16.msra.mxu0 %v6234
        %9502 = vmatmul.bf16.gmra.mxu0 %v2751
        %v9503 = vpop.f32.mrf.mxu0
        %v9504 = vadd.f32 %v9490, %v9503
        %v9505 = vpop.f32.mrf.mxu0
        %v9506 = vadd.f32 %v9492, %v9505
        %9507 = vdwg.mxu0
        %9508 = vmatpush.bf16.msra.mxu0 %v6474
        %9509 = vmatpush.bf16.msra.mxu0 %v6458
        %9510 = vmatpush.bf16.msra.mxu0 %v6442
        %9511 = vmatpush.bf16.msra.mxu0 %v6426
        %9512 = vmatpush.bf16.msra.mxu0 %v6410
        %9513 = vmatpush.bf16.msra.mxu0 %v6394
        %9514 = vmatpush.bf16.msra.mxu0 %v6378
        %9515 = vmatpush.bf16.msra.mxu0 %v6362
        %9516 = vmatmul.bf16.gmra.mxu0 %v2752
        %v9517 = vpop.f32.mrf.mxu0
        %v9518 = vadd.f32 %v9504, %v9517
        %v9519 = vpop.f32.mrf.mxu0
        %v9520 = vadd.f32 %v9506, %v9519
        %9521 = vdwg.mxu0
        %9522 = vmatpush.bf16.msra.mxu0 %v6602
        %9523 = vmatpush.bf16.msra.mxu0 %v6586
        %9524 = vmatpush.bf16.msra.mxu0 %v6570
        %9525 = vmatpush.bf16.msra.mxu0 %v6554
        %9526 = vmatpush.bf16.msra.mxu0 %v6538
        %9527 = vmatpush.bf16.msra.mxu0 %v6522
        %9528 = vmatpush.bf16.msra.mxu0 %v6506
        %9529 = vmatpush.bf16.msra.mxu0 %v6490
        %9530 = vmatmul.bf16.gmra.mxu0 %v2753
        %v9531 = vpop.f32.mrf.mxu0
        %v9532 = vadd.f32 %v9518, %v9531
        %v9533 = vpop.f32.mrf.mxu0
        %v9534 = vadd.f32 %v9520, %v9533
        %9535 = vdwg.mxu0
        %9536 = vmatpush.bf16.msra.mxu0 %v6730
        %9537 = vmatpush.bf16.msra.mxu0 %v6714
        %9538 = vmatpush.bf16.msra.mxu0 %v6698
        %9539 = vmatpush.bf16.msra.mxu0 %v6682
        %9540 = vmatpush.bf16.msra.mxu0 %v6666
        %9541 = vmatpush.bf16.msra.mxu0 %v6650
        %9542 = vmatpush.bf16.msra.mxu0 %v6634
        %9543 = vmatpush.bf16.msra.mxu0 %v6618
        %9544 = vmatmul.bf16.gmra.mxu0 %v2754
        %v9545 = vpop.f32.mrf.mxu0
        %v9546 = vadd.f32 %v9532, %v9545
        %v9547 = vpop.f32.mrf.mxu0
        %v9548 = vadd.f32 %v9534, %v9547
        %9549 = vdwg.mxu0
        %9550 = vmatpush.bf16.msra.mxu0 %v6858
        %9551 = vmatpush.bf16.msra.mxu0 %v6842
        %9552 = vmatpush.bf16.msra.mxu0 %v6826
        %9553 = vmatpush.bf16.msra.mxu0 %v6810
        %9554 = vmatpush.bf16.msra.mxu0 %v6794
        %9555 = vmatpush.bf16.msra.mxu0 %v6778
        %9556 = vmatpush.bf16.msra.mxu0 %v6762
        %9557 = vmatpush.bf16.msra.mxu0 %v6746
        %9558 = vmatmul.bf16.gmra.mxu0 %v2755
        %v9559 = vpop.f32.mrf.mxu0
        %v9560 = vadd.f32 %v9546, %v9559
        %v9561 = vpop.f32.mrf.mxu0
        %v9562 = vadd.f32 %v9548, %v9561
        %9563 = vdwg.mxu0
        %9564 = vmatpush.bf16.msra.mxu0 %v5963
        %9565 = vmatpush.bf16.msra.mxu0 %v5947
        %9566 = vmatpush.bf16.msra.mxu0 %v5931
        %9567 = vmatpush.bf16.msra.mxu0 %v5915
        %9568 = vmatpush.bf16.msra.mxu0 %v5899
        %9569 = vmatpush.bf16.msra.mxu0 %v5883
        %9570 = vmatpush.bf16.msra.mxu0 %v5867
        %9571 = vmatpush.bf16.msra.mxu0 %v5851
        %9572 = vmatmul.bf16.gmra.mxu0 %v2748
        %v9573 = vpop.f32.mrf.mxu0
        %v9574 = vadd.f32 %v2720, %v9573
        %v9575 = vpop.f32.mrf.mxu0
        %v9576 = vadd.f32 %v2722, %v9575
        %9577 = vdwg.mxu0
        %9578 = vmatpush.bf16.msra.mxu0 %v6091
        %9579 = vmatpush.bf16.msra.mxu0 %v6075
        %9580 = vmatpush.bf16.msra.mxu0 %v6059
        %9581 = vmatpush.bf16.msra.mxu0 %v6043
        %9582 = vmatpush.bf16.msra.mxu0 %v6027
        %9583 = vmatpush.bf16.msra.mxu0 %v6011
        %9584 = vmatpush.bf16.msra.mxu0 %v5995
        %9585 = vmatpush.bf16.msra.mxu0 %v5979
        %9586 = vmatmul.bf16.gmra.mxu0 %v2749
        %v9587 = vpop.f32.mrf.mxu0
        %v9588 = vadd.f32 %v9574, %v9587
        %v9589 = vpop.f32.mrf.mxu0
        %v9590 = vadd.f32 %v9576, %v9589
        %9591 = vdwg.mxu0
        %9592 = vmatpush.bf16.msra.mxu0 %v6219
        %9593 = vmatpush.bf16.msra.mxu0 %v6203
        %9594 = vmatpush.bf16.msra.mxu0 %v6187
        %9595 = vmatpush.bf16.msra.mxu0 %v6171
        %9596 = vmatpush.bf16.msra.mxu0 %v6155
        %9597 = vmatpush.bf16.msra.mxu0 %v6139
        %9598 = vmatpush.bf16.msra.mxu0 %v6123
        %9599 = vmatpush.bf16.msra.mxu0 %v6107
        %9600 = vmatmul.bf16.gmra.mxu0 %v2750
        %v9601 = vpop.f32.mrf.mxu0
        %v9602 = vadd.f32 %v9588, %v9601
        %v9603 = vpop.f32.mrf.mxu0
        %v9604 = vadd.f32 %v9590, %v9603
        %9605 = vdwg.mxu0
        %9606 = vmatpush.bf16.msra.mxu0 %v6347
        %9607 = vmatpush.bf16.msra.mxu0 %v6331
        %9608 = vmatpush.bf16.msra.mxu0 %v6315
        %9609 = vmatpush.bf16.msra.mxu0 %v6299
        %9610 = vmatpush.bf16.msra.mxu0 %v6283
        %9611 = vmatpush.bf16.msra.mxu0 %v6267
        %9612 = vmatpush.bf16.msra.mxu0 %v6251
        %9613 = vmatpush.bf16.msra.mxu0 %v6235
        %9614 = vmatmul.bf16.gmra.mxu0 %v2751
        %v9615 = vpop.f32.mrf.mxu0
        %v9616 = vadd.f32 %v9602, %v9615
        %v9617 = vpop.f32.mrf.mxu0
        %v9618 = vadd.f32 %v9604, %v9617
        %9619 = vdwg.mxu0
        %9620 = vmatpush.bf16.msra.mxu0 %v6475
        %9621 = vmatpush.bf16.msra.mxu0 %v6459
        %9622 = vmatpush.bf16.msra.mxu0 %v6443
        %9623 = vmatpush.bf16.msra.mxu0 %v6427
        %9624 = vmatpush.bf16.msra.mxu0 %v6411
        %9625 = vmatpush.bf16.msra.mxu0 %v6395
        %9626 = vmatpush.bf16.msra.mxu0 %v6379
        %9627 = vmatpush.bf16.msra.mxu0 %v6363
        %9628 = vmatmul.bf16.gmra.mxu0 %v2752
        %v9629 = vpop.f32.mrf.mxu0
        %v9630 = vadd.f32 %v9616, %v9629
        %v9631 = vpop.f32.mrf.mxu0
        %v9632 = vadd.f32 %v9618, %v9631
        %9633 = vdwg.mxu0
        %9634 = vmatpush.bf16.msra.mxu0 %v6603
        %9635 = vmatpush.bf16.msra.mxu0 %v6587
        %9636 = vmatpush.bf16.msra.mxu0 %v6571
        %9637 = vmatpush.bf16.msra.mxu0 %v6555
        %9638 = vmatpush.bf16.msra.mxu0 %v6539
        %9639 = vmatpush.bf16.msra.mxu0 %v6523
        %9640 = vmatpush.bf16.msra.mxu0 %v6507
        %9641 = vmatpush.bf16.msra.mxu0 %v6491
        %9642 = vmatmul.bf16.gmra.mxu0 %v2753
        %v9643 = vpop.f32.mrf.mxu0
        %v9644 = vadd.f32 %v9630, %v9643
        %v9645 = vpop.f32.mrf.mxu0
        %v9646 = vadd.f32 %v9632, %v9645
        %9647 = vdwg.mxu0
        %9648 = vmatpush.bf16.msra.mxu0 %v6731
        %9649 = vmatpush.bf16.msra.mxu0 %v6715
        %9650 = vmatpush.bf16.msra.mxu0 %v6699
        %9651 = vmatpush.bf16.msra.mxu0 %v6683
        %9652 = vmatpush.bf16.msra.mxu0 %v6667
        %9653 = vmatpush.bf16.msra.mxu0 %v6651
        %9654 = vmatpush.bf16.msra.mxu0 %v6635
        %9655 = vmatpush.bf16.msra.mxu0 %v6619
        %9656 = vmatmul.bf16.gmra.mxu0 %v2754
        %v9657 = vpop.f32.mrf.mxu0
        %v9658 = vadd.f32 %v9644, %v9657
        %v9659 = vpop.f32.mrf.mxu0
        %v9660 = vadd.f32 %v9646, %v9659
        %9661 = vdwg.mxu0
        %9662 = vmatpush.bf16.msra.mxu0 %v6859
        %9663 = vmatpush.bf16.msra.mxu0 %v6843
        %9664 = vmatpush.bf16.msra.mxu0 %v6827
        %9665 = vmatpush.bf16.msra.mxu0 %v6811
        %9666 = vmatpush.bf16.msra.mxu0 %v6795
        %9667 = vmatpush.bf16.msra.mxu0 %v6779
        %9668 = vmatpush.bf16.msra.mxu0 %v6763
        %9669 = vmatpush.bf16.msra.mxu0 %v6747
        %9670 = vmatmul.bf16.gmra.mxu0 %v2755
        %v9671 = vpop.f32.mrf.mxu0
        %v9672 = vadd.f32 %v9658, %v9671
        %v9673 = vpop.f32.mrf.mxu0
        %v9674 = vadd.f32 %v9660, %v9673
        %9675 = vdwg.mxu0
        %v9676 = vld [vmem:[%s603] sm:$0xff]
        %v9677 = vld [vmem:[%s603 + $0x8] sm:$0xff]
        %v9680 = vperm.slane %v9676, 0
        %v9681 = vperm.slane %v9676, 1
        %v9682 = vperm.slane %v9676, 2
        %v9683 = vperm.slane %v9676, 3
        %v9684 = vperm.slane %v9676, 4
        %v9685 = vperm.slane %v9676, 5
        %v9686 = vperm.slane %v9676, 6
        %v9687 = vperm.slane %v9676, 7
        %v9688 = vperm.slane %v9677, 0
        %v9689 = vperm.slane %v9677, 1
        %v9690 = vperm.slane %v9677, 2
        %v9691 = vperm.slane %v9677, 3
        %v9692 = vperm.slane %v9677, 4
        %v9693 = vperm.slane %v9677, 5
        %v9694 = vperm.slane %v9677, 6
        %v9695 = vperm.slane %v9677, 7
        %v9712 = vadd.f32 %v7992, %v9680
        %v9713 = vadd.f32 %v8104, %v9681
        %v9714 = vadd.f32 %v8216, %v9682
        %v9715 = vadd.f32 %v8328, %v9683
        %v9716 = vadd.f32 %v8440, %v9684
        %v9717 = vadd.f32 %v8552, %v9685
        %v9718 = vadd.f32 %v8664, %v9686
        %v9719 = vadd.f32 %v8776, %v9687
        %v9720 = vadd.f32 %v8888, %v9688
        %v9721 = vadd.f32 %v9000, %v9689
        %v9722 = vadd.f32 %v9112, %v9690
        %v9723 = vadd.f32 %v9224, %v9691
        %v9724 = vadd.f32 %v9336, %v9692
        %v9725 = vadd.f32 %v9448, %v9693
        %v9726 = vadd.f32 %v9560, %v9694
        %v9727 = vadd.f32 %v9672, %v9695
        %v9728 = vadd.f32 %v7994, %v9680
        %v9729 = vadd.f32 %v8106, %v9681
        %v9730 = vadd.f32 %v8218, %v9682
        %v9731 = vadd.f32 %v8330, %v9683
        %v9732 = vadd.f32 %v8442, %v9684
        %v9733 = vadd.f32 %v8554, %v9685
        %v9734 = vadd.f32 %v8666, %v9686
        %v9735 = vadd.f32 %v8778, %v9687
        %v9736 = vadd.f32 %v8890, %v9688
        %v9737 = vadd.f32 %v9002, %v9689
        %v9738 = vadd.f32 %v9114, %v9690
        %v9739 = vadd.f32 %v9226, %v9691
        %v9740 = vadd.f32 %v9338, %v9692
        %v9741 = vadd.f32 %v9450, %v9693
        %v9742 = vadd.f32 %v9562, %v9694
        %v9743 = vadd.f32 %v9674, %v9695
        %v9744 = vld [vmem:[%s553] sm:$0xff]
        %v9745 = vld [vmem:[%s553 + $0x8] sm:$0xff]
        %v9746 = vld [vmem:[%s553 + $0x10] sm:$0xff]
        %v9747 = vld [vmem:[%s553 + $0x18] sm:$0xff]
        %v9748 = vld [vmem:[%s553 + $0x20] sm:$0xff]
        %v9749 = vld [vmem:[%s553 + $0x28] sm:$0xff]
        %v9750 = vld [vmem:[%s553 + $0x30] sm:$0xff]
        %v9751 = vld [vmem:[%s553 + $0x38] sm:$0xff]
        %v9752 = vld [vmem:[%s563] sm:$0xff]
        %v9753 = vld [vmem:[%s563 + $0x8] sm:$0xff]
        %v9754 = vld [vmem:[%s563 + $0x10] sm:$0xff]
        %v9755 = vld [vmem:[%s563 + $0x18] sm:$0xff]
        %v9756 = vld [vmem:[%s563 + $0x20] sm:$0xff]
        %v9757 = vld [vmem:[%s563 + $0x28] sm:$0xff]
        %v9758 = vld [vmem:[%s563 + $0x30] sm:$0xff]
        %v9759 = vld [vmem:[%s563 + $0x38] sm:$0xff]
        %v9760 = vld [vmem:[%s573] sm:$0xff]
        %v9761 = vld [vmem:[%s573 + $0x8] sm:$0xff]
        %v9762 = vld [vmem:[%s573 + $0x10] sm:$0xff]
        %v9763 = vld [vmem:[%s573 + $0x18] sm:$0xff]
        %v9764 = vld [vmem:[%s573 + $0x20] sm:$0xff]
        %v9765 = vld [vmem:[%s573 + $0x28] sm:$0xff]
        %v9766 = vld [vmem:[%s573 + $0x30] sm:$0xff]
        %v9767 = vld [vmem:[%s573 + $0x38] sm:$0xff]
        %v9768 = vld [vmem:[%s5] sm:$0xff]
        %v9769 = vld [vmem:[%s5 + $0x8] sm:$0xff]
        %v9770 = vadd.f32 %v9716, %v9752
        %v9771 = vadd.f32 %v9717, %v9753
        %v9772 = vadd.f32 %v9718, %v9754
        %v9773 = vadd.f32 %v9719, %v9755
        %v9774 = vadd.f32 %v9732, %v9756
        %v9775 = vadd.f32 %v9733, %v9757
        %v9776 = vadd.f32 %v9734, %v9758
        %v9777 = vadd.f32 %v9735, %v9759
        %v9778 = vmax.f32 %v9770, %v9712
        %v9779 = vmax.f32 %v9771, %v9713
        %v9780 = vmax.f32 %v9772, %v9714
        %v9781 = vmax.f32 %v9773, %v9715
        %v9782 = vmax.f32 %v9774, %v9728
        %v9783 = vmax.f32 %v9775, %v9729
        %v9784 = vmax.f32 %v9776, %v9730
        %v9785 = vmax.f32 %v9777, %v9731
        %v9786 = vsub.f32 %v9712, %v9778
        %v9787 = vsub.f32 %v9713, %v9779
        %v9788 = vsub.f32 %v9714, %v9780
        %v9789 = vsub.f32 %v9715, %v9781
        %v9790 = vsub.f32 %v9728, %v9782
        %v9791 = vsub.f32 %v9729, %v9783
        %v9792 = vsub.f32 %v9730, %v9784
        %v9793 = vsub.f32 %v9731, %v9785
        %v9794 = vmul.f32 %v9786, 1.442695
        %v9795 = vpow.pop %v9794
        %v9796 = vmul.f32 %v9787, 1.442695
        %v9797 = vpow.pop %v9796
        %v9798 = vmul.f32 %v9788, 1.442695
        %v9799 = vpow.pop %v9798
        %v9800 = vmul.f32 %v9789, 1.442695
        %v9801 = vpow.pop %v9800
        %v9802 = vmul.f32 %v9790, 1.442695
        %v9803 = vpow.pop %v9802
        %v9804 = vmul.f32 %v9791, 1.442695
        %v9805 = vpow.pop %v9804
        %v9806 = vmul.f32 %v9792, 1.442695
        %v9807 = vpow.pop %v9806
        %v9808 = vmul.f32 %v9793, 1.442695
        %v9809 = vpow.pop %v9808
        %v9810 = vsub.f32 %v9770, %v9778
        %v9811 = vsub.f32 %v9771, %v9779
        %v9812 = vsub.f32 %v9772, %v9780
        %v9813 = vsub.f32 %v9773, %v9781
        %v9814 = vsub.f32 %v9774, %v9782
        %v9815 = vsub.f32 %v9775, %v9783
        %v9816 = vsub.f32 %v9776, %v9784
        %v9817 = vsub.f32 %v9777, %v9785
        %v9818 = vmul.f32 %v9810, 1.442695
        %v9819 = vpow.pop %v9818
        %v9820 = vmul.f32 %v9811, 1.442695
        %v9821 = vpow.pop %v9820
        %v9822 = vmul.f32 %v9812, 1.442695
        %v9823 = vpow.pop %v9822
        %v9824 = vmul.f32 %v9813, 1.442695
        %v9825 = vpow.pop %v9824
        %v9826 = vmul.f32 %v9814, 1.442695
        %v9827 = vpow.pop %v9826
        %v9828 = vmul.f32 %v9815, 1.442695
        %v9829 = vpow.pop %v9828
        %v9830 = vmul.f32 %v9816, 1.442695
        %v9831 = vpow.pop %v9830
        %v9832 = vmul.f32 %v9817, 1.442695
        %v9833 = vpow.pop %v9832
        %v9834 = vxor.u32 %v9720, 2147483648
        %v9835 = vxor.u32 %v9721, 2147483648
        %v9836 = vxor.u32 %v9722, 2147483648
        %v9837 = vxor.u32 %v9723, 2147483648
        %v9838 = vxor.u32 %v9736, 2147483648
        %v9839 = vxor.u32 %v9737, 2147483648
        %v9840 = vxor.u32 %v9738, 2147483648
        %v9841 = vxor.u32 %v9739, 2147483648
        %v9842 = vmul.f32 %v9834, 1.442695
        %v9843 = vpow.pop %v9842
        %v9844 = vmul.f32 %v9835, 1.442695
        %v9845 = vpow.pop %v9844
        %v9846 = vmul.f32 %v9836, 1.442695
        %v9847 = vpow.pop %v9846
        %v9848 = vmul.f32 %v9837, 1.442695
        %v9849 = vpow.pop %v9848
        %v9850 = vmul.f32 %v9838, 1.442695
        %v9851 = vpow.pop %v9850
        %v9852 = vmul.f32 %v9839, 1.442695
        %v9853 = vpow.pop %v9852
        %v9854 = vmul.f32 %v9840, 1.442695
        %v9855 = vpow.pop %v9854
        %v9856 = vmul.f32 %v9841, 1.442695
        %v9857 = vpow.pop %v9856
        %v9858 = vadd.f32 %v9843, 1.0
        %v9859 = vadd.f32 %v9845, 1.0
        %v9860 = vadd.f32 %v9847, 1.0
        %v9861 = vadd.f32 %v9849, 1.0
        %v9862 = vadd.f32 %v9851, 1.0
        %v9863 = vadd.f32 %v9853, 1.0
        %v9864 = vadd.f32 %v9855, 1.0
        %v9865 = vadd.f32 %v9857, 1.0
        %v9866 = vrcp.pop %v9858
        %v9867 = vmul.f32 %v9858, %v9866
        %v9868 = vsub.f32 1.0, %v9867
        %v9869 = vmul.f32 %v9866, %v9868
        %v9870 = vadd.f32 %v9866, %v9869
        %vm9871 = vweird.f32 %v9858
        %vm9872 = vweird.f32 %v9866
        %vm9873 = vmor %vm9871, %vm9872
        %v9874 = vsel %vm9873, %v9866, %v9870
        %v9875 = vand.u32 2147483647, %v9858
        %vm9876 = vcmp.eq.f32.partialorder %v9875, 8.507059e+37
        %v9877 = vand.u32 %v9858, 2147483648
        %v9878 = vor.u32 1.1754944e-38, %v9877
        %v9879 = vsel %vm9876, %v9878, %v9874
        %v9880 = vmul.f32 1.0, %v9879
        %v9881 = vrcp.pop %v9859
        %v9882 = vmul.f32 %v9859, %v9881
        %v9883 = vsub.f32 1.0, %v9882
        %v9884 = vmul.f32 %v9881, %v9883
        %v9885 = vadd.f32 %v9881, %v9884
        %vm9886 = vweird.f32 %v9859
        %vm9887 = vweird.f32 %v9881
        %vm9888 = vmor %vm9886, %vm9887
        %v9889 = vsel %vm9888, %v9881, %v9885
        %v9890 = vand.u32 2147483647, %v9859
        %vm9891 = vcmp.eq.f32.partialorder %v9890, 8.507059e+37
        %v9892 = vand.u32 %v9859, 2147483648
        %v9893 = vor.u32 1.1754944e-38, %v9892
        %v9894 = vsel %vm9891, %v9893, %v9889
        %v9895 = vmul.f32 1.0, %v9894
        %v9896 = vrcp.pop %v9860
        %v9897 = vmul.f32 %v9860, %v9896
        %v9898 = vsub.f32 1.0, %v9897
        %v9899 = vmul.f32 %v9896, %v9898
        %v9900 = vadd.f32 %v9896, %v9899
        %vm9901 = vweird.f32 %v9860
        %vm9902 = vweird.f32 %v9896
        %vm9903 = vmor %vm9901, %vm9902
        %v9904 = vsel %vm9903, %v9896, %v9900
        %v9905 = vand.u32 2147483647, %v9860
        %vm9906 = vcmp.eq.f32.partialorder %v9905, 8.507059e+37
        %v9907 = vand.u32 %v9860, 2147483648
        %v9908 = vor.u32 1.1754944e-38, %v9907
        %v9909 = vsel %vm9906, %v9908, %v9904
        %v9910 = vmul.f32 1.0, %v9909
        %v9911 = vrcp.pop %v9861
        %v9912 = vmul.f32 %v9861, %v9911
        %v9913 = vsub.f32 1.0, %v9912
        %v9914 = vmul.f32 %v9911, %v9913
        %v9915 = vadd.f32 %v9911, %v9914
        %vm9916 = vweird.f32 %v9861
        %vm9917 = vweird.f32 %v9911
        %vm9918 = vmor %vm9916, %vm9917
        %v9919 = vsel %vm9918, %v9911, %v9915
        %v9920 = vand.u32 2147483647, %v9861
        %vm9921 = vcmp.eq.f32.partialorder %v9920, 8.507059e+37
        %v9922 = vand.u32 %v9861, 2147483648
        %v9923 = vor.u32 1.1754944e-38, %v9922
        %v9924 = vsel %vm9921, %v9923, %v9919
        %v9925 = vmul.f32 1.0, %v9924
        %v9926 = vrcp.pop %v9862
        %v9927 = vmul.f32 %v9862, %v9926
        %v9928 = vsub.f32 1.0, %v9927
        %v9929 = vmul.f32 %v9926, %v9928
        %v9930 = vadd.f32 %v9926, %v9929
        %vm9931 = vweird.f32 %v9862
        %vm9932 = vweird.f32 %v9926
        %vm9933 = vmor %vm9931, %vm9932
        %v9934 = vsel %vm9933, %v9926, %v9930
        %v9935 = vand.u32 2147483647, %v9862
        %vm9936 = vcmp.eq.f32.partialorder %v9935, 8.507059e+37
        %v9937 = vand.u32 %v9862, 2147483648
        %v9938 = vor.u32 1.1754944e-38, %v9937
        %v9939 = vsel %vm9936, %v9938, %v9934
        %v9940 = vmul.f32 1.0, %v9939
        %v9941 = vrcp.pop %v9863
        %v9942 = vmul.f32 %v9863, %v9941
        %v9943 = vsub.f32 1.0, %v9942
        %v9944 = vmul.f32 %v9941, %v9943
        %v9945 = vadd.f32 %v9941, %v9944
        %vm9946 = vweird.f32 %v9863
        %vm9947 = vweird.f32 %v9941
        %vm9948 = vmor %vm9946, %vm9947
        %v9949 = vsel %vm9948, %v9941, %v9945
        %v9950 = vand.u32 2147483647, %v9863
        %vm9951 = vcmp.eq.f32.partialorder %v9950, 8.507059e+37
        %v9952 = vand.u32 %v9863, 2147483648
        %v9953 = vor.u32 1.1754944e-38, %v9952
        %v9954 = vsel %vm9951, %v9953, %v9949
        %v9955 = vmul.f32 1.0, %v9954
        %v9956 = vrcp.pop %v9864
        %v9957 = vmul.f32 %v9864, %v9956
        %v9958 = vsub.f32 1.0, %v9957
        %v9959 = vmul.f32 %v9956, %v9958
        %v9960 = vadd.f32 %v9956, %v9959
        %vm9961 = vweird.f32 %v9864
        %vm9962 = vweird.f32 %v9956
        %vm9963 = vmor %vm9961, %vm9962
        %v9964 = vsel %vm9963, %v9956, %v9960
        %v9965 = vand.u32 2147483647, %v9864
        %vm9966 = vcmp.eq.f32.partialorder %v9965, 8.507059e+37
        %v9967 = vand.u32 %v9864, 2147483648
        %v9968 = vor.u32 1.1754944e-38, %v9967
        %v9969 = vsel %vm9966, %v9968, %v9964
        %v9970 = vmul.f32 1.0, %v9969
        %v9971 = vrcp.pop %v9865
        %v9972 = vmul.f32 %v9865, %v9971
        %v9973 = vsub.f32 1.0, %v9972
        %v9974 = vmul.f32 %v9971, %v9973
        %v9975 = vadd.f32 %v9971, %v9974
        %vm9976 = vweird.f32 %v9865
        %vm9977 = vweird.f32 %v9971
        %vm9978 = vmor %vm9976, %vm9977
        %v9979 = vsel %vm9978, %v9971, %v9975
        %v9980 = vand.u32 2147483647, %v9865
        %vm9981 = vcmp.eq.f32.partialorder %v9980, 8.507059e+37
        %v9982 = vand.u32 %v9865, 2147483648
        %v9983 = vor.u32 1.1754944e-38, %v9982
        %v9984 = vsel %vm9981, %v9983, %v9979
        %v9985 = vmul.f32 1.0, %v9984
        %v9986 = vmul.f32 %v9819, %v9760
        %v9987 = vmul.f32 %v9821, %v9761
        %v9988 = vmul.f32 %v9823, %v9762
        %v9989 = vmul.f32 %v9825, %v9763
        %v9990 = vmul.f32 %v9827, %v9764
        %v9991 = vmul.f32 %v9829, %v9765
        %v9992 = vmul.f32 %v9831, %v9766
        %v9993 = vmul.f32 %v9833, %v9767
        %v9994 = vadd.f32 %v9986, %v9795
        %v9995 = vadd.f32 %v9987, %v9797
        %v9996 = vadd.f32 %v9988, %v9799
        %v9997 = vadd.f32 %v9989, %v9801
        %v9998 = vadd.f32 %v9990, %v9803
        %v9999 = vadd.f32 %v9991, %v9805
        %v10000 = vadd.f32 %v9992, %v9807
        %v10001 = vadd.f32 %v9993, %v9809
        %v10002 = vtanh.pop %v9724
        %v10003 = vtanh.pop %v9725
        %v10004 = vtanh.pop %v9726
        %v10005 = vtanh.pop %v9727
        %v10006 = vtanh.pop %v9740
        %v10007 = vtanh.pop %v9741
        %v10008 = vtanh.pop %v9742
        %v10009 = vtanh.pop %v9743
        %v10010 = vmul.f32 %v9744, %v9819
        %v10011 = vmul.f32 %v9745, %v9821
        %v10012 = vmul.f32 %v9746, %v9823
        %v10013 = vmul.f32 %v9747, %v9825
        %v10014 = vmul.f32 %v9748, %v9827
        %v10015 = vmul.f32 %v9749, %v9829
        %v10016 = vmul.f32 %v9750, %v9831
        %v10017 = vmul.f32 %v9751, %v9833
        %v10018 = vmul.f32 %v10002, %v9795
        %v10019 = vmul.f32 %v10003, %v9797
        %v10020 = vmul.f32 %v10004, %v9799
        %v10021 = vmul.f32 %v10005, %v9801
        %v10022 = vmul.f32 %v10006, %v9803
        %v10023 = vmul.f32 %v10007, %v9805
        %v10024 = vmul.f32 %v10008, %v9807
        %v10025 = vmul.f32 %v10009, %v9809
        %v10026 = vadd.f32 %v10010, %v10018
        %v10027 = vadd.f32 %v10011, %v10019
        %v10028 = vadd.f32 %v10012, %v10020
        %v10029 = vadd.f32 %v10013, %v10021
        %v10030 = vadd.f32 %v10014, %v10022
        %v10031 = vadd.f32 %v10015, %v10023
        %v10032 = vadd.f32 %v10016, %v10024
        %v10033 = vadd.f32 %v10017, %v10025
        %10035 = vset.pattern.permute.xlu0 0
        %10036 = vperm.xlu0 %10035, %v9768
        %v10037 = vpop.permute.xlu0 %10036
        %10040 = vset.pattern.permute.xlu0 0
        %10041 = vperm.xlu0 %10040, %v9769
        %v10042 = vpop.permute.xlu0 %10041
        %v10044 = vmul.f32 %v10026, %v10037
        %v10045 = vmul.f32 %v10027, %v10037
        %v10046 = vmul.f32 %v10028, %v10037
        %v10047 = vmul.f32 %v10029, %v10037
        %v10048 = vmul.f32 %v10030, %v10042
        %v10049 = vmul.f32 %v10031, %v10042
        %v10050 = vmul.f32 %v10032, %v10042
        %v10051 = vmul.f32 %v10033, %v10042
        %v10052 = vsub.f32 1.0, %v9768
        %v10053 = vsub.f32 1.0, %v9769
        %10055 = vset.pattern.permute.xlu0 0
        %10056 = vperm.xlu0 %10055, %v10052
        %v10057 = vpop.permute.xlu0 %10056
        %10060 = vset.pattern.permute.xlu0 0
        %10061 = vperm.xlu0 %10060, %v10053
        %v10062 = vpop.permute.xlu0 %10061
        %v10064 = vmul.f32 %v10057, %v9744
        %v10065 = vmul.f32 %v10057, %v9745
        %v10066 = vmul.f32 %v10057, %v9746
        %v10067 = vmul.f32 %v10057, %v9747
        %v10068 = vmul.f32 %v10062, %v9748
        %v10069 = vmul.f32 %v10062, %v9749
        %v10070 = vmul.f32 %v10062, %v9750
        %v10071 = vmul.f32 %v10062, %v9751
        %v10072 = vadd.f32 %v10044, %v10064
        %v10073 = vadd.f32 %v10045, %v10065
        %v10074 = vadd.f32 %v10046, %v10066
        %v10075 = vadd.f32 %v10047, %v10067
        %v10076 = vadd.f32 %v10048, %v10068
        %v10077 = vadd.f32 %v10049, %v10069
        %v10078 = vadd.f32 %v10050, %v10070
        %v10079 = vadd.f32 %v10051, %v10071
        %v10080 = vrcp.pop %v9994
        %v10081 = vmul.f32 %v9994, %v10080
        %v10082 = vsub.f32 1.0, %v10081
        %v10083 = vmul.f32 %v10080, %v10082
        %v10084 = vadd.f32 %v10080, %v10083
        %vm10085 = vweird.f32 %v9994
        %vm10086 = vweird.f32 %v10080
        %vm10087 = vmor %vm10085, %vm10086
        %v10088 = vsel %vm10087, %v10080, %v10084
        %v10089 = vand.u32 2147483647, %v9994
        %vm10090 = vcmp.eq.f32.partialorder %v10089, 8.507059e+37
        %v10091 = vand.u32 %v9994, 2147483648
        %v10092 = vor.u32 1.1754944e-38, %v10091
        %v10093 = vsel %vm10090, %v10092, %v10088
        %v10094 = vmul.f32 %v10072, %v10093
        %v10095 = vrcp.pop %v9995
        %v10096 = vmul.f32 %v9995, %v10095
        %v10097 = vsub.f32 1.0, %v10096
        %v10098 = vmul.f32 %v10095, %v10097
        %v10099 = vadd.f32 %v10095, %v10098
        %vm10100 = vweird.f32 %v9995
        %vm10101 = vweird.f32 %v10095
        %vm10102 = vmor %vm10100, %vm10101
        %v10103 = vsel %vm10102, %v10095, %v10099
        %v10104 = vand.u32 2147483647, %v9995
        %vm10105 = vcmp.eq.f32.partialorder %v10104, 8.507059e+37
        %v10106 = vand.u32 %v9995, 2147483648
        %v10107 = vor.u32 1.1754944e-38, %v10106
        %v10108 = vsel %vm10105, %v10107, %v10103
        %v10109 = vmul.f32 %v10073, %v10108
        %v10110 = vrcp.pop %v9996
        %v10111 = vmul.f32 %v9996, %v10110
        %v10112 = vsub.f32 1.0, %v10111
        %v10113 = vmul.f32 %v10110, %v10112
        %v10114 = vadd.f32 %v10110, %v10113
        %vm10115 = vweird.f32 %v9996
        %vm10116 = vweird.f32 %v10110
        %vm10117 = vmor %vm10115, %vm10116
        %v10118 = vsel %vm10117, %v10110, %v10114
        %v10119 = vand.u32 2147483647, %v9996
        %vm10120 = vcmp.eq.f32.partialorder %v10119, 8.507059e+37
        %v10121 = vand.u32 %v9996, 2147483648
        %v10122 = vor.u32 1.1754944e-38, %v10121
        %v10123 = vsel %vm10120, %v10122, %v10118
        %v10124 = vmul.f32 %v10074, %v10123
        %v10125 = vrcp.pop %v9997
        %v10126 = vmul.f32 %v9997, %v10125
        %v10127 = vsub.f32 1.0, %v10126
        %v10128 = vmul.f32 %v10125, %v10127
        %v10129 = vadd.f32 %v10125, %v10128
        %vm10130 = vweird.f32 %v9997
        %vm10131 = vweird.f32 %v10125
        %vm10132 = vmor %vm10130, %vm10131
        %v10133 = vsel %vm10132, %v10125, %v10129
        %v10134 = vand.u32 2147483647, %v9997
        %vm10135 = vcmp.eq.f32.partialorder %v10134, 8.507059e+37
        %v10136 = vand.u32 %v9997, 2147483648
        %v10137 = vor.u32 1.1754944e-38, %v10136
        %v10138 = vsel %vm10135, %v10137, %v10133
        %v10139 = vmul.f32 %v10075, %v10138
        %v10140 = vrcp.pop %v9998
        %v10141 = vmul.f32 %v9998, %v10140
        %v10142 = vsub.f32 1.0, %v10141
        %v10143 = vmul.f32 %v10140, %v10142
        %v10144 = vadd.f32 %v10140, %v10143
        %vm10145 = vweird.f32 %v9998
        %vm10146 = vweird.f32 %v10140
        %vm10147 = vmor %vm10145, %vm10146
        %v10148 = vsel %vm10147, %v10140, %v10144
        %v10149 = vand.u32 2147483647, %v9998
        %vm10150 = vcmp.eq.f32.partialorder %v10149, 8.507059e+37
        %v10151 = vand.u32 %v9998, 2147483648
        %v10152 = vor.u32 1.1754944e-38, %v10151
        %v10153 = vsel %vm10150, %v10152, %v10148
        %v10154 = vmul.f32 %v10076, %v10153
        %v10155 = vrcp.pop %v9999
        %v10156 = vmul.f32 %v9999, %v10155
        %v10157 = vsub.f32 1.0, %v10156
        %v10158 = vmul.f32 %v10155, %v10157
        %v10159 = vadd.f32 %v10155, %v10158
        %vm10160 = vweird.f32 %v9999
        %vm10161 = vweird.f32 %v10155
        %vm10162 = vmor %vm10160, %vm10161
        %v10163 = vsel %vm10162, %v10155, %v10159
        %v10164 = vand.u32 2147483647, %v9999
        %vm10165 = vcmp.eq.f32.partialorder %v10164, 8.507059e+37
        %v10166 = vand.u32 %v9999, 2147483648
        %v10167 = vor.u32 1.1754944e-38, %v10166
        %v10168 = vsel %vm10165, %v10167, %v10163
        %v10169 = vmul.f32 %v10077, %v10168
        %v10170 = vrcp.pop %v10000
        %v10171 = vmul.f32 %v10000, %v10170
        %v10172 = vsub.f32 1.0, %v10171
        %v10173 = vmul.f32 %v10170, %v10172
        %v10174 = vadd.f32 %v10170, %v10173
        %vm10175 = vweird.f32 %v10000
        %vm10176 = vweird.f32 %v10170
        %vm10177 = vmor %vm10175, %vm10176
        %v10178 = vsel %vm10177, %v10170, %v10174
        %v10179 = vand.u32 2147483647, %v10000
        %vm10180 = vcmp.eq.f32.partialorder %v10179, 8.507059e+37
        %v10181 = vand.u32 %v10000, 2147483648
        %v10182 = vor.u32 1.1754944e-38, %v10181
        %v10183 = vsel %vm10180, %v10182, %v10178
        %v10184 = vmul.f32 %v10078, %v10183
        %v10185 = vrcp.pop %v10001
        %v10186 = vmul.f32 %v10001, %v10185
        %v10187 = vsub.f32 1.0, %v10186
        %v10188 = vmul.f32 %v10185, %v10187
        %v10189 = vadd.f32 %v10185, %v10188
        %vm10190 = vweird.f32 %v10001
        %vm10191 = vweird.f32 %v10185
        %vm10192 = vmor %vm10190, %vm10191
        %v10193 = vsel %vm10192, %v10185, %v10189
        %v10194 = vand.u32 2147483647, %v10001
        %vm10195 = vcmp.eq.f32.partialorder %v10194, 8.507059e+37
        %v10196 = vand.u32 %v10001, 2147483648
        %v10197 = vor.u32 1.1754944e-38, %v10196
        %v10198 = vsel %vm10195, %v10197, %v10193
        %v10199 = vmul.f32 %v10079, %v10198
        %v10200 = vmul.f32 %v9880, %v10094
        %v10201 = vmul.f32 %v9895, %v10109
        %v10202 = vmul.f32 %v9910, %v10124
        %v10203 = vmul.f32 %v9925, %v10139
        %v10204 = vmul.f32 %v9940, %v10154
        %v10205 = vmul.f32 %v9955, %v10169
        %v10206 = vmul.f32 %v9970, %v10184
        %v10207 = vmul.f32 %v9985, %v10199
        %10208 = vst [vmem:[%s663] sm:$0xff] %v10072
        %10209 = vst [vmem:[%s663 + $0x8] sm:$0xff] %v10073
        %10210 = vst [vmem:[%s663 + $0x10] sm:$0xff] %v10074
        %10211 = vst [vmem:[%s663 + $0x18] sm:$0xff] %v10075
        %10212 = vst [vmem:[%s663 + $0x20] sm:$0xff] %v10076
        %10213 = vst [vmem:[%s663 + $0x28] sm:$0xff] %v10077
        %10214 = vst [vmem:[%s663 + $0x30] sm:$0xff] %v10078
        %10215 = vst [vmem:[%s663 + $0x38] sm:$0xff] %v10079
        %10216 = vst [vmem:[%s670] sm:$0xff] %v9778
        %10217 = vst [vmem:[%s670 + $0x8] sm:$0xff] %v9779
        %10218 = vst [vmem:[%s670 + $0x10] sm:$0xff] %v9780
        %10219 = vst [vmem:[%s670 + $0x18] sm:$0xff] %v9781
        %10220 = vst [vmem:[%s670 + $0x20] sm:$0xff] %v9782
        %10221 = vst [vmem:[%s670 + $0x28] sm:$0xff] %v9783
        %10222 = vst [vmem:[%s670 + $0x30] sm:$0xff] %v9784
        %10223 = vst [vmem:[%s670 + $0x38] sm:$0xff] %v9785
        %10224 = vst [vmem:[%s677] sm:$0xff] %v10200
        %10225 = vst [vmem:[%s677 + $0x8] sm:$0xff] %v10201
        %10226 = vst [vmem:[%s677 + $0x10] sm:$0xff] %v10202
        %10227 = vst [vmem:[%s677 + $0x18] sm:$0xff] %v10203
        %10228 = vst [vmem:[%s677 + $0x20] sm:$0xff] %v10204
        %10229 = vst [vmem:[%s677 + $0x28] sm:$0xff] %v10205
        %10230 = vst [vmem:[%s677 + $0x30] sm:$0xff] %v10206
        %10231 = vst [vmem:[%s677 + $0x38] sm:$0xff] %v10207
        %10232 = vst [vmem:[%s684] sm:$0xff] %v9994
        %10233 = vst [vmem:[%s684 + $0x8] sm:$0xff] %v9995
        %10234 = vst [vmem:[%s684 + $0x10] sm:$0xff] %v9996
        %10235 = vst [vmem:[%s684 + $0x18] sm:$0xff] %v9997
        %10236 = vst [vmem:[%s684 + $0x20] sm:$0xff] %v9998
        %10237 = vst [vmem:[%s684 + $0x28] sm:$0xff] %v9999
        %10238 = vst [vmem:[%s684 + $0x30] sm:$0xff] %v10000
        %10239 = vst [vmem:[%s684 + $0x38] sm:$0xff] %v10001
        %s10240 = sand.u32 %s262, 1
        %s10241 = scalar_lea.sflag [#allocation4], %s10240
        %s10242 = sand.u32 %s262, 1
        %s10243 = smul.addr %s10242, 64
        %s10244 = scalar_lea.vmem [#allocation13], %s10243
        %s10245 = sand.u32 %s35, 1
        %s10246 = scalar_lea.sflag [#allocation15], %s10245
        %s10247 = sand.u32 %s288, 1
        %s10248 = smul.addr %s10247, 64
        %s10249 = scalar_lea.vmem [#allocation14], %s10248
        %s10250 = sand.u32 %s35, 1
        %s10251 = scalar_lea.sflag [#allocation15], %s10250
        %s10252 = sand.u32 %s314, 1
        %s10253 = smul.addr %s10252, 64
        %s10254 = scalar_lea.vmem [#allocation16], %s10253
        %s10255 = sand.u32 %s340, 1
        %s10256 = scalar_lea.sflag [#allocation18], %s10255
        %s10257 = sand.u32 %s340, 1
        %s10258 = smul.addr %s10257, 64
        %s10259 = scalar_lea.vmem [#allocation17], %s10258
        // Predicated region
        $region89: #{tpu_custom_call.1} parent=55 // pred_check
          %p10260 = pneg %p272
        $region90: #{tpu_custom_call.1} parent=55 // pred_check_branch
          %10262 = sbr.rel (%p10260) target = $region92
        $region91: #{tpu_custom_call.1} parent=55 // pred_region
          %s10263 = smul.u32 4, %s35
          %10265 = vsyncadd %s10241, 0
          %s10266 = smul.addr %s10263, 8
          %s10267 = scalar_lea.hbm %s9, %s10266
          %s10268 = sshll.u32 %s10244, 4
          %s10269 = int_to_ptr.vmem [resolvable:$true] %s10268
          %s10270 = sshll.u32 %s10267, 4
          %s10271 = int_to_ptr.hbm [resolvable:$true] %s10270
          %10276 = dma.vmem_to_hbm [thread:$0]  %s10269, 1024, %s10271, %s10241, 512, 1024, 32
        $region92: #{tpu_custom_call.1} parent=55 // pred_fallthru
          _
        // Predicated region
        $region93: #{tpu_custom_call.1} parent=55 // pred_check
          %p10277 = pneg %p298
        $region94: #{tpu_custom_call.1} parent=55 // pred_check_branch
          %10279 = sbr.rel (%p10277) target = $region96
        $region95: #{tpu_custom_call.1} parent=55 // pred_region
          %s10280 = smul.u32 4, %s35
          %10282 = vsyncadd %s10246, 0
          %s10283 = smul.addr %s10280, 8
          %s10284 = scalar_lea.hbm %s10, %s10283
          %s10285 = sshll.u32 %s10249, 4
          %s10286 = int_to_ptr.vmem [resolvable:$true] %s10285
          %s10287 = sshll.u32 %s10284, 4
          %s10288 = int_to_ptr.hbm [resolvable:$true] %s10287
          %10293 = dma.vmem_to_hbm [thread:$0]  %s10286, 1024, %s10288, %s10246, 512, 1024, 32
        $region96: #{tpu_custom_call.1} parent=55 // pred_fallthru
          _
        // Predicated region
        $region97: #{tpu_custom_call.1} parent=55 // pred_check
          %p10294 = pneg %p324
        $region98: #{tpu_custom_call.1} parent=55 // pred_check_branch
          %10296 = sbr.rel (%p10294) target = $region100
        $region99: #{tpu_custom_call.1} parent=55 // pred_region
          %s10297 = smul.u32 4, %s35
          %10299 = vsyncadd %s10251, 0
          %s10300 = smul.addr %s10297, 8
          %s10301 = scalar_lea.hbm %s11, %s10300
          %s10302 = sshll.u32 %s10254, 4
          %s10303 = int_to_ptr.vmem [resolvable:$true] %s10302
          %s10304 = sshll.u32 %s10301, 4
          %s10305 = int_to_ptr.hbm [resolvable:$true] %s10304
          %10310 = dma.vmem_to_hbm [thread:$0]  %s10303, 1024, %s10305, %s10251, 512, 1024, 32
        $region100: #{tpu_custom_call.1} parent=55 // pred_fallthru
          _
        // Predicated region
        $region101: #{tpu_custom_call.1} parent=55 // pred_check
          %p10311 = pneg %p350
        $region102: #{tpu_custom_call.1} parent=55 // pred_check_branch
          %10313 = sbr.rel (%p10311) target = $region104
        $region103: #{tpu_custom_call.1} parent=55 // pred_region
          %s10314 = smul.u32 4, %s35
          %10316 = vsyncadd %s10256, 0
          %s10317 = smul.addr %s10314, 8
          %s10318 = scalar_lea.hbm %s12, %s10317
          %s10319 = sshll.u32 %s10259, 4
          %s10320 = int_to_ptr.vmem [resolvable:$true] %s10319
          %s10321 = sshll.u32 %s10318, 4
          %s10322 = int_to_ptr.hbm [resolvable:$true] %s10321
          %10327 = dma.vmem_to_hbm [thread:$0]  %s10320, 1024, %s10322, %s10256, 512, 1024, 32
        $region104: #{tpu_custom_call.1} parent=55 // pred_fallthru
          _
      $region56: #{tpu_custom_call.1} parent=5 // pred_fallthru
        _
      %p10328 = scmp.le.s32.totalorder 2, %s30
      // Predicated region
      $region105: #{tpu_custom_call.1} parent=5 // pred_check
        %p10329 = pneg %p10328
      $region106: #{tpu_custom_call.1} parent=5 // pred_check_branch
        %10331 = sbr.rel (%p10329) target = $region108
      $region107: #{tpu_custom_call.1} parent=5 // pred_region
        %s10332 = ssub.s32 %s30, 2
        // Predicated region
        $region109: #{tpu_custom_call.1} parent=107 // pred_check
          %p10333 = pneg %p278
        $region110: #{tpu_custom_call.1} parent=107 // pred_check_branch
          %10335 = sbr.rel (%p10333) target = $region112
        $region111: #{tpu_custom_call.1} parent=107 // pred_region
          %s10336 = sand.u32 %s263, 1
          %s10337 = scalar_lea.sflag [#allocation4], %s10336
          %s10338 = sand.u32 %s263, 1
          %s10339 = smul.addr %s10338, 64
          %s10340 = scalar_lea.vmem [#allocation13], %s10339
          %10342 = dma.done %s10337, 1024
        $region112: #{tpu_custom_call.1} parent=107 // pred_fallthru
          _
        // Predicated region
        $region113: #{tpu_custom_call.1} parent=107 // pred_check
          %p10343 = pneg %p304
        $region114: #{tpu_custom_call.1} parent=107 // pred_check_branch
          %10345 = sbr.rel (%p10343) target = $region116
        $region115: #{tpu_custom_call.1} parent=107 // pred_region
          %s10346 = sand.u32 %s36, 1
          %s10347 = scalar_lea.sflag [#allocation15], %s10346
          %s10348 = sand.u32 %s289, 1
          %s10349 = smul.addr %s10348, 64
          %s10350 = scalar_lea.vmem [#allocation14], %s10349
          %10352 = dma.done %s10347, 1024
        $region116: #{tpu_custom_call.1} parent=107 // pred_fallthru
          _
        // Predicated region
        $region117: #{tpu_custom_call.1} parent=107 // pred_check
          %p10353 = pneg %p330
        $region118: #{tpu_custom_call.1} parent=107 // pred_check_branch
          %10355 = sbr.rel (%p10353) target = $region120
        $region119: #{tpu_custom_call.1} parent=107 // pred_region
          %s10356 = sand.u32 %s36, 1
          %s10357 = scalar_lea.sflag [#allocation15], %s10356
          %s10358 = sand.u32 %s315, 1
          %s10359 = smul.addr %s10358, 64
          %s10360 = scalar_lea.vmem [#allocation16], %s10359
          %10362 = dma.done %s10357, 1024
        $region120: #{tpu_custom_call.1} parent=107 // pred_fallthru
          _
        // Predicated region
        $region121: #{tpu_custom_call.1} parent=107 // pred_check
          %p10363 = pneg %p356
        $region122: #{tpu_custom_call.1} parent=107 // pred_check_branch
          %10365 = sbr.rel (%p10363) target = $region124
        $region123: #{tpu_custom_call.1} parent=107 // pred_region
          %s10366 = sand.u32 %s341, 1
          %s10367 = scalar_lea.sflag [#allocation18], %s10366
          %s10368 = sand.u32 %s341, 1
          %s10369 = smul.addr %s10368, 64
          %s10370 = scalar_lea.vmem [#allocation17], %s10369
          %10372 = dma.done %s10367, 1024
        $region124: #{tpu_custom_call.1} parent=107 // pred_fallthru
          _
      $region108: #{tpu_custom_call.1} parent=5 // pred_fallthru
        _
    $region6: #{tpu_custom_call.1} parent=1 // loop_footer
      %s34 = sadd.s32 1, %s30
    $region7: #{tpu_custom_call.1} parent=1 // loop_footer_branch
      %29 = sbr.rel target = $region3
    $region8: #{tpu_custom_call.1} parent=1 // loop_exit
      _
    %10373 = vsyncpa [#allocation3], 1
    %s10374 = scalar_lea.sflag [#allocation3], 1
    %10375 = vsyncpa %s10374, 1
    %10376 = vsyncpa [#allocation6], 1
    %10377 = vsyncpa [#allocation4], 1
    %s10378 = scalar_lea.sflag [#allocation4], 1
    %10379 = vsyncpa %s10378, 1
    %10380 = vsyncpa [#allocation15], 1
    %s10381 = scalar_lea.sflag [#allocation15], 1
    %10382 = vsyncpa %s10381, 1
    %10383 = vsyncpa [#allocation18], 1
    %s10384 = scalar_lea.sflag [#allocation18], 1
    %10385 = vsyncpa %s10384, 1

</llo_original>
